<compile_context>
chip_gen: v7x
topology: tpu7x:2x2x1
jax: 0.10.0
libtpu: 0.0.40
codegen_flags: <defaults>
</compile_context>

<pallas_src>
import functools

import jax
import jax.numpy as jnp
from jax import lax
from jax.experimental import pallas as pl
from jax.experimental.pallas import tpu as pltpu

KERNEL_SIZE = 3
STRIDE = 1
PADDING = 2
C_IN, C1, C2 = 3, 16, 32


def conv2d_size_out(size, kernel_size=KERNEL_SIZE, stride=STRIDE, padding=PADDING):
    return (padding * 2 + size - kernel_size + stride) // stride


# ------------------------------ fused kernel ------------------------------- #
def _fused_forward_kernel(h, w, outputs,
                          x_ref, bd1_ref, b1_ref, bd2_ref, b2_ref, wh_ref, bh_ref,
                          out_ref, y1p_ref):
    """One batch element per grid step; all intermediates stay in VMEM."""
    K = KERNEL_SIZE
    H1, W1 = conv2d_size_out(h), conv2d_size_out(w)
    H2, W2 = conv2d_size_out(H1), conv2d_size_out(W1)

    # ---- conv1 + bias + ReLU: 9 shifted-slice MXU matmuls, f32 accumulation ----
    x = x_ref[...]                                            # (h+2p, (w+2p)*C_IN) f32
    acc1 = jnp.zeros((H1, W1 * C1), jnp.float32)
    for ky in range(K):
        for kx in range(K):
            patch = x[ky:ky + H1, kx * C_IN:kx * C_IN + W1 * C_IN]   # (H1, W1*C_IN)
            acc1 = acc1 + jnp.dot(patch.astype(jnp.bfloat16),
                                  bd1_ref[ky * K + kx],
                                  preferred_element_type=jnp.float32)
    y1 = jnp.maximum(acc1 + b1_ref[...], 0.0)                 # (H1, W1*C1)

    # ---- zero-pad conv1 output into a VMEM scratch (never touches HBM) ----
    y1p_ref[...] = jnp.zeros(y1p_ref.shape, y1p_ref.dtype)
    y1p_ref[PADDING:PADDING + H1, PADDING * C1:(PADDING + W1) * C1] = y1

    # ---- conv2 + bias + ReLU ----
    x2 = y1p_ref[...]                                         # (H1+2p, (W1+2p)*C1)
    acc2 = jnp.zeros((H2, W2 * C2), jnp.float32)
    for ky in range(K):
        for kx in range(K):
            patch = x2[ky:ky + H2, kx * C1:kx * C1 + W2 * C1]        # (H2, W2*C1)
            acc2 = acc2 + jnp.dot(patch.astype(jnp.bfloat16),
                                  bd2_ref[ky * K + kx],
                                  preferred_element_type=jnp.float32)
    y2 = jnp.maximum(acc2 + b2_ref[...], 0.0)                 # (H2, W2*C2)

    # ---- linear head: `outputs` is tiny, so do per-output Frobenius products
    #      (VPU multiply + reduce) against the HWC-ordered head weight ----
    lane = lax.broadcasted_iota(jnp.int32, (1, outputs), 1)
    logits = bh_ref[...]                                      # (1, outputs)
    for o in range(outputs):
        s = jnp.sum(y2 * wh_ref[o], axis=1, keepdims=True)    # (H2, 1)
        s = jnp.sum(s, axis=0, keepdims=True)                 # (1, 1)
        logits = logits + s * (lane == o).astype(jnp.float32)

    # ---- numerically stable softmax ----
    m = jnp.max(logits, axis=-1, keepdims=True)
    e = jnp.exp(logits - m)
    out_ref[...] = e / jnp.sum(e, axis=-1, keepdims=True)


# ------------------------------ weight re-layout ---------------------------- #
def _block_diag_conv_weight(w_hwio, width, dtype):
    """(K, K, Cin, Cout) -> (K*K, width*Cin, width*Cout) block-diagonal weights
    so that (H, width*Cin) @ (width*Cin, width*Cout) applies one conv tap
    (ky, kx) at every output column.  Built once at init."""
    kh, kw, cin, cout = w_hwio.shape
    eye = jnp.eye(width, dtype=w_hwio.dtype)
    bd = jnp.einsum('uv,abcd->abucvd', eye, w_hwio)           # (K,K,width,Cin,width,Cout)
    return bd.reshape(kh * kw, width * cin, width * cout).astype(dtype)


def init_params(key, h, w, outputs):
    """PyTorch-style init (uniform +-1/sqrt(fan_in)).

    Returns (kernel_params, pytorch_layout_params); the second tuple is what a
    real checkpoint would provide and feeds the pure-JAX reference."""
    H1, W1 = conv2d_size_out(h), conv2d_size_out(w)
    H2, W2 = conv2d_size_out(H1), conv2d_size_out(W1)
    linear_input_size = H2 * W2 * C2

    def unif(k, shape, fan_in):
        bound = 1.0 / jnp.sqrt(jnp.float32(fan_in))
        return jax.random.uniform(k, shape, jnp.float32, -bound, bound)

    k1, k2, k3, k4, k5, k6 = jax.random.split(key, 6)
    # PyTorch-layout parameters.
    w1_t = unif(k1, (C1, C_IN, KERNEL_SIZE, KERNEL_SIZE), C_IN * KERNEL_SIZE ** 2)
    b1 = unif(k2, (C1,), C_IN * KERNEL_SIZE ** 2)
    w2_t = unif(k3, (C2, C1, KERNEL_SIZE, KERNEL_SIZE), C1 * KERNEL_SIZE ** 2)
    b2 = unif(k4, (C2,), C1 * KERNEL_SIZE ** 2)
    wh_t = unif(k5, (outputs, C2, H2, W2), linear_input_size)   # head.weight, CHW columns
    bh = unif(k6, (outputs,), linear_input_size)

    # One-time re-layout into the kernel's formats.
    w1 = jnp.transpose(w1_t, (2, 3, 1, 0))                      # (kh, kw, Cin, Cout)
    w2 = jnp.transpose(w2_t, (2, 3, 1, 0))
    bd1 = _block_diag_conv_weight(w1, W1, jnp.bfloat16)         # (9, W1*C_IN, W1*C1)
    bd2 = _block_diag_conv_weight(w2, W2, jnp.bfloat16)         # (9, W2*C1,  W2*C2)
    b1t = jnp.tile(b1.reshape(1, C1), (1, W1))                  # (1, W1*C1)
    b2t = jnp.tile(b2.reshape(1, C2), (1, W2))                  # (1, W2*C2)
    # Head weight rows re-ordered CHW -> HWC so the kernel consumes NHWC
    # activations with no runtime transpose (matches PyTorch's view(N, -1)).
    wh = jnp.transpose(wh_t, (0, 2, 3, 1)).reshape(outputs, H2, W2 * C2)
    bh2 = bh.reshape(1, outputs)

    kernel_params = (bd1, b1t, bd2, b2t, wh, bh2)
    torch_params = (w1_t, b1, w2_t, b2, wh_t, bh)
    return kernel_params, torch_params


# --------------------------------- forward ---------------------------------- #
def policy_gradient_forward(params, x_nchw):
    """Forward pass: x_nchw [N, 3, H, W] float32 -> action probabilities [N, outputs]."""
    bd1, b1t, bd2, b2t, wh, bh = params
    n, c, h, w = x_nchw.shape
    assert c == C_IN
    H1, W1 = conv2d_size_out(h), conv2d_size_out(w)
    HP1, WP1 = h + 2 * PADDING, w + 2 * PADDING
    HP2, WP2 = H1 + 2 * PADDING, W1 + 2 * PADDING
    outputs = bh.shape[-1]

    # NCHW -> NHWC -> spatial zero-pad -> (N, Hp, Wp*C) lane-dense layout.
    # These touch only the tiny raw input; all layer intermediates stay in VMEM.
    x = jnp.transpose(x_nchw, (0, 2, 3, 1))
    x = jnp.pad(x, ((0, 0), (PADDING, PADDING), (PADDING, PADDING), (0, 0)))
    x2d = x.reshape(n, HP1, WP1 * C_IN)

    kernel = functools.partial(_fused_forward_kernel, h, w, outputs)

    out = pl.pallas_call(
        kernel,
        out_shape=jax.ShapeDtypeStruct((n, 1, outputs), jnp.float32),
        grid=(n,),
        in_specs=[
            pl.BlockSpec((None, HP1, WP1 * C_IN), lambda i: (i, 0, 0)),  # per-sample input
            pl.BlockSpec(bd1.shape, lambda i: (0, 0, 0)),   # weights: constant index maps
            pl.BlockSpec(b1t.shape, lambda i: (0, 0)),      # -> DMA'd once, VMEM resident
            pl.BlockSpec(bd2.shape, lambda i: (0, 0, 0)),
            pl.BlockSpec(b2t.shape, lambda i: (0, 0)),
            pl.BlockSpec(wh.shape, lambda i: (0, 0, 0)),
            pl.BlockSpec(bh.shape, lambda i: (0, 0)),
        ],
        out_specs=pl.BlockSpec((None, 1, outputs), lambda i: (i, 0, 0)),
        scratch_shapes=[pltpu.VMEM((HP2, WP2 * C1), jnp.float32)],  # padded conv1 output
        compiler_params=pltpu.CompilerParams(
            dimension_semantics=("parallel",),       # batch sharded across TCs on v7x
            vmem_limit_bytes=32 * 1024 * 1024,       # fits v5e/v6e/v7x scoped VMEM
        ),
    )(x2d, bd1, b1t, bd2, b2t, wh, bh)
    return out.reshape(n, outputs)


# --------------------------- pure-JAX reference ------------------------------ #
def _reference_forward(torch_params, x_nchw):
    """Reference mirroring the kernel's numerics (bf16 conv operands, f32
    accumulation) with PyTorch semantics: cross-correlation convs, CHW flatten."""
    w1_t, b1, w2_t, b2, wh_t, bh = torch_params
    n = x_nchw.shape[0]

    def bf(v):  # round to bf16 like the kernel's matmul operands
        return v.astype(jnp.bfloat16).astype(jnp.float32)

    x = jnp.transpose(x_nchw, (0, 2, 3, 1))                   # NHWC
    w1 = jnp.transpose(w1_t, (2, 3, 1, 0))                    # HWIO
    w2 = jnp.transpose(w2_t, (2, 3, 1, 0))
    dn = ('NHWC', 'HWIO', 'NHWC')
    y1 = lax.conv_general_dilated(bf(x), bf(w1), (STRIDE, STRIDE),
                                  [(PADDING, PADDING)] * 2, dimension_numbers=dn,
                                  precision=lax.Precision.HIGHEST)
    y1 = jnp.maximum(y1 + b1.reshape(1, 1, 1, -1), 0.0)
    y2 = lax.conv_general_dilated(bf(y1), bf(w2), (STRIDE, STRIDE),
                                  [(PADDING, PADDING)] * 2, dimension_numbers=dn,
                                  precision=lax.Precision.HIGHEST)
    y2 = jnp.maximum(y2 + b2.reshape(1, 1, 1, -1), 0.0)
    flat = jnp.transpose(y2, (0, 3, 1, 2)).reshape(n, -1)     # PyTorch CHW flatten
    logits = jnp.einsum('nk,ok->no', flat, wh_t.reshape(wh_t.shape[0], -1),
                        precision=lax.Precision.HIGHEST) + bh
    return jax.nn.softmax(logits, axis=-1)


if __name__ == "__main__":
    batch, h, w, outputs = 2, 16, 16, 4
    key = jax.random.PRNGKey(0)
    pkey, xkey = jax.random.split(key)

    params, torch_params = init_params(pkey, h, w, outputs)
    x = jax.random.normal(xkey, (batch, 3, h, w), dtype=jnp.float32)

    fwd = jax.jit(policy_gradient_forward)
    probs = fwd(params, x)
    jax.block_until_ready(probs)

    assert probs.shape == (batch, outputs)
    # each softmax row must sum to 1
    assert bool(jnp.allclose(jnp.sum(probs, axis=-1), 1.0, atol=1e-5))
    # match the pure-JAX / PyTorch-semantics reference
    ref = _reference_forward(torch_params, x)
    assert bool(jnp.allclose(probs, ref, atol=2e-3)), (probs, ref)
    print("KERNEL_OK")
</pallas_src>

<mosaic_0001>
module attributes {stable_mosaic.version = 11 : i64} {
  func.func @_fused_forward_kernel(%arg0: i32, %arg1: memref<1x20x60xf32, #tpu.memory_space<vmem>>, %arg2: memref<9x54x288xbf16, #tpu.memory_space<vmem>>, %arg3: memref<1x288xf32, #tpu.memory_space<vmem>>, %arg4: memref<9x320x640xbf16, #tpu.memory_space<vmem>>, %arg5: memref<1x640xf32, #tpu.memory_space<vmem>>, %arg6: memref<4x20x640xf32, #tpu.memory_space<vmem>>, %arg7: memref<1x4xf32, #tpu.memory_space<vmem>>, %arg8: memref<1x1x4xf32, #tpu.memory_space<vmem>>, %arg9: memref<22x352xf32, #tpu.memory_space<vmem>>) attributes {dimension_semantics = [#tpu.dimension_semantics<parallel>], iteration_bounds = array<i64: 2>, scalar_prefetch = 0 : i64, scratch_operands = 1 : i64, tpu.core_type = #tpu.core_type<tc>, window_params = [{transform_indices = @transform_0, window_bounds = array<i64: 1, 20, 60>}, {pipeline_mode = #tpu.pipeline_mode<synchronous>, transform_indices = @transform_1, window_bounds = array<i64: 9, 54, 288>}, {pipeline_mode = #tpu.pipeline_mode<synchronous>, transform_indices = @transform_2, window_bounds = array<i64: 1, 288>}, {pipeline_mode = #tpu.pipeline_mode<synchronous>, transform_indices = @transform_3, window_bounds = array<i64: 9, 320, 640>}, {pipeline_mode = #tpu.pipeline_mode<synchronous>, transform_indices = @transform_4, window_bounds = array<i64: 1, 640>}, {pipeline_mode = #tpu.pipeline_mode<synchronous>, transform_indices = @transform_5, window_bounds = array<i64: 4, 20, 640>}, {pipeline_mode = #tpu.pipeline_mode<synchronous>, transform_indices = @transform_6, window_bounds = array<i64: 1, 4>}, {transform_indices = @transform_7, window_bounds = array<i64: 1, 1, 4>}]} {
    %c0 = arith.constant 0 : index
    %c0_0 = arith.constant 0 : index
    %c0_1 = arith.constant 0 : index
    %0 = vector.load %arg1[%c0, %c0_0, %c0_1] : memref<1x20x60xf32, #tpu.memory_space<vmem>>, vector<1x20x60xf32>
    %1 = vector.shape_cast %0 : vector<1x20x60xf32> to vector<20x60xf32>
    %cst = arith.constant 0.000000e+00 : f32
    %2 = vector.broadcast %cst : f32 to vector<18x288xf32>
    %3 = vector.extract_strided_slice %1 {offsets = [0, 0], sizes = [18, 54], strides = [1, 1]} : vector<20x60xf32> to vector<18x54xf32>
    %4 = arith.truncf %3 : vector<18x54xf32> to vector<18x54xbf16>
    %c0_2 = arith.constant 0 : index
    %c0_3 = arith.constant 0 : index
    %c0_4 = arith.constant 0 : index
    %5 = vector.load %arg2[%c0_2, %c0_3, %c0_4] : memref<9x54x288xbf16, #tpu.memory_space<vmem>>, vector<1x54x288xbf16>
    %6 = vector.shape_cast %5 : vector<1x54x288xbf16> to vector<54x288xbf16>
    %cst_5 = arith.constant dense<0.000000e+00> : vector<18x288xf32>
    %7 = tpu.matmul %4, %6, %cst_5 {dimension_numbers = #tpu.dot_dimension_numbers<[1], [0], [0], [1], [0, 0, 1, 1], [], []>} : vector<18x54xbf16>, vector<54x288xbf16>, vector<18x288xf32> -> vector<18x288xf32>
    %8 = arith.addf %2, %7 : vector<18x288xf32>
    %9 = vector.extract_strided_slice %1 {offsets = [0, 3], sizes = [18, 54], strides = [1, 1]} : vector<20x60xf32> to vector<18x54xf32>
    %10 = arith.truncf %9 : vector<18x54xf32> to vector<18x54xbf16>
    %c1 = arith.constant 1 : index
    %c0_6 = arith.constant 0 : index
    %c0_7 = arith.constant 0 : index
    %11 = vector.load %arg2[%c1, %c0_6, %c0_7] : memref<9x54x288xbf16, #tpu.memory_space<vmem>>, vector<1x54x288xbf16>
    %12 = vector.shape_cast %11 : vector<1x54x288xbf16> to vector<54x288xbf16>
    %cst_8 = arith.constant dense<0.000000e+00> : vector<18x288xf32>
    %13 = tpu.matmul %10, %12, %cst_8 {dimension_numbers = #tpu.dot_dimension_numbers<[1], [0], [0], [1], [0, 0, 1, 1], [], []>} : vector<18x54xbf16>, vector<54x288xbf16>, vector<18x288xf32> -> vector<18x288xf32>
    %14 = arith.addf %8, %13 : vector<18x288xf32>
    %15 = vector.extract_strided_slice %1 {offsets = [0, 6], sizes = [18, 54], strides = [1, 1]} : vector<20x60xf32> to vector<18x54xf32>
    %16 = arith.truncf %15 : vector<18x54xf32> to vector<18x54xbf16>
    %c2 = arith.constant 2 : index
    %c0_9 = arith.constant 0 : index
    %c0_10 = arith.constant 0 : index
    %17 = vector.load %arg2[%c2, %c0_9, %c0_10] : memref<9x54x288xbf16, #tpu.memory_space<vmem>>, vector<1x54x288xbf16>
    %18 = vector.shape_cast %17 : vector<1x54x288xbf16> to vector<54x288xbf16>
    %cst_11 = arith.constant dense<0.000000e+00> : vector<18x288xf32>
    %19 = tpu.matmul %16, %18, %cst_11 {dimension_numbers = #tpu.dot_dimension_numbers<[1], [0], [0], [1], [0, 0, 1, 1], [], []>} : vector<18x54xbf16>, vector<54x288xbf16>, vector<18x288xf32> -> vector<18x288xf32>
    %20 = arith.addf %14, %19 : vector<18x288xf32>
    %21 = vector.extract_strided_slice %1 {offsets = [1, 0], sizes = [18, 54], strides = [1, 1]} : vector<20x60xf32> to vector<18x54xf32>
    %22 = arith.truncf %21 : vector<18x54xf32> to vector<18x54xbf16>
    %c3 = arith.constant 3 : index
    %c0_12 = arith.constant 0 : index
    %c0_13 = arith.constant 0 : index
    %23 = vector.load %arg2[%c3, %c0_12, %c0_13] : memref<9x54x288xbf16, #tpu.memory_space<vmem>>, vector<1x54x288xbf16>
    %24 = vector.shape_cast %23 : vector<1x54x288xbf16> to vector<54x288xbf16>
    %cst_14 = arith.constant dense<0.000000e+00> : vector<18x288xf32>
    %25 = tpu.matmul %22, %24, %cst_14 {dimension_numbers = #tpu.dot_dimension_numbers<[1], [0], [0], [1], [0, 0, 1, 1], [], []>} : vector<18x54xbf16>, vector<54x288xbf16>, vector<18x288xf32> -> vector<18x288xf32>
    %26 = arith.addf %20, %25 : vector<18x288xf32>
    %27 = vector.extract_strided_slice %1 {offsets = [1, 3], sizes = [18, 54], strides = [1, 1]} : vector<20x60xf32> to vector<18x54xf32>
    %28 = arith.truncf %27 : vector<18x54xf32> to vector<18x54xbf16>
    %c4 = arith.constant 4 : index
    %c0_15 = arith.constant 0 : index
    %c0_16 = arith.constant 0 : index
    %29 = vector.load %arg2[%c4, %c0_15, %c0_16] : memref<9x54x288xbf16, #tpu.memory_space<vmem>>, vector<1x54x288xbf16>
    %30 = vector.shape_cast %29 : vector<1x54x288xbf16> to vector<54x288xbf16>
    %cst_17 = arith.constant dense<0.000000e+00> : vector<18x288xf32>
    %31 = tpu.matmul %28, %30, %cst_17 {dimension_numbers = #tpu.dot_dimension_numbers<[1], [0], [0], [1], [0, 0, 1, 1], [], []>} : vector<18x54xbf16>, vector<54x288xbf16>, vector<18x288xf32> -> vector<18x288xf32>
    %32 = arith.addf %26, %31 : vector<18x288xf32>
    %33 = vector.extract_strided_slice %1 {offsets = [1, 6], sizes = [18, 54], strides = [1, 1]} : vector<20x60xf32> to vector<18x54xf32>
    %34 = arith.truncf %33 : vector<18x54xf32> to vector<18x54xbf16>
    %c5 = arith.constant 5 : index
    %c0_18 = arith.constant 0 : index
    %c0_19 = arith.constant 0 : index
    %35 = vector.load %arg2[%c5, %c0_18, %c0_19] : memref<9x54x288xbf16, #tpu.memory_space<vmem>>, vector<1x54x288xbf16>
    %36 = vector.shape_cast %35 : vector<1x54x288xbf16> to vector<54x288xbf16>
    %cst_20 = arith.constant dense<0.000000e+00> : vector<18x288xf32>
    %37 = tpu.matmul %34, %36, %cst_20 {dimension_numbers = #tpu.dot_dimension_numbers<[1], [0], [0], [1], [0, 0, 1, 1], [], []>} : vector<18x54xbf16>, vector<54x288xbf16>, vector<18x288xf32> -> vector<18x288xf32>
    %38 = arith.addf %32, %37 : vector<18x288xf32>
    %39 = vector.extract_strided_slice %1 {offsets = [2, 0], sizes = [18, 54], strides = [1, 1]} : vector<20x60xf32> to vector<18x54xf32>
    %40 = arith.truncf %39 : vector<18x54xf32> to vector<18x54xbf16>
    %c6 = arith.constant 6 : index
    %c0_21 = arith.constant 0 : index
    %c0_22 = arith.constant 0 : index
    %41 = vector.load %arg2[%c6, %c0_21, %c0_22] : memref<9x54x288xbf16, #tpu.memory_space<vmem>>, vector<1x54x288xbf16>
    %42 = vector.shape_cast %41 : vector<1x54x288xbf16> to vector<54x288xbf16>
    %cst_23 = arith.constant dense<0.000000e+00> : vector<18x288xf32>
    %43 = tpu.matmul %40, %42, %cst_23 {dimension_numbers = #tpu.dot_dimension_numbers<[1], [0], [0], [1], [0, 0, 1, 1], [], []>} : vector<18x54xbf16>, vector<54x288xbf16>, vector<18x288xf32> -> vector<18x288xf32>
    %44 = arith.addf %38, %43 : vector<18x288xf32>
    %45 = vector.extract_strided_slice %1 {offsets = [2, 3], sizes = [18, 54], strides = [1, 1]} : vector<20x60xf32> to vector<18x54xf32>
    %46 = arith.truncf %45 : vector<18x54xf32> to vector<18x54xbf16>
    %c7 = arith.constant 7 : index
    %c0_24 = arith.constant 0 : index
    %c0_25 = arith.constant 0 : index
    %47 = vector.load %arg2[%c7, %c0_24, %c0_25] : memref<9x54x288xbf16, #tpu.memory_space<vmem>>, vector<1x54x288xbf16>
    %48 = vector.shape_cast %47 : vector<1x54x288xbf16> to vector<54x288xbf16>
    %cst_26 = arith.constant dense<0.000000e+00> : vector<18x288xf32>
    %49 = tpu.matmul %46, %48, %cst_26 {dimension_numbers = #tpu.dot_dimension_numbers<[1], [0], [0], [1], [0, 0, 1, 1], [], []>} : vector<18x54xbf16>, vector<54x288xbf16>, vector<18x288xf32> -> vector<18x288xf32>
    %50 = arith.addf %44, %49 : vector<18x288xf32>
    %51 = vector.extract_strided_slice %1 {offsets = [2, 6], sizes = [18, 54], strides = [1, 1]} : vector<20x60xf32> to vector<18x54xf32>
    %52 = arith.truncf %51 : vector<18x54xf32> to vector<18x54xbf16>
    %c8 = arith.constant 8 : index
    %c0_27 = arith.constant 0 : index
    %c0_28 = arith.constant 0 : index
    %53 = vector.load %arg2[%c8, %c0_27, %c0_28] : memref<9x54x288xbf16, #tpu.memory_space<vmem>>, vector<1x54x288xbf16>
    %54 = vector.shape_cast %53 : vector<1x54x288xbf16> to vector<54x288xbf16>
    %cst_29 = arith.constant dense<0.000000e+00> : vector<18x288xf32>
    %55 = tpu.matmul %52, %54, %cst_29 {dimension_numbers = #tpu.dot_dimension_numbers<[1], [0], [0], [1], [0, 0, 1, 1], [], []>} : vector<18x54xbf16>, vector<54x288xbf16>, vector<18x288xf32> -> vector<18x288xf32>
    %56 = arith.addf %50, %55 : vector<18x288xf32>
    %c0_30 = arith.constant 0 : index
    %c0_31 = arith.constant 0 : index
    %57 = vector.load %arg3[%c0_30, %c0_31] : memref<1x288xf32, #tpu.memory_space<vmem>>, vector<1x288xf32>
    %58 = vector.broadcast %57 : vector<1x288xf32> to vector<18x288xf32>
    %59 = arith.addf %56, %58 : vector<18x288xf32>
    %cst_32 = arith.constant 0.000000e+00 : f32
    %60 = vector.broadcast %cst_32 : f32 to vector<18x288xf32>
    %61 = arith.maximumf %59, %60 : vector<18x288xf32>
    %cst_33 = arith.constant 0.000000e+00 : f32
    %62 = vector.broadcast %cst_33 : f32 to vector<22x352xf32>
    %c0_34 = arith.constant 0 : index
    %c0_35 = arith.constant 0 : index
    %63 = vector.load %arg9[%c0_34, %c0_35] : memref<22x352xf32, #tpu.memory_space<vmem>>, vector<22x352xf32>
    tpu.vector_store %arg9[%c0_34, %c0_35], %62 {strides = array<i32>} : memref<22x352xf32, #tpu.memory_space<vmem>>, vector<22x352xf32>,
    %c2_36 = arith.constant 2 : index
    %c32 = arith.constant 32 : index
    %64 = vector.load %arg9[%c2_36, %c32] : memref<22x352xf32, #tpu.memory_space<vmem>>, vector<18x288xf32>
    tpu.vector_store %arg9[%c2_36, %c32], %61 {strides = array<i32>} : memref<22x352xf32, #tpu.memory_space<vmem>>, vector<18x288xf32>,
    %c0_37 = arith.constant 0 : index
    %c0_38 = arith.constant 0 : index
    %65 = vector.load %arg9[%c0_37, %c0_38] : memref<22x352xf32, #tpu.memory_space<vmem>>, vector<22x352xf32>
    %cst_39 = arith.constant 0.000000e+00 : f32
    %66 = vector.broadcast %cst_39 : f32 to vector<20x640xf32>
    %67 = vector.extract_strided_slice %65 {offsets = [0, 0], sizes = [20, 320], strides = [1, 1]} : vector<22x352xf32> to vector<20x320xf32>
    %68 = arith.truncf %67 : vector<20x320xf32> to vector<20x320xbf16>
    %c0_40 = arith.constant 0 : index
    %c0_41 = arith.constant 0 : index
    %c0_42 = arith.constant 0 : index
    %69 = vector.load %arg4[%c0_40, %c0_41, %c0_42] : memref<9x320x640xbf16, #tpu.memory_space<vmem>>, vector<1x320x640xbf16>
    %70 = vector.shape_cast %69 : vector<1x320x640xbf16> to vector<320x640xbf16>
    %cst_43 = arith.constant dense<0.000000e+00> : vector<20x640xf32>
    %71 = tpu.matmul %68, %70, %cst_43 {dimension_numbers = #tpu.dot_dimension_numbers<[1], [0], [0], [1], [0, 0, 1, 1], [], []>} : vector<20x320xbf16>, vector<320x640xbf16>, vector<20x640xf32> -> vector<20x640xf32>
    %72 = arith.addf %66, %71 : vector<20x640xf32>
    %73 = vector.extract_strided_slice %65 {offsets = [0, 16], sizes = [20, 320], strides = [1, 1]} : vector<22x352xf32> to vector<20x320xf32>
    %74 = arith.truncf %73 : vector<20x320xf32> to vector<20x320xbf16>
    %c1_44 = arith.constant 1 : index
    %c0_45 = arith.constant 0 : index
    %c0_46 = arith.constant 0 : index
    %75 = vector.load %arg4[%c1_44, %c0_45, %c0_46] : memref<9x320x640xbf16, #tpu.memory_space<vmem>>, vector<1x320x640xbf16>
    %76 = vector.shape_cast %75 : vector<1x320x640xbf16> to vector<320x640xbf16>
    %cst_47 = arith.constant dense<0.000000e+00> : vector<20x640xf32>
    %77 = tpu.matmul %74, %76, %cst_47 {dimension_numbers = #tpu.dot_dimension_numbers<[1], [0], [0], [1], [0, 0, 1, 1], [], []>} : vector<20x320xbf16>, vector<320x640xbf16>, vector<20x640xf32> -> vector<20x640xf32>
    %78 = arith.addf %72, %77 : vector<20x640xf32>
    %79 = vector.extract_strided_slice %65 {offsets = [0, 32], sizes = [20, 320], strides = [1, 1]} : vector<22x352xf32> to vector<20x320xf32>
    %80 = arith.truncf %79 : vector<20x320xf32> to vector<20x320xbf16>
    %c2_48 = arith.constant 2 : index
    %c0_49 = arith.constant 0 : index
    %c0_50 = arith.constant 0 : index
    %81 = vector.load %arg4[%c2_48, %c0_49, %c0_50] : memref<9x320x640xbf16, #tpu.memory_space<vmem>>, vector<1x320x640xbf16>
    %82 = vector.shape_cast %81 : vector<1x320x640xbf16> to vector<320x640xbf16>
    %cst_51 = arith.constant dense<0.000000e+00> : vector<20x640xf32>
    %83 = tpu.matmul %80, %82, %cst_51 {dimension_numbers = #tpu.dot_dimension_numbers<[1], [0], [0], [1], [0, 0, 1, 1], [], []>} : vector<20x320xbf16>, vector<320x640xbf16>, vector<20x640xf32> -> vector<20x640xf32>
    %84 = arith.addf %78, %83 : vector<20x640xf32>
    %85 = vector.extract_strided_slice %65 {offsets = [1, 0], sizes = [20, 320], strides = [1, 1]} : vector<22x352xf32> to vector<20x320xf32>
    %86 = arith.truncf %85 : vector<20x320xf32> to vector<20x320xbf16>
    %c3_52 = arith.constant 3 : index
    %c0_53 = arith.constant 0 : index
    %c0_54 = arith.constant 0 : index
    %87 = vector.load %arg4[%c3_52, %c0_53, %c0_54] : memref<9x320x640xbf16, #tpu.memory_space<vmem>>, vector<1x320x640xbf16>
    %88 = vector.shape_cast %87 : vector<1x320x640xbf16> to vector<320x640xbf16>
    %cst_55 = arith.constant dense<0.000000e+00> : vector<20x640xf32>
    %89 = tpu.matmul %86, %88, %cst_55 {dimension_numbers = #tpu.dot_dimension_numbers<[1], [0], [0], [1], [0, 0, 1, 1], [], []>} : vector<20x320xbf16>, vector<320x640xbf16>, vector<20x640xf32> -> vector<20x640xf32>
    %90 = arith.addf %84, %89 : vector<20x640xf32>
    %91 = vector.extract_strided_slice %65 {offsets = [1, 16], sizes = [20, 320], strides = [1, 1]} : vector<22x352xf32> to vector<20x320xf32>
    %92 = arith.truncf %91 : vector<20x320xf32> to vector<20x320xbf16>
    %c4_56 = arith.constant 4 : index
    %c0_57 = arith.constant 0 : index
    %c0_58 = arith.constant 0 : index
    %93 = vector.load %arg4[%c4_56, %c0_57, %c0_58] : memref<9x320x640xbf16, #tpu.memory_space<vmem>>, vector<1x320x640xbf16>
    %94 = vector.shape_cast %93 : vector<1x320x640xbf16> to vector<320x640xbf16>
    %cst_59 = arith.constant dense<0.000000e+00> : vector<20x640xf32>
    %95 = tpu.matmul %92, %94, %cst_59 {dimension_numbers = #tpu.dot_dimension_numbers<[1], [0], [0], [1], [0, 0, 1, 1], [], []>} : vector<20x320xbf16>, vector<320x640xbf16>, vector<20x640xf32> -> vector<20x640xf32>
    %96 = arith.addf %90, %95 : vector<20x640xf32>
    %97 = vector.extract_strided_slice %65 {offsets = [1, 32], sizes = [20, 320], strides = [1, 1]} : vector<22x352xf32> to vector<20x320xf32>
    %98 = arith.truncf %97 : vector<20x320xf32> to vector<20x320xbf16>
    %c5_60 = arith.constant 5 : index
    %c0_61 = arith.constant 0 : index
    %c0_62 = arith.constant 0 : index
    %99 = vector.load %arg4[%c5_60, %c0_61, %c0_62] : memref<9x320x640xbf16, #tpu.memory_space<vmem>>, vector<1x320x640xbf16>
    %100 = vector.shape_cast %99 : vector<1x320x640xbf16> to vector<320x640xbf16>
    %cst_63 = arith.constant dense<0.000000e+00> : vector<20x640xf32>
    %101 = tpu.matmul %98, %100, %cst_63 {dimension_numbers = #tpu.dot_dimension_numbers<[1], [0], [0], [1], [0, 0, 1, 1], [], []>} : vector<20x320xbf16>, vector<320x640xbf16>, vector<20x640xf32> -> vector<20x640xf32>
    %102 = arith.addf %96, %101 : vector<20x640xf32>
    %103 = vector.extract_strided_slice %65 {offsets = [2, 0], sizes = [20, 320], strides = [1, 1]} : vector<22x352xf32> to vector<20x320xf32>
    %104 = arith.truncf %103 : vector<20x320xf32> to vector<20x320xbf16>
    %c6_64 = arith.constant 6 : index
    %c0_65 = arith.constant 0 : index
    %c0_66 = arith.constant 0 : index
    %105 = vector.load %arg4[%c6_64, %c0_65, %c0_66] : memref<9x320x640xbf16, #tpu.memory_space<vmem>>, vector<1x320x640xbf16>
    %106 = vector.shape_cast %105 : vector<1x320x640xbf16> to vector<320x640xbf16>
    %cst_67 = arith.constant dense<0.000000e+00> : vector<20x640xf32>
    %107 = tpu.matmul %104, %106, %cst_67 {dimension_numbers = #tpu.dot_dimension_numbers<[1], [0], [0], [1], [0, 0, 1, 1], [], []>} : vector<20x320xbf16>, vector<320x640xbf16>, vector<20x640xf32> -> vector<20x640xf32>
    %108 = arith.addf %102, %107 : vector<20x640xf32>
    %109 = vector.extract_strided_slice %65 {offsets = [2, 16], sizes = [20, 320], strides = [1, 1]} : vector<22x352xf32> to vector<20x320xf32>
    %110 = arith.truncf %109 : vector<20x320xf32> to vector<20x320xbf16>
    %c7_68 = arith.constant 7 : index
    %c0_69 = arith.constant 0 : index
    %c0_70 = arith.constant 0 : index
    %111 = vector.load %arg4[%c7_68, %c0_69, %c0_70] : memref<9x320x640xbf16, #tpu.memory_space<vmem>>, vector<1x320x640xbf16>
    %112 = vector.shape_cast %111 : vector<1x320x640xbf16> to vector<320x640xbf16>
    %cst_71 = arith.constant dense<0.000000e+00> : vector<20x640xf32>
    %113 = tpu.matmul %110, %112, %cst_71 {dimension_numbers = #tpu.dot_dimension_numbers<[1], [0], [0], [1], [0, 0, 1, 1], [], []>} : vector<20x320xbf16>, vector<320x640xbf16>, vector<20x640xf32> -> vector<20x640xf32>
    %114 = arith.addf %108, %113 : vector<20x640xf32>
    %115 = vector.extract_strided_slice %65 {offsets = [2, 32], sizes = [20, 320], strides = [1, 1]} : vector<22x352xf32> to vector<20x320xf32>
    %116 = arith.truncf %115 : vector<20x320xf32> to vector<20x320xbf16>
    %c8_72 = arith.constant 8 : index
    %c0_73 = arith.constant 0 : index
    %c0_74 = arith.constant 0 : index
    %117 = vector.load %arg4[%c8_72, %c0_73, %c0_74] : memref<9x320x640xbf16, #tpu.memory_space<vmem>>, vector<1x320x640xbf16>
    %118 = vector.shape_cast %117 : vector<1x320x640xbf16> to vector<320x640xbf16>
    %cst_75 = arith.constant dense<0.000000e+00> : vector<20x640xf32>
    %119 = tpu.matmul %116, %118, %cst_75 {dimension_numbers = #tpu.dot_dimension_numbers<[1], [0], [0], [1], [0, 0, 1, 1], [], []>} : vector<20x320xbf16>, vector<320x640xbf16>, vector<20x640xf32> -> vector<20x640xf32>
    %120 = arith.addf %114, %119 : vector<20x640xf32>
    %c0_76 = arith.constant 0 : index
    %c0_77 = arith.constant 0 : index
    %121 = vector.load %arg5[%c0_76, %c0_77] : memref<1x640xf32, #tpu.memory_space<vmem>>, vector<1x640xf32>
    %122 = vector.broadcast %121 : vector<1x640xf32> to vector<20x640xf32>
    %123 = arith.addf %120, %122 : vector<20x640xf32>
    %cst_78 = arith.constant 0.000000e+00 : f32
    %124 = vector.broadcast %cst_78 : f32 to vector<20x640xf32>
    %125 = arith.maximumf %123, %124 : vector<20x640xf32>
    %126 = tpu.iota {dimensions = array<i32: 1>} : vector<1x4xi32>
    %c0_79 = arith.constant 0 : index
    %c0_80 = arith.constant 0 : index
    %127 = vector.load %arg7[%c0_79, %c0_80] : memref<1x4xf32, #tpu.memory_space<vmem>>, vector<1x4xf32>
    %c0_81 = arith.constant 0 : index
    %c0_82 = arith.constant 0 : index
    %c0_83 = arith.constant 0 : index
    %128 = vector.load %arg6[%c0_81, %c0_82, %c0_83] : memref<4x20x640xf32, #tpu.memory_space<vmem>>, vector<1x20x640xf32>
    %129 = vector.shape_cast %128 : vector<1x20x640xf32> to vector<20x640xf32>
    %130 = arith.mulf %125, %129 : vector<20x640xf32>
    %cst_84 = arith.constant dense<0.000000e+00> : vector<20xf32>
    %131 = vector.multi_reduction <add>, %130, %cst_84 [1] : vector<20x640xf32> to vector<20xf32>
    %132 = vector.shape_cast %131 : vector<20xf32> to vector<20x1xf32>
    %cst_85 = arith.constant dense<0.000000e+00> : vector<1xf32>
    %133 = vector.multi_reduction <add>, %132, %cst_85 [0] : vector<20x1xf32> to vector<1xf32>
    %134 = vector.shape_cast %133 : vector<1xf32> to vector<1x1xf32>
    %c0_i32 = arith.constant 0 : i32
    %135 = vector.broadcast %c0_i32 : i32 to vector<1x4xi32>
    %136 = arith.cmpi eq, %126, %135 : vector<1x4xi32>
    %137 = arith.extui %136 : vector<1x4xi1> to vector<1x4xi32>
    %138 = arith.sitofp %137 : vector<1x4xi32> to vector<1x4xf32>
    %139 = vector.broadcast %134 : vector<1x1xf32> to vector<1x4xf32>
    %140 = arith.mulf %139, %138 : vector<1x4xf32>
    %141 = arith.addf %127, %140 : vector<1x4xf32>
    %c1_86 = arith.constant 1 : index
    %c0_87 = arith.constant 0 : index
    %c0_88 = arith.constant 0 : index
    %142 = vector.load %arg6[%c1_86, %c0_87, %c0_88] : memref<4x20x640xf32, #tpu.memory_space<vmem>>, vector<1x20x640xf32>
    %143 = vector.shape_cast %142 : vector<1x20x640xf32> to vector<20x640xf32>
    %144 = arith.mulf %125, %143 : vector<20x640xf32>
    %cst_89 = arith.constant dense<0.000000e+00> : vector<20xf32>
    %145 = vector.multi_reduction <add>, %144, %cst_89 [1] : vector<20x640xf32> to vector<20xf32>
    %146 = vector.shape_cast %145 : vector<20xf32> to vector<20x1xf32>
    %cst_90 = arith.constant dense<0.000000e+00> : vector<1xf32>
    %147 = vector.multi_reduction <add>, %146, %cst_90 [0] : vector<20x1xf32> to vector<1xf32>
    %148 = vector.shape_cast %147 : vector<1xf32> to vector<1x1xf32>
    %c1_i32 = arith.constant 1 : i32
    %149 = vector.broadcast %c1_i32 : i32 to vector<1x4xi32>
    %150 = arith.cmpi eq, %126, %149 : vector<1x4xi32>
    %151 = arith.extui %150 : vector<1x4xi1> to vector<1x4xi32>
    %152 = arith.sitofp %151 : vector<1x4xi32> to vector<1x4xf32>
    %153 = vector.broadcast %148 : vector<1x1xf32> to vector<1x4xf32>
    %154 = arith.mulf %153, %152 : vector<1x4xf32>
    %155 = arith.addf %141, %154 : vector<1x4xf32>
    %c2_91 = arith.constant 2 : index
    %c0_92 = arith.constant 0 : index
    %c0_93 = arith.constant 0 : index
    %156 = vector.load %arg6[%c2_91, %c0_92, %c0_93] : memref<4x20x640xf32, #tpu.memory_space<vmem>>, vector<1x20x640xf32>
    %157 = vector.shape_cast %156 : vector<1x20x640xf32> to vector<20x640xf32>
    %158 = arith.mulf %125, %157 : vector<20x640xf32>
    %cst_94 = arith.constant dense<0.000000e+00> : vector<20xf32>
    %159 = vector.multi_reduction <add>, %158, %cst_94 [1] : vector<20x640xf32> to vector<20xf32>
    %160 = vector.shape_cast %159 : vector<20xf32> to vector<20x1xf32>
    %cst_95 = arith.constant dense<0.000000e+00> : vector<1xf32>
    %161 = vector.multi_reduction <add>, %160, %cst_95 [0] : vector<20x1xf32> to vector<1xf32>
    %162 = vector.shape_cast %161 : vector<1xf32> to vector<1x1xf32>
    %c2_i32 = arith.constant 2 : i32
    %163 = vector.broadcast %c2_i32 : i32 to vector<1x4xi32>
    %164 = arith.cmpi eq, %126, %163 : vector<1x4xi32>
    %165 = arith.extui %164 : vector<1x4xi1> to vector<1x4xi32>
    %166 = arith.sitofp %165 : vector<1x4xi32> to vector<1x4xf32>
    %167 = vector.broadcast %162 : vector<1x1xf32> to vector<1x4xf32>
    %168 = arith.mulf %167, %166 : vector<1x4xf32>
    %169 = arith.addf %155, %168 : vector<1x4xf32>
    %c3_96 = arith.constant 3 : index
    %c0_97 = arith.constant 0 : index
    %c0_98 = arith.constant 0 : index
    %170 = vector.load %arg6[%c3_96, %c0_97, %c0_98] : memref<4x20x640xf32, #tpu.memory_space<vmem>>, vector<1x20x640xf32>
    %171 = vector.shape_cast %170 : vector<1x20x640xf32> to vector<20x640xf32>
    %172 = arith.mulf %125, %171 : vector<20x640xf32>
    %cst_99 = arith.constant dense<0.000000e+00> : vector<20xf32>
    %173 = vector.multi_reduction <add>, %172, %cst_99 [1] : vector<20x640xf32> to vector<20xf32>
    %174 = vector.shape_cast %173 : vector<20xf32> to vector<20x1xf32>
    %cst_100 = arith.constant dense<0.000000e+00> : vector<1xf32>
    %175 = vector.multi_reduction <add>, %174, %cst_100 [0] : vector<20x1xf32> to vector<1xf32>
    %176 = vector.shape_cast %175 : vector<1xf32> to vector<1x1xf32>
    %c3_i32 = arith.constant 3 : i32
    %177 = vector.broadcast %c3_i32 : i32 to vector<1x4xi32>
    %178 = arith.cmpi eq, %126, %177 : vector<1x4xi32>
    %179 = arith.extui %178 : vector<1x4xi1> to vector<1x4xi32>
    %180 = arith.sitofp %179 : vector<1x4xi32> to vector<1x4xf32>
    %181 = vector.broadcast %176 : vector<1x1xf32> to vector<1x4xf32>
    %182 = arith.mulf %181, %180 : vector<1x4xf32>
    %183 = arith.addf %169, %182 : vector<1x4xf32>
    %cst_101 = arith.constant dense<0xFF800000> : vector<1xf32>
    %184 = vector.multi_reduction <maximumf>, %183, %cst_101 [1] : vector<1x4xf32> to vector<1xf32>
    %185 = vector.shape_cast %184 : vector<1xf32> to vector<1x1xf32>
    %186 = vector.broadcast %185 : vector<1x1xf32> to vector<1x4xf32>
    %187 = arith.subf %183, %186 : vector<1x4xf32>
    %188 = math.exp %187 : vector<1x4xf32>
    %cst_102 = arith.constant dense<0.000000e+00> : vector<1xf32>
    %189 = vector.multi_reduction <add>, %188, %cst_102 [1] : vector<1x4xf32> to vector<1xf32>
    %190 = vector.shape_cast %189 : vector<1xf32> to vector<1x1xf32>
    %191 = vector.broadcast %190 : vector<1x1xf32> to vector<1x4xf32>
    %192 = arith.divf %188, %191 : vector<1x4xf32>
    %c0_103 = arith.constant 0 : index
    %c0_104 = arith.constant 0 : index
    %c0_105 = arith.constant 0 : index
    %193 = vector.load %arg8[%c0_103, %c0_104, %c0_105] : memref<1x1x4xf32, #tpu.memory_space<vmem>>, vector<1x1x4xf32>
    %194 = vector.shape_cast %193 : vector<1x1x4xf32> to vector<1x4xf32>
    %195 = vector.shape_cast %192 : vector<1x4xf32> to vector<1x1x4xf32>
    tpu.vector_store %arg8[%c0_103, %c0_104, %c0_105], %195 {strides = array<i32>} : memref<1x1x4xf32, #tpu.memory_space<vmem>>, vector<1x1x4xf32>,
    return
  }
  func.func @transform_0(%arg0: i32) -> (i32, i32, i32) {
    %c0_i32 = arith.constant 0 : i32
    %c0_i32_0 = arith.constant 0 : i32
    %c0_i32_1 = arith.constant 0 : i32
    return %arg0, %c0_i32, %c0_i32_0 : i32, i32, i32
  }
  func.func @transform_1(%arg0: i32) -> (i32, i32, i32) {
    %c0_i32 = arith.constant 0 : i32
    %c0_i32_0 = arith.constant 0 : i32
    %c0_i32_1 = arith.constant 0 : i32
    %c0_i32_2 = arith.constant 0 : i32
    return %c0_i32, %c0_i32_0, %c0_i32_1 : i32, i32, i32
  }
  func.func @transform_2(%arg0: i32) -> (i32, i32) {
    %c0_i32 = arith.constant 0 : i32
    %c0_i32_0 = arith.constant 0 : i32
    %c0_i32_1 = arith.constant 0 : i32
    return %c0_i32, %c0_i32_0 : i32, i32
  }
  func.func @transform_3(%arg0: i32) -> (i32, i32, i32) {
    %c0_i32 = arith.constant 0 : i32
    %c0_i32_0 = arith.constant 0 : i32
    %c0_i32_1 = arith.constant 0 : i32
    %c0_i32_2 = arith.constant 0 : i32
    return %c0_i32, %c0_i32_0, %c0_i32_1 : i32, i32, i32
  }
  func.func @transform_4(%arg0: i32) -> (i32, i32) {
    %c0_i32 = arith.constant 0 : i32
    %c0_i32_0 = arith.constant 0 : i32
    %c0_i32_1 = arith.constant 0 : i32
    return %c0_i32, %c0_i32_0 : i32, i32
  }
  func.func @transform_5(%arg0: i32) -> (i32, i32, i32) {
    %c0_i32 = arith.constant 0 : i32
    %c0_i32_0 = arith.constant 0 : i32
    %c0_i32_1 = arith.constant 0 : i32
    %c0_i32_2 = arith.constant 0 : i32
    return %c0_i32, %c0_i32_0, %c0_i32_1 : i32, i32, i32
  }
  func.func @transform_6(%arg0: i32) -> (i32, i32) {
    %c0_i32 = arith.constant 0 : i32
    %c0_i32_0 = arith.constant 0 : i32
    %c0_i32_1 = arith.constant 0 : i32
    return %c0_i32, %c0_i32_0 : i32, i32
  }
  func.func @transform_7(%arg0: i32) -> (i32, i32, i32) {
    %c0_i32 = arith.constant 0 : i32
    %c0_i32_0 = arith.constant 0 : i32
    %c0_i32_1 = arith.constant 0 : i32
    return %arg0, %c0_i32, %c0_i32_0 : i32, i32, i32
  }
}

</mosaic_0001>

<llo_original>
// kernel: policy_gradient_forward.1
$region0: #{policy_gradient_forward.1}
  #allocation0 [shape = 'u32[]', space=smem, size = 0x4, offset = 0x4, fixed_abs, tag = 'smem constant byte address 0x4 - core index']
  #allocation1 [shape = 'u32[144,128]{1,0:T(1,128)}', space=vmem, size = 0x12000, scoped, tag = 'internal scratch']
  #allocation2 [shape = 'f32[22,352]{1,0:T(8,128)}', space=vmem, size = 0x9000, scoped, tag = 'scratch operand']
  %s0 = inlined_call_operand.vmem [shape: f32[2,20,60], index: 0, kind: input, shape index: {}]
  %s1 = inlined_call_operand.hbm [shape: bf16[9,54,288], index: 1, kind: input, shape index: {}]
  %s2 = inlined_call_operand.hbm [shape: f32[1,288], index: 2, kind: input, shape index: {}]
  %s3 = inlined_call_operand.hbm [shape: bf16[9,320,640], index: 3, kind: input, shape index: {}]
  %s4 = inlined_call_operand.hbm [shape: f32[1,640], index: 4, kind: input, shape index: {}]
  %s5 = inlined_call_operand.vmem [shape: f32[4,20,640], index: 5, kind: input, shape index: {}]
  %s6 = inlined_call_operand.hbm [shape: f32[1,4], index: 6, kind: input, shape index: {}]
  %s7 = inlined_call_operand.hbm [shape: f32[2,1,4], index: 7, kind: output, shape index: {}]
  %s8 = sld [smem:[#allocation0]]
  $region81: #{policy_gradient_forward.1} parent=0
    _
  %s10 = ssub.s32 1, %s8
  %s11 = scalar_select 0, %s10, %s8
  $region1: #{policy_gradient_forward.1} parent=0
    #allocation3 [shape = 'u8[387072]{0}', space=vmem, size = 0x5e800, scoped, tag = 'input window, operand 1, single buffered']
    #allocation4 [shape = 's32[2]{0}', space=sflag, size = 0x8, scoped, tag = 'scoped memory for policy_gradient_forward.1']
    #allocation5 [shape = 's32[2]{0}', space=sflag, size = 0x8, scoped, tag = 'scoped memory for policy_gradient_forward.1']
    #allocation6 [shape = 'u8[1536]{0}', space=vmem, size = 0x800, scoped, tag = 'input window, operand 2, single buffered']
    #allocation7 [shape = 's32[1]{0}', space=sflag, size = 0x4, scoped, tag = 'scoped memory for policy_gradient_forward.1']
    #allocation8 [shape = 'u8[3686400]{0}', space=vmem, size = 0x384000, scoped, tag = 'input window, operand 3, single buffered']
    #allocation9 [shape = 'u8[2560]{0}', space=vmem, size = 0xc00, scoped, tag = 'input window, operand 4, single buffered']
    #allocation10 [shape = 's32[1]{0}', space=sflag, size = 0x4, scoped, tag = 'scoped memory for policy_gradient_forward.1']
    #allocation11 [shape = 'u8[512]{0}', space=vmem, size = 0x400, scoped, tag = 'input window, operand 6, single buffered']
    #allocation12 [shape = 'u8[1024]{0}', space=vmem, size = 0x400, scoped, tag = 'output window, operand 0']
    %12 = vsyncpa [#allocation4], 0
    %13 = vsyncpa [#allocation7], 0
    %14 = vsyncpa [#allocation10], 0
    %15 = vsyncpa [#allocation5], 0
    %s16 = scalar_lea.sflag [#allocation5], 1
    %17 = vsyncpa %s16, 0
    loop: start=0, step=1, limit=4
    $region2: #{policy_gradient_forward.1} parent=1 // loop_pre_header
      _
    $region3: #{policy_gradient_forward.1} parent=1 // loop_header
      %s19 = sphi 0, %s23
      %p20 = scmp.ge.s32.totalorder %s19, 4
      %s29 = sphi 0, %s31
      %s32 = sphi 0, %s29
      %s33 = sphi 0, %s32
      %s49 = sphi 0, %s33
      %s53 = sphi 0, %s53
      %s55 = sphi 0, %s53
      %s56 = sphi 0, %s55
      %s70 = sphi 0, %s56
      %s74 = sphi 0, %s74
      %s76 = sphi 0, %s74
      %s77 = sphi 0, %s76
      %s91 = sphi 0, %s77
      %s95 = sphi 0, %s95
      %s97 = sphi 0, %s95
      %s98 = sphi 0, %s97
      %s112 = sphi 0, %s98
      %s116 = sphi 0, %s116
      %s118 = sphi 0, %s116
      %s119 = sphi 0, %s118
      %s133 = sphi 0, %s119
      %s137 = sphi 0, %s137
      %s139 = sphi 0, %s137
      %s140 = sphi 0, %s139
      %s154 = sphi 0, %s140
      %s158 = sphi 0, %s158
      %s160 = sphi 0, %s158
      %s161 = sphi 0, %s160
      %s175 = sphi 0, %s161
      %s181 = sphi 0, %s183
      %s184 = sphi 0, %s181
      %s185 = sphi 0, %s184
      %s201 = sphi 0, %s185
    $region4: #{policy_gradient_forward.1} parent=1 // loop_header_branch
      %22 = sbr.rel (%p20) target = $region8
    $region5: #{policy_gradient_forward.1} parent=1 // loop_body
      %s24 = ssub.s32 %s19, 1
      %s25 = ssub.s32 %s19, 2
      %s26 = sadd.s32 %s19, 1
      %s27 = ssub.s32 %s19, %s26
      %p28 = scmp.eq.s32.totalorder %s27, 0
      %s30 = sadd.s32 %s29, 1
      %s31 = scalar_select %p28, %s29, %s30
      %p34 = pneg %p28
      %p35 = scmp.eq.s32.totalorder %s19, 1
      %p36 = por %p34, %p35
      %p37 = scmp.ne.s32.totalorder %s29, %s32
      %p38 = scmp.eq.s32.totalorder %s19, 0
      %p39 = por %p37, %p38
      %p40 = scmp.ne.s32.totalorder %s29, %s32
      %p41 = scmp.eq.s32.totalorder %s24, 1
      %p42 = por %p40, %p41
      %p43 = scmp.ne.s32.totalorder %s32, %s33
      %p44 = scmp.eq.s32.totalorder %s24, 0
      %p45 = por %p43, %p44
      %p46 = scmp.ne.s32.totalorder %s32, %s33
      %p47 = scmp.eq.s32.totalorder %s25, 1
      %p48 = por %p46, %p47
      %p50 = scmp.ne.s32.totalorder %s33, %s49
      %p51 = scmp.eq.s32.totalorder %s25, 0
      %p52 = por %p50, %p51
      %s54 = sadd.s32 %s53, 1
      %p57 = scmp.eq.s32.totalorder %s19, 1
      %p58 = scmp.ne.s32.totalorder %s53, %s55
      %p59 = scmp.eq.s32.totalorder %s19, 0
      %p60 = por %p58, %p59
      %p61 = scmp.ne.s32.totalorder %s53, %s55
      %p62 = scmp.eq.s32.totalorder %s24, 1
      %p63 = por %p61, %p62
      %p64 = scmp.ne.s32.totalorder %s55, %s56
      %p65 = scmp.eq.s32.totalorder %s24, 0
      %p66 = por %p64, %p65
      %p67 = scmp.ne.s32.totalorder %s55, %s56
      %p68 = scmp.eq.s32.totalorder %s25, 1
      %p69 = por %p67, %p68
      %p71 = scmp.ne.s32.totalorder %s56, %s70
      %p72 = scmp.eq.s32.totalorder %s25, 0
      %p73 = por %p71, %p72
      %s75 = sadd.s32 %s74, 1
      %p78 = scmp.eq.s32.totalorder %s19, 1
      %p79 = scmp.ne.s32.totalorder %s74, %s76
      %p80 = scmp.eq.s32.totalorder %s19, 0
      %p81 = por %p79, %p80
      %p82 = scmp.ne.s32.totalorder %s74, %s76
      %p83 = scmp.eq.s32.totalorder %s24, 1
      %p84 = por %p82, %p83
      %p85 = scmp.ne.s32.totalorder %s76, %s77
      %p86 = scmp.eq.s32.totalorder %s24, 0
      %p87 = por %p85, %p86
      %p88 = scmp.ne.s32.totalorder %s76, %s77
      %p89 = scmp.eq.s32.totalorder %s25, 1
      %p90 = por %p88, %p89
      %p92 = scmp.ne.s32.totalorder %s77, %s91
      %p93 = scmp.eq.s32.totalorder %s25, 0
      %p94 = por %p92, %p93
      %s96 = sadd.s32 %s95, 1
      %p99 = scmp.eq.s32.totalorder %s19, 1
      %p100 = scmp.ne.s32.totalorder %s95, %s97
      %p101 = scmp.eq.s32.totalorder %s19, 0
      %p102 = por %p100, %p101
      %p103 = scmp.ne.s32.totalorder %s95, %s97
      %p104 = scmp.eq.s32.totalorder %s24, 1
      %p105 = por %p103, %p104
      %p106 = scmp.ne.s32.totalorder %s97, %s98
      %p107 = scmp.eq.s32.totalorder %s24, 0
      %p108 = por %p106, %p107
      %p109 = scmp.ne.s32.totalorder %s97, %s98
      %p110 = scmp.eq.s32.totalorder %s25, 1
      %p111 = por %p109, %p110
      %p113 = scmp.ne.s32.totalorder %s98, %s112
      %p114 = scmp.eq.s32.totalorder %s25, 0
      %p115 = por %p113, %p114
      %s117 = sadd.s32 %s116, 1
      %p120 = scmp.eq.s32.totalorder %s19, 1
      %p121 = scmp.ne.s32.totalorder %s116, %s118
      %p122 = scmp.eq.s32.totalorder %s19, 0
      %p123 = por %p121, %p122
      %p124 = scmp.ne.s32.totalorder %s116, %s118
      %p125 = scmp.eq.s32.totalorder %s24, 1
      %p126 = por %p124, %p125
      %p127 = scmp.ne.s32.totalorder %s118, %s119
      %p128 = scmp.eq.s32.totalorder %s24, 0
      %p129 = por %p127, %p128
      %p130 = scmp.ne.s32.totalorder %s118, %s119
      %p131 = scmp.eq.s32.totalorder %s25, 1
      %p132 = por %p130, %p131
      %p134 = scmp.ne.s32.totalorder %s119, %s133
      %p135 = scmp.eq.s32.totalorder %s25, 0
      %p136 = por %p134, %p135
      %s138 = sadd.s32 %s137, 1
      %p141 = scmp.eq.s32.totalorder %s19, 1
      %p142 = scmp.ne.s32.totalorder %s137, %s139
      %p143 = scmp.eq.s32.totalorder %s19, 0
      %p144 = por %p142, %p143
      %p145 = scmp.ne.s32.totalorder %s137, %s139
      %p146 = scmp.eq.s32.totalorder %s24, 1
      %p147 = por %p145, %p146
      %p148 = scmp.ne.s32.totalorder %s139, %s140
      %p149 = scmp.eq.s32.totalorder %s24, 0
      %p150 = por %p148, %p149
      %p151 = scmp.ne.s32.totalorder %s139, %s140
      %p152 = scmp.eq.s32.totalorder %s25, 1
      %p153 = por %p151, %p152
      %p155 = scmp.ne.s32.totalorder %s140, %s154
      %p156 = scmp.eq.s32.totalorder %s25, 0
      %p157 = por %p155, %p156
      %s159 = sadd.s32 %s158, 1
      %p162 = scmp.eq.s32.totalorder %s19, 1
      %p163 = scmp.ne.s32.totalorder %s158, %s160
      %p164 = scmp.eq.s32.totalorder %s19, 0
      %p165 = por %p163, %p164
      %p166 = scmp.ne.s32.totalorder %s158, %s160
      %p167 = scmp.eq.s32.totalorder %s24, 1
      %p168 = por %p166, %p167
      %p169 = scmp.ne.s32.totalorder %s160, %s161
      %p170 = scmp.eq.s32.totalorder %s24, 0
      %p171 = por %p169, %p170
      %p172 = scmp.ne.s32.totalorder %s160, %s161
      %p173 = scmp.eq.s32.totalorder %s25, 1
      %p174 = por %p172, %p173
      %p176 = scmp.ne.s32.totalorder %s161, %s175
      %p177 = scmp.eq.s32.totalorder %s25, 0
      %p178 = por %p176, %p177
      %s179 = ssub.s32 %s19, %s26
      %p180 = scmp.eq.s32.totalorder %s179, 0
      %s182 = sadd.s32 %s181, 1
      %s183 = scalar_select %p180, %s181, %s182
      %p186 = pneg %p180
      %p187 = scmp.eq.s32.totalorder %s19, 1
      %p188 = por %p186, %p187
      %p189 = scmp.ne.s32.totalorder %s181, %s184
      %p190 = scmp.eq.s32.totalorder %s19, 0
      %p191 = por %p189, %p190
      %p192 = scmp.ne.s32.totalorder %s181, %s184
      %p193 = scmp.eq.s32.totalorder %s24, 1
      %p194 = por %p192, %p193
      %p195 = scmp.ne.s32.totalorder %s184, %s185
      %p196 = scmp.eq.s32.totalorder %s24, 0
      %p197 = por %p195, %p196
      %p198 = scmp.ne.s32.totalorder %s184, %s185
      %p199 = scmp.eq.s32.totalorder %s25, 1
      %p200 = por %p198, %p199
      %p202 = scmp.ne.s32.totalorder %s185, %s201
      %p203 = scmp.eq.s32.totalorder %s25, 0
      %p204 = por %p202, %p203
      %p205 = scmp.le.s32.totalorder 1, %s19
      %p206 = scmp.lt.s32.totalorder %s19, 3
      %p207 = pnand %p205, %p206
      %p208 = pneg %p207
      // Predicated region
      $region9: #{policy_gradient_forward.1} parent=5 // pred_check
        _
      $region10: #{policy_gradient_forward.1} parent=5 // pred_check_branch
        %210 = sbr.rel (%p207) target = $region12
      $region11: #{policy_gradient_forward.1} parent=5 // pred_region
        %s211 = ssub.s32 %s19, 1
        // Predicated region
        $region13: #{policy_gradient_forward.1} parent=11 // pred_check
          %p212 = pneg %p66
        $region14: #{policy_gradient_forward.1} parent=11 // pred_check_branch
          %214 = sbr.rel (%p212) target = $region16
        $region15: #{policy_gradient_forward.1} parent=11 // pred_region
          %s216 = ssub.s32 12096, 12096
          %217 = vsyncadd [#allocation4], %s216
          %s218 = sshll.u32 [#allocation3], 4
          %s219 = int_to_ptr.vmem [resolvable:$true] %s218
          %224 = dma.hbm_to_vmem [thread:$0]  %s1, 12096, %s219, [#allocation4], 192, 192, 12
        $region16: #{policy_gradient_forward.1} parent=11 // pred_fallthru
          _
        // Predicated region
        $region17: #{policy_gradient_forward.1} parent=11 // pred_check
          %p225 = pneg %p87
        $region18: #{policy_gradient_forward.1} parent=11 // pred_check_branch
          %227 = sbr.rel (%p225) target = $region20
        $region19: #{policy_gradient_forward.1} parent=11 // pred_region
          %s229 = ssub.s32 48, 48
          %230 = vsyncadd [#allocation7], %s229
          %s232 = sshll.u32 [#allocation6], 4
          %s233 = int_to_ptr.vmem [resolvable:$true] %s232
          %235 = dma.hbm_to_vmem [thread:$0]  %s2, 48, %s233, [#allocation7]
        $region20: #{policy_gradient_forward.1} parent=11 // pred_fallthru
          _
        // Predicated region
        $region21: #{policy_gradient_forward.1} parent=11 // pred_check
          %p236 = pneg %p108
        $region22: #{policy_gradient_forward.1} parent=11 // pred_check_branch
          %238 = sbr.rel (%p236) target = $region24
        $region23: #{policy_gradient_forward.1} parent=11 // pred_region
          %s240 = ssub.s32 115200, 115200
          %241 = vsyncadd [#allocation7], %s240
          %s242 = sshll.u32 [#allocation8], 4
          %s243 = int_to_ptr.vmem [resolvable:$true] %s242
          %248 = dma.hbm_to_vmem [thread:$0]  %s3, 115200, %s243, [#allocation7], 320, 320, 20
        $region24: #{policy_gradient_forward.1} parent=11 // pred_fallthru
          _
        // Predicated region
        $region25: #{policy_gradient_forward.1} parent=11 // pred_check
          %p249 = pneg %p129
        $region26: #{policy_gradient_forward.1} parent=11 // pred_check_branch
          %251 = sbr.rel (%p249) target = $region28
        $region27: #{policy_gradient_forward.1} parent=11 // pred_region
          %s253 = ssub.s32 80, 80
          %254 = vsyncadd [#allocation10], %s253
          %s256 = sshll.u32 [#allocation9], 4
          %s257 = int_to_ptr.vmem [resolvable:$true] %s256
          %259 = dma.hbm_to_vmem [thread:$0]  %s4, 80, %s257, [#allocation10]
        $region28: #{policy_gradient_forward.1} parent=11 // pred_fallthru
          _
        // Predicated region
        $region29: #{policy_gradient_forward.1} parent=11 // pred_check
          %p260 = pneg %p150
        $region30: #{policy_gradient_forward.1} parent=11 // pred_check_branch
          %262 = sbr.rel (%p260) target = $region32
        $region31: #{policy_gradient_forward.1} parent=11 // pred_region
          _
        $region32: #{policy_gradient_forward.1} parent=11 // pred_fallthru
          _
        // Predicated region
        $region33: #{policy_gradient_forward.1} parent=11 // pred_check
          %p263 = pneg %p171
        $region34: #{policy_gradient_forward.1} parent=11 // pred_check_branch
          %265 = sbr.rel (%p263) target = $region36
        $region35: #{policy_gradient_forward.1} parent=11 // pred_region
          %s267 = ssub.s32 16, 16
          %268 = vsyncadd [#allocation10], %s267
          %s270 = sshll.u32 [#allocation11], 4
          %s271 = int_to_ptr.vmem [resolvable:$true] %s270
          %273 = dma.hbm_to_vmem [thread:$0]  %s6, 16, %s271, [#allocation10]
        $region36: #{policy_gradient_forward.1} parent=11 // pred_fallthru
          _
      $region12: #{policy_gradient_forward.1} parent=5 // pred_fallthru
        _
      %p274 = scmp.lt.s32.totalorder %s19, 2
      // Predicated region
      $region37: #{policy_gradient_forward.1} parent=5 // pred_check
        %p275 = pneg %p274
      $region38: #{policy_gradient_forward.1} parent=5 // pred_check_branch
        %277 = sbr.rel (%p275) target = $region40
      $region39: #{policy_gradient_forward.1} parent=5 // pred_region
        // Predicated region
        $region41: #{policy_gradient_forward.1} parent=39 // pred_check
          %p278 = pneg %p39
        $region42: #{policy_gradient_forward.1} parent=39 // pred_check_branch
          %280 = sbr.rel (%p278) target = $region44
        $region43: #{policy_gradient_forward.1} parent=39 // pred_region
          %p281 = scmp.lt.s32.totalorder %s19, 1
          %s282 = scalar_select %p281, %s19, 1
          %s283 = smul.addr %s282, 3
          %s284 = smul.addr %s283, 8
          %s285 = scalar_lea.vmem %s0, %s284
        $region44: #{policy_gradient_forward.1} parent=39 // pred_fallthru
          _
      $region40: #{policy_gradient_forward.1} parent=5 // pred_fallthru
        _
      %p286 = scmp.le.s32.totalorder 1, %s19
      %p287 = scmp.lt.s32.totalorder %s19, 3
      %p288 = pnand %p286, %p287
      %p289 = pneg %p288
      // Predicated region
      $region45: #{policy_gradient_forward.1} parent=5 // pred_check
        _
      $region46: #{policy_gradient_forward.1} parent=5 // pred_check_branch
        %291 = sbr.rel (%p288) target = $region48
      $region47: #{policy_gradient_forward.1} parent=5 // pred_region
        %s292 = ssub.s32 %s19, 1
        // Predicated region
        $region49: #{policy_gradient_forward.1} parent=47 // pred_check
          %p293 = pneg %p66
        $region50: #{policy_gradient_forward.1} parent=47 // pred_check_branch
          %295 = sbr.rel (%p293) target = $region52
        $region51: #{policy_gradient_forward.1} parent=47 // pred_region
          %296 = dma.done [#allocation4], 12096
        $region52: #{policy_gradient_forward.1} parent=47 // pred_fallthru
          _
        // Predicated region
        $region53: #{policy_gradient_forward.1} parent=47 // pred_check
          %p297 = pneg %p87
        $region54: #{policy_gradient_forward.1} parent=47 // pred_check_branch
          %299 = sbr.rel (%p297) target = $region56
        $region55: #{policy_gradient_forward.1} parent=47 // pred_region
          %300 = dma.done [#allocation7], 48
        $region56: #{policy_gradient_forward.1} parent=47 // pred_fallthru
          _
        // Predicated region
        $region57: #{policy_gradient_forward.1} parent=47 // pred_check
          %p301 = pneg %p108
        $region58: #{policy_gradient_forward.1} parent=47 // pred_check_branch
          %303 = sbr.rel (%p301) target = $region60
        $region59: #{policy_gradient_forward.1} parent=47 // pred_region
          %304 = dma.done [#allocation7], 115200
        $region60: #{policy_gradient_forward.1} parent=47 // pred_fallthru
          _
        // Predicated region
        $region61: #{policy_gradient_forward.1} parent=47 // pred_check
          %p305 = pneg %p129
        $region62: #{policy_gradient_forward.1} parent=47 // pred_check_branch
          %307 = sbr.rel (%p305) target = $region64
        $region63: #{policy_gradient_forward.1} parent=47 // pred_region
          %308 = dma.done [#allocation10], 80
        $region64: #{policy_gradient_forward.1} parent=47 // pred_fallthru
          _
        // Predicated region
        $region65: #{policy_gradient_forward.1} parent=47 // pred_check
          %p309 = pneg %p171
        $region66: #{policy_gradient_forward.1} parent=47 // pred_check_branch
          %311 = sbr.rel (%p309) target = $region68
        $region67: #{policy_gradient_forward.1} parent=47 // pred_region
          %312 = dma.done [#allocation10], 16
        $region68: #{policy_gradient_forward.1} parent=47 // pred_fallthru
          _
        %p313 = scmp.lt.s32.totalorder %s24, 1
        %s314 = scalar_select %p313, %s24, 1
        %s315 = smul.addr %s314, 3
        %s316 = smul.addr %s315, 8
        %s317 = scalar_lea.vmem %s0, %s316
        %p318 = pneg %p45
        %p319 = pneg %p42
        %p320 = pneg %p66
        %p321 = pneg %p63
        %p322 = pneg %p87
        %p323 = pneg %p84
        %p324 = pneg %p108
        %p325 = pneg %p105
        %p326 = pneg %p129
        %p327 = pneg %p126
        %p328 = pneg %p150
        %p329 = pneg %p147
        %p330 = pneg %p171
        %p331 = pneg %p168
        %p332 = pneg %p197
        %p333 = pneg %p194
        %s334 = sand.u32 %s184, 1
        %s335 = scalar_lea.sflag [#allocation5], %s334
        %s336 = sand.u32 %s184, 1
        %s337 = scalar_lea.vmem [#allocation12], %s336
        %p338 = scmp.lt.s32.totalorder %s24, 1
        %s339 = scalar_select %p338, %s24, 1
        %s340 = smul.addr %s339, 3
        %s341 = smul.addr %s340, 8
        %s342 = scalar_lea.vmem %s0, %s341
        %v344 = vld [vmem:[%s342] sm:$0xff]
        %v345 = vld [vmem:[%s342 + $0x8] sm:$0xff]
        %v346 = vld [vmem:[%s342 + $0x10] sm:$0xf]
        %v347 = vpack.c.bf16 %v345, %v344
        %v348 = vpack.c.bf16 %v346, %v346
        %v349 = vld [vmem:[#allocation3] sm:$0xff]
        %v350 = vld [vmem:[#allocation3 + $0x8] sm:$0xf]
        %v351 = vld [vmem:[#allocation3 + $0xc] sm:$0xff]
        %v352 = vld [vmem:[#allocation3 + $0x14] sm:$0xf]
        %v353 = vld [vmem:[#allocation3 + $0x18] sm:$0xff]
        %v354 = vld [vmem:[#allocation3 + $0x20] sm:$0xf]
        %v355 = vld [vmem:[#allocation3 + $0x24] sm:$0xff]
        %v356 = vld [vmem:[#allocation3 + $0x2c] sm:$0xf]
        %v357 = vld [vmem:[#allocation3 + $0x30] sm:$0xff]
        %v358 = vld [vmem:[#allocation3 + $0x38] sm:$0xf]
        %v359 = vld [vmem:[#allocation3 + $0x3c] sm:$0xff]
        %v360 = vld [vmem:[#allocation3 + $0x44] sm:$0xf]
        %v361 = vld [vmem:[#allocation3 + $0x48] sm:$0x77]
        %v362 = vld [vmem:[#allocation3 + $0x50] sm:$0x7]
        %s363 = scalar_lea.vmem [#allocation3], 84
        %v364 = vld [vmem:[%s363] sm:$0xff]
        %v365 = vld [vmem:[%s363 + $0x8] sm:$0xf]
        %v366 = vld [vmem:[%s363 + $0xc] sm:$0xff]
        %v367 = vld [vmem:[%s363 + $0x14] sm:$0xf]
        %v368 = vld [vmem:[%s363 + $0x18] sm:$0xff]
        %v369 = vld [vmem:[%s363 + $0x20] sm:$0xf]
        %v370 = vld [vmem:[%s363 + $0x24] sm:$0xff]
        %v371 = vld [vmem:[%s363 + $0x2c] sm:$0xf]
        %v372 = vld [vmem:[%s363 + $0x30] sm:$0xff]
        %v373 = vld [vmem:[%s363 + $0x38] sm:$0xf]
        %v374 = vld [vmem:[%s363 + $0x3c] sm:$0xff]
        %v375 = vld [vmem:[%s363 + $0x44] sm:$0xf]
        %v376 = vld [vmem:[%s363 + $0x48] sm:$0x77]
        %v377 = vld [vmem:[%s363 + $0x50] sm:$0x7]
        %380 = vrot.lane.b32.xlu0 %v347, 125
        %v381 = vpop.permute.xlu0 %380
        %382 = vrot.lane.b32.xlu0 %v348, 125
        %v383 = vpop.permute.xlu0 %382
        %v398 = vunpack.c.l.b16 %v364
        %v399 = vunpack.c.h.b16 %v364
        %v400 = vunpack.c.l.b16 %v365
        %v401 = vunpack.c.l.b16 %v366
        %v402 = vunpack.c.h.b16 %v366
        %v403 = vunpack.c.l.b16 %v367
        %v404 = vunpack.c.l.b16 %v368
        %v405 = vunpack.c.h.b16 %v368
        %v406 = vunpack.c.l.b16 %v369
        %v407 = vunpack.c.l.b16 %v370
        %v408 = vunpack.c.h.b16 %v370
        %v409 = vunpack.c.l.b16 %v371
        %v410 = vunpack.c.l.b16 %v372
        %v411 = vunpack.c.h.b16 %v372
        %v412 = vunpack.c.l.b16 %v373
        %v413 = vunpack.c.l.b16 %v374
        %v414 = vunpack.c.h.b16 %v374
        %v415 = vunpack.c.l.b16 %v375
        %v416 = vunpack.c.l.b16 %v376
        %v417 = vunpack.c.h.b16 %v376
        %v418 = vunpack.c.l.b16 %v377
        %v419 = vpack.c.b16 %v401, %v398
        %v420 = vpack.c.b16 %v402, %v399
        %v421 = vpack.c.b16 %v403, %v400
        %v422 = vpack.c.b16 %v407, %v404
        %v423 = vpack.c.b16 %v408, %v405
        %v424 = vpack.c.b16 %v409, %v406
        %v425 = vpack.c.b16 %v413, %v410
        %v426 = vpack.c.b16 %v414, %v411
        %v427 = vpack.c.b16 %v415, %v412
        %v428 = vpack.c.b16 %v416, %v416
        %v429 = vpack.c.b16 %v417, %v417
        %v430 = vpack.c.b16 %v418, %v418
        %vm440 = vcmask 441344
        %v442 = vsel %vm440, %v381, 0
        %v445 = vsel %vm440, %v383, 0
        %vm447 = vcmask 1042432
        %v449 = vsel %vm447, %v428, 0
        %v452 = vsel %vm447, %v429, 0
        %v455 = vsel %vm447, %v430, 0
        %457 = vmatprep.subr.bf16.mxu0 %v420
        %458 = vmatpush1.bf16.msra.mxu0 %v419
        %459 = vmatprep.subr.bf16.mxu0 %v423
        %460 = vmatpush1.bf16.msra.mxu0 %v422
        %461 = vmatprep.subr.bf16.mxu0 %v426
        %462 = vmatpush1.bf16.msra.mxu0 %v425
        %463 = vmatprep.subr.bf16.mxu0 %v452
        %464 = vmatpush1.bf16.msra.mxu0 %v449
        %465 = vmatprep.subr.bf16.mxu0 0
        %466 = vmatpush1.bf16.msra.mxu0 0
        %467 = vmatprep.subr.bf16.mxu0 0
        %468 = vmatpush1.bf16.msra.mxu0 0
        %469 = vmatprep.subr.bf16.mxu0 0
        %470 = vmatpush1.bf16.msra.mxu0 0
        %471 = vmatprep.subr.bf16.mxu0 0
        %472 = vmatpush1.bf16.msra.mxu0 0
        %473 = vmatprep.subr.bf16.mxu0 0
        %474 = vmatpush1.bf16.msra.mxu0 0
        %475 = vmatprep.subr.bf16.mxu0 0
        %476 = vmatpush1.bf16.msra.mxu0 0
        %477 = vmatprep.subr.bf16.mxu0 0
        %478 = vmatpush1.bf16.msra.mxu0 0
        %479 = vmatprep.subr.bf16.mxu0 0
        %480 = vmatpush1.bf16.msra.mxu0 0
        %481 = vmatprep.subr.bf16.mxu0 0
        %482 = vmatpush1.bf16.msra.mxu0 0
        %483 = vmatprep.subr.bf16.mxu0 0
        %484 = vmatpush1.bf16.msra.mxu0 0
        %485 = vmatprep.subr.bf16.mxu0 0
        %486 = vmatpush1.bf16.msra.mxu0 0
        %487 = vmatprep.subr.bf16.mxu0 0
        %488 = vmatpush1.bf16.msra.mxu0 0
        %489 = vmatprep.mubr.bf16.mxu0 0
        %490 = vmatmul.mubr.bf16.gmra.mrb[0].mxu0 %v442
        %v491 = vpop.f32.mrb[0].mxu0
        %v492 = vadd.f32 0.0, %v491
        %v493 = vpop.f32.mrb[0].mxu0
        %v494 = vadd.f32 0.0, %v493
        %v495 = vpop.f32.mrb[0].mxu0
        %v496 = vadd.f32 0.0, %v495
        %v497 = vpop.f32.mrb[0].mxu0
        %v498 = vadd.f32 0.0, %v497
        %499 = vmatprep.mubr.bf16.mxu0 0
        %500 = vmatmul.mubr.bf16.gmra.mrb[0].mxu0 %v445
        %v501 = vpop.f32.mrb[0].mxu0
        %v502 = vadd.f32 0.0, %v501
        %v503 = vpop.f32.mrb[0].mxu0
        %v504 = vadd.f32 0.0, %v503
        %v505 = vpop.f32.mrb[0].mxu0
        %v506 = vpop.f32.mrb[0].mxu0
        %507 = vdwg.mxu0
        %508 = vmatprep.subr.bf16.mxu0 0
        %509 = vmatpush1.bf16.msra.mxu0 %v421
        %510 = vmatprep.subr.bf16.mxu0 0
        %511 = vmatpush1.bf16.msra.mxu0 %v424
        %512 = vmatprep.subr.bf16.mxu0 0
        %513 = vmatpush1.bf16.msra.mxu0 %v427
        %514 = vmatprep.subr.bf16.mxu0 0
        %515 = vmatpush1.bf16.msra.mxu0 %v455
        %516 = vmatprep.subr.bf16.mxu0 0
        %517 = vmatpush1.bf16.msra.mxu0 0
        %518 = vmatprep.subr.bf16.mxu0 0
        %519 = vmatpush1.bf16.msra.mxu0 0
        %520 = vmatprep.subr.bf16.mxu0 0
        %521 = vmatpush1.bf16.msra.mxu0 0
        %522 = vmatprep.subr.bf16.mxu0 0
        %523 = vmatpush1.bf16.msra.mxu0 0
        %524 = vmatprep.subr.bf16.mxu0 0
        %525 = vmatpush1.bf16.msra.mxu0 0
        %526 = vmatprep.subr.bf16.mxu0 0
        %527 = vmatpush1.bf16.msra.mxu0 0
        %528 = vmatprep.subr.bf16.mxu0 0
        %529 = vmatpush1.bf16.msra.mxu0 0
        %530 = vmatprep.subr.bf16.mxu0 0
        %531 = vmatpush1.bf16.msra.mxu0 0
        %532 = vmatprep.subr.bf16.mxu0 0
        %533 = vmatpush1.bf16.msra.mxu0 0
        %534 = vmatprep.subr.bf16.mxu0 0
        %535 = vmatpush1.bf16.msra.mxu0 0
        %536 = vmatprep.subr.bf16.mxu0 0
        %537 = vmatpush1.bf16.msra.mxu0 0
        %538 = vmatprep.subr.bf16.mxu0 0
        %539 = vmatpush1.bf16.msra.mxu0 0
        %540 = vmatprep.mubr.bf16.mxu0 0
        %541 = vmatmul.mubr.bf16.gmra.mrb[0].mxu0 %v442
        %v542 = vpop.f32.mrb[0].mxu0
        %v543 = vadd.f32 0.0, %v542
        %v544 = vpop.f32.mrb[0].mxu0
        %v545 = vpop.f32.mrb[0].mxu0
        %v546 = vadd.f32 0.0, %v545
        %v547 = vpop.f32.mrb[0].mxu0
        %548 = vmatprep.mubr.bf16.mxu0 0
        %549 = vmatmul.mubr.bf16.gmra.mrb[0].mxu0 %v445
        %v550 = vpop.f32.mrb[0].mxu0
        %v551 = vadd.f32 0.0, %v550
        %v552 = vpop.f32.mrb[0].mxu0
        %v553 = vpop.f32.mrb[0].mxu0
        %v554 = vpop.f32.mrb[0].mxu0
        %555 = vdwg.mxu0
        %v570 = vunpack.c.l.b16 %v349
        %v571 = vunpack.c.h.b16 %v349
        %v572 = vunpack.c.l.b16 %v350
        %v573 = vunpack.c.l.b16 %v351
        %v574 = vunpack.c.h.b16 %v351
        %v575 = vunpack.c.l.b16 %v352
        %v576 = vunpack.c.l.b16 %v353
        %v577 = vunpack.c.h.b16 %v353
        %v578 = vunpack.c.l.b16 %v354
        %v579 = vunpack.c.l.b16 %v355
        %v580 = vunpack.c.h.b16 %v355
        %v581 = vunpack.c.l.b16 %v356
        %v582 = vunpack.c.l.b16 %v357
        %v583 = vunpack.c.h.b16 %v357
        %v584 = vunpack.c.l.b16 %v358
        %v585 = vunpack.c.l.b16 %v359
        %v586 = vunpack.c.h.b16 %v359
        %v587 = vunpack.c.l.b16 %v360
        %v588 = vunpack.c.l.b16 %v361
        %v589 = vunpack.c.h.b16 %v361
        %v590 = vunpack.c.l.b16 %v362
        %v591 = vpack.c.b16 %v573, %v570
        %v592 = vpack.c.b16 %v574, %v571
        %v593 = vpack.c.b16 %v575, %v572
        %v594 = vpack.c.b16 %v579, %v576
        %v595 = vpack.c.b16 %v580, %v577
        %v596 = vpack.c.b16 %v581, %v578
        %v597 = vpack.c.b16 %v585, %v582
        %v598 = vpack.c.b16 %v586, %v583
        %v599 = vpack.c.b16 %v587, %v584
        %v600 = vpack.c.b16 %v588, %v588
        %v601 = vpack.c.b16 %v589, %v589
        %v602 = vpack.c.b16 %v590, %v590
        %v613 = vsel %vm440, %v347, 0
        %v616 = vsel %vm440, %v348, 0
        %v619 = vsel %vm447, %v600, 0
        %v622 = vsel %vm447, %v601, 0
        %v625 = vsel %vm447, %v602, 0
        %627 = vmatprep.subr.bf16.mxu0 %v592
        %628 = vmatpush1.bf16.msra.mxu0 %v591
        %629 = vmatprep.subr.bf16.mxu0 %v595
        %630 = vmatpush1.bf16.msra.mxu0 %v594
        %631 = vmatprep.subr.bf16.mxu0 %v598
        %632 = vmatpush1.bf16.msra.mxu0 %v597
        %633 = vmatprep.subr.bf16.mxu0 %v622
        %634 = vmatpush1.bf16.msra.mxu0 %v619
        %635 = vmatprep.subr.bf16.mxu0 0
        %636 = vmatpush1.bf16.msra.mxu0 0
        %637 = vmatprep.subr.bf16.mxu0 0
        %638 = vmatpush1.bf16.msra.mxu0 0
        %639 = vmatprep.subr.bf16.mxu0 0
        %640 = vmatpush1.bf16.msra.mxu0 0
        %641 = vmatprep.subr.bf16.mxu0 0
        %642 = vmatpush1.bf16.msra.mxu0 0
        %643 = vmatprep.subr.bf16.mxu0 0
        %644 = vmatpush1.bf16.msra.mxu0 0
        %645 = vmatprep.subr.bf16.mxu0 0
        %646 = vmatpush1.bf16.msra.mxu0 0
        %647 = vmatprep.subr.bf16.mxu0 0
        %648 = vmatpush1.bf16.msra.mxu0 0
        %649 = vmatprep.subr.bf16.mxu0 0
        %650 = vmatpush1.bf16.msra.mxu0 0
        %651 = vmatprep.subr.bf16.mxu0 0
        %652 = vmatpush1.bf16.msra.mxu0 0
        %653 = vmatprep.subr.bf16.mxu0 0
        %654 = vmatpush1.bf16.msra.mxu0 0
        %655 = vmatprep.subr.bf16.mxu0 0
        %656 = vmatpush1.bf16.msra.mxu0 0
        %657 = vmatprep.subr.bf16.mxu0 0
        %658 = vmatpush1.bf16.msra.mxu0 0
        %659 = vmatprep.mubr.bf16.mxu0 0
        %660 = vmatmul.mubr.bf16.gmra.mrb[0].mxu0 %v613
        %v661 = vpop.f32.mrb[0].mxu0
        %v662 = vadd.f32 %v492, %v661
        %v663 = vpop.f32.mrb[0].mxu0
        %v664 = vadd.f32 %v494, %v663
        %v665 = vpop.f32.mrb[0].mxu0
        %v666 = vadd.f32 %v496, %v665
        %v667 = vpop.f32.mrb[0].mxu0
        %v668 = vadd.f32 %v498, %v667
        %669 = vmatprep.mubr.bf16.mxu0 0
        %670 = vmatmul.mubr.bf16.gmra.mrb[0].mxu0 %v616
        %v671 = vpop.f32.mrb[0].mxu0
        %v672 = vadd.f32 %v502, %v671
        %v673 = vpop.f32.mrb[0].mxu0
        %v674 = vadd.f32 %v504, %v673
        %v675 = vpop.f32.mrb[0].mxu0
        %v676 = vpop.f32.mrb[0].mxu0
        %677 = vdwg.mxu0
        %678 = vmatprep.subr.bf16.mxu0 0
        %679 = vmatpush1.bf16.msra.mxu0 %v593
        %680 = vmatprep.subr.bf16.mxu0 0
        %681 = vmatpush1.bf16.msra.mxu0 %v596
        %682 = vmatprep.subr.bf16.mxu0 0
        %683 = vmatpush1.bf16.msra.mxu0 %v599
        %684 = vmatprep.subr.bf16.mxu0 0
        %685 = vmatpush1.bf16.msra.mxu0 %v625
        %686 = vmatprep.subr.bf16.mxu0 0
        %687 = vmatpush1.bf16.msra.mxu0 0
        %688 = vmatprep.subr.bf16.mxu0 0
        %689 = vmatpush1.bf16.msra.mxu0 0
        %690 = vmatprep.subr.bf16.mxu0 0
        %691 = vmatpush1.bf16.msra.mxu0 0
        %692 = vmatprep.subr.bf16.mxu0 0
        %693 = vmatpush1.bf16.msra.mxu0 0
        %694 = vmatprep.subr.bf16.mxu0 0
        %695 = vmatpush1.bf16.msra.mxu0 0
        %696 = vmatprep.subr.bf16.mxu0 0
        %697 = vmatpush1.bf16.msra.mxu0 0
        %698 = vmatprep.subr.bf16.mxu0 0
        %699 = vmatpush1.bf16.msra.mxu0 0
        %700 = vmatprep.subr.bf16.mxu0 0
        %701 = vmatpush1.bf16.msra.mxu0 0
        %702 = vmatprep.subr.bf16.mxu0 0
        %703 = vmatpush1.bf16.msra.mxu0 0
        %704 = vmatprep.subr.bf16.mxu0 0
        %705 = vmatpush1.bf16.msra.mxu0 0
        %706 = vmatprep.subr.bf16.mxu0 0
        %707 = vmatpush1.bf16.msra.mxu0 0
        %708 = vmatprep.subr.bf16.mxu0 0
        %709 = vmatpush1.bf16.msra.mxu0 0
        %710 = vmatprep.mubr.bf16.mxu0 0
        %711 = vmatmul.mubr.bf16.gmra.mrb[0].mxu0 %v613
        %v712 = vpop.f32.mrb[0].mxu0
        %v713 = vadd.f32 %v543, %v712
        %v714 = vpop.f32.mrb[0].mxu0
        %v715 = vpop.f32.mrb[0].mxu0
        %v716 = vadd.f32 %v546, %v715
        %v717 = vpop.f32.mrb[0].mxu0
        %718 = vmatprep.mubr.bf16.mxu0 0
        %719 = vmatmul.mubr.bf16.gmra.mrb[0].mxu0 %v616
        %v720 = vpop.f32.mrb[0].mxu0
        %v721 = vadd.f32 %v551, %v720
        %v722 = vpop.f32.mrb[0].mxu0
        %v723 = vpop.f32.mrb[0].mxu0
        %v724 = vpop.f32.mrb[0].mxu0
        %725 = vdwg.mxu0
        %s726 = scalar_lea.vmem [#allocation3], 168
        %v727 = vld [vmem:[%s726] sm:$0xff]
        %v728 = vld [vmem:[%s726 + $0x8] sm:$0xf]
        %v729 = vld [vmem:[%s726 + $0xc] sm:$0xff]
        %v730 = vld [vmem:[%s726 + $0x14] sm:$0xf]
        %v731 = vld [vmem:[%s726 + $0x18] sm:$0xff]
        %v732 = vld [vmem:[%s726 + $0x20] sm:$0xf]
        %v733 = vld [vmem:[%s726 + $0x24] sm:$0xff]
        %v734 = vld [vmem:[%s726 + $0x2c] sm:$0xf]
        %v735 = vld [vmem:[%s726 + $0x30] sm:$0xff]
        %v736 = vld [vmem:[%s726 + $0x38] sm:$0xf]
        %v737 = vld [vmem:[%s726 + $0x3c] sm:$0xff]
        %v738 = vld [vmem:[%s726 + $0x44] sm:$0xf]
        %v739 = vld [vmem:[%s726 + $0x48] sm:$0x77]
        %v740 = vld [vmem:[%s726 + $0x50] sm:$0x7]
        %741 = vrot.lane.b32.xlu0 %v347, 122
        %v742 = vpop.permute.xlu0 %741
        %743 = vrot.lane.b32.xlu0 %v348, 122
        %v744 = vpop.permute.xlu0 %743
        %v759 = vunpack.c.l.b16 %v727
        %v760 = vunpack.c.h.b16 %v727
        %v761 = vunpack.c.l.b16 %v728
        %v762 = vunpack.c.l.b16 %v729
        %v763 = vunpack.c.h.b16 %v729
        %v764 = vunpack.c.l.b16 %v730
        %v765 = vunpack.c.l.b16 %v731
        %v766 = vunpack.c.h.b16 %v731
        %v767 = vunpack.c.l.b16 %v732
        %v768 = vunpack.c.l.b16 %v733
        %v769 = vunpack.c.h.b16 %v733
        %v770 = vunpack.c.l.b16 %v734
        %v771 = vunpack.c.l.b16 %v735
        %v772 = vunpack.c.h.b16 %v735
        %v773 = vunpack.c.l.b16 %v736
        %v774 = vunpack.c.l.b16 %v737
        %v775 = vunpack.c.h.b16 %v737
        %v776 = vunpack.c.l.b16 %v738
        %v777 = vunpack.c.l.b16 %v739
        %v778 = vunpack.c.h.b16 %v739
        %v779 = vunpack.c.l.b16 %v740
        %v780 = vpack.c.b16 %v762, %v759
        %v781 = vpack.c.b16 %v763, %v760
        %v782 = vpack.c.b16 %v764, %v761
        %v783 = vpack.c.b16 %v768, %v765
        %v784 = vpack.c.b16 %v769, %v766
        %v785 = vpack.c.b16 %v770, %v767
        %v786 = vpack.c.b16 %v774, %v771
        %v787 = vpack.c.b16 %v775, %v772
        %v788 = vpack.c.b16 %v776, %v773
        %v789 = vpack.c.b16 %v777, %v777
        %v790 = vpack.c.b16 %v778, %v778
        %v791 = vpack.c.b16 %v779, %v779
        %v802 = vsel %vm440, %v742, 0
        %v805 = vsel %vm440, %v744, 0
        %v808 = vsel %vm447, %v789, 0
        %v811 = vsel %vm447, %v790, 0
        %v814 = vsel %vm447, %v791, 0
        %816 = vmatprep.subr.bf16.mxu0 %v781
        %817 = vmatpush1.bf16.msra.mxu0 %v780
        %818 = vmatprep.subr.bf16.mxu0 %v784
        %819 = vmatpush1.bf16.msra.mxu0 %v783
        %820 = vmatprep.subr.bf16.mxu0 %v787
        %821 = vmatpush1.bf16.msra.mxu0 %v786
        %822 = vmatprep.subr.bf16.mxu0 %v811
        %823 = vmatpush1.bf16.msra.mxu0 %v808
        %824 = vmatprep.subr.bf16.mxu0 0
        %825 = vmatpush1.bf16.msra.mxu0 0
        %826 = vmatprep.subr.bf16.mxu0 0
        %827 = vmatpush1.bf16.msra.mxu0 0
        %828 = vmatprep.subr.bf16.mxu0 0
        %829 = vmatpush1.bf16.msra.mxu0 0
        %830 = vmatprep.subr.bf16.mxu0 0
        %831 = vmatpush1.bf16.msra.mxu0 0
        %832 = vmatprep.subr.bf16.mxu0 0
        %833 = vmatpush1.bf16.msra.mxu0 0
        %834 = vmatprep.subr.bf16.mxu0 0
        %835 = vmatpush1.bf16.msra.mxu0 0
        %836 = vmatprep.subr.bf16.mxu0 0
        %837 = vmatpush1.bf16.msra.mxu0 0
        %838 = vmatprep.subr.bf16.mxu0 0
        %839 = vmatpush1.bf16.msra.mxu0 0
        %840 = vmatprep.subr.bf16.mxu0 0
        %841 = vmatpush1.bf16.msra.mxu0 0
        %842 = vmatprep.subr.bf16.mxu0 0
        %843 = vmatpush1.bf16.msra.mxu0 0
        %844 = vmatprep.subr.bf16.mxu0 0
        %845 = vmatpush1.bf16.msra.mxu0 0
        %846 = vmatprep.subr.bf16.mxu0 0
        %847 = vmatpush1.bf16.msra.mxu0 0
        %848 = vmatprep.mubr.bf16.mxu0 0
        %849 = vmatmul.mubr.bf16.gmra.mrb[0].mxu0 %v802
        %v850 = vpop.f32.mrb[0].mxu0
        %v851 = vadd.f32 0.0, %v850
        %v852 = vpop.f32.mrb[0].mxu0
        %v853 = vadd.f32 0.0, %v852
        %v854 = vpop.f32.mrb[0].mxu0
        %v855 = vadd.f32 0.0, %v854
        %v856 = vpop.f32.mrb[0].mxu0
        %v857 = vadd.f32 0.0, %v856
        %858 = vmatprep.mubr.bf16.mxu0 0
        %859 = vmatmul.mubr.bf16.gmra.mrb[0].mxu0 %v805
        %v860 = vpop.f32.mrb[0].mxu0
        %v861 = vadd.f32 0.0, %v860
        %v862 = vpop.f32.mrb[0].mxu0
        %v863 = vadd.f32 0.0, %v862
        %v864 = vpop.f32.mrb[0].mxu0
        %v865 = vpop.f32.mrb[0].mxu0
        %866 = vdwg.mxu0
        %867 = vmatprep.subr.bf16.mxu0 0
        %868 = vmatpush1.bf16.msra.mxu0 %v782
        %869 = vmatprep.subr.bf16.mxu0 0
        %870 = vmatpush1.bf16.msra.mxu0 %v785
        %871 = vmatprep.subr.bf16.mxu0 0
        %872 = vmatpush1.bf16.msra.mxu0 %v788
        %873 = vmatprep.subr.bf16.mxu0 0
        %874 = vmatpush1.bf16.msra.mxu0 %v814
        %875 = vmatprep.subr.bf16.mxu0 0
        %876 = vmatpush1.bf16.msra.mxu0 0
        %877 = vmatprep.subr.bf16.mxu0 0
        %878 = vmatpush1.bf16.msra.mxu0 0
        %879 = vmatprep.subr.bf16.mxu0 0
        %880 = vmatpush1.bf16.msra.mxu0 0
        %881 = vmatprep.subr.bf16.mxu0 0
        %882 = vmatpush1.bf16.msra.mxu0 0
        %883 = vmatprep.subr.bf16.mxu0 0
        %884 = vmatpush1.bf16.msra.mxu0 0
        %885 = vmatprep.subr.bf16.mxu0 0
        %886 = vmatpush1.bf16.msra.mxu0 0
        %887 = vmatprep.subr.bf16.mxu0 0
        %888 = vmatpush1.bf16.msra.mxu0 0
        %889 = vmatprep.subr.bf16.mxu0 0
        %890 = vmatpush1.bf16.msra.mxu0 0
        %891 = vmatprep.subr.bf16.mxu0 0
        %892 = vmatpush1.bf16.msra.mxu0 0
        %893 = vmatprep.subr.bf16.mxu0 0
        %894 = vmatpush1.bf16.msra.mxu0 0
        %895 = vmatprep.subr.bf16.mxu0 0
        %896 = vmatpush1.bf16.msra.mxu0 0
        %897 = vmatprep.subr.bf16.mxu0 0
        %898 = vmatpush1.bf16.msra.mxu0 0
        %899 = vmatprep.mubr.bf16.mxu0 0
        %900 = vmatmul.mubr.bf16.gmra.mrb[0].mxu0 %v802
        %v901 = vpop.f32.mrb[0].mxu0
        %v902 = vadd.f32 0.0, %v901
        %v903 = vpop.f32.mrb[0].mxu0
        %v904 = vpop.f32.mrb[0].mxu0
        %v905 = vadd.f32 0.0, %v904
        %v906 = vpop.f32.mrb[0].mxu0
        %907 = vmatprep.mubr.bf16.mxu0 0
        %908 = vmatmul.mubr.bf16.gmra.mrb[0].mxu0 %v805
        %v909 = vpop.f32.mrb[0].mxu0
        %v910 = vadd.f32 0.0, %v909
        %v911 = vpop.f32.mrb[0].mxu0
        %v912 = vpop.f32.mrb[0].mxu0
        %v913 = vpop.f32.mrb[0].mxu0
        %914 = vdwg.mxu0
        %v915 = vadd.f32 %v662, %v851
        %v916 = vadd.f32 %v664, %v853
        %v917 = vadd.f32 %v713, %v902
        %v918 = vadd.f32 %v666, %v855
        %v919 = vadd.f32 %v668, %v857
        %v920 = vadd.f32 %v716, %v905
        %v921 = vadd.f32 %v672, %v861
        %v922 = vadd.f32 %v674, %v863
        %v923 = vadd.f32 %v721, %v910
        %s924 = scalar_lea.vmem [#allocation3], 252
        %v925 = vld [vmem:[%s924] sm:$0xff]
        %v926 = vld [vmem:[%s924 + $0x8] sm:$0xf]
        %v927 = vld [vmem:[%s924 + $0xc] sm:$0xff]
        %v928 = vld [vmem:[%s924 + $0x14] sm:$0xf]
        %v929 = vld [vmem:[%s924 + $0x18] sm:$0xff]
        %v930 = vld [vmem:[%s924 + $0x20] sm:$0xf]
        %v931 = vld [vmem:[%s924 + $0x24] sm:$0xff]
        %v932 = vld [vmem:[%s924 + $0x2c] sm:$0xf]
        %v933 = vld [vmem:[%s924 + $0x30] sm:$0xff]
        %v934 = vld [vmem:[%s924 + $0x38] sm:$0xf]
        %v935 = vld [vmem:[%s924 + $0x3c] sm:$0xff]
        %v936 = vld [vmem:[%s924 + $0x44] sm:$0xf]
        %v937 = vld [vmem:[%s924 + $0x48] sm:$0x77]
        %v938 = vld [vmem:[%s924 + $0x50] sm:$0x7]
        %vm939 = vsmask.f32 7424
        %v940 = vshrl.u32 %v347, 16
        %v942 = vshll.u32 %v347, 16
        %v944 = vrot.slane %v942, 1
        %v945 = vor.u32 %v940, %v944
        %v946 = vshll.u32 %v348, 16
        %v948 = vrot.slane %v946, 1
        %v949 = vsel %vm939, %v945, %v948
        %v950 = vshrl.u32 %v348, 16
        %v952 = vor.u32 %v950, %v948
        %v967 = vunpack.c.l.b16 %v925
        %v968 = vunpack.c.h.b16 %v925
        %v969 = vunpack.c.l.b16 %v926
        %v970 = vunpack.c.l.b16 %v927
        %v971 = vunpack.c.h.b16 %v927
        %v972 = vunpack.c.l.b16 %v928
        %v973 = vunpack.c.l.b16 %v929
        %v974 = vunpack.c.h.b16 %v929
        %v975 = vunpack.c.l.b16 %v930
        %v976 = vunpack.c.l.b16 %v931
        %v977 = vunpack.c.h.b16 %v931
        %v978 = vunpack.c.l.b16 %v932
        %v979 = vunpack.c.l.b16 %v933
        %v980 = vunpack.c.h.b16 %v933
        %v981 = vunpack.c.l.b16 %v934
        %v982 = vunpack.c.l.b16 %v935
        %v983 = vunpack.c.h.b16 %v935
        %v984 = vunpack.c.l.b16 %v936
        %v985 = vunpack.c.l.b16 %v937
        %v986 = vunpack.c.h.b16 %v937
        %v987 = vunpack.c.l.b16 %v938
        %v988 = vpack.c.b16 %v970, %v967
        %v989 = vpack.c.b16 %v971, %v968
        %v990 = vpack.c.b16 %v972, %v969
        %v991 = vpack.c.b16 %v976, %v973
        %v992 = vpack.c.b16 %v977, %v974
        %v993 = vpack.c.b16 %v978, %v975
        %v994 = vpack.c.b16 %v982, %v979
        %v995 = vpack.c.b16 %v983, %v980
        %v996 = vpack.c.b16 %v984, %v981
        %v997 = vpack.c.b16 %v985, %v985
        %v998 = vpack.c.b16 %v986, %v986
        %v999 = vpack.c.b16 %v987, %v987
        %v1010 = vsel %vm440, %v949, 0
        %v1013 = vsel %vm440, %v952, 0
        %v1016 = vsel %vm447, %v997, 0
        %v1019 = vsel %vm447, %v998, 0
        %v1022 = vsel %vm447, %v999, 0
        %1024 = vmatprep.subr.bf16.mxu0 %v989
        %1025 = vmatpush1.bf16.msra.mxu0 %v988
        %1026 = vmatprep.subr.bf16.mxu0 %v992
        %1027 = vmatpush1.bf16.msra.mxu0 %v991
        %1028 = vmatprep.subr.bf16.mxu0 %v995
        %1029 = vmatpush1.bf16.msra.mxu0 %v994
        %1030 = vmatprep.subr.bf16.mxu0 %v1019
        %1031 = vmatpush1.bf16.msra.mxu0 %v1016
        %1032 = vmatprep.subr.bf16.mxu0 0
        %1033 = vmatpush1.bf16.msra.mxu0 0
        %1034 = vmatprep.subr.bf16.mxu0 0
        %1035 = vmatpush1.bf16.msra.mxu0 0
        %1036 = vmatprep.subr.bf16.mxu0 0
        %1037 = vmatpush1.bf16.msra.mxu0 0
        %1038 = vmatprep.subr.bf16.mxu0 0
        %1039 = vmatpush1.bf16.msra.mxu0 0
        %1040 = vmatprep.subr.bf16.mxu0 0
        %1041 = vmatpush1.bf16.msra.mxu0 0
        %1042 = vmatprep.subr.bf16.mxu0 0
        %1043 = vmatpush1.bf16.msra.mxu0 0
        %1044 = vmatprep.subr.bf16.mxu0 0
        %1045 = vmatpush1.bf16.msra.mxu0 0
        %1046 = vmatprep.subr.bf16.mxu0 0
        %1047 = vmatpush1.bf16.msra.mxu0 0
        %1048 = vmatprep.subr.bf16.mxu0 0
        %1049 = vmatpush1.bf16.msra.mxu0 0
        %1050 = vmatprep.subr.bf16.mxu0 0
        %1051 = vmatpush1.bf16.msra.mxu0 0
        %1052 = vmatprep.subr.bf16.mxu0 0
        %1053 = vmatpush1.bf16.msra.mxu0 0
        %1054 = vmatprep.subr.bf16.mxu0 0
        %1055 = vmatpush1.bf16.msra.mxu0 0
        %1056 = vmatprep.mubr.bf16.mxu0 0
        %1057 = vmatmul.mubr.bf16.gmra.mrb[0].mxu0 %v1010
        %v1058 = vpop.f32.mrb[0].mxu0
        %v1059 = vadd.f32 0.0, %v1058
        %v1060 = vpop.f32.mrb[0].mxu0
        %v1061 = vadd.f32 0.0, %v1060
        %v1062 = vpop.f32.mrb[0].mxu0
        %v1063 = vadd.f32 0.0, %v1062
        %v1064 = vpop.f32.mrb[0].mxu0
        %v1065 = vadd.f32 0.0, %v1064
        %1066 = vmatprep.mubr.bf16.mxu0 0
        %1067 = vmatmul.mubr.bf16.gmra.mrb[0].mxu0 %v1013
        %v1068 = vpop.f32.mrb[0].mxu0
        %v1069 = vadd.f32 0.0, %v1068
        %v1070 = vpop.f32.mrb[0].mxu0
        %v1071 = vadd.f32 0.0, %v1070
        %v1072 = vpop.f32.mrb[0].mxu0
        %v1073 = vpop.f32.mrb[0].mxu0
        %1074 = vdwg.mxu0
        %1075 = vmatprep.subr.bf16.mxu0 0
        %1076 = vmatpush1.bf16.msra.mxu0 %v990
        %1077 = vmatprep.subr.bf16.mxu0 0
        %1078 = vmatpush1.bf16.msra.mxu0 %v993
        %1079 = vmatprep.subr.bf16.mxu0 0
        %1080 = vmatpush1.bf16.msra.mxu0 %v996
        %1081 = vmatprep.subr.bf16.mxu0 0
        %1082 = vmatpush1.bf16.msra.mxu0 %v1022
        %1083 = vmatprep.subr.bf16.mxu0 0
        %1084 = vmatpush1.bf16.msra.mxu0 0
        %1085 = vmatprep.subr.bf16.mxu0 0
        %1086 = vmatpush1.bf16.msra.mxu0 0
        %1087 = vmatprep.subr.bf16.mxu0 0
        %1088 = vmatpush1.bf16.msra.mxu0 0
        %1089 = vmatprep.subr.bf16.mxu0 0
        %1090 = vmatpush1.bf16.msra.mxu0 0
        %1091 = vmatprep.subr.bf16.mxu0 0
        %1092 = vmatpush1.bf16.msra.mxu0 0
        %1093 = vmatprep.subr.bf16.mxu0 0
        %1094 = vmatpush1.bf16.msra.mxu0 0
        %1095 = vmatprep.subr.bf16.mxu0 0
        %1096 = vmatpush1.bf16.msra.mxu0 0
        %1097 = vmatprep.subr.bf16.mxu0 0
        %1098 = vmatpush1.bf16.msra.mxu0 0
        %1099 = vmatprep.subr.bf16.mxu0 0
        %1100 = vmatpush1.bf16.msra.mxu0 0
        %1101 = vmatprep.subr.bf16.mxu0 0
        %1102 = vmatpush1.bf16.msra.mxu0 0
        %1103 = vmatprep.subr.bf16.mxu0 0
        %1104 = vmatpush1.bf16.msra.mxu0 0
        %1105 = vmatprep.subr.bf16.mxu0 0
        %1106 = vmatpush1.bf16.msra.mxu0 0
        %1107 = vmatprep.mubr.bf16.mxu0 0
        %1108 = vmatmul.mubr.bf16.gmra.mrb[0].mxu0 %v1010
        %v1109 = vpop.f32.mrb[0].mxu0
        %v1110 = vadd.f32 0.0, %v1109
        %v1111 = vpop.f32.mrb[0].mxu0
        %v1112 = vpop.f32.mrb[0].mxu0
        %v1113 = vadd.f32 0.0, %v1112
        %v1114 = vpop.f32.mrb[0].mxu0
        %1115 = vmatprep.mubr.bf16.mxu0 0
        %1116 = vmatmul.mubr.bf16.gmra.mrb[0].mxu0 %v1013
        %v1117 = vpop.f32.mrb[0].mxu0
        %v1118 = vadd.f32 0.0, %v1117
        %v1119 = vpop.f32.mrb[0].mxu0
        %v1120 = vpop.f32.mrb[0].mxu0
        %v1121 = vpop.f32.mrb[0].mxu0
        %1122 = vdwg.mxu0
        %v1123 = vadd.f32 %v915, %v1059
        %v1124 = vadd.f32 %v916, %v1061
        %v1125 = vadd.f32 %v917, %v1110
        %v1126 = vadd.f32 %v918, %v1063
        %v1127 = vadd.f32 %v919, %v1065
        %v1128 = vadd.f32 %v920, %v1113
        %v1129 = vadd.f32 %v921, %v1069
        %v1130 = vadd.f32 %v922, %v1071
        %v1131 = vadd.f32 %v923, %v1118
        %s1132 = scalar_lea.vmem [#allocation3], 336
        %v1133 = vld [vmem:[%s1132] sm:$0xff]
        %v1134 = vld [vmem:[%s1132 + $0x8] sm:$0xf]
        %v1135 = vld [vmem:[%s1132 + $0xc] sm:$0xff]
        %v1136 = vld [vmem:[%s1132 + $0x14] sm:$0xf]
        %v1137 = vld [vmem:[%s1132 + $0x18] sm:$0xff]
        %v1138 = vld [vmem:[%s1132 + $0x20] sm:$0xf]
        %v1139 = vld [vmem:[%s1132 + $0x24] sm:$0xff]
        %v1140 = vld [vmem:[%s1132 + $0x2c] sm:$0xf]
        %v1141 = vld [vmem:[%s1132 + $0x30] sm:$0xff]
        %v1142 = vld [vmem:[%s1132 + $0x38] sm:$0xf]
        %v1143 = vld [vmem:[%s1132 + $0x3c] sm:$0xff]
        %v1144 = vld [vmem:[%s1132 + $0x44] sm:$0xf]
        %v1145 = vld [vmem:[%s1132 + $0x48] sm:$0x77]
        %v1146 = vld [vmem:[%s1132 + $0x50] sm:$0x7]
        %1147 = vrot.lane.b32.xlu0 %v949, 125
        %v1148 = vpop.permute.xlu0 %1147
        %1149 = vrot.lane.b32.xlu0 %v952, 125
        %v1150 = vpop.permute.xlu0 %1149
        %v1165 = vunpack.c.l.b16 %v1133
        %v1166 = vunpack.c.h.b16 %v1133
        %v1167 = vunpack.c.l.b16 %v1134
        %v1168 = vunpack.c.l.b16 %v1135
        %v1169 = vunpack.c.h.b16 %v1135
        %v1170 = vunpack.c.l.b16 %v1136
        %v1171 = vunpack.c.l.b16 %v1137
        %v1172 = vunpack.c.h.b16 %v1137
        %v1173 = vunpack.c.l.b16 %v1138
        %v1174 = vunpack.c.l.b16 %v1139
        %v1175 = vunpack.c.h.b16 %v1139
        %v1176 = vunpack.c.l.b16 %v1140
        %v1177 = vunpack.c.l.b16 %v1141
        %v1178 = vunpack.c.h.b16 %v1141
        %v1179 = vunpack.c.l.b16 %v1142
        %v1180 = vunpack.c.l.b16 %v1143
        %v1181 = vunpack.c.h.b16 %v1143
        %v1182 = vunpack.c.l.b16 %v1144
        %v1183 = vunpack.c.l.b16 %v1145
        %v1184 = vunpack.c.h.b16 %v1145
        %v1185 = vunpack.c.l.b16 %v1146
        %v1186 = vpack.c.b16 %v1168, %v1165
        %v1187 = vpack.c.b16 %v1169, %v1166
        %v1188 = vpack.c.b16 %v1170, %v1167
        %v1189 = vpack.c.b16 %v1174, %v1171
        %v1190 = vpack.c.b16 %v1175, %v1172
        %v1191 = vpack.c.b16 %v1176, %v1173
        %v1192 = vpack.c.b16 %v1180, %v1177
        %v1193 = vpack.c.b16 %v1181, %v1178
        %v1194 = vpack.c.b16 %v1182, %v1179
        %v1195 = vpack.c.b16 %v1183, %v1183
        %v1196 = vpack.c.b16 %v1184, %v1184
        %v1197 = vpack.c.b16 %v1185, %v1185
        %v1208 = vsel %vm440, %v1148, 0
        %v1211 = vsel %vm440, %v1150, 0
        %v1214 = vsel %vm447, %v1195, 0
        %v1217 = vsel %vm447, %v1196, 0
        %v1220 = vsel %vm447, %v1197, 0
        %1222 = vmatprep.subr.bf16.mxu0 %v1187
        %1223 = vmatpush1.bf16.msra.mxu0 %v1186
        %1224 = vmatprep.subr.bf16.mxu0 %v1190
        %1225 = vmatpush1.bf16.msra.mxu0 %v1189
        %1226 = vmatprep.subr.bf16.mxu0 %v1193
        %1227 = vmatpush1.bf16.msra.mxu0 %v1192
        %1228 = vmatprep.subr.bf16.mxu0 %v1217
        %1229 = vmatpush1.bf16.msra.mxu0 %v1214
        %1230 = vmatprep.subr.bf16.mxu0 0
        %1231 = vmatpush1.bf16.msra.mxu0 0
        %1232 = vmatprep.subr.bf16.mxu0 0
        %1233 = vmatpush1.bf16.msra.mxu0 0
        %1234 = vmatprep.subr.bf16.mxu0 0
        %1235 = vmatpush1.bf16.msra.mxu0 0
        %1236 = vmatprep.subr.bf16.mxu0 0
        %1237 = vmatpush1.bf16.msra.mxu0 0
        %1238 = vmatprep.subr.bf16.mxu0 0
        %1239 = vmatpush1.bf16.msra.mxu0 0
        %1240 = vmatprep.subr.bf16.mxu0 0
        %1241 = vmatpush1.bf16.msra.mxu0 0
        %1242 = vmatprep.subr.bf16.mxu0 0
        %1243 = vmatpush1.bf16.msra.mxu0 0
        %1244 = vmatprep.subr.bf16.mxu0 0
        %1245 = vmatpush1.bf16.msra.mxu0 0
        %1246 = vmatprep.subr.bf16.mxu0 0
        %1247 = vmatpush1.bf16.msra.mxu0 0
        %1248 = vmatprep.subr.bf16.mxu0 0
        %1249 = vmatpush1.bf16.msra.mxu0 0
        %1250 = vmatprep.subr.bf16.mxu0 0
        %1251 = vmatpush1.bf16.msra.mxu0 0
        %1252 = vmatprep.subr.bf16.mxu0 0
        %1253 = vmatpush1.bf16.msra.mxu0 0
        %1254 = vmatprep.mubr.bf16.mxu0 0
        %1255 = vmatmul.mubr.bf16.gmra.mrb[0].mxu0 %v1208
        %v1256 = vpop.f32.mrb[0].mxu0
        %v1257 = vadd.f32 0.0, %v1256
        %v1258 = vpop.f32.mrb[0].mxu0
        %v1259 = vadd.f32 0.0, %v1258
        %v1260 = vpop.f32.mrb[0].mxu0
        %v1261 = vadd.f32 0.0, %v1260
        %v1262 = vpop.f32.mrb[0].mxu0
        %v1263 = vadd.f32 0.0, %v1262
        %1264 = vmatprep.mubr.bf16.mxu0 0
        %1265 = vmatmul.mubr.bf16.gmra.mrb[0].mxu0 %v1211
        %v1266 = vpop.f32.mrb[0].mxu0
        %v1267 = vadd.f32 0.0, %v1266
        %v1268 = vpop.f32.mrb[0].mxu0
        %v1269 = vadd.f32 0.0, %v1268
        %v1270 = vpop.f32.mrb[0].mxu0
        %v1271 = vpop.f32.mrb[0].mxu0
        %1272 = vdwg.mxu0
        %1273 = vmatprep.subr.bf16.mxu0 0
        %1274 = vmatpush1.bf16.msra.mxu0 %v1188
        %1275 = vmatprep.subr.bf16.mxu0 0
        %1276 = vmatpush1.bf16.msra.mxu0 %v1191
        %1277 = vmatprep.subr.bf16.mxu0 0
        %1278 = vmatpush1.bf16.msra.mxu0 %v1194
        %1279 = vmatprep.subr.bf16.mxu0 0
        %1280 = vmatpush1.bf16.msra.mxu0 %v1220
        %1281 = vmatprep.subr.bf16.mxu0 0
        %1282 = vmatpush1.bf16.msra.mxu0 0
        %1283 = vmatprep.subr.bf16.mxu0 0
        %1284 = vmatpush1.bf16.msra.mxu0 0
        %1285 = vmatprep.subr.bf16.mxu0 0
        %1286 = vmatpush1.bf16.msra.mxu0 0
        %1287 = vmatprep.subr.bf16.mxu0 0
        %1288 = vmatpush1.bf16.msra.mxu0 0
        %1289 = vmatprep.subr.bf16.mxu0 0
        %1290 = vmatpush1.bf16.msra.mxu0 0
        %1291 = vmatprep.subr.bf16.mxu0 0
        %1292 = vmatpush1.bf16.msra.mxu0 0
        %1293 = vmatprep.subr.bf16.mxu0 0
        %1294 = vmatpush1.bf16.msra.mxu0 0
        %1295 = vmatprep.subr.bf16.mxu0 0
        %1296 = vmatpush1.bf16.msra.mxu0 0
        %1297 = vmatprep.subr.bf16.mxu0 0
        %1298 = vmatpush1.bf16.msra.mxu0 0
        %1299 = vmatprep.subr.bf16.mxu0 0
        %1300 = vmatpush1.bf16.msra.mxu0 0
        %1301 = vmatprep.subr.bf16.mxu0 0
        %1302 = vmatpush1.bf16.msra.mxu0 0
        %1303 = vmatprep.subr.bf16.mxu0 0
        %1304 = vmatpush1.bf16.msra.mxu0 0
        %1305 = vmatprep.mubr.bf16.mxu0 0
        %1306 = vmatmul.mubr.bf16.gmra.mrb[0].mxu0 %v1208
        %v1307 = vpop.f32.mrb[0].mxu0
        %v1308 = vadd.f32 0.0, %v1307
        %v1309 = vpop.f32.mrb[0].mxu0
        %v1310 = vpop.f32.mrb[0].mxu0
        %v1311 = vadd.f32 0.0, %v1310
        %v1312 = vpop.f32.mrb[0].mxu0
        %1313 = vmatprep.mubr.bf16.mxu0 0
        %1314 = vmatmul.mubr.bf16.gmra.mrb[0].mxu0 %v1211
        %v1315 = vpop.f32.mrb[0].mxu0
        %v1316 = vadd.f32 0.0, %v1315
        %v1317 = vpop.f32.mrb[0].mxu0
        %v1318 = vpop.f32.mrb[0].mxu0
        %v1319 = vpop.f32.mrb[0].mxu0
        %1320 = vdwg.mxu0
        %v1321 = vadd.f32 %v1123, %v1257
        %v1322 = vadd.f32 %v1124, %v1259
        %v1323 = vadd.f32 %v1125, %v1308
        %v1324 = vadd.f32 %v1126, %v1261
        %v1325 = vadd.f32 %v1127, %v1263
        %v1326 = vadd.f32 %v1128, %v1311
        %v1327 = vadd.f32 %v1129, %v1267
        %v1328 = vadd.f32 %v1130, %v1269
        %v1329 = vadd.f32 %v1131, %v1316
        %s1330 = scalar_lea.vmem [#allocation3], 420
        %v1331 = vld [vmem:[%s1330] sm:$0xff]
        %v1332 = vld [vmem:[%s1330 + $0x8] sm:$0xf]
        %v1333 = vld [vmem:[%s1330 + $0xc] sm:$0xff]
        %v1334 = vld [vmem:[%s1330 + $0x14] sm:$0xf]
        %v1335 = vld [vmem:[%s1330 + $0x18] sm:$0xff]
        %v1336 = vld [vmem:[%s1330 + $0x20] sm:$0xf]
        %v1337 = vld [vmem:[%s1330 + $0x24] sm:$0xff]
        %v1338 = vld [vmem:[%s1330 + $0x2c] sm:$0xf]
        %v1339 = vld [vmem:[%s1330 + $0x30] sm:$0xff]
        %v1340 = vld [vmem:[%s1330 + $0x38] sm:$0xf]
        %v1341 = vld [vmem:[%s1330 + $0x3c] sm:$0xff]
        %v1342 = vld [vmem:[%s1330 + $0x44] sm:$0xf]
        %v1343 = vld [vmem:[%s1330 + $0x48] sm:$0x77]
        %v1344 = vld [vmem:[%s1330 + $0x50] sm:$0x7]
        %1345 = vrot.lane.b32.xlu0 %v949, 122
        %v1346 = vpop.permute.xlu0 %1345
        %1347 = vrot.lane.b32.xlu0 %v952, 122
        %v1348 = vpop.permute.xlu0 %1347
        %v1363 = vunpack.c.l.b16 %v1331
        %v1364 = vunpack.c.h.b16 %v1331
        %v1365 = vunpack.c.l.b16 %v1332
        %v1366 = vunpack.c.l.b16 %v1333
        %v1367 = vunpack.c.h.b16 %v1333
        %v1368 = vunpack.c.l.b16 %v1334
        %v1369 = vunpack.c.l.b16 %v1335
        %v1370 = vunpack.c.h.b16 %v1335
        %v1371 = vunpack.c.l.b16 %v1336
        %v1372 = vunpack.c.l.b16 %v1337
        %v1373 = vunpack.c.h.b16 %v1337
        %v1374 = vunpack.c.l.b16 %v1338
        %v1375 = vunpack.c.l.b16 %v1339
        %v1376 = vunpack.c.h.b16 %v1339
        %v1377 = vunpack.c.l.b16 %v1340
        %v1378 = vunpack.c.l.b16 %v1341
        %v1379 = vunpack.c.h.b16 %v1341
        %v1380 = vunpack.c.l.b16 %v1342
        %v1381 = vunpack.c.l.b16 %v1343
        %v1382 = vunpack.c.h.b16 %v1343
        %v1383 = vunpack.c.l.b16 %v1344
        %v1384 = vpack.c.b16 %v1366, %v1363
        %v1385 = vpack.c.b16 %v1367, %v1364
        %v1386 = vpack.c.b16 %v1368, %v1365
        %v1387 = vpack.c.b16 %v1372, %v1369
        %v1388 = vpack.c.b16 %v1373, %v1370
        %v1389 = vpack.c.b16 %v1374, %v1371
        %v1390 = vpack.c.b16 %v1378, %v1375
        %v1391 = vpack.c.b16 %v1379, %v1376
        %v1392 = vpack.c.b16 %v1380, %v1377
        %v1393 = vpack.c.b16 %v1381, %v1381
        %v1394 = vpack.c.b16 %v1382, %v1382
        %v1395 = vpack.c.b16 %v1383, %v1383
        %v1406 = vsel %vm440, %v1346, 0
        %v1409 = vsel %vm440, %v1348, 0
        %v1412 = vsel %vm447, %v1393, 0
        %v1415 = vsel %vm447, %v1394, 0
        %v1418 = vsel %vm447, %v1395, 0
        %1420 = vmatprep.subr.bf16.mxu0 %v1385
        %1421 = vmatpush1.bf16.msra.mxu0 %v1384
        %1422 = vmatprep.subr.bf16.mxu0 %v1388
        %1423 = vmatpush1.bf16.msra.mxu0 %v1387
        %1424 = vmatprep.subr.bf16.mxu0 %v1391
        %1425 = vmatpush1.bf16.msra.mxu0 %v1390
        %1426 = vmatprep.subr.bf16.mxu0 %v1415
        %1427 = vmatpush1.bf16.msra.mxu0 %v1412
        %1428 = vmatprep.subr.bf16.mxu0 0
        %1429 = vmatpush1.bf16.msra.mxu0 0
        %1430 = vmatprep.subr.bf16.mxu0 0
        %1431 = vmatpush1.bf16.msra.mxu0 0
        %1432 = vmatprep.subr.bf16.mxu0 0
        %1433 = vmatpush1.bf16.msra.mxu0 0
        %1434 = vmatprep.subr.bf16.mxu0 0
        %1435 = vmatpush1.bf16.msra.mxu0 0
        %1436 = vmatprep.subr.bf16.mxu0 0
        %1437 = vmatpush1.bf16.msra.mxu0 0
        %1438 = vmatprep.subr.bf16.mxu0 0
        %1439 = vmatpush1.bf16.msra.mxu0 0
        %1440 = vmatprep.subr.bf16.mxu0 0
        %1441 = vmatpush1.bf16.msra.mxu0 0
        %1442 = vmatprep.subr.bf16.mxu0 0
        %1443 = vmatpush1.bf16.msra.mxu0 0
        %1444 = vmatprep.subr.bf16.mxu0 0
        %1445 = vmatpush1.bf16.msra.mxu0 0
        %1446 = vmatprep.subr.bf16.mxu0 0
        %1447 = vmatpush1.bf16.msra.mxu0 0
        %1448 = vmatprep.subr.bf16.mxu0 0
        %1449 = vmatpush1.bf16.msra.mxu0 0
        %1450 = vmatprep.subr.bf16.mxu0 0
        %1451 = vmatpush1.bf16.msra.mxu0 0
        %1452 = vmatprep.mubr.bf16.mxu0 0
        %1453 = vmatmul.mubr.bf16.gmra.mrb[0].mxu0 %v1406
        %v1454 = vpop.f32.mrb[0].mxu0
        %v1455 = vadd.f32 0.0, %v1454
        %v1456 = vpop.f32.mrb[0].mxu0
        %v1457 = vadd.f32 0.0, %v1456
        %v1458 = vpop.f32.mrb[0].mxu0
        %v1459 = vadd.f32 0.0, %v1458
        %v1460 = vpop.f32.mrb[0].mxu0
        %v1461 = vadd.f32 0.0, %v1460
        %1462 = vmatprep.mubr.bf16.mxu0 0
        %1463 = vmatmul.mubr.bf16.gmra.mrb[0].mxu0 %v1409
        %v1464 = vpop.f32.mrb[0].mxu0
        %v1465 = vadd.f32 0.0, %v1464
        %v1466 = vpop.f32.mrb[0].mxu0
        %v1467 = vadd.f32 0.0, %v1466
        %v1468 = vpop.f32.mrb[0].mxu0
        %v1469 = vpop.f32.mrb[0].mxu0
        %1470 = vdwg.mxu0
        %1471 = vmatprep.subr.bf16.mxu0 0
        %1472 = vmatpush1.bf16.msra.mxu0 %v1386
        %1473 = vmatprep.subr.bf16.mxu0 0
        %1474 = vmatpush1.bf16.msra.mxu0 %v1389
        %1475 = vmatprep.subr.bf16.mxu0 0
        %1476 = vmatpush1.bf16.msra.mxu0 %v1392
        %1477 = vmatprep.subr.bf16.mxu0 0
        %1478 = vmatpush1.bf16.msra.mxu0 %v1418
        %1479 = vmatprep.subr.bf16.mxu0 0
        %1480 = vmatpush1.bf16.msra.mxu0 0
        %1481 = vmatprep.subr.bf16.mxu0 0
        %1482 = vmatpush1.bf16.msra.mxu0 0
        %1483 = vmatprep.subr.bf16.mxu0 0
        %1484 = vmatpush1.bf16.msra.mxu0 0
        %1485 = vmatprep.subr.bf16.mxu0 0
        %1486 = vmatpush1.bf16.msra.mxu0 0
        %1487 = vmatprep.subr.bf16.mxu0 0
        %1488 = vmatpush1.bf16.msra.mxu0 0
        %1489 = vmatprep.subr.bf16.mxu0 0
        %1490 = vmatpush1.bf16.msra.mxu0 0
        %1491 = vmatprep.subr.bf16.mxu0 0
        %1492 = vmatpush1.bf16.msra.mxu0 0
        %1493 = vmatprep.subr.bf16.mxu0 0
        %1494 = vmatpush1.bf16.msra.mxu0 0
        %1495 = vmatprep.subr.bf16.mxu0 0
        %1496 = vmatpush1.bf16.msra.mxu0 0
        %1497 = vmatprep.subr.bf16.mxu0 0
        %1498 = vmatpush1.bf16.msra.mxu0 0
        %1499 = vmatprep.subr.bf16.mxu0 0
        %1500 = vmatpush1.bf16.msra.mxu0 0
        %1501 = vmatprep.subr.bf16.mxu0 0
        %1502 = vmatpush1.bf16.msra.mxu0 0
        %1503 = vmatprep.mubr.bf16.mxu0 0
        %1504 = vmatmul.mubr.bf16.gmra.mrb[0].mxu0 %v1406
        %v1505 = vpop.f32.mrb[0].mxu0
        %v1506 = vadd.f32 0.0, %v1505
        %v1507 = vpop.f32.mrb[0].mxu0
        %v1508 = vpop.f32.mrb[0].mxu0
        %v1509 = vadd.f32 0.0, %v1508
        %v1510 = vpop.f32.mrb[0].mxu0
        %1511 = vmatprep.mubr.bf16.mxu0 0
        %1512 = vmatmul.mubr.bf16.gmra.mrb[0].mxu0 %v1409
        %v1513 = vpop.f32.mrb[0].mxu0
        %v1514 = vadd.f32 0.0, %v1513
        %v1515 = vpop.f32.mrb[0].mxu0
        %v1516 = vpop.f32.mrb[0].mxu0
        %v1517 = vpop.f32.mrb[0].mxu0
        %1518 = vdwg.mxu0
        %v1519 = vadd.f32 %v1321, %v1455
        %v1520 = vadd.f32 %v1322, %v1457
        %v1521 = vadd.f32 %v1323, %v1506
        %v1522 = vadd.f32 %v1324, %v1459
        %v1523 = vadd.f32 %v1325, %v1461
        %v1524 = vadd.f32 %v1326, %v1509
        %v1525 = vadd.f32 %v1327, %v1465
        %v1526 = vadd.f32 %v1328, %v1467
        %v1527 = vadd.f32 %v1329, %v1514
        %s1528 = scalar_lea.vmem [#allocation3], 504
        %v1529 = vld [vmem:[%s1528] sm:$0xff]
        %v1530 = vld [vmem:[%s1528 + $0x8] sm:$0xf]
        %v1531 = vld [vmem:[%s1528 + $0xc] sm:$0xff]
        %v1532 = vld [vmem:[%s1528 + $0x14] sm:$0xf]
        %v1533 = vld [vmem:[%s1528 + $0x18] sm:$0xff]
        %v1534 = vld [vmem:[%s1528 + $0x20] sm:$0xf]
        %v1535 = vld [vmem:[%s1528 + $0x24] sm:$0xff]
        %v1536 = vld [vmem:[%s1528 + $0x2c] sm:$0xf]
        %v1537 = vld [vmem:[%s1528 + $0x30] sm:$0xff]
        %v1538 = vld [vmem:[%s1528 + $0x38] sm:$0xf]
        %v1539 = vld [vmem:[%s1528 + $0x3c] sm:$0xff]
        %v1540 = vld [vmem:[%s1528 + $0x44] sm:$0xf]
        %v1541 = vld [vmem:[%s1528 + $0x48] sm:$0x77]
        %v1542 = vld [vmem:[%s1528 + $0x50] sm:$0x7]
        %vm1543 = vcmask 1046528
        %v1544 = vrot.slane %v347, 1
        %v1545 = vrot.slane %v348, 1
        %v1546 = vsel %vm1543, %v1544, %v1545
        %v1561 = vunpack.c.l.b16 %v1529
        %v1562 = vunpack.c.h.b16 %v1529
        %v1563 = vunpack.c.l.b16 %v1530
        %v1564 = vunpack.c.l.b16 %v1531
        %v1565 = vunpack.c.h.b16 %v1531
        %v1566 = vunpack.c.l.b16 %v1532
        %v1567 = vunpack.c.l.b16 %v1533
        %v1568 = vunpack.c.h.b16 %v1533
        %v1569 = vunpack.c.l.b16 %v1534
        %v1570 = vunpack.c.l.b16 %v1535
        %v1571 = vunpack.c.h.b16 %v1535
        %v1572 = vunpack.c.l.b16 %v1536
        %v1573 = vunpack.c.l.b16 %v1537
        %v1574 = vunpack.c.h.b16 %v1537
        %v1575 = vunpack.c.l.b16 %v1538
        %v1576 = vunpack.c.l.b16 %v1539
        %v1577 = vunpack.c.h.b16 %v1539
        %v1578 = vunpack.c.l.b16 %v1540
        %v1579 = vunpack.c.l.b16 %v1541
        %v1580 = vunpack.c.h.b16 %v1541
        %v1581 = vunpack.c.l.b16 %v1542
        %v1582 = vpack.c.b16 %v1564, %v1561
        %v1583 = vpack.c.b16 %v1565, %v1562
        %v1584 = vpack.c.b16 %v1566, %v1563
        %v1585 = vpack.c.b16 %v1570, %v1567
        %v1586 = vpack.c.b16 %v1571, %v1568
        %v1587 = vpack.c.b16 %v1572, %v1569
        %v1588 = vpack.c.b16 %v1576, %v1573
        %v1589 = vpack.c.b16 %v1577, %v1574
        %v1590 = vpack.c.b16 %v1578, %v1575
        %v1591 = vpack.c.b16 %v1579, %v1579
        %v1592 = vpack.c.b16 %v1580, %v1580
        %v1593 = vpack.c.b16 %v1581, %v1581
        %v1604 = vsel %vm440, %v1546, 0
        %v1607 = vsel %vm440, %v1545, 0
        %v1610 = vsel %vm447, %v1591, 0
        %v1613 = vsel %vm447, %v1592, 0
        %v1616 = vsel %vm447, %v1593, 0
        %1618 = vmatprep.subr.bf16.mxu0 %v1583
        %1619 = vmatpush1.bf16.msra.mxu0 %v1582
        %1620 = vmatprep.subr.bf16.mxu0 %v1586
        %1621 = vmatpush1.bf16.msra.mxu0 %v1585
        %1622 = vmatprep.subr.bf16.mxu0 %v1589
        %1623 = vmatpush1.bf16.msra.mxu0 %v1588
        %1624 = vmatprep.subr.bf16.mxu0 %v1613
        %1625 = vmatpush1.bf16.msra.mxu0 %v1610
        %1626 = vmatprep.subr.bf16.mxu0 0
        %1627 = vmatpush1.bf16.msra.mxu0 0
        %1628 = vmatprep.subr.bf16.mxu0 0
        %1629 = vmatpush1.bf16.msra.mxu0 0
        %1630 = vmatprep.subr.bf16.mxu0 0
        %1631 = vmatpush1.bf16.msra.mxu0 0
        %1632 = vmatprep.subr.bf16.mxu0 0
        %1633 = vmatpush1.bf16.msra.mxu0 0
        %1634 = vmatprep.subr.bf16.mxu0 0
        %1635 = vmatpush1.bf16.msra.mxu0 0
        %1636 = vmatprep.subr.bf16.mxu0 0
        %1637 = vmatpush1.bf16.msra.mxu0 0
        %1638 = vmatprep.subr.bf16.mxu0 0
        %1639 = vmatpush1.bf16.msra.mxu0 0
        %1640 = vmatprep.subr.bf16.mxu0 0
        %1641 = vmatpush1.bf16.msra.mxu0 0
        %1642 = vmatprep.subr.bf16.mxu0 0
        %1643 = vmatpush1.bf16.msra.mxu0 0
        %1644 = vmatprep.subr.bf16.mxu0 0
        %1645 = vmatpush1.bf16.msra.mxu0 0
        %1646 = vmatprep.subr.bf16.mxu0 0
        %1647 = vmatpush1.bf16.msra.mxu0 0
        %1648 = vmatprep.subr.bf16.mxu0 0
        %1649 = vmatpush1.bf16.msra.mxu0 0
        %1650 = vmatprep.mubr.bf16.mxu0 0
        %1651 = vmatmul.mubr.bf16.gmra.mrb[0].mxu0 %v1604
        %v1652 = vpop.f32.mrb[0].mxu0
        %v1653 = vadd.f32 0.0, %v1652
        %v1654 = vpop.f32.mrb[0].mxu0
        %v1655 = vadd.f32 0.0, %v1654
        %v1656 = vpop.f32.mrb[0].mxu0
        %v1657 = vadd.f32 0.0, %v1656
        %v1658 = vpop.f32.mrb[0].mxu0
        %v1659 = vadd.f32 0.0, %v1658
        %1660 = vmatprep.mubr.bf16.mxu0 0
        %1661 = vmatmul.mubr.bf16.gmra.mrb[0].mxu0 %v1607
        %v1662 = vpop.f32.mrb[0].mxu0
        %v1663 = vadd.f32 0.0, %v1662
        %v1664 = vpop.f32.mrb[0].mxu0
        %v1665 = vadd.f32 0.0, %v1664
        %v1666 = vpop.f32.mrb[0].mxu0
        %v1667 = vpop.f32.mrb[0].mxu0
        %1668 = vdwg.mxu0
        %1669 = vmatprep.subr.bf16.mxu0 0
        %1670 = vmatpush1.bf16.msra.mxu0 %v1584
        %1671 = vmatprep.subr.bf16.mxu0 0
        %1672 = vmatpush1.bf16.msra.mxu0 %v1587
        %1673 = vmatprep.subr.bf16.mxu0 0
        %1674 = vmatpush1.bf16.msra.mxu0 %v1590
        %1675 = vmatprep.subr.bf16.mxu0 0
        %1676 = vmatpush1.bf16.msra.mxu0 %v1616
        %1677 = vmatprep.subr.bf16.mxu0 0
        %1678 = vmatpush1.bf16.msra.mxu0 0
        %1679 = vmatprep.subr.bf16.mxu0 0
        %1680 = vmatpush1.bf16.msra.mxu0 0
        %1681 = vmatprep.subr.bf16.mxu0 0
        %1682 = vmatpush1.bf16.msra.mxu0 0
        %1683 = vmatprep.subr.bf16.mxu0 0
        %1684 = vmatpush1.bf16.msra.mxu0 0
        %1685 = vmatprep.subr.bf16.mxu0 0
        %1686 = vmatpush1.bf16.msra.mxu0 0
        %1687 = vmatprep.subr.bf16.mxu0 0
        %1688 = vmatpush1.bf16.msra.mxu0 0
        %1689 = vmatprep.subr.bf16.mxu0 0
        %1690 = vmatpush1.bf16.msra.mxu0 0
        %1691 = vmatprep.subr.bf16.mxu0 0
        %1692 = vmatpush1.bf16.msra.mxu0 0
        %1693 = vmatprep.subr.bf16.mxu0 0
        %1694 = vmatpush1.bf16.msra.mxu0 0
        %1695 = vmatprep.subr.bf16.mxu0 0
        %1696 = vmatpush1.bf16.msra.mxu0 0
        %1697 = vmatprep.subr.bf16.mxu0 0
        %1698 = vmatpush1.bf16.msra.mxu0 0
        %1699 = vmatprep.subr.bf16.mxu0 0
        %1700 = vmatpush1.bf16.msra.mxu0 0
        %1701 = vmatprep.mubr.bf16.mxu0 0
        %1702 = vmatmul.mubr.bf16.gmra.mrb[0].mxu0 %v1604
        %v1703 = vpop.f32.mrb[0].mxu0
        %v1704 = vadd.f32 0.0, %v1703
        %v1705 = vpop.f32.mrb[0].mxu0
        %v1706 = vpop.f32.mrb[0].mxu0
        %v1707 = vadd.f32 0.0, %v1706
        %v1708 = vpop.f32.mrb[0].mxu0
        %1709 = vmatprep.mubr.bf16.mxu0 0
        %1710 = vmatmul.mubr.bf16.gmra.mrb[0].mxu0 %v1607
        %v1711 = vpop.f32.mrb[0].mxu0
        %v1712 = vadd.f32 0.0, %v1711
        %v1713 = vpop.f32.mrb[0].mxu0
        %v1714 = vpop.f32.mrb[0].mxu0
        %v1715 = vpop.f32.mrb[0].mxu0
        %1716 = vdwg.mxu0
        %v1717 = vadd.f32 %v1519, %v1653
        %v1718 = vadd.f32 %v1520, %v1655
        %v1719 = vadd.f32 %v1521, %v1704
        %v1720 = vadd.f32 %v1522, %v1657
        %v1721 = vadd.f32 %v1523, %v1659
        %v1722 = vadd.f32 %v1524, %v1707
        %v1723 = vadd.f32 %v1525, %v1663
        %v1724 = vadd.f32 %v1526, %v1665
        %v1725 = vadd.f32 %v1527, %v1712
        %s1726 = scalar_lea.vmem [#allocation3], 588
        %v1727 = vld [vmem:[%s1726] sm:$0xff]
        %v1728 = vld [vmem:[%s1726 + $0x8] sm:$0xf]
        %v1729 = vld [vmem:[%s1726 + $0xc] sm:$0xff]
        %v1730 = vld [vmem:[%s1726 + $0x14] sm:$0xf]
        %v1731 = vld [vmem:[%s1726 + $0x18] sm:$0xff]
        %v1732 = vld [vmem:[%s1726 + $0x20] sm:$0xf]
        %v1733 = vld [vmem:[%s1726 + $0x24] sm:$0xff]
        %v1734 = vld [vmem:[%s1726 + $0x2c] sm:$0xf]
        %v1735 = vld [vmem:[%s1726 + $0x30] sm:$0xff]
        %v1736 = vld [vmem:[%s1726 + $0x38] sm:$0xf]
        %v1737 = vld [vmem:[%s1726 + $0x3c] sm:$0xff]
        %v1738 = vld [vmem:[%s1726 + $0x44] sm:$0xf]
        %v1739 = vld [vmem:[%s1726 + $0x48] sm:$0x77]
        %v1740 = vld [vmem:[%s1726 + $0x50] sm:$0x7]
        %1741 = vrot.lane.b32.xlu0 %v1546, 125
        %v1742 = vpop.permute.xlu0 %1741
        %1743 = vrot.lane.b32.xlu0 %v1545, 125
        %v1744 = vpop.permute.xlu0 %1743
        %v1759 = vunpack.c.l.b16 %v1727
        %v1760 = vunpack.c.h.b16 %v1727
        %v1761 = vunpack.c.l.b16 %v1728
        %v1762 = vunpack.c.l.b16 %v1729
        %v1763 = vunpack.c.h.b16 %v1729
        %v1764 = vunpack.c.l.b16 %v1730
        %v1765 = vunpack.c.l.b16 %v1731
        %v1766 = vunpack.c.h.b16 %v1731
        %v1767 = vunpack.c.l.b16 %v1732
        %v1768 = vunpack.c.l.b16 %v1733
        %v1769 = vunpack.c.h.b16 %v1733
        %v1770 = vunpack.c.l.b16 %v1734
        %v1771 = vunpack.c.l.b16 %v1735
        %v1772 = vunpack.c.h.b16 %v1735
        %v1773 = vunpack.c.l.b16 %v1736
        %v1774 = vunpack.c.l.b16 %v1737
        %v1775 = vunpack.c.h.b16 %v1737
        %v1776 = vunpack.c.l.b16 %v1738
        %v1777 = vunpack.c.l.b16 %v1739
        %v1778 = vunpack.c.h.b16 %v1739
        %v1779 = vunpack.c.l.b16 %v1740
        %v1780 = vpack.c.b16 %v1762, %v1759
        %v1781 = vpack.c.b16 %v1763, %v1760
        %v1782 = vpack.c.b16 %v1764, %v1761
        %v1783 = vpack.c.b16 %v1768, %v1765
        %v1784 = vpack.c.b16 %v1769, %v1766
        %v1785 = vpack.c.b16 %v1770, %v1767
        %v1786 = vpack.c.b16 %v1774, %v1771
        %v1787 = vpack.c.b16 %v1775, %v1772
        %v1788 = vpack.c.b16 %v1776, %v1773
        %v1789 = vpack.c.b16 %v1777, %v1777
        %v1790 = vpack.c.b16 %v1778, %v1778
        %v1791 = vpack.c.b16 %v1779, %v1779
        %v1802 = vsel %vm440, %v1742, 0
        %v1805 = vsel %vm440, %v1744, 0
        %v1808 = vsel %vm447, %v1789, 0
        %v1811 = vsel %vm447, %v1790, 0
        %v1814 = vsel %vm447, %v1791, 0
        %1816 = vmatprep.subr.bf16.mxu0 %v1781
        %1817 = vmatpush1.bf16.msra.mxu0 %v1780
        %1818 = vmatprep.subr.bf16.mxu0 %v1784
        %1819 = vmatpush1.bf16.msra.mxu0 %v1783
        %1820 = vmatprep.subr.bf16.mxu0 %v1787
        %1821 = vmatpush1.bf16.msra.mxu0 %v1786
        %1822 = vmatprep.subr.bf16.mxu0 %v1811
        %1823 = vmatpush1.bf16.msra.mxu0 %v1808
        %1824 = vmatprep.subr.bf16.mxu0 0
        %1825 = vmatpush1.bf16.msra.mxu0 0
        %1826 = vmatprep.subr.bf16.mxu0 0
        %1827 = vmatpush1.bf16.msra.mxu0 0
        %1828 = vmatprep.subr.bf16.mxu0 0
        %1829 = vmatpush1.bf16.msra.mxu0 0
        %1830 = vmatprep.subr.bf16.mxu0 0
        %1831 = vmatpush1.bf16.msra.mxu0 0
        %1832 = vmatprep.subr.bf16.mxu0 0
        %1833 = vmatpush1.bf16.msra.mxu0 0
        %1834 = vmatprep.subr.bf16.mxu0 0
        %1835 = vmatpush1.bf16.msra.mxu0 0
        %1836 = vmatprep.subr.bf16.mxu0 0
        %1837 = vmatpush1.bf16.msra.mxu0 0
        %1838 = vmatprep.subr.bf16.mxu0 0
        %1839 = vmatpush1.bf16.msra.mxu0 0
        %1840 = vmatprep.subr.bf16.mxu0 0
        %1841 = vmatpush1.bf16.msra.mxu0 0
        %1842 = vmatprep.subr.bf16.mxu0 0
        %1843 = vmatpush1.bf16.msra.mxu0 0
        %1844 = vmatprep.subr.bf16.mxu0 0
        %1845 = vmatpush1.bf16.msra.mxu0 0
        %1846 = vmatprep.subr.bf16.mxu0 0
        %1847 = vmatpush1.bf16.msra.mxu0 0
        %1848 = vmatprep.mubr.bf16.mxu0 0
        %1849 = vmatmul.mubr.bf16.gmra.mrb[0].mxu0 %v1802
        %v1850 = vpop.f32.mrb[0].mxu0
        %v1851 = vadd.f32 0.0, %v1850
        %v1852 = vpop.f32.mrb[0].mxu0
        %v1853 = vadd.f32 0.0, %v1852
        %v1854 = vpop.f32.mrb[0].mxu0
        %v1855 = vadd.f32 0.0, %v1854
        %v1856 = vpop.f32.mrb[0].mxu0
        %v1857 = vadd.f32 0.0, %v1856
        %1858 = vmatprep.mubr.bf16.mxu0 0
        %1859 = vmatmul.mubr.bf16.gmra.mrb[0].mxu0 %v1805
        %v1860 = vpop.f32.mrb[0].mxu0
        %v1861 = vadd.f32 0.0, %v1860
        %v1862 = vpop.f32.mrb[0].mxu0
        %v1863 = vadd.f32 0.0, %v1862
        %v1864 = vpop.f32.mrb[0].mxu0
        %v1865 = vpop.f32.mrb[0].mxu0
        %1866 = vdwg.mxu0
        %1867 = vmatprep.subr.bf16.mxu0 0
        %1868 = vmatpush1.bf16.msra.mxu0 %v1782
        %1869 = vmatprep.subr.bf16.mxu0 0
        %1870 = vmatpush1.bf16.msra.mxu0 %v1785
        %1871 = vmatprep.subr.bf16.mxu0 0
        %1872 = vmatpush1.bf16.msra.mxu0 %v1788
        %1873 = vmatprep.subr.bf16.mxu0 0
        %1874 = vmatpush1.bf16.msra.mxu0 %v1814
        %1875 = vmatprep.subr.bf16.mxu0 0
        %1876 = vmatpush1.bf16.msra.mxu0 0
        %1877 = vmatprep.subr.bf16.mxu0 0
        %1878 = vmatpush1.bf16.msra.mxu0 0
        %1879 = vmatprep.subr.bf16.mxu0 0
        %1880 = vmatpush1.bf16.msra.mxu0 0
        %1881 = vmatprep.subr.bf16.mxu0 0
        %1882 = vmatpush1.bf16.msra.mxu0 0
        %1883 = vmatprep.subr.bf16.mxu0 0
        %1884 = vmatpush1.bf16.msra.mxu0 0
        %1885 = vmatprep.subr.bf16.mxu0 0
        %1886 = vmatpush1.bf16.msra.mxu0 0
        %1887 = vmatprep.subr.bf16.mxu0 0
        %1888 = vmatpush1.bf16.msra.mxu0 0
        %1889 = vmatprep.subr.bf16.mxu0 0
        %1890 = vmatpush1.bf16.msra.mxu0 0
        %1891 = vmatprep.subr.bf16.mxu0 0
        %1892 = vmatpush1.bf16.msra.mxu0 0
        %1893 = vmatprep.subr.bf16.mxu0 0
        %1894 = vmatpush1.bf16.msra.mxu0 0
        %1895 = vmatprep.subr.bf16.mxu0 0
        %1896 = vmatpush1.bf16.msra.mxu0 0
        %1897 = vmatprep.subr.bf16.mxu0 0
        %1898 = vmatpush1.bf16.msra.mxu0 0
        %1899 = vmatprep.mubr.bf16.mxu0 0
        %1900 = vmatmul.mubr.bf16.gmra.mrb[0].mxu0 %v1802
        %v1901 = vpop.f32.mrb[0].mxu0
        %v1902 = vadd.f32 0.0, %v1901
        %v1903 = vpop.f32.mrb[0].mxu0
        %v1904 = vpop.f32.mrb[0].mxu0
        %v1905 = vadd.f32 0.0, %v1904
        %v1906 = vpop.f32.mrb[0].mxu0
        %1907 = vmatprep.mubr.bf16.mxu0 0
        %1908 = vmatmul.mubr.bf16.gmra.mrb[0].mxu0 %v1805
        %v1909 = vpop.f32.mrb[0].mxu0
        %v1910 = vadd.f32 0.0, %v1909
        %v1911 = vpop.f32.mrb[0].mxu0
        %v1912 = vpop.f32.mrb[0].mxu0
        %v1913 = vpop.f32.mrb[0].mxu0
        %1914 = vdwg.mxu0
        %v1915 = vadd.f32 %v1717, %v1851
        %v1916 = vadd.f32 %v1718, %v1853
        %v1917 = vadd.f32 %v1719, %v1902
        %v1918 = vadd.f32 %v1720, %v1855
        %v1919 = vadd.f32 %v1721, %v1857
        %v1920 = vadd.f32 %v1722, %v1905
        %v1921 = vadd.f32 %v1723, %v1861
        %v1922 = vadd.f32 %v1724, %v1863
        %v1923 = vadd.f32 %v1725, %v1910
        %s1924 = scalar_lea.vmem [#allocation3], 672
        %v1925 = vld [vmem:[%s1924] sm:$0xff]
        %v1926 = vld [vmem:[%s1924 + $0x8] sm:$0xf]
        %v1927 = vld [vmem:[%s1924 + $0xc] sm:$0xff]
        %v1928 = vld [vmem:[%s1924 + $0x14] sm:$0xf]
        %v1929 = vld [vmem:[%s1924 + $0x18] sm:$0xff]
        %v1930 = vld [vmem:[%s1924 + $0x20] sm:$0xf]
        %v1931 = vld [vmem:[%s1924 + $0x24] sm:$0xff]
        %v1932 = vld [vmem:[%s1924 + $0x2c] sm:$0xf]
        %v1933 = vld [vmem:[%s1924 + $0x30] sm:$0xff]
        %v1934 = vld [vmem:[%s1924 + $0x38] sm:$0xf]
        %v1935 = vld [vmem:[%s1924 + $0x3c] sm:$0xff]
        %v1936 = vld [vmem:[%s1924 + $0x44] sm:$0xf]
        %v1937 = vld [vmem:[%s1924 + $0x48] sm:$0x77]
        %v1938 = vld [vmem:[%s1924 + $0x50] sm:$0x7]
        %1939 = vrot.lane.b32.xlu0 %v1546, 122
        %v1940 = vpop.permute.xlu0 %1939
        %1941 = vrot.lane.b32.xlu0 %v1545, 122
        %v1942 = vpop.permute.xlu0 %1941
        %v1957 = vunpack.c.l.b16 %v1925
        %v1958 = vunpack.c.h.b16 %v1925
        %v1959 = vunpack.c.l.b16 %v1926
        %v1960 = vunpack.c.l.b16 %v1927
        %v1961 = vunpack.c.h.b16 %v1927
        %v1962 = vunpack.c.l.b16 %v1928
        %v1963 = vunpack.c.l.b16 %v1929
        %v1964 = vunpack.c.h.b16 %v1929
        %v1965 = vunpack.c.l.b16 %v1930
        %v1966 = vunpack.c.l.b16 %v1931
        %v1967 = vunpack.c.h.b16 %v1931
        %v1968 = vunpack.c.l.b16 %v1932
        %v1969 = vunpack.c.l.b16 %v1933
        %v1970 = vunpack.c.h.b16 %v1933
        %v1971 = vunpack.c.l.b16 %v1934
        %v1972 = vunpack.c.l.b16 %v1935
        %v1973 = vunpack.c.h.b16 %v1935
        %v1974 = vunpack.c.l.b16 %v1936
        %v1975 = vunpack.c.l.b16 %v1937
        %v1976 = vunpack.c.h.b16 %v1937
        %v1977 = vunpack.c.l.b16 %v1938
        %v1978 = vpack.c.b16 %v1960, %v1957
        %v1979 = vpack.c.b16 %v1961, %v1958
        %v1980 = vpack.c.b16 %v1962, %v1959
        %v1981 = vpack.c.b16 %v1966, %v1963
        %v1982 = vpack.c.b16 %v1967, %v1964
        %v1983 = vpack.c.b16 %v1968, %v1965
        %v1984 = vpack.c.b16 %v1972, %v1969
        %v1985 = vpack.c.b16 %v1973, %v1970
        %v1986 = vpack.c.b16 %v1974, %v1971
        %v1987 = vpack.c.b16 %v1975, %v1975
        %v1988 = vpack.c.b16 %v1976, %v1976
        %v1989 = vpack.c.b16 %v1977, %v1977
        %v2000 = vsel %vm440, %v1940, 0
        %v2003 = vsel %vm440, %v1942, 0
        %v2006 = vsel %vm447, %v1987, 0
        %v2009 = vsel %vm447, %v1988, 0
        %v2012 = vsel %vm447, %v1989, 0
        %2014 = vmatprep.subr.bf16.mxu0 %v1979
        %2015 = vmatpush1.bf16.msra.mxu0 %v1978
        %2016 = vmatprep.subr.bf16.mxu0 %v1982
        %2017 = vmatpush1.bf16.msra.mxu0 %v1981
        %2018 = vmatprep.subr.bf16.mxu0 %v1985
        %2019 = vmatpush1.bf16.msra.mxu0 %v1984
        %2020 = vmatprep.subr.bf16.mxu0 %v2009
        %2021 = vmatpush1.bf16.msra.mxu0 %v2006
        %2022 = vmatprep.subr.bf16.mxu0 0
        %2023 = vmatpush1.bf16.msra.mxu0 0
        %2024 = vmatprep.subr.bf16.mxu0 0
        %2025 = vmatpush1.bf16.msra.mxu0 0
        %2026 = vmatprep.subr.bf16.mxu0 0
        %2027 = vmatpush1.bf16.msra.mxu0 0
        %2028 = vmatprep.subr.bf16.mxu0 0
        %2029 = vmatpush1.bf16.msra.mxu0 0
        %2030 = vmatprep.subr.bf16.mxu0 0
        %2031 = vmatpush1.bf16.msra.mxu0 0
        %2032 = vmatprep.subr.bf16.mxu0 0
        %2033 = vmatpush1.bf16.msra.mxu0 0
        %2034 = vmatprep.subr.bf16.mxu0 0
        %2035 = vmatpush1.bf16.msra.mxu0 0
        %2036 = vmatprep.subr.bf16.mxu0 0
        %2037 = vmatpush1.bf16.msra.mxu0 0
        %2038 = vmatprep.subr.bf16.mxu0 0
        %2039 = vmatpush1.bf16.msra.mxu0 0
        %2040 = vmatprep.subr.bf16.mxu0 0
        %2041 = vmatpush1.bf16.msra.mxu0 0
        %2042 = vmatprep.subr.bf16.mxu0 0
        %2043 = vmatpush1.bf16.msra.mxu0 0
        %2044 = vmatprep.subr.bf16.mxu0 0
        %2045 = vmatpush1.bf16.msra.mxu0 0
        %2046 = vmatprep.mubr.bf16.mxu0 0
        %2047 = vmatmul.mubr.bf16.gmra.mrb[0].mxu0 %v2000
        %v2048 = vpop.f32.mrb[0].mxu0
        %v2049 = vadd.f32 0.0, %v2048
        %v2050 = vpop.f32.mrb[0].mxu0
        %v2051 = vadd.f32 0.0, %v2050
        %v2052 = vpop.f32.mrb[0].mxu0
        %v2053 = vadd.f32 0.0, %v2052
        %v2054 = vpop.f32.mrb[0].mxu0
        %v2055 = vadd.f32 0.0, %v2054
        %2056 = vmatprep.mubr.bf16.mxu0 0
        %2057 = vmatmul.mubr.bf16.gmra.mrb[0].mxu0 %v2003
        %v2058 = vpop.f32.mrb[0].mxu0
        %v2059 = vadd.f32 0.0, %v2058
        %v2060 = vpop.f32.mrb[0].mxu0
        %v2061 = vadd.f32 0.0, %v2060
        %v2062 = vpop.f32.mrb[0].mxu0
        %v2063 = vpop.f32.mrb[0].mxu0
        %2064 = vdwg.mxu0
        %2065 = vmatprep.subr.bf16.mxu0 0
        %2066 = vmatpush1.bf16.msra.mxu0 %v1980
        %2067 = vmatprep.subr.bf16.mxu0 0
        %2068 = vmatpush1.bf16.msra.mxu0 %v1983
        %2069 = vmatprep.subr.bf16.mxu0 0
        %2070 = vmatpush1.bf16.msra.mxu0 %v1986
        %2071 = vmatprep.subr.bf16.mxu0 0
        %2072 = vmatpush1.bf16.msra.mxu0 %v2012
        %2073 = vmatprep.subr.bf16.mxu0 0
        %2074 = vmatpush1.bf16.msra.mxu0 0
        %2075 = vmatprep.subr.bf16.mxu0 0
        %2076 = vmatpush1.bf16.msra.mxu0 0
        %2077 = vmatprep.subr.bf16.mxu0 0
        %2078 = vmatpush1.bf16.msra.mxu0 0
        %2079 = vmatprep.subr.bf16.mxu0 0
        %2080 = vmatpush1.bf16.msra.mxu0 0
        %2081 = vmatprep.subr.bf16.mxu0 0
        %2082 = vmatpush1.bf16.msra.mxu0 0
        %2083 = vmatprep.subr.bf16.mxu0 0
        %2084 = vmatpush1.bf16.msra.mxu0 0
        %2085 = vmatprep.subr.bf16.mxu0 0
        %2086 = vmatpush1.bf16.msra.mxu0 0
        %2087 = vmatprep.subr.bf16.mxu0 0
        %2088 = vmatpush1.bf16.msra.mxu0 0
        %2089 = vmatprep.subr.bf16.mxu0 0
        %2090 = vmatpush1.bf16.msra.mxu0 0
        %2091 = vmatprep.subr.bf16.mxu0 0
        %2092 = vmatpush1.bf16.msra.mxu0 0
        %2093 = vmatprep.subr.bf16.mxu0 0
        %2094 = vmatpush1.bf16.msra.mxu0 0
        %2095 = vmatprep.subr.bf16.mxu0 0
        %2096 = vmatpush1.bf16.msra.mxu0 0
        %2097 = vmatprep.mubr.bf16.mxu0 0
        %2098 = vmatmul.mubr.bf16.gmra.mrb[0].mxu0 %v2000
        %v2099 = vpop.f32.mrb[0].mxu0
        %v2100 = vadd.f32 0.0, %v2099
        %v2101 = vpop.f32.mrb[0].mxu0
        %v2102 = vpop.f32.mrb[0].mxu0
        %v2103 = vadd.f32 0.0, %v2102
        %v2104 = vpop.f32.mrb[0].mxu0
        %2105 = vmatprep.mubr.bf16.mxu0 0
        %2106 = vmatmul.mubr.bf16.gmra.mrb[0].mxu0 %v2003
        %v2107 = vpop.f32.mrb[0].mxu0
        %v2108 = vadd.f32 0.0, %v2107
        %v2109 = vpop.f32.mrb[0].mxu0
        %v2110 = vpop.f32.mrb[0].mxu0
        %v2111 = vpop.f32.mrb[0].mxu0
        %2112 = vdwg.mxu0
        %v2113 = vadd.f32 %v1915, %v2049
        %v2114 = vadd.f32 %v1916, %v2051
        %v2115 = vadd.f32 %v1917, %v2100
        %v2116 = vadd.f32 %v1918, %v2053
        %v2117 = vadd.f32 %v1919, %v2055
        %v2118 = vadd.f32 %v1920, %v2103
        %v2119 = vadd.f32 %v1921, %v2059
        %v2120 = vadd.f32 %v1922, %v2061
        %v2121 = vadd.f32 %v1923, %v2108
        %v2122 = vld [vmem:[#allocation6] sm:$0x7]
        %v2124 = vlaneseq
        %v2125 = vshrl.u32 %v2124, 7
        %v2126 = vsub.s32 0, %v2125
        %v2127 = vrot.slane %v2122, %v2126
        %v2128 = vlaneseq
        %v2129 = vshrl.u32 %v2128, 7
        %v2130 = vsub.s32 1, %v2129
        %v2131 = vrot.slane %v2122, %v2130
        %v2132 = vlaneseq
        %v2133 = vshrl.u32 %v2132, 7
        %v2134 = vsub.s32 2, %v2133
        %v2135 = vrot.slane %v2122, %v2134
        %v2139 = vadd.f32 %v2113, %v2127
        %v2140 = vadd.f32 %v2114, %v2131
        %v2141 = vadd.f32 %v2115, %v2135
        %v2142 = vadd.f32 %v2116, %v2127
        %v2143 = vadd.f32 %v2117, %v2131
        %v2144 = vadd.f32 %v2118, %v2135
        %v2145 = vadd.f32 %v2119, %v2127
        %v2146 = vadd.f32 %v2120, %v2131
        %v2147 = vadd.f32 %v2121, %v2135
        %v2148 = vmax.f32 %v2139, 0.0
        %v2149 = vmax.f32 %v2140, 0.0
        %v2150 = vmax.f32 %v2141, 0.0
        %v2151 = vmax.f32 %v2142, 0.0
        %v2152 = vmax.f32 %v2143, 0.0
        %v2153 = vmax.f32 %v2144, 0.0
        %v2154 = vmax.f32 %v2145, 0.0
        %v2155 = vmax.f32 %v2146, 0.0
        %v2156 = vmax.f32 %v2147, 0.0
        %2157 = vst [vmem:[#allocation2] sm:$0xff] 0.0
        %2158 = vst [vmem:[#allocation2 + $0x8] sm:$0xff] 0.0
        %vm2159 = vcmask 785408
        %2160 = vst.msk [vmem:[#allocation2 + $0x10] sm:$0xff] %vm2159, 0.0
        %2161 = vst [vmem:[#allocation2 + $0x18] sm:$0xff] 0.0
        %2162 = vst [vmem:[#allocation2 + $0x20] sm:$0xff] 0.0
        %2163 = vst.msk [vmem:[#allocation2 + $0x28] sm:$0xff] %vm2159, 0.0
        %2164 = vst [vmem:[#allocation2 + $0x30] sm:$0x3f] 0.0
        %2165 = vst [vmem:[#allocation2 + $0x38] sm:$0x3f] 0.0
        %vm2166 = vcmask 783360
        %2167 = vst.msk [vmem:[#allocation2 + $0x40] sm:$0x3f] %vm2166, 0.0
        %vm2177 = vcmask 1041408
        %v2178 = vrot.slane %v2148, 6
        %v2179 = vrot.slane %v2149, 6
        %v2180 = vrot.slane %v2150, 6
        %v2181 = vrot.slane %v2151, 6
        %v2182 = vsel %vm2177, %v2178, %v2181
        %v2183 = vrot.slane %v2152, 6
        %v2184 = vsel %vm2177, %v2179, %v2183
        %v2185 = vrot.slane %v2153, 6
        %v2186 = vsel %vm2177, %v2180, %v2185
        %v2187 = vrot.slane %v2154, 6
        %v2188 = vsel %vm2177, %v2181, %v2187
        %v2189 = vrot.slane %v2155, 6
        %v2190 = vsel %vm2177, %v2183, %v2189
        %v2191 = vrot.slane %v2156, 6
        %v2192 = vsel %vm2177, %v2185, %v2191
        %2193 = vrot.lane.b32.xlu0 %v2178, 32
        %v2194 = vpop.permute.xlu0 %2193
        %2195 = vrot.lane.b32.xlu0 %v2179, 32
        %v2196 = vpop.permute.xlu0 %2195
        %2197 = vrot.lane.b32.xlu0 %v2180, 32
        %v2198 = vpop.permute.xlu0 %2197
        %2199 = vrot.lane.b32.xlu0 %v2182, 32
        %v2200 = vpop.permute.xlu0 %2199
        %2201 = vrot.lane.b32.xlu0 %v2184, 32
        %v2202 = vpop.permute.xlu0 %2201
        %2203 = vrot.lane.b32.xlu0 %v2186, 32
        %v2204 = vpop.permute.xlu0 %2203
        %2205 = vrot.lane.b32.xlu0 %v2188, 32
        %v2206 = vpop.permute.xlu0 %2205
        %2207 = vrot.lane.b32.xlu0 %v2190, 32
        %v2208 = vpop.permute.xlu0 %2207
        %2209 = vrot.lane.b32.xlu0 %v2192, 32
        %v2210 = vpop.permute.xlu0 %2209
        %vm2211 = vcmask 261120
        %v2212 = vsel %vm2211, %v2194, %v2196
        %v2213 = vsel %vm2211, %v2196, %v2198
        %v2214 = vsel %vm2211, %v2200, %v2202
        %v2215 = vsel %vm2211, %v2202, %v2204
        %v2216 = vsel %vm2211, %v2206, %v2208
        %v2217 = vsel %vm2211, %v2208, %v2210
        %vm2227 = vcmask 1047810
        %2228 = vst.msk [vmem:[#allocation2] sm:$0xfc] %vm2227, %v2194
        %2229 = vst [vmem:[#allocation2 + $0x8] sm:$0xfc] %v2212
        %vm2230 = vcmask 523266
        %2231 = vst.msk [vmem:[#allocation2 + $0x10] sm:$0xfc] %vm2230, %v2213
        %vm2232 = vcmask 1047808
        %2233 = vst.msk [vmem:[#allocation2 + $0x18] sm:$0xff] %vm2232, %v2200
        %2234 = vst [vmem:[#allocation2 + $0x20] sm:$0xff] %v2214
        %vm2235 = vcmask 523264
        %2236 = vst.msk [vmem:[#allocation2 + $0x28] sm:$0xff] %vm2235, %v2215
        %vm2237 = vcmask 1043712
        %2238 = vst.msk [vmem:[#allocation2 + $0x30] sm:$0xf] %vm2237, %v2206
        %2239 = vst [vmem:[#allocation2 + $0x38] sm:$0xf] %v2216
        %vm2240 = vcmask 519168
        %2241 = vst.msk [vmem:[#allocation2 + $0x40] sm:$0xf] %vm2240, %v2217
        %v2242 = vld [vmem:[#allocation2] sm:$0xff]
        %v2243 = vld [vmem:[#allocation2 + $0x8] sm:$0xff]
        %v2244 = vld [vmem:[#allocation2 + $0x10] sm:$0xff]
        %v2245 = vld [vmem:[#allocation2 + $0x18] sm:$0xff]
        %v2246 = vld [vmem:[#allocation2 + $0x20] sm:$0xff]
        %v2247 = vld [vmem:[#allocation2 + $0x28] sm:$0xff]
        %v2248 = vld [vmem:[#allocation2 + $0x30] sm:$0x3f]
        %v2249 = vld [vmem:[#allocation2 + $0x38] sm:$0x3f]
        %v2250 = vld [vmem:[#allocation2 + $0x40] sm:$0x3f]
        %v2251 = vpack.c.bf16 %v2245, %v2242
        %v2252 = vpack.c.bf16 %v2246, %v2243
        %v2253 = vpack.c.bf16 %v2247, %v2244
        %v2254 = vpack.c.bf16 %v2248, %v2248
        %v2255 = vpack.c.bf16 %v2249, %v2249
        %v2256 = vpack.c.bf16 %v2250, %v2250
        %v2257 = vld [vmem:[#allocation8] sm:$0xff]
        %v2258 = vld [vmem:[#allocation8 + $0x8] sm:$0xff]
        %v2259 = vld [vmem:[#allocation8 + $0x10] sm:$0xf]
        %v2260 = vld [vmem:[#allocation8 + $0x14] sm:$0xff]
        %v2261 = vld [vmem:[#allocation8 + $0x1c] sm:$0xff]
        %v2262 = vld [vmem:[#allocation8 + $0x24] sm:$0xf]
        %v2263 = vld [vmem:[#allocation8 + $0x28] sm:$0xff]
        %v2264 = vld [vmem:[#allocation8 + $0x30] sm:$0xff]
        %v2265 = vld [vmem:[#allocation8 + $0x38] sm:$0xf]
        %v2266 = vld [vmem:[#allocation8 + $0x3c] sm:$0xff]
        %v2267 = vld [vmem:[#allocation8 + $0x44] sm:$0xff]
        %v2268 = vld [vmem:[#allocation8 + $0x4c] sm:$0xf]
        %v2269 = vld [vmem:[#allocation8 + $0x50] sm:$0xff]
        %v2270 = vld [vmem:[#allocation8 + $0x58] sm:$0xff]
        %v2271 = vld [vmem:[#allocation8 + $0x60] sm:$0xf]
        %v2272 = vld [vmem:[#allocation8 + $0x64] sm:$0xff]
        %v2273 = vld [vmem:[#allocation8 + $0x6c] sm:$0xff]
        %v2274 = vld [vmem:[#allocation8 + $0x74] sm:$0xf]
        %v2275 = vld [vmem:[#allocation8 + $0x78] sm:$0xff]
        %v2276 = vld [vmem:[#allocation8 + $0x80] sm:$0xff]
        %v2277 = vld [vmem:[#allocation8 + $0x88] sm:$0xf]
        %v2278 = vld [vmem:[#allocation8 + $0x8c] sm:$0xff]
        %v2279 = vld [vmem:[#allocation8 + $0x94] sm:$0xff]
        %v2280 = vld [vmem:[#allocation8 + $0x9c] sm:$0xf]
        %v2281 = vld [vmem:[#allocation8 + $0xa0] sm:$0xff]
        %v2282 = vld [vmem:[#allocation8 + $0xa8] sm:$0xff]
        %v2283 = vld [vmem:[#allocation8 + $0xb0] sm:$0xf]
        %v2284 = vld [vmem:[#allocation8 + $0xb4] sm:$0xff]
        %v2285 = vld [vmem:[#allocation8 + $0xbc] sm:$0xff]
        %v2286 = vld [vmem:[#allocation8 + $0xc4] sm:$0xf]
        %v2287 = vld [vmem:[#allocation8 + $0xc8] sm:$0xff]
        %v2288 = vld [vmem:[#allocation8 + $0xd0] sm:$0xff]
        %v2289 = vld [vmem:[#allocation8 + $0xd8] sm:$0xf]
        %v2290 = vld [vmem:[#allocation8 + $0xdc] sm:$0xff]
        %v2291 = vld [vmem:[#allocation8 + $0xe4] sm:$0xff]
        %v2292 = vld [vmem:[#allocation8 + $0xec] sm:$0xf]
        %v2293 = vld [vmem:[#allocation8 + $0xf0] sm:$0xff]
        %v2294 = vld [vmem:[#allocation8 + $0xf8] sm:$0xff]
        %v2295 = vld [vmem:[#allocation8 + $0x100] sm:$0xf]
        %v2296 = vld [vmem:[#allocation8 + $0x104] sm:$0xff]
        %v2297 = vld [vmem:[#allocation8 + $0x10c] sm:$0xff]
        %v2298 = vld [vmem:[#allocation8 + $0x114] sm:$0xf]
        %v2299 = vld [vmem:[#allocation8 + $0x118] sm:$0xff]
        %v2300 = vld [vmem:[#allocation8 + $0x120] sm:$0xff]
        %v2301 = vld [vmem:[#allocation8 + $0x128] sm:$0xf]
        %v2302 = vld [vmem:[#allocation8 + $0x12c] sm:$0xff]
        %v2303 = vld [vmem:[#allocation8 + $0x134] sm:$0xff]
        %v2304 = vld [vmem:[#allocation8 + $0x13c] sm:$0xf]
        %v2305 = vld [vmem:[#allocation8 + $0x140] sm:$0xff]
        %v2306 = vld [vmem:[#allocation8 + $0x148] sm:$0xff]
        %v2307 = vld [vmem:[#allocation8 + $0x150] sm:$0xf]
        %v2308 = vld [vmem:[#allocation8 + $0x154] sm:$0xff]
        %v2309 = vld [vmem:[#allocation8 + $0x15c] sm:$0xff]
        %v2310 = vld [vmem:[#allocation8 + $0x164] sm:$0xf]
        %v2311 = vld [vmem:[#allocation8 + $0x168] sm:$0xff]
        %v2312 = vld [vmem:[#allocation8 + $0x170] sm:$0xff]
        %v2313 = vld [vmem:[#allocation8 + $0x178] sm:$0xf]
        %v2314 = vld [vmem:[#allocation8 + $0x17c] sm:$0xff]
        %v2315 = vld [vmem:[#allocation8 + $0x184] sm:$0xff]
        %v2316 = vld [vmem:[#allocation8 + $0x18c] sm:$0xf]
        %v2317 = vld [vmem:[#allocation8 + $0x190] sm:$0xff]
        %v2318 = vld [vmem:[#allocation8 + $0x198] sm:$0xff]
        %v2319 = vld [vmem:[#allocation8 + $0x1a0] sm:$0xf]
        %v2320 = vld [vmem:[#allocation8 + $0x1a4] sm:$0xff]
        %v2321 = vld [vmem:[#allocation8 + $0x1ac] sm:$0xff]
        %v2322 = vld [vmem:[#allocation8 + $0x1b4] sm:$0xf]
        %v2323 = vld [vmem:[#allocation8 + $0x1b8] sm:$0xff]
        %v2324 = vld [vmem:[#allocation8 + $0x1c0] sm:$0xff]
        %v2325 = vld [vmem:[#allocation8 + $0x1c8] sm:$0xf]
        %v2326 = vld [vmem:[#allocation8 + $0x1cc] sm:$0xff]
        %v2327 = vld [vmem:[#allocation8 + $0x1d4] sm:$0xff]
        %v2328 = vld [vmem:[#allocation8 + $0x1dc] sm:$0xf]
        %v2329 = vld [vmem:[#allocation8 + $0x1e0] sm:$0xff]
        %v2330 = vld [vmem:[#allocation8 + $0x1e8] sm:$0xff]
        %v2331 = vld [vmem:[#allocation8 + $0x1f0] sm:$0xf]
        %v2332 = vld [vmem:[#allocation8 + $0x1f4] sm:$0xff]
        %v2333 = vld [vmem:[#allocation8 + $0x1fc] sm:$0xff]
        %v2334 = vld [vmem:[#allocation8 + $0x204] sm:$0xf]
        %v2335 = vld [vmem:[#allocation8 + $0x208] sm:$0xff]
        %v2336 = vld [vmem:[#allocation8 + $0x210] sm:$0xff]
        %v2337 = vld [vmem:[#allocation8 + $0x218] sm:$0xf]
        %v2338 = vld [vmem:[#allocation8 + $0x21c] sm:$0xff]
        %v2339 = vld [vmem:[#allocation8 + $0x224] sm:$0xff]
        %v2340 = vld [vmem:[#allocation8 + $0x22c] sm:$0xf]
        %v2341 = vld [vmem:[#allocation8 + $0x230] sm:$0xff]
        %v2342 = vld [vmem:[#allocation8 + $0x238] sm:$0xff]
        %v2343 = vld [vmem:[#allocation8 + $0x240] sm:$0xf]
        %v2344 = vld [vmem:[#allocation8 + $0x244] sm:$0xff]
        %v2345 = vld [vmem:[#allocation8 + $0x24c] sm:$0xff]
        %v2346 = vld [vmem:[#allocation8 + $0x254] sm:$0xf]
        %v2347 = vld [vmem:[#allocation8 + $0x258] sm:$0xff]
        %v2348 = vld [vmem:[#allocation8 + $0x260] sm:$0xff]
        %v2349 = vld [vmem:[#allocation8 + $0x268] sm:$0xf]
        %v2350 = vld [vmem:[#allocation8 + $0x26c] sm:$0xff]
        %v2351 = vld [vmem:[#allocation8 + $0x274] sm:$0xff]
        %v2352 = vld [vmem:[#allocation8 + $0x27c] sm:$0xf]
        %v2353 = vld [vmem:[#allocation8 + $0x280] sm:$0xff]
        %v2354 = vld [vmem:[#allocation8 + $0x288] sm:$0xff]
        %v2355 = vld [vmem:[#allocation8 + $0x290] sm:$0xf]
        %v2356 = vld [vmem:[#allocation8 + $0x294] sm:$0xff]
        %v2357 = vld [vmem:[#allocation8 + $0x29c] sm:$0xff]
        %v2358 = vld [vmem:[#allocation8 + $0x2a4] sm:$0xf]
        %v2359 = vld [vmem:[#allocation8 + $0x2a8] sm:$0xff]
        %v2360 = vld [vmem:[#allocation8 + $0x2b0] sm:$0xff]
        %v2361 = vld [vmem:[#allocation8 + $0x2b8] sm:$0xf]
        %v2362 = vld [vmem:[#allocation8 + $0x2bc] sm:$0xff]
        %v2363 = vld [vmem:[#allocation8 + $0x2c4] sm:$0xff]
        %v2364 = vld [vmem:[#allocation8 + $0x2cc] sm:$0xf]
        %v2365 = vld [vmem:[#allocation8 + $0x2d0] sm:$0xff]
        %v2366 = vld [vmem:[#allocation8 + $0x2d8] sm:$0xff]
        %v2367 = vld [vmem:[#allocation8 + $0x2e0] sm:$0xf]
        %v2368 = vld [vmem:[#allocation8 + $0x2e4] sm:$0xff]
        %v2369 = vld [vmem:[#allocation8 + $0x2ec] sm:$0xff]
        %v2370 = vld [vmem:[#allocation8 + $0x2f4] sm:$0xf]
        %v2371 = vld [vmem:[#allocation8 + $0x2f8] sm:$0xff]
        %v2372 = vld [vmem:[#allocation8 + $0x300] sm:$0xff]
        %v2373 = vld [vmem:[#allocation8 + $0x308] sm:$0xf]
        %v2374 = vld [vmem:[#allocation8 + $0x30c] sm:$0xff]
        %v2375 = vld [vmem:[#allocation8 + $0x314] sm:$0xff]
        %v2376 = vld [vmem:[#allocation8 + $0x31c] sm:$0xf]
        %s2377 = scalar_lea.vmem [#allocation8], 800
        %v2378 = vld [vmem:[%s2377] sm:$0xff]
        %v2379 = vld [vmem:[%s2377 + $0x8] sm:$0xff]
        %v2380 = vld [vmem:[%s2377 + $0x10] sm:$0xf]
        %v2381 = vld [vmem:[%s2377 + $0x14] sm:$0xff]
        %v2382 = vld [vmem:[%s2377 + $0x1c] sm:$0xff]
        %v2383 = vld [vmem:[%s2377 + $0x24] sm:$0xf]
        %v2384 = vld [vmem:[%s2377 + $0x28] sm:$0xff]
        %v2385 = vld [vmem:[%s2377 + $0x30] sm:$0xff]
        %v2386 = vld [vmem:[%s2377 + $0x38] sm:$0xf]
        %v2387 = vld [vmem:[%s2377 + $0x3c] sm:$0xff]
        %v2388 = vld [vmem:[%s2377 + $0x44] sm:$0xff]
        %v2389 = vld [vmem:[%s2377 + $0x4c] sm:$0xf]
        %v2390 = vld [vmem:[%s2377 + $0x50] sm:$0xff]
        %v2391 = vld [vmem:[%s2377 + $0x58] sm:$0xff]
        %v2392 = vld [vmem:[%s2377 + $0x60] sm:$0xf]
        %v2393 = vld [vmem:[%s2377 + $0x64] sm:$0xff]
        %v2394 = vld [vmem:[%s2377 + $0x6c] sm:$0xff]
        %v2395 = vld [vmem:[%s2377 + $0x74] sm:$0xf]
        %v2396 = vld [vmem:[%s2377 + $0x78] sm:$0xff]
        %v2397 = vld [vmem:[%s2377 + $0x80] sm:$0xff]
        %v2398 = vld [vmem:[%s2377 + $0x88] sm:$0xf]
        %v2399 = vld [vmem:[%s2377 + $0x8c] sm:$0xff]
        %v2400 = vld [vmem:[%s2377 + $0x94] sm:$0xff]
        %v2401 = vld [vmem:[%s2377 + $0x9c] sm:$0xf]
        %v2402 = vld [vmem:[%s2377 + $0xa0] sm:$0xff]
        %v2403 = vld [vmem:[%s2377 + $0xa8] sm:$0xff]
        %v2404 = vld [vmem:[%s2377 + $0xb0] sm:$0xf]
        %v2405 = vld [vmem:[%s2377 + $0xb4] sm:$0xff]
        %v2406 = vld [vmem:[%s2377 + $0xbc] sm:$0xff]
        %v2407 = vld [vmem:[%s2377 + $0xc4] sm:$0xf]
        %v2408 = vld [vmem:[%s2377 + $0xc8] sm:$0xff]
        %v2409 = vld [vmem:[%s2377 + $0xd0] sm:$0xff]
        %v2410 = vld [vmem:[%s2377 + $0xd8] sm:$0xf]
        %v2411 = vld [vmem:[%s2377 + $0xdc] sm:$0xff]
        %v2412 = vld [vmem:[%s2377 + $0xe4] sm:$0xff]
        %v2413 = vld [vmem:[%s2377 + $0xec] sm:$0xf]
        %v2414 = vld [vmem:[%s2377 + $0xf0] sm:$0xff]
        %v2415 = vld [vmem:[%s2377 + $0xf8] sm:$0xff]
        %v2416 = vld [vmem:[%s2377 + $0x100] sm:$0xf]
        %v2417 = vld [vmem:[%s2377 + $0x104] sm:$0xff]
        %v2418 = vld [vmem:[%s2377 + $0x10c] sm:$0xff]
        %v2419 = vld [vmem:[%s2377 + $0x114] sm:$0xf]
        %v2420 = vld [vmem:[%s2377 + $0x118] sm:$0xff]
        %v2421 = vld [vmem:[%s2377 + $0x120] sm:$0xff]
        %v2422 = vld [vmem:[%s2377 + $0x128] sm:$0xf]
        %v2423 = vld [vmem:[%s2377 + $0x12c] sm:$0xff]
        %v2424 = vld [vmem:[%s2377 + $0x134] sm:$0xff]
        %v2425 = vld [vmem:[%s2377 + $0x13c] sm:$0xf]
        %v2426 = vld [vmem:[%s2377 + $0x140] sm:$0xff]
        %v2427 = vld [vmem:[%s2377 + $0x148] sm:$0xff]
        %v2428 = vld [vmem:[%s2377 + $0x150] sm:$0xf]
        %v2429 = vld [vmem:[%s2377 + $0x154] sm:$0xff]
        %v2430 = vld [vmem:[%s2377 + $0x15c] sm:$0xff]
        %v2431 = vld [vmem:[%s2377 + $0x164] sm:$0xf]
        %v2432 = vld [vmem:[%s2377 + $0x168] sm:$0xff]
        %v2433 = vld [vmem:[%s2377 + $0x170] sm:$0xff]
        %v2434 = vld [vmem:[%s2377 + $0x178] sm:$0xf]
        %v2435 = vld [vmem:[%s2377 + $0x17c] sm:$0xff]
        %v2436 = vld [vmem:[%s2377 + $0x184] sm:$0xff]
        %v2437 = vld [vmem:[%s2377 + $0x18c] sm:$0xf]
        %v2438 = vld [vmem:[%s2377 + $0x190] sm:$0xff]
        %v2439 = vld [vmem:[%s2377 + $0x198] sm:$0xff]
        %v2440 = vld [vmem:[%s2377 + $0x1a0] sm:$0xf]
        %v2441 = vld [vmem:[%s2377 + $0x1a4] sm:$0xff]
        %v2442 = vld [vmem:[%s2377 + $0x1ac] sm:$0xff]
        %v2443 = vld [vmem:[%s2377 + $0x1b4] sm:$0xf]
        %v2444 = vld [vmem:[%s2377 + $0x1b8] sm:$0xff]
        %v2445 = vld [vmem:[%s2377 + $0x1c0] sm:$0xff]
        %v2446 = vld [vmem:[%s2377 + $0x1c8] sm:$0xf]
        %v2447 = vld [vmem:[%s2377 + $0x1cc] sm:$0xff]
        %v2448 = vld [vmem:[%s2377 + $0x1d4] sm:$0xff]
        %v2449 = vld [vmem:[%s2377 + $0x1dc] sm:$0xf]
        %v2450 = vld [vmem:[%s2377 + $0x1e0] sm:$0xff]
        %v2451 = vld [vmem:[%s2377 + $0x1e8] sm:$0xff]
        %v2452 = vld [vmem:[%s2377 + $0x1f0] sm:$0xf]
        %v2453 = vld [vmem:[%s2377 + $0x1f4] sm:$0xff]
        %v2454 = vld [vmem:[%s2377 + $0x1fc] sm:$0xff]
        %v2455 = vld [vmem:[%s2377 + $0x204] sm:$0xf]
        %v2456 = vld [vmem:[%s2377 + $0x208] sm:$0xff]
        %v2457 = vld [vmem:[%s2377 + $0x210] sm:$0xff]
        %v2458 = vld [vmem:[%s2377 + $0x218] sm:$0xf]
        %v2459 = vld [vmem:[%s2377 + $0x21c] sm:$0xff]
        %v2460 = vld [vmem:[%s2377 + $0x224] sm:$0xff]
        %v2461 = vld [vmem:[%s2377 + $0x22c] sm:$0xf]
        %v2462 = vld [vmem:[%s2377 + $0x230] sm:$0xff]
        %v2463 = vld [vmem:[%s2377 + $0x238] sm:$0xff]
        %v2464 = vld [vmem:[%s2377 + $0x240] sm:$0xf]
        %v2465 = vld [vmem:[%s2377 + $0x244] sm:$0xff]
        %v2466 = vld [vmem:[%s2377 + $0x24c] sm:$0xff]
        %v2467 = vld [vmem:[%s2377 + $0x254] sm:$0xf]
        %v2468 = vld [vmem:[%s2377 + $0x258] sm:$0xff]
        %v2469 = vld [vmem:[%s2377 + $0x260] sm:$0xff]
        %v2470 = vld [vmem:[%s2377 + $0x268] sm:$0xf]
        %v2471 = vld [vmem:[%s2377 + $0x26c] sm:$0xff]
        %v2472 = vld [vmem:[%s2377 + $0x274] sm:$0xff]
        %v2473 = vld [vmem:[%s2377 + $0x27c] sm:$0xf]
        %v2474 = vld [vmem:[%s2377 + $0x280] sm:$0xff]
        %v2475 = vld [vmem:[%s2377 + $0x288] sm:$0xff]
        %v2476 = vld [vmem:[%s2377 + $0x290] sm:$0xf]
        %v2477 = vld [vmem:[%s2377 + $0x294] sm:$0xff]
        %v2478 = vld [vmem:[%s2377 + $0x29c] sm:$0xff]
        %v2479 = vld [vmem:[%s2377 + $0x2a4] sm:$0xf]
        %v2480 = vld [vmem:[%s2377 + $0x2a8] sm:$0xff]
        %v2481 = vld [vmem:[%s2377 + $0x2b0] sm:$0xff]
        %v2482 = vld [vmem:[%s2377 + $0x2b8] sm:$0xf]
        %v2483 = vld [vmem:[%s2377 + $0x2bc] sm:$0xff]
        %v2484 = vld [vmem:[%s2377 + $0x2c4] sm:$0xff]
        %v2485 = vld [vmem:[%s2377 + $0x2cc] sm:$0xf]
        %v2486 = vld [vmem:[%s2377 + $0x2d0] sm:$0xff]
        %v2487 = vld [vmem:[%s2377 + $0x2d8] sm:$0xff]
        %v2488 = vld [vmem:[%s2377 + $0x2e0] sm:$0xf]
        %v2489 = vld [vmem:[%s2377 + $0x2e4] sm:$0xff]
        %v2490 = vld [vmem:[%s2377 + $0x2ec] sm:$0xff]
        %v2491 = vld [vmem:[%s2377 + $0x2f4] sm:$0xf]
        %v2492 = vld [vmem:[%s2377 + $0x2f8] sm:$0xff]
        %v2493 = vld [vmem:[%s2377 + $0x300] sm:$0xff]
        %v2494 = vld [vmem:[%s2377 + $0x308] sm:$0xf]
        %v2495 = vld [vmem:[%s2377 + $0x30c] sm:$0xff]
        %v2496 = vld [vmem:[%s2377 + $0x314] sm:$0xff]
        %v2497 = vld [vmem:[%s2377 + $0x31c] sm:$0xf]
        %2504 = vrot.lane.b32.xlu0 %v2251, 112
        %v2505 = vpop.permute.xlu0 %2504
        %2506 = vrot.lane.b32.xlu0 %v2252, 112
        %v2507 = vpop.permute.xlu0 %2506
        %2508 = vrot.lane.b32.xlu0 %v2253, 112
        %v2509 = vpop.permute.xlu0 %2508
        %2510 = vrot.lane.b32.xlu0 %v2254, 112
        %v2511 = vpop.permute.xlu0 %2510
        %2512 = vrot.lane.b32.xlu0 %v2255, 112
        %v2513 = vpop.permute.xlu0 %2512
        %2514 = vrot.lane.b32.xlu0 %v2256, 112
        %v2515 = vpop.permute.xlu0 %2514
        %vm2516 = vcmask 916480
        %v2517 = vsel %vm2516, %v2505, %v2507
        %v2518 = vsel %vm2516, %v2507, %v2509
        %v2519 = vsel %vm2516, %v2511, %v2513
        %v2520 = vsel %vm2516, %v2513, %v2515
        %v2645 = vunpack.c.l.b16 %v2378
        %v2646 = vunpack.c.h.b16 %v2378
        %v2647 = vunpack.c.l.b16 %v2379
        %v2648 = vunpack.c.h.b16 %v2379
        %v2649 = vunpack.c.l.b16 %v2380
        %v2650 = vunpack.c.l.b16 %v2381
        %v2651 = vunpack.c.h.b16 %v2381
        %v2652 = vunpack.c.l.b16 %v2382
        %v2653 = vunpack.c.h.b16 %v2382
        %v2654 = vunpack.c.l.b16 %v2383
        %v2655 = vunpack.c.l.b16 %v2384
        %v2656 = vunpack.c.h.b16 %v2384
        %v2657 = vunpack.c.l.b16 %v2385
        %v2658 = vunpack.c.h.b16 %v2385
        %v2659 = vunpack.c.l.b16 %v2386
        %v2660 = vunpack.c.l.b16 %v2387
        %v2661 = vunpack.c.h.b16 %v2387
        %v2662 = vunpack.c.l.b16 %v2388
        %v2663 = vunpack.c.h.b16 %v2388
        %v2664 = vunpack.c.l.b16 %v2389
        %v2665 = vunpack.c.l.b16 %v2390
        %v2666 = vunpack.c.h.b16 %v2390
        %v2667 = vunpack.c.l.b16 %v2391
        %v2668 = vunpack.c.h.b16 %v2391
        %v2669 = vunpack.c.l.b16 %v2392
        %v2670 = vunpack.c.l.b16 %v2393
        %v2671 = vunpack.c.h.b16 %v2393
        %v2672 = vunpack.c.l.b16 %v2394
        %v2673 = vunpack.c.h.b16 %v2394
        %v2674 = vunpack.c.l.b16 %v2395
        %v2675 = vunpack.c.l.b16 %v2396
        %v2676 = vunpack.c.h.b16 %v2396
        %v2677 = vunpack.c.l.b16 %v2397
        %v2678 = vunpack.c.h.b16 %v2397
        %v2679 = vunpack.c.l.b16 %v2398
        %v2680 = vunpack.c.l.b16 %v2399
        %v2681 = vunpack.c.h.b16 %v2399
        %v2682 = vunpack.c.l.b16 %v2400
        %v2683 = vunpack.c.h.b16 %v2400
        %v2684 = vunpack.c.l.b16 %v2401
        %v2685 = vunpack.c.l.b16 %v2402
        %v2686 = vunpack.c.h.b16 %v2402
        %v2687 = vunpack.c.l.b16 %v2403
        %v2688 = vunpack.c.h.b16 %v2403
        %v2689 = vunpack.c.l.b16 %v2404
        %v2690 = vunpack.c.l.b16 %v2405
        %v2691 = vunpack.c.h.b16 %v2405
        %v2692 = vunpack.c.l.b16 %v2406
        %v2693 = vunpack.c.h.b16 %v2406
        %v2694 = vunpack.c.l.b16 %v2407
        %v2695 = vunpack.c.l.b16 %v2408
        %v2696 = vunpack.c.h.b16 %v2408
        %v2697 = vunpack.c.l.b16 %v2409
        %v2698 = vunpack.c.h.b16 %v2409
        %v2699 = vunpack.c.l.b16 %v2410
        %v2700 = vunpack.c.l.b16 %v2411
        %v2701 = vunpack.c.h.b16 %v2411
        %v2702 = vunpack.c.l.b16 %v2412
        %v2703 = vunpack.c.h.b16 %v2412
        %v2704 = vunpack.c.l.b16 %v2413
        %v2705 = vunpack.c.l.b16 %v2414
        %v2706 = vunpack.c.h.b16 %v2414
        %v2707 = vunpack.c.l.b16 %v2415
        %v2708 = vunpack.c.h.b16 %v2415
        %v2709 = vunpack.c.l.b16 %v2416
        %v2710 = vunpack.c.l.b16 %v2417
        %v2711 = vunpack.c.h.b16 %v2417
        %v2712 = vunpack.c.l.b16 %v2418
        %v2713 = vunpack.c.h.b16 %v2418
        %v2714 = vunpack.c.l.b16 %v2419
        %v2715 = vunpack.c.l.b16 %v2420
        %v2716 = vunpack.c.h.b16 %v2420
        %v2717 = vunpack.c.l.b16 %v2421
        %v2718 = vunpack.c.h.b16 %v2421
        %v2719 = vunpack.c.l.b16 %v2422
        %v2720 = vunpack.c.l.b16 %v2423
        %v2721 = vunpack.c.h.b16 %v2423
        %v2722 = vunpack.c.l.b16 %v2424
        %v2723 = vunpack.c.h.b16 %v2424
        %v2724 = vunpack.c.l.b16 %v2425
        %v2725 = vunpack.c.l.b16 %v2426
        %v2726 = vunpack.c.h.b16 %v2426
        %v2727 = vunpack.c.l.b16 %v2427
        %v2728 = vunpack.c.h.b16 %v2427
        %v2729 = vunpack.c.l.b16 %v2428
        %v2730 = vunpack.c.l.b16 %v2429
        %v2731 = vunpack.c.h.b16 %v2429
        %v2732 = vunpack.c.l.b16 %v2430
        %v2733 = vunpack.c.h.b16 %v2430
        %v2734 = vunpack.c.l.b16 %v2431
        %v2735 = vunpack.c.l.b16 %v2432
        %v2736 = vunpack.c.h.b16 %v2432
        %v2737 = vunpack.c.l.b16 %v2433
        %v2738 = vunpack.c.h.b16 %v2433
        %v2739 = vunpack.c.l.b16 %v2434
        %v2740 = vunpack.c.l.b16 %v2435
        %v2741 = vunpack.c.h.b16 %v2435
        %v2742 = vunpack.c.l.b16 %v2436
        %v2743 = vunpack.c.h.b16 %v2436
        %v2744 = vunpack.c.l.b16 %v2437
        %v2745 = vunpack.c.l.b16 %v2438
        %v2746 = vunpack.c.h.b16 %v2438
        %v2747 = vunpack.c.l.b16 %v2439
        %v2748 = vunpack.c.h.b16 %v2439
        %v2749 = vunpack.c.l.b16 %v2440
        %v2750 = vunpack.c.l.b16 %v2441
        %v2751 = vunpack.c.h.b16 %v2441
        %v2752 = vunpack.c.l.b16 %v2442
        %v2753 = vunpack.c.h.b16 %v2442
        %v2754 = vunpack.c.l.b16 %v2443
        %v2755 = vunpack.c.l.b16 %v2444
        %v2756 = vunpack.c.h.b16 %v2444
        %v2757 = vunpack.c.l.b16 %v2445
        %v2758 = vunpack.c.h.b16 %v2445
        %v2759 = vunpack.c.l.b16 %v2446
        %v2760 = vunpack.c.l.b16 %v2447
        %v2761 = vunpack.c.h.b16 %v2447
        %v2762 = vunpack.c.l.b16 %v2448
        %v2763 = vunpack.c.h.b16 %v2448
        %v2764 = vunpack.c.l.b16 %v2449
        %v2765 = vunpack.c.l.b16 %v2450
        %v2766 = vunpack.c.h.b16 %v2450
        %v2767 = vunpack.c.l.b16 %v2451
        %v2768 = vunpack.c.h.b16 %v2451
        %v2769 = vunpack.c.l.b16 %v2452
        %v2770 = vunpack.c.l.b16 %v2453
        %v2771 = vunpack.c.h.b16 %v2453
        %v2772 = vunpack.c.l.b16 %v2454
        %v2773 = vunpack.c.h.b16 %v2454
        %v2774 = vunpack.c.l.b16 %v2455
        %v2775 = vunpack.c.l.b16 %v2456
        %v2776 = vunpack.c.h.b16 %v2456
        %v2777 = vunpack.c.l.b16 %v2457
        %v2778 = vunpack.c.h.b16 %v2457
        %v2779 = vunpack.c.l.b16 %v2458
        %v2780 = vunpack.c.l.b16 %v2459
        %v2781 = vunpack.c.h.b16 %v2459
        %v2782 = vunpack.c.l.b16 %v2460
        %v2783 = vunpack.c.h.b16 %v2460
        %v2784 = vunpack.c.l.b16 %v2461
        %v2785 = vunpack.c.l.b16 %v2462
        %v2786 = vunpack.c.h.b16 %v2462
        %v2787 = vunpack.c.l.b16 %v2463
        %v2788 = vunpack.c.h.b16 %v2463
        %v2789 = vunpack.c.l.b16 %v2464
        %v2790 = vunpack.c.l.b16 %v2465
        %v2791 = vunpack.c.h.b16 %v2465
        %v2792 = vunpack.c.l.b16 %v2466
        %v2793 = vunpack.c.h.b16 %v2466
        %v2794 = vunpack.c.l.b16 %v2467
        %v2795 = vunpack.c.l.b16 %v2468
        %v2796 = vunpack.c.h.b16 %v2468
        %v2797 = vunpack.c.l.b16 %v2469
        %v2798 = vunpack.c.h.b16 %v2469
        %v2799 = vunpack.c.l.b16 %v2470
        %v2800 = vunpack.c.l.b16 %v2471
        %v2801 = vunpack.c.h.b16 %v2471
        %v2802 = vunpack.c.l.b16 %v2472
        %v2803 = vunpack.c.h.b16 %v2472
        %v2804 = vunpack.c.l.b16 %v2473
        %v2805 = vunpack.c.l.b16 %v2474
        %v2806 = vunpack.c.h.b16 %v2474
        %v2807 = vunpack.c.l.b16 %v2475
        %v2808 = vunpack.c.h.b16 %v2475
        %v2809 = vunpack.c.l.b16 %v2476
        %v2810 = vunpack.c.l.b16 %v2477
        %v2811 = vunpack.c.h.b16 %v2477
        %v2812 = vunpack.c.l.b16 %v2478
        %v2813 = vunpack.c.h.b16 %v2478
        %v2814 = vunpack.c.l.b16 %v2479
        %v2815 = vunpack.c.l.b16 %v2480
        %v2816 = vunpack.c.h.b16 %v2480
        %v2817 = vunpack.c.l.b16 %v2481
        %v2818 = vunpack.c.h.b16 %v2481
        %v2819 = vunpack.c.l.b16 %v2482
        %v2820 = vunpack.c.l.b16 %v2483
        %v2821 = vunpack.c.h.b16 %v2483
        %v2822 = vunpack.c.l.b16 %v2484
        %v2823 = vunpack.c.h.b16 %v2484
        %v2824 = vunpack.c.l.b16 %v2485
        %v2825 = vunpack.c.l.b16 %v2486
        %v2826 = vunpack.c.h.b16 %v2486
        %v2827 = vunpack.c.l.b16 %v2487
        %v2828 = vunpack.c.h.b16 %v2487
        %v2829 = vunpack.c.l.b16 %v2488
        %v2830 = vunpack.c.l.b16 %v2489
        %v2831 = vunpack.c.h.b16 %v2489
        %v2832 = vunpack.c.l.b16 %v2490
        %v2833 = vunpack.c.h.b16 %v2490
        %v2834 = vunpack.c.l.b16 %v2491
        %v2835 = vunpack.c.l.b16 %v2492
        %v2836 = vunpack.c.h.b16 %v2492
        %v2837 = vunpack.c.l.b16 %v2493
        %v2838 = vunpack.c.h.b16 %v2493
        %v2839 = vunpack.c.l.b16 %v2494
        %v2840 = vunpack.c.l.b16 %v2495
        %v2841 = vunpack.c.h.b16 %v2495
        %v2842 = vunpack.c.l.b16 %v2496
        %v2843 = vunpack.c.h.b16 %v2496
        %v2844 = vunpack.c.l.b16 %v2497
        %v2845 = vpack.c.b16 %v2650, %v2645
        %v2846 = vpack.c.b16 %v2651, %v2646
        %v2847 = vpack.c.b16 %v2652, %v2647
        %v2848 = vpack.c.b16 %v2653, %v2648
        %v2849 = vpack.c.b16 %v2654, %v2649
        %v2850 = vpack.c.b16 %v2660, %v2655
        %v2851 = vpack.c.b16 %v2661, %v2656
        %v2852 = vpack.c.b16 %v2662, %v2657
        %v2853 = vpack.c.b16 %v2663, %v2658
        %v2854 = vpack.c.b16 %v2664, %v2659
        %v2855 = vpack.c.b16 %v2670, %v2665
        %v2856 = vpack.c.b16 %v2671, %v2666
        %v2857 = vpack.c.b16 %v2672, %v2667
        %v2858 = vpack.c.b16 %v2673, %v2668
        %v2859 = vpack.c.b16 %v2674, %v2669
        %v2860 = vpack.c.b16 %v2680, %v2675
        %v2861 = vpack.c.b16 %v2681, %v2676
        %v2862 = vpack.c.b16 %v2682, %v2677
        %v2863 = vpack.c.b16 %v2683, %v2678
        %v2864 = vpack.c.b16 %v2684, %v2679
        %v2865 = vpack.c.b16 %v2690, %v2685
        %v2866 = vpack.c.b16 %v2691, %v2686
        %v2867 = vpack.c.b16 %v2692, %v2687
        %v2868 = vpack.c.b16 %v2693, %v2688
        %v2869 = vpack.c.b16 %v2694, %v2689
        %v2870 = vpack.c.b16 %v2700, %v2695
        %v2871 = vpack.c.b16 %v2701, %v2696
        %v2872 = vpack.c.b16 %v2702, %v2697
        %v2873 = vpack.c.b16 %v2703, %v2698
        %v2874 = vpack.c.b16 %v2704, %v2699
        %v2875 = vpack.c.b16 %v2710, %v2705
        %v2876 = vpack.c.b16 %v2711, %v2706
        %v2877 = vpack.c.b16 %v2712, %v2707
        %v2878 = vpack.c.b16 %v2713, %v2708
        %v2879 = vpack.c.b16 %v2714, %v2709
        %v2880 = vpack.c.b16 %v2720, %v2715
        %v2881 = vpack.c.b16 %v2721, %v2716
        %v2882 = vpack.c.b16 %v2722, %v2717
        %v2883 = vpack.c.b16 %v2723, %v2718
        %v2884 = vpack.c.b16 %v2724, %v2719
        %v2885 = vpack.c.b16 %v2730, %v2725
        %v2886 = vpack.c.b16 %v2731, %v2726
        %v2887 = vpack.c.b16 %v2732, %v2727
        %v2888 = vpack.c.b16 %v2733, %v2728
        %v2889 = vpack.c.b16 %v2734, %v2729
        %v2890 = vpack.c.b16 %v2740, %v2735
        %v2891 = vpack.c.b16 %v2741, %v2736
        %v2892 = vpack.c.b16 %v2742, %v2737
        %v2893 = vpack.c.b16 %v2743, %v2738
        %v2894 = vpack.c.b16 %v2744, %v2739
        %v2895 = vpack.c.b16 %v2750, %v2745
        %v2896 = vpack.c.b16 %v2751, %v2746
        %v2897 = vpack.c.b16 %v2752, %v2747
        %v2898 = vpack.c.b16 %v2753, %v2748
        %v2899 = vpack.c.b16 %v2754, %v2749
        %v2900 = vpack.c.b16 %v2760, %v2755
        %v2901 = vpack.c.b16 %v2761, %v2756
        %v2902 = vpack.c.b16 %v2762, %v2757
        %v2903 = vpack.c.b16 %v2763, %v2758
        %v2904 = vpack.c.b16 %v2764, %v2759
        %v2905 = vpack.c.b16 %v2770, %v2765
        %v2906 = vpack.c.b16 %v2771, %v2766
        %v2907 = vpack.c.b16 %v2772, %v2767
        %v2908 = vpack.c.b16 %v2773, %v2768
        %v2909 = vpack.c.b16 %v2774, %v2769
        %v2910 = vpack.c.b16 %v2780, %v2775
        %v2911 = vpack.c.b16 %v2781, %v2776
        %v2912 = vpack.c.b16 %v2782, %v2777
        %v2913 = vpack.c.b16 %v2783, %v2778
        %v2914 = vpack.c.b16 %v2784, %v2779
        %v2915 = vpack.c.b16 %v2790, %v2785
        %v2916 = vpack.c.b16 %v2791, %v2786
        %v2917 = vpack.c.b16 %v2792, %v2787
        %v2918 = vpack.c.b16 %v2793, %v2788
        %v2919 = vpack.c.b16 %v2794, %v2789
        %v2920 = vpack.c.b16 %v2800, %v2795
        %v2921 = vpack.c.b16 %v2801, %v2796
        %v2922 = vpack.c.b16 %v2802, %v2797
        %v2923 = vpack.c.b16 %v2803, %v2798
        %v2924 = vpack.c.b16 %v2804, %v2799
        %v2925 = vpack.c.b16 %v2810, %v2805
        %v2926 = vpack.c.b16 %v2811, %v2806
        %v2927 = vpack.c.b16 %v2812, %v2807
        %v2928 = vpack.c.b16 %v2813, %v2808
        %v2929 = vpack.c.b16 %v2814, %v2809
        %v2930 = vpack.c.b16 %v2820, %v2815
        %v2931 = vpack.c.b16 %v2821, %v2816
        %v2932 = vpack.c.b16 %v2822, %v2817
        %v2933 = vpack.c.b16 %v2823, %v2818
        %v2934 = vpack.c.b16 %v2824, %v2819
        %v2935 = vpack.c.b16 %v2830, %v2825
        %v2936 = vpack.c.b16 %v2831, %v2826
        %v2937 = vpack.c.b16 %v2832, %v2827
        %v2938 = vpack.c.b16 %v2833, %v2828
        %v2939 = vpack.c.b16 %v2834, %v2829
        %v2940 = vpack.c.b16 %v2840, %v2835
        %v2941 = vpack.c.b16 %v2841, %v2836
        %v2942 = vpack.c.b16 %v2842, %v2837
        %v2943 = vpack.c.b16 %v2843, %v2838
        %v2944 = vpack.c.b16 %v2844, %v2839
        %v3046 = vsel %vm2235, %v2509, 0
        %v3049 = vsel %vm2235, %v2515, 0
        %3051 = vmatprep.subr.bf16.mxu0 %v2846
        %3052 = vmatpush1.bf16.msra.mxu0 %v2845
        %3053 = vmatprep.subr.bf16.mxu0 %v2851
        %3054 = vmatpush1.bf16.msra.mxu0 %v2850
        %3055 = vmatprep.subr.bf16.mxu0 %v2856
        %3056 = vmatpush1.bf16.msra.mxu0 %v2855
        %3057 = vmatprep.subr.bf16.mxu0 %v2861
        %3058 = vmatpush1.bf16.msra.mxu0 %v2860
        %3059 = vmatprep.subr.bf16.mxu0 %v2866
        %3060 = vmatpush1.bf16.msra.mxu0 %v2865
        %3061 = vmatprep.subr.bf16.mxu0 %v2871
        %3062 = vmatpush1.bf16.msra.mxu0 %v2870
        %3063 = vmatprep.subr.bf16.mxu0 %v2876
        %3064 = vmatpush1.bf16.msra.mxu0 %v2875
        %3065 = vmatprep.subr.bf16.mxu0 %v2881
        %3066 = vmatpush1.bf16.msra.mxu0 %v2880
        %3067 = vmatprep.subr.bf16.mxu0 %v2886
        %3068 = vmatpush1.bf16.msra.mxu0 %v2885
        %3069 = vmatprep.subr.bf16.mxu0 %v2891
        %3070 = vmatpush1.bf16.msra.mxu0 %v2890
        %3071 = vmatprep.subr.bf16.mxu0 %v2896
        %3072 = vmatpush1.bf16.msra.mxu0 %v2895
        %3073 = vmatprep.subr.bf16.mxu0 %v2901
        %3074 = vmatpush1.bf16.msra.mxu0 %v2900
        %3075 = vmatprep.subr.bf16.mxu0 %v2906
        %3076 = vmatpush1.bf16.msra.mxu0 %v2905
        %3077 = vmatprep.subr.bf16.mxu0 %v2911
        %3078 = vmatpush1.bf16.msra.mxu0 %v2910
        %3079 = vmatprep.subr.bf16.mxu0 %v2916
        %3080 = vmatpush1.bf16.msra.mxu0 %v2915
        %3081 = vmatprep.subr.bf16.mxu0 %v2921
        %3082 = vmatpush1.bf16.msra.mxu0 %v2920
        %3083 = vmatprep.mubr.bf16.mxu0 %v2518
        %3084 = vmatmul.mubr.bf16.gmra.mrb[0].mxu0 %v2517
        %v3085 = vpop.f32.mrb[0].mxu0
        %v3086 = vadd.f32 0.0, %v3085
        %v3087 = vpop.f32.mrb[0].mxu0
        %v3088 = vadd.f32 0.0, %v3087
        %v3089 = vpop.f32.mrb[0].mxu0
        %v3090 = vadd.f32 0.0, %v3089
        %v3091 = vpop.f32.mrb[0].mxu0
        %v3092 = vadd.f32 0.0, %v3091
        %3093 = vmatprep.mubr.bf16.mxu0 %v2520
        %3094 = vmatmul.mubr.bf16.gmra.mrb[0].mxu0 %v2519
        %v3095 = vpop.f32.mrb[0].mxu0
        %v3096 = vadd.f32 0.0, %v3095
        %v3097 = vpop.f32.mrb[0].mxu0
        %v3098 = vadd.f32 0.0, %v3097
        %v3099 = vpop.f32.mrb[0].mxu0
        %v3100 = vpop.f32.mrb[0].mxu0
        %3101 = vdwg.mxu0
        %3102 = vmatprep.subr.bf16.mxu0 %v2926
        %3103 = vmatpush1.bf16.msra.mxu0 %v2925
        %3104 = vmatprep.subr.bf16.mxu0 %v2931
        %3105 = vmatpush1.bf16.msra.mxu0 %v2930
        %3106 = vmatprep.subr.bf16.mxu0 %v2936
        %3107 = vmatpush1.bf16.msra.mxu0 %v2935
        %3108 = vmatprep.subr.bf16.mxu0 %v2941
        %3109 = vmatpush1.bf16.msra.mxu0 %v2940
        %3110 = vmatprep.subr.bf16.mxu0 0
        %3111 = vmatpush1.bf16.msra.mxu0 0
        %3112 = vmatprep.subr.bf16.mxu0 0
        %3113 = vmatpush1.bf16.msra.mxu0 0
        %3114 = vmatprep.subr.bf16.mxu0 0
        %3115 = vmatpush1.bf16.msra.mxu0 0
        %3116 = vmatprep.subr.bf16.mxu0 0
        %3117 = vmatpush1.bf16.msra.mxu0 0
        %3118 = vmatprep.subr.bf16.mxu0 0
        %3119 = vmatpush1.bf16.msra.mxu0 0
        %3120 = vmatprep.subr.bf16.mxu0 0
        %3121 = vmatpush1.bf16.msra.mxu0 0
        %3122 = vmatprep.subr.bf16.mxu0 0
        %3123 = vmatpush1.bf16.msra.mxu0 0
        %3124 = vmatprep.subr.bf16.mxu0 0
        %3125 = vmatpush1.bf16.msra.mxu0 0
        %3126 = vmatprep.subr.bf16.mxu0 0
        %3127 = vmatpush1.bf16.msra.mxu0 0
        %3128 = vmatprep.subr.bf16.mxu0 0
        %3129 = vmatpush1.bf16.msra.mxu0 0
        %3130 = vmatprep.subr.bf16.mxu0 0
        %3131 = vmatpush1.bf16.msra.mxu0 0
        %3132 = vmatprep.subr.bf16.mxu0 0
        %3133 = vmatpush1.bf16.msra.mxu0 0
        %3134 = vmatprep.mubr.bf16.mxu0 0
        %3135 = vmatmul.mubr.bf16.gmra.mrb[0].mxu0 %v3046
        %v3136 = vpop.f32.mrb[0].mxu0
        %v3137 = vadd.f32 %v3086, %v3136
        %v3138 = vpop.f32.mrb[0].mxu0
        %v3139 = vadd.f32 %v3088, %v3138
        %v3140 = vpop.f32.mrb[0].mxu0
        %v3141 = vadd.f32 %v3090, %v3140
        %v3142 = vpop.f32.mrb[0].mxu0
        %v3143 = vadd.f32 %v3092, %v3142
        %3144 = vmatprep.mubr.bf16.mxu0 0
        %3145 = vmatmul.mubr.bf16.gmra.mrb[0].mxu0 %v3049
        %v3146 = vpop.f32.mrb[0].mxu0
        %v3147 = vadd.f32 %v3096, %v3146
        %v3148 = vpop.f32.mrb[0].mxu0
        %v3149 = vadd.f32 %v3098, %v3148
        %v3150 = vpop.f32.mrb[0].mxu0
        %v3151 = vpop.f32.mrb[0].mxu0
        %3152 = vdwg.mxu0
        %3153 = vmatprep.subr.bf16.mxu0 %v2848
        %3154 = vmatpush1.bf16.msra.mxu0 %v2847
        %3155 = vmatprep.subr.bf16.mxu0 %v2853
        %3156 = vmatpush1.bf16.msra.mxu0 %v2852
        %3157 = vmatprep.subr.bf16.mxu0 %v2858
        %3158 = vmatpush1.bf16.msra.mxu0 %v2857
        %3159 = vmatprep.subr.bf16.mxu0 %v2863
        %3160 = vmatpush1.bf16.msra.mxu0 %v2862
        %3161 = vmatprep.subr.bf16.mxu0 %v2868
        %3162 = vmatpush1.bf16.msra.mxu0 %v2867
        %3163 = vmatprep.subr.bf16.mxu0 %v2873
        %3164 = vmatpush1.bf16.msra.mxu0 %v2872
        %3165 = vmatprep.subr.bf16.mxu0 %v2878
        %3166 = vmatpush1.bf16.msra.mxu0 %v2877
        %3167 = vmatprep.subr.bf16.mxu0 %v2883
        %3168 = vmatpush1.bf16.msra.mxu0 %v2882
        %3169 = vmatprep.subr.bf16.mxu0 %v2888
        %3170 = vmatpush1.bf16.msra.mxu0 %v2887
        %3171 = vmatprep.subr.bf16.mxu0 %v2893
        %3172 = vmatpush1.bf16.msra.mxu0 %v2892
        %3173 = vmatprep.subr.bf16.mxu0 %v2898
        %3174 = vmatpush1.bf16.msra.mxu0 %v2897
        %3175 = vmatprep.subr.bf16.mxu0 %v2903
        %3176 = vmatpush1.bf16.msra.mxu0 %v2902
        %3177 = vmatprep.subr.bf16.mxu0 %v2908
        %3178 = vmatpush1.bf16.msra.mxu0 %v2907
        %3179 = vmatprep.subr.bf16.mxu0 %v2913
        %3180 = vmatpush1.bf16.msra.mxu0 %v2912
        %3181 = vmatprep.subr.bf16.mxu0 %v2918
        %3182 = vmatpush1.bf16.msra.mxu0 %v2917
        %3183 = vmatprep.subr.bf16.mxu0 %v2923
        %3184 = vmatpush1.bf16.msra.mxu0 %v2922
        %3185 = vmatprep.mubr.bf16.mxu0 %v2518
        %3186 = vmatmul.mubr.bf16.gmra.mrb[0].mxu0 %v2517
        %v3187 = vpop.f32.mrb[0].mxu0
        %v3188 = vadd.f32 0.0, %v3187
        %v3189 = vpop.f32.mrb[0].mxu0
        %v3190 = vadd.f32 0.0, %v3189
        %v3191 = vpop.f32.mrb[0].mxu0
        %v3192 = vadd.f32 0.0, %v3191
        %v3193 = vpop.f32.mrb[0].mxu0
        %v3194 = vadd.f32 0.0, %v3193
        %3195 = vmatprep.mubr.bf16.mxu0 %v2520
        %3196 = vmatmul.mubr.bf16.gmra.mrb[0].mxu0 %v2519
        %v3197 = vpop.f32.mrb[0].mxu0
        %v3198 = vadd.f32 0.0, %v3197
        %v3199 = vpop.f32.mrb[0].mxu0
        %v3200 = vadd.f32 0.0, %v3199
        %v3201 = vpop.f32.mrb[0].mxu0
        %v3202 = vpop.f32.mrb[0].mxu0
        %3203 = vdwg.mxu0
        %3204 = vmatprep.subr.bf16.mxu0 %v2928
        %3205 = vmatpush1.bf16.msra.mxu0 %v2927
        %3206 = vmatprep.subr.bf16.mxu0 %v2933
        %3207 = vmatpush1.bf16.msra.mxu0 %v2932
        %3208 = vmatprep.subr.bf16.mxu0 %v2938
        %3209 = vmatpush1.bf16.msra.mxu0 %v2937
        %3210 = vmatprep.subr.bf16.mxu0 %v2943
        %3211 = vmatpush1.bf16.msra.mxu0 %v2942
        %3212 = vmatprep.subr.bf16.mxu0 0
        %3213 = vmatpush1.bf16.msra.mxu0 0
        %3214 = vmatprep.subr.bf16.mxu0 0
        %3215 = vmatpush1.bf16.msra.mxu0 0
        %3216 = vmatprep.subr.bf16.mxu0 0
        %3217 = vmatpush1.bf16.msra.mxu0 0
        %3218 = vmatprep.subr.bf16.mxu0 0
        %3219 = vmatpush1.bf16.msra.mxu0 0
        %3220 = vmatprep.subr.bf16.mxu0 0
        %3221 = vmatpush1.bf16.msra.mxu0 0
        %3222 = vmatprep.subr.bf16.mxu0 0
        %3223 = vmatpush1.bf16.msra.mxu0 0
        %3224 = vmatprep.subr.bf16.mxu0 0
        %3225 = vmatpush1.bf16.msra.mxu0 0
        %3226 = vmatprep.subr.bf16.mxu0 0
        %3227 = vmatpush1.bf16.msra.mxu0 0
        %3228 = vmatprep.subr.bf16.mxu0 0
        %3229 = vmatpush1.bf16.msra.mxu0 0
        %3230 = vmatprep.subr.bf16.mxu0 0
        %3231 = vmatpush1.bf16.msra.mxu0 0
        %3232 = vmatprep.subr.bf16.mxu0 0
        %3233 = vmatpush1.bf16.msra.mxu0 0
        %3234 = vmatprep.subr.bf16.mxu0 0
        %3235 = vmatpush1.bf16.msra.mxu0 0
        %3236 = vmatprep.mubr.bf16.mxu0 0
        %3237 = vmatmul.mubr.bf16.gmra.mrb[0].mxu0 %v3046
        %v3238 = vpop.f32.mrb[0].mxu0
        %v3239 = vadd.f32 %v3188, %v3238
        %v3240 = vpop.f32.mrb[0].mxu0
        %v3241 = vadd.f32 %v3190, %v3240
        %v3242 = vpop.f32.mrb[0].mxu0
        %v3243 = vadd.f32 %v3192, %v3242
        %v3244 = vpop.f32.mrb[0].mxu0
        %v3245 = vadd.f32 %v3194, %v3244
        %3246 = vmatprep.mubr.bf16.mxu0 0
        %3247 = vmatmul.mubr.bf16.gmra.mrb[0].mxu0 %v3049
        %v3248 = vpop.f32.mrb[0].mxu0
        %v3249 = vadd.f32 %v3198, %v3248
        %v3250 = vpop.f32.mrb[0].mxu0
        %v3251 = vadd.f32 %v3200, %v3250
        %v3252 = vpop.f32.mrb[0].mxu0
        %v3253 = vpop.f32.mrb[0].mxu0
        %3254 = vdwg.mxu0
        %3255 = vmatprep.subr.bf16.mxu0 0
        %3256 = vmatpush1.bf16.msra.mxu0 %v2849
        %3257 = vmatprep.subr.bf16.mxu0 0
        %3258 = vmatpush1.bf16.msra.mxu0 %v2854
        %3259 = vmatprep.subr.bf16.mxu0 0
        %3260 = vmatpush1.bf16.msra.mxu0 %v2859
        %3261 = vmatprep.subr.bf16.mxu0 0
        %3262 = vmatpush1.bf16.msra.mxu0 %v2864
        %3263 = vmatprep.subr.bf16.mxu0 0
        %3264 = vmatpush1.bf16.msra.mxu0 %v2869
        %3265 = vmatprep.subr.bf16.mxu0 0
        %3266 = vmatpush1.bf16.msra.mxu0 %v2874
        %3267 = vmatprep.subr.bf16.mxu0 0
        %3268 = vmatpush1.bf16.msra.mxu0 %v2879
        %3269 = vmatprep.subr.bf16.mxu0 0
        %3270 = vmatpush1.bf16.msra.mxu0 %v2884
        %3271 = vmatprep.subr.bf16.mxu0 0
        %3272 = vmatpush1.bf16.msra.mxu0 %v2889
        %3273 = vmatprep.subr.bf16.mxu0 0
        %3274 = vmatpush1.bf16.msra.mxu0 %v2894
        %3275 = vmatprep.subr.bf16.mxu0 0
        %3276 = vmatpush1.bf16.msra.mxu0 %v2899
        %3277 = vmatprep.subr.bf16.mxu0 0
        %3278 = vmatpush1.bf16.msra.mxu0 %v2904
        %3279 = vmatprep.subr.bf16.mxu0 0
        %3280 = vmatpush1.bf16.msra.mxu0 %v2909
        %3281 = vmatprep.subr.bf16.mxu0 0
        %3282 = vmatpush1.bf16.msra.mxu0 %v2914
        %3283 = vmatprep.subr.bf16.mxu0 0
        %3284 = vmatpush1.bf16.msra.mxu0 %v2919
        %3285 = vmatprep.subr.bf16.mxu0 0
        %3286 = vmatpush1.bf16.msra.mxu0 %v2924
        %3287 = vmatprep.mubr.bf16.mxu0 %v2518
        %3288 = vmatmul.mubr.bf16.gmra.mrb[0].mxu0 %v2517
        %v3289 = vpop.f32.mrb[0].mxu0
        %v3290 = vadd.f32 0.0, %v3289
        %v3291 = vpop.f32.mrb[0].mxu0
        %v3292 = vpop.f32.mrb[0].mxu0
        %v3293 = vadd.f32 0.0, %v3292
        %v3294 = vpop.f32.mrb[0].mxu0
        %3295 = vmatprep.mubr.bf16.mxu0 %v2520
        %3296 = vmatmul.mubr.bf16.gmra.mrb[0].mxu0 %v2519
        %v3297 = vpop.f32.mrb[0].mxu0
        %v3298 = vadd.f32 0.0, %v3297
        %v3299 = vpop.f32.mrb[0].mxu0
        %v3300 = vpop.f32.mrb[0].mxu0
        %v3301 = vpop.f32.mrb[0].mxu0
        %3302 = vdwg.mxu0
        %3303 = vmatprep.subr.bf16.mxu0 0
        %3304 = vmatpush1.bf16.msra.mxu0 %v2929
        %3305 = vmatprep.subr.bf16.mxu0 0
        %3306 = vmatpush1.bf16.msra.mxu0 %v2934
        %3307 = vmatprep.subr.bf16.mxu0 0
        %3308 = vmatpush1.bf16.msra.mxu0 %v2939
        %3309 = vmatprep.subr.bf16.mxu0 0
        %3310 = vmatpush1.bf16.msra.mxu0 %v2944
        %3311 = vmatprep.subr.bf16.mxu0 0
        %3312 = vmatpush1.bf16.msra.mxu0 0
        %3313 = vmatprep.subr.bf16.mxu0 0
        %3314 = vmatpush1.bf16.msra.mxu0 0
        %3315 = vmatprep.subr.bf16.mxu0 0
        %3316 = vmatpush1.bf16.msra.mxu0 0
        %3317 = vmatprep.subr.bf16.mxu0 0
        %3318 = vmatpush1.bf16.msra.mxu0 0
        %3319 = vmatprep.subr.bf16.mxu0 0
        %3320 = vmatpush1.bf16.msra.mxu0 0
        %3321 = vmatprep.subr.bf16.mxu0 0
        %3322 = vmatpush1.bf16.msra.mxu0 0
        %3323 = vmatprep.subr.bf16.mxu0 0
        %3324 = vmatpush1.bf16.msra.mxu0 0
        %3325 = vmatprep.subr.bf16.mxu0 0
        %3326 = vmatpush1.bf16.msra.mxu0 0
        %3327 = vmatprep.subr.bf16.mxu0 0
        %3328 = vmatpush1.bf16.msra.mxu0 0
        %3329 = vmatprep.subr.bf16.mxu0 0
        %3330 = vmatpush1.bf16.msra.mxu0 0
        %3331 = vmatprep.subr.bf16.mxu0 0
        %3332 = vmatpush1.bf16.msra.mxu0 0
        %3333 = vmatprep.subr.bf16.mxu0 0
        %3334 = vmatpush1.bf16.msra.mxu0 0
        %3335 = vmatprep.mubr.bf16.mxu0 0
        %3336 = vmatmul.mubr.bf16.gmra.mrb[0].mxu0 %v3046
        %v3337 = vpop.f32.mrb[0].mxu0
        %v3338 = vadd.f32 %v3290, %v3337
        %v3339 = vpop.f32.mrb[0].mxu0
        %v3340 = vpop.f32.mrb[0].mxu0
        %v3341 = vadd.f32 %v3293, %v3340
        %v3342 = vpop.f32.mrb[0].mxu0
        %3343 = vmatprep.mubr.bf16.mxu0 0
        %3344 = vmatmul.mubr.bf16.gmra.mrb[0].mxu0 %v3049
        %v3345 = vpop.f32.mrb[0].mxu0
        %v3346 = vadd.f32 %v3298, %v3345
        %v3347 = vpop.f32.mrb[0].mxu0
        %v3348 = vpop.f32.mrb[0].mxu0
        %v3349 = vpop.f32.mrb[0].mxu0
        %3350 = vdwg.mxu0
        %v3471 = vunpack.c.l.b16 %v2257
        %v3472 = vunpack.c.h.b16 %v2257
        %v3473 = vunpack.c.l.b16 %v2258
        %v3474 = vunpack.c.h.b16 %v2258
        %v3475 = vunpack.c.l.b16 %v2259
        %v3476 = vunpack.c.l.b16 %v2260
        %v3477 = vunpack.c.h.b16 %v2260
        %v3478 = vunpack.c.l.b16 %v2261
        %v3479 = vunpack.c.h.b16 %v2261
        %v3480 = vunpack.c.l.b16 %v2262
        %v3481 = vunpack.c.l.b16 %v2263
        %v3482 = vunpack.c.h.b16 %v2263
        %v3483 = vunpack.c.l.b16 %v2264
        %v3484 = vunpack.c.h.b16 %v2264
        %v3485 = vunpack.c.l.b16 %v2265
        %v3486 = vunpack.c.l.b16 %v2266
        %v3487 = vunpack.c.h.b16 %v2266
        %v3488 = vunpack.c.l.b16 %v2267
        %v3489 = vunpack.c.h.b16 %v2267
        %v3490 = vunpack.c.l.b16 %v2268
        %v3491 = vunpack.c.l.b16 %v2269
        %v3492 = vunpack.c.h.b16 %v2269
        %v3493 = vunpack.c.l.b16 %v2270
        %v3494 = vunpack.c.h.b16 %v2270
        %v3495 = vunpack.c.l.b16 %v2271
        %v3496 = vunpack.c.l.b16 %v2272
        %v3497 = vunpack.c.h.b16 %v2272
        %v3498 = vunpack.c.l.b16 %v2273
        %v3499 = vunpack.c.h.b16 %v2273
        %v3500 = vunpack.c.l.b16 %v2274
        %v3501 = vunpack.c.l.b16 %v2275
        %v3502 = vunpack.c.h.b16 %v2275
        %v3503 = vunpack.c.l.b16 %v2276
        %v3504 = vunpack.c.h.b16 %v2276
        %v3505 = vunpack.c.l.b16 %v2277
        %v3506 = vunpack.c.l.b16 %v2278
        %v3507 = vunpack.c.h.b16 %v2278
        %v3508 = vunpack.c.l.b16 %v2279
        %v3509 = vunpack.c.h.b16 %v2279
        %v3510 = vunpack.c.l.b16 %v2280
        %v3511 = vunpack.c.l.b16 %v2281
        %v3512 = vunpack.c.h.b16 %v2281
        %v3513 = vunpack.c.l.b16 %v2282
        %v3514 = vunpack.c.h.b16 %v2282
        %v3515 = vunpack.c.l.b16 %v2283
        %v3516 = vunpack.c.l.b16 %v2284
        %v3517 = vunpack.c.h.b16 %v2284
        %v3518 = vunpack.c.l.b16 %v2285
        %v3519 = vunpack.c.h.b16 %v2285
        %v3520 = vunpack.c.l.b16 %v2286
        %v3521 = vunpack.c.l.b16 %v2287
        %v3522 = vunpack.c.h.b16 %v2287
        %v3523 = vunpack.c.l.b16 %v2288
        %v3524 = vunpack.c.h.b16 %v2288
        %v3525 = vunpack.c.l.b16 %v2289
        %v3526 = vunpack.c.l.b16 %v2290
        %v3527 = vunpack.c.h.b16 %v2290
        %v3528 = vunpack.c.l.b16 %v2291
        %v3529 = vunpack.c.h.b16 %v2291
        %v3530 = vunpack.c.l.b16 %v2292
        %v3531 = vunpack.c.l.b16 %v2293
        %v3532 = vunpack.c.h.b16 %v2293
        %v3533 = vunpack.c.l.b16 %v2294
        %v3534 = vunpack.c.h.b16 %v2294
        %v3535 = vunpack.c.l.b16 %v2295
        %v3536 = vunpack.c.l.b16 %v2296
        %v3537 = vunpack.c.h.b16 %v2296
        %v3538 = vunpack.c.l.b16 %v2297
        %v3539 = vunpack.c.h.b16 %v2297
        %v3540 = vunpack.c.l.b16 %v2298
        %v3541 = vunpack.c.l.b16 %v2299
        %v3542 = vunpack.c.h.b16 %v2299
        %v3543 = vunpack.c.l.b16 %v2300
        %v3544 = vunpack.c.h.b16 %v2300
        %v3545 = vunpack.c.l.b16 %v2301
        %v3546 = vunpack.c.l.b16 %v2302
        %v3547 = vunpack.c.h.b16 %v2302
        %v3548 = vunpack.c.l.b16 %v2303
        %v3549 = vunpack.c.h.b16 %v2303
        %v3550 = vunpack.c.l.b16 %v2304
        %v3551 = vunpack.c.l.b16 %v2305
        %v3552 = vunpack.c.h.b16 %v2305
        %v3553 = vunpack.c.l.b16 %v2306
        %v3554 = vunpack.c.h.b16 %v2306
        %v3555 = vunpack.c.l.b16 %v2307
        %v3556 = vunpack.c.l.b16 %v2308
        %v3557 = vunpack.c.h.b16 %v2308
        %v3558 = vunpack.c.l.b16 %v2309
        %v3559 = vunpack.c.h.b16 %v2309
        %v3560 = vunpack.c.l.b16 %v2310
        %v3561 = vunpack.c.l.b16 %v2311
        %v3562 = vunpack.c.h.b16 %v2311
        %v3563 = vunpack.c.l.b16 %v2312
        %v3564 = vunpack.c.h.b16 %v2312
        %v3565 = vunpack.c.l.b16 %v2313
        %v3566 = vunpack.c.l.b16 %v2314
        %v3567 = vunpack.c.h.b16 %v2314
        %v3568 = vunpack.c.l.b16 %v2315
        %v3569 = vunpack.c.h.b16 %v2315
        %v3570 = vunpack.c.l.b16 %v2316
        %v3571 = vunpack.c.l.b16 %v2317
        %v3572 = vunpack.c.h.b16 %v2317
        %v3573 = vunpack.c.l.b16 %v2318
        %v3574 = vunpack.c.h.b16 %v2318
        %v3575 = vunpack.c.l.b16 %v2319
        %v3576 = vunpack.c.l.b16 %v2320
        %v3577 = vunpack.c.h.b16 %v2320
        %v3578 = vunpack.c.l.b16 %v2321
        %v3579 = vunpack.c.h.b16 %v2321
        %v3580 = vunpack.c.l.b16 %v2322
        %v3581 = vunpack.c.l.b16 %v2323
        %v3582 = vunpack.c.h.b16 %v2323
        %v3583 = vunpack.c.l.b16 %v2324
        %v3584 = vunpack.c.h.b16 %v2324
        %v3585 = vunpack.c.l.b16 %v2325
        %v3586 = vunpack.c.l.b16 %v2326
        %v3587 = vunpack.c.h.b16 %v2326
        %v3588 = vunpack.c.l.b16 %v2327
        %v3589 = vunpack.c.h.b16 %v2327
        %v3590 = vunpack.c.l.b16 %v2328
        %v3591 = vunpack.c.l.b16 %v2329
        %v3592 = vunpack.c.h.b16 %v2329
        %v3593 = vunpack.c.l.b16 %v2330
        %v3594 = vunpack.c.h.b16 %v2330
        %v3595 = vunpack.c.l.b16 %v2331
        %v3596 = vunpack.c.l.b16 %v2332
        %v3597 = vunpack.c.h.b16 %v2332
        %v3598 = vunpack.c.l.b16 %v2333
        %v3599 = vunpack.c.h.b16 %v2333
        %v3600 = vunpack.c.l.b16 %v2334
        %v3601 = vunpack.c.l.b16 %v2335
        %v3602 = vunpack.c.h.b16 %v2335
        %v3603 = vunpack.c.l.b16 %v2336
        %v3604 = vunpack.c.h.b16 %v2336
        %v3605 = vunpack.c.l.b16 %v2337
        %v3606 = vunpack.c.l.b16 %v2338
        %v3607 = vunpack.c.h.b16 %v2338
        %v3608 = vunpack.c.l.b16 %v2339
        %v3609 = vunpack.c.h.b16 %v2339
        %v3610 = vunpack.c.l.b16 %v2340
        %v3611 = vunpack.c.l.b16 %v2341
        %v3612 = vunpack.c.h.b16 %v2341
        %v3613 = vunpack.c.l.b16 %v2342
        %v3614 = vunpack.c.h.b16 %v2342
        %v3615 = vunpack.c.l.b16 %v2343
        %v3616 = vunpack.c.l.b16 %v2344
        %v3617 = vunpack.c.h.b16 %v2344
        %v3618 = vunpack.c.l.b16 %v2345
        %v3619 = vunpack.c.h.b16 %v2345
        %v3620 = vunpack.c.l.b16 %v2346
        %v3621 = vunpack.c.l.b16 %v2347
        %v3622 = vunpack.c.h.b16 %v2347
        %v3623 = vunpack.c.l.b16 %v2348
        %v3624 = vunpack.c.h.b16 %v2348
        %v3625 = vunpack.c.l.b16 %v2349
        %v3626 = vunpack.c.l.b16 %v2350
        %v3627 = vunpack.c.h.b16 %v2350
        %v3628 = vunpack.c.l.b16 %v2351
        %v3629 = vunpack.c.h.b16 %v2351
        %v3630 = vunpack.c.l.b16 %v2352
        %v3631 = vunpack.c.l.b16 %v2353
        %v3632 = vunpack.c.h.b16 %v2353
        %v3633 = vunpack.c.l.b16 %v2354
        %v3634 = vunpack.c.h.b16 %v2354
        %v3635 = vunpack.c.l.b16 %v2355
        %v3636 = vunpack.c.l.b16 %v2356
        %v3637 = vunpack.c.h.b16 %v2356
        %v3638 = vunpack.c.l.b16 %v2357
        %v3639 = vunpack.c.h.b16 %v2357
        %v3640 = vunpack.c.l.b16 %v2358
        %v3641 = vunpack.c.l.b16 %v2359
        %v3642 = vunpack.c.h.b16 %v2359
        %v3643 = vunpack.c.l.b16 %v2360
        %v3644 = vunpack.c.h.b16 %v2360
        %v3645 = vunpack.c.l.b16 %v2361
        %v3646 = vunpack.c.l.b16 %v2362
        %v3647 = vunpack.c.h.b16 %v2362
        %v3648 = vunpack.c.l.b16 %v2363
        %v3649 = vunpack.c.h.b16 %v2363
        %v3650 = vunpack.c.l.b16 %v2364
        %v3651 = vunpack.c.l.b16 %v2365
        %v3652 = vunpack.c.h.b16 %v2365
        %v3653 = vunpack.c.l.b16 %v2366
        %v3654 = vunpack.c.h.b16 %v2366
        %v3655 = vunpack.c.l.b16 %v2367
        %v3656 = vunpack.c.l.b16 %v2368
        %v3657 = vunpack.c.h.b16 %v2368
        %v3658 = vunpack.c.l.b16 %v2369
        %v3659 = vunpack.c.h.b16 %v2369
        %v3660 = vunpack.c.l.b16 %v2370
        %v3661 = vunpack.c.l.b16 %v2371
        %v3662 = vunpack.c.h.b16 %v2371
        %v3663 = vunpack.c.l.b16 %v2372
        %v3664 = vunpack.c.h.b16 %v2372
        %v3665 = vunpack.c.l.b16 %v2373
        %v3666 = vunpack.c.l.b16 %v2374
        %v3667 = vunpack.c.h.b16 %v2374
        %v3668 = vunpack.c.l.b16 %v2375
        %v3669 = vunpack.c.h.b16 %v2375
        %v3670 = vunpack.c.l.b16 %v2376
        %v3671 = vpack.c.b16 %v3476, %v3471
        %v3672 = vpack.c.b16 %v3477, %v3472
        %v3673 = vpack.c.b16 %v3478, %v3473
        %v3674 = vpack.c.b16 %v3479, %v3474
        %v3675 = vpack.c.b16 %v3480, %v3475
        %v3676 = vpack.c.b16 %v3486, %v3481
        %v3677 = vpack.c.b16 %v3487, %v3482
        %v3678 = vpack.c.b16 %v3488, %v3483
        %v3679 = vpack.c.b16 %v3489, %v3484
        %v3680 = vpack.c.b16 %v3490, %v3485
        %v3681 = vpack.c.b16 %v3496, %v3491
        %v3682 = vpack.c.b16 %v3497, %v3492
        %v3683 = vpack.c.b16 %v3498, %v3493
        %v3684 = vpack.c.b16 %v3499, %v3494
        %v3685 = vpack.c.b16 %v3500, %v3495
        %v3686 = vpack.c.b16 %v3506, %v3501
        %v3687 = vpack.c.b16 %v3507, %v3502
        %v3688 = vpack.c.b16 %v3508, %v3503
        %v3689 = vpack.c.b16 %v3509, %v3504
        %v3690 = vpack.c.b16 %v3510, %v3505
        %v3691 = vpack.c.b16 %v3516, %v3511
        %v3692 = vpack.c.b16 %v3517, %v3512
        %v3693 = vpack.c.b16 %v3518, %v3513
        %v3694 = vpack.c.b16 %v3519, %v3514
        %v3695 = vpack.c.b16 %v3520, %v3515
        %v3696 = vpack.c.b16 %v3526, %v3521
        %v3697 = vpack.c.b16 %v3527, %v3522
        %v3698 = vpack.c.b16 %v3528, %v3523
        %v3699 = vpack.c.b16 %v3529, %v3524
        %v3700 = vpack.c.b16 %v3530, %v3525
        %v3701 = vpack.c.b16 %v3536, %v3531
        %v3702 = vpack.c.b16 %v3537, %v3532
        %v3703 = vpack.c.b16 %v3538, %v3533
        %v3704 = vpack.c.b16 %v3539, %v3534
        %v3705 = vpack.c.b16 %v3540, %v3535
        %v3706 = vpack.c.b16 %v3546, %v3541
        %v3707 = vpack.c.b16 %v3547, %v3542
        %v3708 = vpack.c.b16 %v3548, %v3543
        %v3709 = vpack.c.b16 %v3549, %v3544
        %v3710 = vpack.c.b16 %v3550, %v3545
        %v3711 = vpack.c.b16 %v3556, %v3551
        %v3712 = vpack.c.b16 %v3557, %v3552
        %v3713 = vpack.c.b16 %v3558, %v3553
        %v3714 = vpack.c.b16 %v3559, %v3554
        %v3715 = vpack.c.b16 %v3560, %v3555
        %v3716 = vpack.c.b16 %v3566, %v3561
        %v3717 = vpack.c.b16 %v3567, %v3562
        %v3718 = vpack.c.b16 %v3568, %v3563
        %v3719 = vpack.c.b16 %v3569, %v3564
        %v3720 = vpack.c.b16 %v3570, %v3565
        %v3721 = vpack.c.b16 %v3576, %v3571
        %v3722 = vpack.c.b16 %v3577, %v3572
        %v3723 = vpack.c.b16 %v3578, %v3573
        %v3724 = vpack.c.b16 %v3579, %v3574
        %v3725 = vpack.c.b16 %v3580, %v3575
        %v3726 = vpack.c.b16 %v3586, %v3581
        %v3727 = vpack.c.b16 %v3587, %v3582
        %v3728 = vpack.c.b16 %v3588, %v3583
        %v3729 = vpack.c.b16 %v3589, %v3584
        %v3730 = vpack.c.b16 %v3590, %v3585
        %v3731 = vpack.c.b16 %v3596, %v3591
        %v3732 = vpack.c.b16 %v3597, %v3592
        %v3733 = vpack.c.b16 %v3598, %v3593
        %v3734 = vpack.c.b16 %v3599, %v3594
        %v3735 = vpack.c.b16 %v3600, %v3595
        %v3736 = vpack.c.b16 %v3606, %v3601
        %v3737 = vpack.c.b16 %v3607, %v3602
        %v3738 = vpack.c.b16 %v3608, %v3603
        %v3739 = vpack.c.b16 %v3609, %v3604
        %v3740 = vpack.c.b16 %v3610, %v3605
        %v3741 = vpack.c.b16 %v3616, %v3611
        %v3742 = vpack.c.b16 %v3617, %v3612
        %v3743 = vpack.c.b16 %v3618, %v3613
        %v3744 = vpack.c.b16 %v3619, %v3614
        %v3745 = vpack.c.b16 %v3620, %v3615
        %v3746 = vpack.c.b16 %v3626, %v3621
        %v3747 = vpack.c.b16 %v3627, %v3622
        %v3748 = vpack.c.b16 %v3628, %v3623
        %v3749 = vpack.c.b16 %v3629, %v3624
        %v3750 = vpack.c.b16 %v3630, %v3625
        %v3751 = vpack.c.b16 %v3636, %v3631
        %v3752 = vpack.c.b16 %v3637, %v3632
        %v3753 = vpack.c.b16 %v3638, %v3633
        %v3754 = vpack.c.b16 %v3639, %v3634
        %v3755 = vpack.c.b16 %v3640, %v3635
        %v3756 = vpack.c.b16 %v3646, %v3641
        %v3757 = vpack.c.b16 %v3647, %v3642
        %v3758 = vpack.c.b16 %v3648, %v3643
        %v3759 = vpack.c.b16 %v3649, %v3644
        %v3760 = vpack.c.b16 %v3650, %v3645
        %v3761 = vpack.c.b16 %v3656, %v3651
        %v3762 = vpack.c.b16 %v3657, %v3652
        %v3763 = vpack.c.b16 %v3658, %v3653
        %v3764 = vpack.c.b16 %v3659, %v3654
        %v3765 = vpack.c.b16 %v3660, %v3655
        %v3766 = vpack.c.b16 %v3666, %v3661
        %v3767 = vpack.c.b16 %v3667, %v3662
        %v3768 = vpack.c.b16 %v3668, %v3663
        %v3769 = vpack.c.b16 %v3669, %v3664
        %v3770 = vpack.c.b16 %v3670, %v3665
        %v3872 = vsel %vm2235, %v2253, 0
        %v3875 = vsel %vm2235, %v2256, 0
        %3877 = vmatprep.subr.bf16.mxu0 %v3672
        %3878 = vmatpush1.bf16.msra.mxu0 %v3671
        %3879 = vmatprep.subr.bf16.mxu0 %v3677
        %3880 = vmatpush1.bf16.msra.mxu0 %v3676
        %3881 = vmatprep.subr.bf16.mxu0 %v3682
        %3882 = vmatpush1.bf16.msra.mxu0 %v3681
        %3883 = vmatprep.subr.bf16.mxu0 %v3687
        %3884 = vmatpush1.bf16.msra.mxu0 %v3686
        %3885 = vmatprep.subr.bf16.mxu0 %v3692
        %3886 = vmatpush1.bf16.msra.mxu0 %v3691
        %3887 = vmatprep.subr.bf16.mxu0 %v3697
        %3888 = vmatpush1.bf16.msra.mxu0 %v3696
        %3889 = vmatprep.subr.bf16.mxu0 %v3702
        %3890 = vmatpush1.bf16.msra.mxu0 %v3701
        %3891 = vmatprep.subr.bf16.mxu0 %v3707
        %3892 = vmatpush1.bf16.msra.mxu0 %v3706
        %3893 = vmatprep.subr.bf16.mxu0 %v3712
        %3894 = vmatpush1.bf16.msra.mxu0 %v3711
        %3895 = vmatprep.subr.bf16.mxu0 %v3717
        %3896 = vmatpush1.bf16.msra.mxu0 %v3716
        %3897 = vmatprep.subr.bf16.mxu0 %v3722
        %3898 = vmatpush1.bf16.msra.mxu0 %v3721
        %3899 = vmatprep.subr.bf16.mxu0 %v3727
        %3900 = vmatpush1.bf16.msra.mxu0 %v3726
        %3901 = vmatprep.subr.bf16.mxu0 %v3732
        %3902 = vmatpush1.bf16.msra.mxu0 %v3731
        %3903 = vmatprep.subr.bf16.mxu0 %v3737
        %3904 = vmatpush1.bf16.msra.mxu0 %v3736
        %3905 = vmatprep.subr.bf16.mxu0 %v3742
        %3906 = vmatpush1.bf16.msra.mxu0 %v3741
        %3907 = vmatprep.subr.bf16.mxu0 %v3747
        %3908 = vmatpush1.bf16.msra.mxu0 %v3746
        %3909 = vmatprep.mubr.bf16.mxu0 %v2252
        %3910 = vmatmul.mubr.bf16.gmra.mrb[0].mxu0 %v2251
        %v3911 = vpop.f32.mrb[0].mxu0
        %v3912 = vadd.f32 %v3137, %v3911
        %v3913 = vpop.f32.mrb[0].mxu0
        %v3914 = vadd.f32 %v3139, %v3913
        %v3915 = vpop.f32.mrb[0].mxu0
        %v3916 = vadd.f32 %v3141, %v3915
        %v3917 = vpop.f32.mrb[0].mxu0
        %v3918 = vadd.f32 %v3143, %v3917
        %3919 = vmatprep.mubr.bf16.mxu0 %v2255
        %3920 = vmatmul.mubr.bf16.gmra.mrb[0].mxu0 %v2254
        %v3921 = vpop.f32.mrb[0].mxu0
        %v3922 = vadd.f32 %v3147, %v3921
        %v3923 = vpop.f32.mrb[0].mxu0
        %v3924 = vadd.f32 %v3149, %v3923
        %v3925 = vpop.f32.mrb[0].mxu0
        %v3926 = vpop.f32.mrb[0].mxu0
        %3927 = vdwg.mxu0
        %3928 = vmatprep.subr.bf16.mxu0 %v3752
        %3929 = vmatpush1.bf16.msra.mxu0 %v3751
        %3930 = vmatprep.subr.bf16.mxu0 %v3757
        %3931 = vmatpush1.bf16.msra.mxu0 %v3756
        %3932 = vmatprep.subr.bf16.mxu0 %v3762
        %3933 = vmatpush1.bf16.msra.mxu0 %v3761
        %3934 = vmatprep.subr.bf16.mxu0 %v3767
        %3935 = vmatpush1.bf16.msra.mxu0 %v3766
        %3936 = vmatprep.subr.bf16.mxu0 0
        %3937 = vmatpush1.bf16.msra.mxu0 0
        %3938 = vmatprep.subr.bf16.mxu0 0
        %3939 = vmatpush1.bf16.msra.mxu0 0
        %3940 = vmatprep.subr.bf16.mxu0 0
        %3941 = vmatpush1.bf16.msra.mxu0 0
        %3942 = vmatprep.subr.bf16.mxu0 0
        %3943 = vmatpush1.bf16.msra.mxu0 0
        %3944 = vmatprep.subr.bf16.mxu0 0
        %3945 = vmatpush1.bf16.msra.mxu0 0
        %3946 = vmatprep.subr.bf16.mxu0 0
        %3947 = vmatpush1.bf16.msra.mxu0 0
        %3948 = vmatprep.subr.bf16.mxu0 0
        %3949 = vmatpush1.bf16.msra.mxu0 0
        %3950 = vmatprep.subr.bf16.mxu0 0
        %3951 = vmatpush1.bf16.msra.mxu0 0
        %3952 = vmatprep.subr.bf16.mxu0 0
        %3953 = vmatpush1.bf16.msra.mxu0 0
        %3954 = vmatprep.subr.bf16.mxu0 0
        %3955 = vmatpush1.bf16.msra.mxu0 0
        %3956 = vmatprep.subr.bf16.mxu0 0
        %3957 = vmatpush1.bf16.msra.mxu0 0
        %3958 = vmatprep.subr.bf16.mxu0 0
        %3959 = vmatpush1.bf16.msra.mxu0 0
        %3960 = vmatprep.mubr.bf16.mxu0 0
        %3961 = vmatmul.mubr.bf16.gmra.mrb[0].mxu0 %v3872
        %v3962 = vpop.f32.mrb[0].mxu0
        %v3963 = vadd.f32 %v3912, %v3962
        %v3964 = vpop.f32.mrb[0].mxu0
        %v3965 = vadd.f32 %v3914, %v3964
        %v3966 = vpop.f32.mrb[0].mxu0
        %v3967 = vadd.f32 %v3916, %v3966
        %v3968 = vpop.f32.mrb[0].mxu0
        %v3969 = vadd.f32 %v3918, %v3968
        %3970 = vmatprep.mubr.bf16.mxu0 0
        %3971 = vmatmul.mubr.bf16.gmra.mrb[0].mxu0 %v3875
        %v3972 = vpop.f32.mrb[0].mxu0
        %v3973 = vadd.f32 %v3922, %v3972
        %v3974 = vpop.f32.mrb[0].mxu0
        %v3975 = vadd.f32 %v3924, %v3974
        %v3976 = vpop.f32.mrb[0].mxu0
        %v3977 = vpop.f32.mrb[0].mxu0
        %3978 = vdwg.mxu0
        %3979 = vmatprep.subr.bf16.mxu0 %v3674
        %3980 = vmatpush1.bf16.msra.mxu0 %v3673
        %3981 = vmatprep.subr.bf16.mxu0 %v3679
        %3982 = vmatpush1.bf16.msra.mxu0 %v3678
        %3983 = vmatprep.subr.bf16.mxu0 %v3684
        %3984 = vmatpush1.bf16.msra.mxu0 %v3683
        %3985 = vmatprep.subr.bf16.mxu0 %v3689
        %3986 = vmatpush1.bf16.msra.mxu0 %v3688
        %3987 = vmatprep.subr.bf16.mxu0 %v3694
        %3988 = vmatpush1.bf16.msra.mxu0 %v3693
        %3989 = vmatprep.subr.bf16.mxu0 %v3699
        %3990 = vmatpush1.bf16.msra.mxu0 %v3698
        %3991 = vmatprep.subr.bf16.mxu0 %v3704
        %3992 = vmatpush1.bf16.msra.mxu0 %v3703
        %3993 = vmatprep.subr.bf16.mxu0 %v3709
        %3994 = vmatpush1.bf16.msra.mxu0 %v3708
        %3995 = vmatprep.subr.bf16.mxu0 %v3714
        %3996 = vmatpush1.bf16.msra.mxu0 %v3713
        %3997 = vmatprep.subr.bf16.mxu0 %v3719
        %3998 = vmatpush1.bf16.msra.mxu0 %v3718
        %3999 = vmatprep.subr.bf16.mxu0 %v3724
        %4000 = vmatpush1.bf16.msra.mxu0 %v3723
        %4001 = vmatprep.subr.bf16.mxu0 %v3729
        %4002 = vmatpush1.bf16.msra.mxu0 %v3728
        %4003 = vmatprep.subr.bf16.mxu0 %v3734
        %4004 = vmatpush1.bf16.msra.mxu0 %v3733
        %4005 = vmatprep.subr.bf16.mxu0 %v3739
        %4006 = vmatpush1.bf16.msra.mxu0 %v3738
        %4007 = vmatprep.subr.bf16.mxu0 %v3744
        %4008 = vmatpush1.bf16.msra.mxu0 %v3743
        %4009 = vmatprep.subr.bf16.mxu0 %v3749
        %4010 = vmatpush1.bf16.msra.mxu0 %v3748
        %4011 = vmatprep.mubr.bf16.mxu0 %v2252
        %4012 = vmatmul.mubr.bf16.gmra.mrb[0].mxu0 %v2251
        %v4013 = vpop.f32.mrb[0].mxu0
        %v4014 = vadd.f32 %v3239, %v4013
        %v4015 = vpop.f32.mrb[0].mxu0
        %v4016 = vadd.f32 %v3241, %v4015
        %v4017 = vpop.f32.mrb[0].mxu0
        %v4018 = vadd.f32 %v3243, %v4017
        %v4019 = vpop.f32.mrb[0].mxu0
        %v4020 = vadd.f32 %v3245, %v4019
        %4021 = vmatprep.mubr.bf16.mxu0 %v2255
        %4022 = vmatmul.mubr.bf16.gmra.mrb[0].mxu0 %v2254
        %v4023 = vpop.f32.mrb[0].mxu0
        %v4024 = vadd.f32 %v3249, %v4023
        %v4025 = vpop.f32.mrb[0].mxu0
        %v4026 = vadd.f32 %v3251, %v4025
        %v4027 = vpop.f32.mrb[0].mxu0
        %v4028 = vpop.f32.mrb[0].mxu0
        %4029 = vdwg.mxu0
        %4030 = vmatprep.subr.bf16.mxu0 %v3754
        %4031 = vmatpush1.bf16.msra.mxu0 %v3753
        %4032 = vmatprep.subr.bf16.mxu0 %v3759
        %4033 = vmatpush1.bf16.msra.mxu0 %v3758
        %4034 = vmatprep.subr.bf16.mxu0 %v3764
        %4035 = vmatpush1.bf16.msra.mxu0 %v3763
        %4036 = vmatprep.subr.bf16.mxu0 %v3769
        %4037 = vmatpush1.bf16.msra.mxu0 %v3768
        %4038 = vmatprep.subr.bf16.mxu0 0
        %4039 = vmatpush1.bf16.msra.mxu0 0
        %4040 = vmatprep.subr.bf16.mxu0 0
        %4041 = vmatpush1.bf16.msra.mxu0 0
        %4042 = vmatprep.subr.bf16.mxu0 0
        %4043 = vmatpush1.bf16.msra.mxu0 0
        %4044 = vmatprep.subr.bf16.mxu0 0
        %4045 = vmatpush1.bf16.msra.mxu0 0
        %4046 = vmatprep.subr.bf16.mxu0 0
        %4047 = vmatpush1.bf16.msra.mxu0 0
        %4048 = vmatprep.subr.bf16.mxu0 0
        %4049 = vmatpush1.bf16.msra.mxu0 0
        %4050 = vmatprep.subr.bf16.mxu0 0
        %4051 = vmatpush1.bf16.msra.mxu0 0
        %4052 = vmatprep.subr.bf16.mxu0 0
        %4053 = vmatpush1.bf16.msra.mxu0 0
        %4054 = vmatprep.subr.bf16.mxu0 0
        %4055 = vmatpush1.bf16.msra.mxu0 0
        %4056 = vmatprep.subr.bf16.mxu0 0
        %4057 = vmatpush1.bf16.msra.mxu0 0
        %4058 = vmatprep.subr.bf16.mxu0 0
        %4059 = vmatpush1.bf16.msra.mxu0 0
        %4060 = vmatprep.subr.bf16.mxu0 0
        %4061 = vmatpush1.bf16.msra.mxu0 0
        %4062 = vmatprep.mubr.bf16.mxu0 0
        %4063 = vmatmul.mubr.bf16.gmra.mrb[0].mxu0 %v3872
        %v4064 = vpop.f32.mrb[0].mxu0
        %v4065 = vadd.f32 %v4014, %v4064
        %v4066 = vpop.f32.mrb[0].mxu0
        %v4067 = vadd.f32 %v4016, %v4066
        %v4068 = vpop.f32.mrb[0].mxu0
        %v4069 = vadd.f32 %v4018, %v4068
        %v4070 = vpop.f32.mrb[0].mxu0
        %v4071 = vadd.f32 %v4020, %v4070
        %4072 = vmatprep.mubr.bf16.mxu0 0
        %4073 = vmatmul.mubr.bf16.gmra.mrb[0].mxu0 %v3875
        %v4074 = vpop.f32.mrb[0].mxu0
        %v4075 = vadd.f32 %v4024, %v4074
        %v4076 = vpop.f32.mrb[0].mxu0
        %v4077 = vadd.f32 %v4026, %v4076
        %v4078 = vpop.f32.mrb[0].mxu0
        %v4079 = vpop.f32.mrb[0].mxu0
        %4080 = vdwg.mxu0
        %4081 = vmatprep.subr.bf16.mxu0 0
        %4082 = vmatpush1.bf16.msra.mxu0 %v3675
        %4083 = vmatprep.subr.bf16.mxu0 0
        %4084 = vmatpush1.bf16.msra.mxu0 %v3680
        %4085 = vmatprep.subr.bf16.mxu0 0
        %4086 = vmatpush1.bf16.msra.mxu0 %v3685
        %4087 = vmatprep.subr.bf16.mxu0 0
        %4088 = vmatpush1.bf16.msra.mxu0 %v3690
        %4089 = vmatprep.subr.bf16.mxu0 0
        %4090 = vmatpush1.bf16.msra.mxu0 %v3695
        %4091 = vmatprep.subr.bf16.mxu0 0
        %4092 = vmatpush1.bf16.msra.mxu0 %v3700
        %4093 = vmatprep.subr.bf16.mxu0 0
        %4094 = vmatpush1.bf16.msra.mxu0 %v3705
        %4095 = vmatprep.subr.bf16.mxu0 0
        %4096 = vmatpush1.bf16.msra.mxu0 %v3710
        %4097 = vmatprep.subr.bf16.mxu0 0
        %4098 = vmatpush1.bf16.msra.mxu0 %v3715
        %4099 = vmatprep.subr.bf16.mxu0 0
        %4100 = vmatpush1.bf16.msra.mxu0 %v3720
        %4101 = vmatprep.subr.bf16.mxu0 0
        %4102 = vmatpush1.bf16.msra.mxu0 %v3725
        %4103 = vmatprep.subr.bf16.mxu0 0
        %4104 = vmatpush1.bf16.msra.mxu0 %v3730
        %4105 = vmatprep.subr.bf16.mxu0 0
        %4106 = vmatpush1.bf16.msra.mxu0 %v3735
        %4107 = vmatprep.subr.bf16.mxu0 0
        %4108 = vmatpush1.bf16.msra.mxu0 %v3740
        %4109 = vmatprep.subr.bf16.mxu0 0
        %4110 = vmatpush1.bf16.msra.mxu0 %v3745
        %4111 = vmatprep.subr.bf16.mxu0 0
        %4112 = vmatpush1.bf16.msra.mxu0 %v3750
        %4113 = vmatprep.mubr.bf16.mxu0 %v2252
        %4114 = vmatmul.mubr.bf16.gmra.mrb[0].mxu0 %v2251
        %v4115 = vpop.f32.mrb[0].mxu0
        %v4116 = vadd.f32 %v3338, %v4115
        %v4117 = vpop.f32.mrb[0].mxu0
        %v4118 = vpop.f32.mrb[0].mxu0
        %v4119 = vadd.f32 %v3341, %v4118
        %v4120 = vpop.f32.mrb[0].mxu0
        %4121 = vmatprep.mubr.bf16.mxu0 %v2255
        %4122 = vmatmul.mubr.bf16.gmra.mrb[0].mxu0 %v2254
        %v4123 = vpop.f32.mrb[0].mxu0
        %v4124 = vadd.f32 %v3346, %v4123
        %v4125 = vpop.f32.mrb[0].mxu0
        %v4126 = vpop.f32.mrb[0].mxu0
        %v4127 = vpop.f32.mrb[0].mxu0
        %4128 = vdwg.mxu0
        %4129 = vmatprep.subr.bf16.mxu0 0
        %4130 = vmatpush1.bf16.msra.mxu0 %v3755
        %4131 = vmatprep.subr.bf16.mxu0 0
        %4132 = vmatpush1.bf16.msra.mxu0 %v3760
        %4133 = vmatprep.subr.bf16.mxu0 0
        %4134 = vmatpush1.bf16.msra.mxu0 %v3765
        %4135 = vmatprep.subr.bf16.mxu0 0
        %4136 = vmatpush1.bf16.msra.mxu0 %v3770
        %4137 = vmatprep.subr.bf16.mxu0 0
        %4138 = vmatpush1.bf16.msra.mxu0 0
        %4139 = vmatprep.subr.bf16.mxu0 0
        %4140 = vmatpush1.bf16.msra.mxu0 0
        %4141 = vmatprep.subr.bf16.mxu0 0
        %4142 = vmatpush1.bf16.msra.mxu0 0
        %4143 = vmatprep.subr.bf16.mxu0 0
        %4144 = vmatpush1.bf16.msra.mxu0 0
        %4145 = vmatprep.subr.bf16.mxu0 0
        %4146 = vmatpush1.bf16.msra.mxu0 0
        %4147 = vmatprep.subr.bf16.mxu0 0
        %4148 = vmatpush1.bf16.msra.mxu0 0
        %4149 = vmatprep.subr.bf16.mxu0 0
        %4150 = vmatpush1.bf16.msra.mxu0 0
        %4151 = vmatprep.subr.bf16.mxu0 0
        %4152 = vmatpush1.bf16.msra.mxu0 0
        %4153 = vmatprep.subr.bf16.mxu0 0
        %4154 = vmatpush1.bf16.msra.mxu0 0
        %4155 = vmatprep.subr.bf16.mxu0 0
        %4156 = vmatpush1.bf16.msra.mxu0 0
        %4157 = vmatprep.subr.bf16.mxu0 0
        %4158 = vmatpush1.bf16.msra.mxu0 0
        %4159 = vmatprep.subr.bf16.mxu0 0
        %4160 = vmatpush1.bf16.msra.mxu0 0
        %4161 = vmatprep.mubr.bf16.mxu0 0
        %4162 = vmatmul.mubr.bf16.gmra.mrb[0].mxu0 %v3872
        %v4163 = vpop.f32.mrb[0].mxu0
        %v4164 = vadd.f32 %v4116, %v4163
        %v4165 = vpop.f32.mrb[0].mxu0
        %v4166 = vpop.f32.mrb[0].mxu0
        %v4167 = vadd.f32 %v4119, %v4166
        %v4168 = vpop.f32.mrb[0].mxu0
        %4169 = vmatprep.mubr.bf16.mxu0 0
        %4170 = vmatmul.mubr.bf16.gmra.mrb[0].mxu0 %v3875
        %v4171 = vpop.f32.mrb[0].mxu0
        %v4172 = vadd.f32 %v4124, %v4171
        %v4173 = vpop.f32.mrb[0].mxu0
        %v4174 = vpop.f32.mrb[0].mxu0
        %v4175 = vpop.f32.mrb[0].mxu0
        %4176 = vdwg.mxu0
        %s4177 = scalar_lea.vmem [#allocation8], 1600
        %v4178 = vld [vmem:[%s4177] sm:$0xff]
        %v4179 = vld [vmem:[%s4177 + $0x8] sm:$0xff]
        %v4180 = vld [vmem:[%s4177 + $0x10] sm:$0xf]
        %v4181 = vld [vmem:[%s4177 + $0x14] sm:$0xff]
        %v4182 = vld [vmem:[%s4177 + $0x1c] sm:$0xff]
        %v4183 = vld [vmem:[%s4177 + $0x24] sm:$0xf]
        %v4184 = vld [vmem:[%s4177 + $0x28] sm:$0xff]
        %v4185 = vld [vmem:[%s4177 + $0x30] sm:$0xff]
        %v4186 = vld [vmem:[%s4177 + $0x38] sm:$0xf]
        %v4187 = vld [vmem:[%s4177 + $0x3c] sm:$0xff]
        %v4188 = vld [vmem:[%s4177 + $0x44] sm:$0xff]
        %v4189 = vld [vmem:[%s4177 + $0x4c] sm:$0xf]
        %v4190 = vld [vmem:[%s4177 + $0x50] sm:$0xff]
        %v4191 = vld [vmem:[%s4177 + $0x58] sm:$0xff]
        %v4192 = vld [vmem:[%s4177 + $0x60] sm:$0xf]
        %v4193 = vld [vmem:[%s4177 + $0x64] sm:$0xff]
        %v4194 = vld [vmem:[%s4177 + $0x6c] sm:$0xff]
        %v4195 = vld [vmem:[%s4177 + $0x74] sm:$0xf]
        %v4196 = vld [vmem:[%s4177 + $0x78] sm:$0xff]
        %v4197 = vld [vmem:[%s4177 + $0x80] sm:$0xff]
        %v4198 = vld [vmem:[%s4177 + $0x88] sm:$0xf]
        %v4199 = vld [vmem:[%s4177 + $0x8c] sm:$0xff]
        %v4200 = vld [vmem:[%s4177 + $0x94] sm:$0xff]
        %v4201 = vld [vmem:[%s4177 + $0x9c] sm:$0xf]
        %v4202 = vld [vmem:[%s4177 + $0xa0] sm:$0xff]
        %v4203 = vld [vmem:[%s4177 + $0xa8] sm:$0xff]
        %v4204 = vld [vmem:[%s4177 + $0xb0] sm:$0xf]
        %v4205 = vld [vmem:[%s4177 + $0xb4] sm:$0xff]
        %v4206 = vld [vmem:[%s4177 + $0xbc] sm:$0xff]
        %v4207 = vld [vmem:[%s4177 + $0xc4] sm:$0xf]
        %v4208 = vld [vmem:[%s4177 + $0xc8] sm:$0xff]
        %v4209 = vld [vmem:[%s4177 + $0xd0] sm:$0xff]
        %v4210 = vld [vmem:[%s4177 + $0xd8] sm:$0xf]
        %v4211 = vld [vmem:[%s4177 + $0xdc] sm:$0xff]
        %v4212 = vld [vmem:[%s4177 + $0xe4] sm:$0xff]
        %v4213 = vld [vmem:[%s4177 + $0xec] sm:$0xf]
        %v4214 = vld [vmem:[%s4177 + $0xf0] sm:$0xff]
        %v4215 = vld [vmem:[%s4177 + $0xf8] sm:$0xff]
        %v4216 = vld [vmem:[%s4177 + $0x100] sm:$0xf]
        %v4217 = vld [vmem:[%s4177 + $0x104] sm:$0xff]
        %v4218 = vld [vmem:[%s4177 + $0x10c] sm:$0xff]
        %v4219 = vld [vmem:[%s4177 + $0x114] sm:$0xf]
        %v4220 = vld [vmem:[%s4177 + $0x118] sm:$0xff]
        %v4221 = vld [vmem:[%s4177 + $0x120] sm:$0xff]
        %v4222 = vld [vmem:[%s4177 + $0x128] sm:$0xf]
        %v4223 = vld [vmem:[%s4177 + $0x12c] sm:$0xff]
        %v4224 = vld [vmem:[%s4177 + $0x134] sm:$0xff]
        %v4225 = vld [vmem:[%s4177 + $0x13c] sm:$0xf]
        %v4226 = vld [vmem:[%s4177 + $0x140] sm:$0xff]
        %v4227 = vld [vmem:[%s4177 + $0x148] sm:$0xff]
        %v4228 = vld [vmem:[%s4177 + $0x150] sm:$0xf]
        %v4229 = vld [vmem:[%s4177 + $0x154] sm:$0xff]
        %v4230 = vld [vmem:[%s4177 + $0x15c] sm:$0xff]
        %v4231 = vld [vmem:[%s4177 + $0x164] sm:$0xf]
        %v4232 = vld [vmem:[%s4177 + $0x168] sm:$0xff]
        %v4233 = vld [vmem:[%s4177 + $0x170] sm:$0xff]
        %v4234 = vld [vmem:[%s4177 + $0x178] sm:$0xf]
        %v4235 = vld [vmem:[%s4177 + $0x17c] sm:$0xff]
        %v4236 = vld [vmem:[%s4177 + $0x184] sm:$0xff]
        %v4237 = vld [vmem:[%s4177 + $0x18c] sm:$0xf]
        %v4238 = vld [vmem:[%s4177 + $0x190] sm:$0xff]
        %v4239 = vld [vmem:[%s4177 + $0x198] sm:$0xff]
        %v4240 = vld [vmem:[%s4177 + $0x1a0] sm:$0xf]
        %v4241 = vld [vmem:[%s4177 + $0x1a4] sm:$0xff]
        %v4242 = vld [vmem:[%s4177 + $0x1ac] sm:$0xff]
        %v4243 = vld [vmem:[%s4177 + $0x1b4] sm:$0xf]
        %v4244 = vld [vmem:[%s4177 + $0x1b8] sm:$0xff]
        %v4245 = vld [vmem:[%s4177 + $0x1c0] sm:$0xff]
        %v4246 = vld [vmem:[%s4177 + $0x1c8] sm:$0xf]
        %v4247 = vld [vmem:[%s4177 + $0x1cc] sm:$0xff]
        %v4248 = vld [vmem:[%s4177 + $0x1d4] sm:$0xff]
        %v4249 = vld [vmem:[%s4177 + $0x1dc] sm:$0xf]
        %v4250 = vld [vmem:[%s4177 + $0x1e0] sm:$0xff]
        %v4251 = vld [vmem:[%s4177 + $0x1e8] sm:$0xff]
        %v4252 = vld [vmem:[%s4177 + $0x1f0] sm:$0xf]
        %v4253 = vld [vmem:[%s4177 + $0x1f4] sm:$0xff]
        %v4254 = vld [vmem:[%s4177 + $0x1fc] sm:$0xff]
        %v4255 = vld [vmem:[%s4177 + $0x204] sm:$0xf]
        %v4256 = vld [vmem:[%s4177 + $0x208] sm:$0xff]
        %v4257 = vld [vmem:[%s4177 + $0x210] sm:$0xff]
        %v4258 = vld [vmem:[%s4177 + $0x218] sm:$0xf]
        %v4259 = vld [vmem:[%s4177 + $0x21c] sm:$0xff]
        %v4260 = vld [vmem:[%s4177 + $0x224] sm:$0xff]
        %v4261 = vld [vmem:[%s4177 + $0x22c] sm:$0xf]
        %v4262 = vld [vmem:[%s4177 + $0x230] sm:$0xff]
        %v4263 = vld [vmem:[%s4177 + $0x238] sm:$0xff]
        %v4264 = vld [vmem:[%s4177 + $0x240] sm:$0xf]
        %v4265 = vld [vmem:[%s4177 + $0x244] sm:$0xff]
        %v4266 = vld [vmem:[%s4177 + $0x24c] sm:$0xff]
        %v4267 = vld [vmem:[%s4177 + $0x254] sm:$0xf]
        %v4268 = vld [vmem:[%s4177 + $0x258] sm:$0xff]
        %v4269 = vld [vmem:[%s4177 + $0x260] sm:$0xff]
        %v4270 = vld [vmem:[%s4177 + $0x268] sm:$0xf]
        %v4271 = vld [vmem:[%s4177 + $0x26c] sm:$0xff]
        %v4272 = vld [vmem:[%s4177 + $0x274] sm:$0xff]
        %v4273 = vld [vmem:[%s4177 + $0x27c] sm:$0xf]
        %v4274 = vld [vmem:[%s4177 + $0x280] sm:$0xff]
        %v4275 = vld [vmem:[%s4177 + $0x288] sm:$0xff]
        %v4276 = vld [vmem:[%s4177 + $0x290] sm:$0xf]
        %v4277 = vld [vmem:[%s4177 + $0x294] sm:$0xff]
        %v4278 = vld [vmem:[%s4177 + $0x29c] sm:$0xff]
        %v4279 = vld [vmem:[%s4177 + $0x2a4] sm:$0xf]
        %v4280 = vld [vmem:[%s4177 + $0x2a8] sm:$0xff]
        %v4281 = vld [vmem:[%s4177 + $0x2b0] sm:$0xff]
        %v4282 = vld [vmem:[%s4177 + $0x2b8] sm:$0xf]
        %v4283 = vld [vmem:[%s4177 + $0x2bc] sm:$0xff]
        %v4284 = vld [vmem:[%s4177 + $0x2c4] sm:$0xff]
        %v4285 = vld [vmem:[%s4177 + $0x2cc] sm:$0xf]
        %v4286 = vld [vmem:[%s4177 + $0x2d0] sm:$0xff]
        %v4287 = vld [vmem:[%s4177 + $0x2d8] sm:$0xff]
        %v4288 = vld [vmem:[%s4177 + $0x2e0] sm:$0xf]
        %v4289 = vld [vmem:[%s4177 + $0x2e4] sm:$0xff]
        %v4290 = vld [vmem:[%s4177 + $0x2ec] sm:$0xff]
        %v4291 = vld [vmem:[%s4177 + $0x2f4] sm:$0xf]
        %v4292 = vld [vmem:[%s4177 + $0x2f8] sm:$0xff]
        %v4293 = vld [vmem:[%s4177 + $0x300] sm:$0xff]
        %v4294 = vld [vmem:[%s4177 + $0x308] sm:$0xf]
        %v4295 = vld [vmem:[%s4177 + $0x30c] sm:$0xff]
        %v4296 = vld [vmem:[%s4177 + $0x314] sm:$0xff]
        %v4297 = vld [vmem:[%s4177 + $0x31c] sm:$0xf]
        %4298 = vrot.lane.b32.xlu0 %v2251, 96
        %v4299 = vpop.permute.xlu0 %4298
        %4300 = vrot.lane.b32.xlu0 %v2252, 96
        %v4301 = vpop.permute.xlu0 %4300
        %4302 = vrot.lane.b32.xlu0 %v2253, 96
        %v4303 = vpop.permute.xlu0 %4302
        %4304 = vrot.lane.b32.xlu0 %v2254, 96
        %v4305 = vpop.permute.xlu0 %4304
        %4306 = vrot.lane.b32.xlu0 %v2255, 96
        %v4307 = vpop.permute.xlu0 %4306
        %4308 = vrot.lane.b32.xlu0 %v2256, 96
        %v4309 = vpop.permute.xlu0 %4308
        %vm4310 = vcmask 785408
        %v4311 = vsel %vm4310, %v4299, %v4301
        %v4312 = vsel %vm4310, %v4301, %v4303
        %v4313 = vsel %vm4310, %v4305, %v4307
        %v4314 = vsel %vm4310, %v4307, %v4309
        %v4439 = vunpack.c.l.b16 %v4178
        %v4440 = vunpack.c.h.b16 %v4178
        %v4441 = vunpack.c.l.b16 %v4179
        %v4442 = vunpack.c.h.b16 %v4179
        %v4443 = vunpack.c.l.b16 %v4180
        %v4444 = vunpack.c.l.b16 %v4181
        %v4445 = vunpack.c.h.b16 %v4181
        %v4446 = vunpack.c.l.b16 %v4182
        %v4447 = vunpack.c.h.b16 %v4182
        %v4448 = vunpack.c.l.b16 %v4183
        %v4449 = vunpack.c.l.b16 %v4184
        %v4450 = vunpack.c.h.b16 %v4184
        %v4451 = vunpack.c.l.b16 %v4185
        %v4452 = vunpack.c.h.b16 %v4185
        %v4453 = vunpack.c.l.b16 %v4186
        %v4454 = vunpack.c.l.b16 %v4187
        %v4455 = vunpack.c.h.b16 %v4187
        %v4456 = vunpack.c.l.b16 %v4188
        %v4457 = vunpack.c.h.b16 %v4188
        %v4458 = vunpack.c.l.b16 %v4189
        %v4459 = vunpack.c.l.b16 %v4190
        %v4460 = vunpack.c.h.b16 %v4190
        %v4461 = vunpack.c.l.b16 %v4191
        %v4462 = vunpack.c.h.b16 %v4191
        %v4463 = vunpack.c.l.b16 %v4192
        %v4464 = vunpack.c.l.b16 %v4193
        %v4465 = vunpack.c.h.b16 %v4193
        %v4466 = vunpack.c.l.b16 %v4194
        %v4467 = vunpack.c.h.b16 %v4194
        %v4468 = vunpack.c.l.b16 %v4195
        %v4469 = vunpack.c.l.b16 %v4196
        %v4470 = vunpack.c.h.b16 %v4196
        %v4471 = vunpack.c.l.b16 %v4197
        %v4472 = vunpack.c.h.b16 %v4197
        %v4473 = vunpack.c.l.b16 %v4198
        %v4474 = vunpack.c.l.b16 %v4199
        %v4475 = vunpack.c.h.b16 %v4199
        %v4476 = vunpack.c.l.b16 %v4200
        %v4477 = vunpack.c.h.b16 %v4200
        %v4478 = vunpack.c.l.b16 %v4201
        %v4479 = vunpack.c.l.b16 %v4202
        %v4480 = vunpack.c.h.b16 %v4202
        %v4481 = vunpack.c.l.b16 %v4203
        %v4482 = vunpack.c.h.b16 %v4203
        %v4483 = vunpack.c.l.b16 %v4204
        %v4484 = vunpack.c.l.b16 %v4205
        %v4485 = vunpack.c.h.b16 %v4205
        %v4486 = vunpack.c.l.b16 %v4206
        %v4487 = vunpack.c.h.b16 %v4206
        %v4488 = vunpack.c.l.b16 %v4207
        %v4489 = vunpack.c.l.b16 %v4208
        %v4490 = vunpack.c.h.b16 %v4208
        %v4491 = vunpack.c.l.b16 %v4209
        %v4492 = vunpack.c.h.b16 %v4209
        %v4493 = vunpack.c.l.b16 %v4210
        %v4494 = vunpack.c.l.b16 %v4211
        %v4495 = vunpack.c.h.b16 %v4211
        %v4496 = vunpack.c.l.b16 %v4212
        %v4497 = vunpack.c.h.b16 %v4212
        %v4498 = vunpack.c.l.b16 %v4213
        %v4499 = vunpack.c.l.b16 %v4214
        %v4500 = vunpack.c.h.b16 %v4214
        %v4501 = vunpack.c.l.b16 %v4215
        %v4502 = vunpack.c.h.b16 %v4215
        %v4503 = vunpack.c.l.b16 %v4216
        %v4504 = vunpack.c.l.b16 %v4217
        %v4505 = vunpack.c.h.b16 %v4217
        %v4506 = vunpack.c.l.b16 %v4218
        %v4507 = vunpack.c.h.b16 %v4218
        %v4508 = vunpack.c.l.b16 %v4219
        %v4509 = vunpack.c.l.b16 %v4220
        %v4510 = vunpack.c.h.b16 %v4220
        %v4511 = vunpack.c.l.b16 %v4221
        %v4512 = vunpack.c.h.b16 %v4221
        %v4513 = vunpack.c.l.b16 %v4222
        %v4514 = vunpack.c.l.b16 %v4223
        %v4515 = vunpack.c.h.b16 %v4223
        %v4516 = vunpack.c.l.b16 %v4224
        %v4517 = vunpack.c.h.b16 %v4224
        %v4518 = vunpack.c.l.b16 %v4225
        %v4519 = vunpack.c.l.b16 %v4226
        %v4520 = vunpack.c.h.b16 %v4226
        %v4521 = vunpack.c.l.b16 %v4227
        %v4522 = vunpack.c.h.b16 %v4227
        %v4523 = vunpack.c.l.b16 %v4228
        %v4524 = vunpack.c.l.b16 %v4229
        %v4525 = vunpack.c.h.b16 %v4229
        %v4526 = vunpack.c.l.b16 %v4230
        %v4527 = vunpack.c.h.b16 %v4230
        %v4528 = vunpack.c.l.b16 %v4231
        %v4529 = vunpack.c.l.b16 %v4232
        %v4530 = vunpack.c.h.b16 %v4232
        %v4531 = vunpack.c.l.b16 %v4233
        %v4532 = vunpack.c.h.b16 %v4233
        %v4533 = vunpack.c.l.b16 %v4234
        %v4534 = vunpack.c.l.b16 %v4235
        %v4535 = vunpack.c.h.b16 %v4235
        %v4536 = vunpack.c.l.b16 %v4236
        %v4537 = vunpack.c.h.b16 %v4236
        %v4538 = vunpack.c.l.b16 %v4237
        %v4539 = vunpack.c.l.b16 %v4238
        %v4540 = vunpack.c.h.b16 %v4238
        %v4541 = vunpack.c.l.b16 %v4239
        %v4542 = vunpack.c.h.b16 %v4239
        %v4543 = vunpack.c.l.b16 %v4240
        %v4544 = vunpack.c.l.b16 %v4241
        %v4545 = vunpack.c.h.b16 %v4241
        %v4546 = vunpack.c.l.b16 %v4242
        %v4547 = vunpack.c.h.b16 %v4242
        %v4548 = vunpack.c.l.b16 %v4243
        %v4549 = vunpack.c.l.b16 %v4244
        %v4550 = vunpack.c.h.b16 %v4244
        %v4551 = vunpack.c.l.b16 %v4245
        %v4552 = vunpack.c.h.b16 %v4245
        %v4553 = vunpack.c.l.b16 %v4246
        %v4554 = vunpack.c.l.b16 %v4247
        %v4555 = vunpack.c.h.b16 %v4247
        %v4556 = vunpack.c.l.b16 %v4248
        %v4557 = vunpack.c.h.b16 %v4248
        %v4558 = vunpack.c.l.b16 %v4249
        %v4559 = vunpack.c.l.b16 %v4250
        %v4560 = vunpack.c.h.b16 %v4250
        %v4561 = vunpack.c.l.b16 %v4251
        %v4562 = vunpack.c.h.b16 %v4251
        %v4563 = vunpack.c.l.b16 %v4252
        %v4564 = vunpack.c.l.b16 %v4253
        %v4565 = vunpack.c.h.b16 %v4253
        %v4566 = vunpack.c.l.b16 %v4254
        %v4567 = vunpack.c.h.b16 %v4254
        %v4568 = vunpack.c.l.b16 %v4255
        %v4569 = vunpack.c.l.b16 %v4256
        %v4570 = vunpack.c.h.b16 %v4256
        %v4571 = vunpack.c.l.b16 %v4257
        %v4572 = vunpack.c.h.b16 %v4257
        %v4573 = vunpack.c.l.b16 %v4258
        %v4574 = vunpack.c.l.b16 %v4259
        %v4575 = vunpack.c.h.b16 %v4259
        %v4576 = vunpack.c.l.b16 %v4260
        %v4577 = vunpack.c.h.b16 %v4260
        %v4578 = vunpack.c.l.b16 %v4261
        %v4579 = vunpack.c.l.b16 %v4262
        %v4580 = vunpack.c.h.b16 %v4262
        %v4581 = vunpack.c.l.b16 %v4263
        %v4582 = vunpack.c.h.b16 %v4263
        %v4583 = vunpack.c.l.b16 %v4264
        %v4584 = vunpack.c.l.b16 %v4265
        %v4585 = vunpack.c.h.b16 %v4265
        %v4586 = vunpack.c.l.b16 %v4266
        %v4587 = vunpack.c.h.b16 %v4266
        %v4588 = vunpack.c.l.b16 %v4267
        %v4589 = vunpack.c.l.b16 %v4268
        %v4590 = vunpack.c.h.b16 %v4268
        %v4591 = vunpack.c.l.b16 %v4269
        %v4592 = vunpack.c.h.b16 %v4269
        %v4593 = vunpack.c.l.b16 %v4270
        %v4594 = vunpack.c.l.b16 %v4271
        %v4595 = vunpack.c.h.b16 %v4271
        %v4596 = vunpack.c.l.b16 %v4272
        %v4597 = vunpack.c.h.b16 %v4272
        %v4598 = vunpack.c.l.b16 %v4273
        %v4599 = vunpack.c.l.b16 %v4274
        %v4600 = vunpack.c.h.b16 %v4274
        %v4601 = vunpack.c.l.b16 %v4275
        %v4602 = vunpack.c.h.b16 %v4275
        %v4603 = vunpack.c.l.b16 %v4276
        %v4604 = vunpack.c.l.b16 %v4277
        %v4605 = vunpack.c.h.b16 %v4277
        %v4606 = vunpack.c.l.b16 %v4278
        %v4607 = vunpack.c.h.b16 %v4278
        %v4608 = vunpack.c.l.b16 %v4279
        %v4609 = vunpack.c.l.b16 %v4280
        %v4610 = vunpack.c.h.b16 %v4280
        %v4611 = vunpack.c.l.b16 %v4281
        %v4612 = vunpack.c.h.b16 %v4281
        %v4613 = vunpack.c.l.b16 %v4282
        %v4614 = vunpack.c.l.b16 %v4283
        %v4615 = vunpack.c.h.b16 %v4283
        %v4616 = vunpack.c.l.b16 %v4284
        %v4617 = vunpack.c.h.b16 %v4284
        %v4618 = vunpack.c.l.b16 %v4285
        %v4619 = vunpack.c.l.b16 %v4286
        %v4620 = vunpack.c.h.b16 %v4286
        %v4621 = vunpack.c.l.b16 %v4287
        %v4622 = vunpack.c.h.b16 %v4287
        %v4623 = vunpack.c.l.b16 %v4288
        %v4624 = vunpack.c.l.b16 %v4289
        %v4625 = vunpack.c.h.b16 %v4289
        %v4626 = vunpack.c.l.b16 %v4290
        %v4627 = vunpack.c.h.b16 %v4290
        %v4628 = vunpack.c.l.b16 %v4291
        %v4629 = vunpack.c.l.b16 %v4292
        %v4630 = vunpack.c.h.b16 %v4292
        %v4631 = vunpack.c.l.b16 %v4293
        %v4632 = vunpack.c.h.b16 %v4293
        %v4633 = vunpack.c.l.b16 %v4294
        %v4634 = vunpack.c.l.b16 %v4295
        %v4635 = vunpack.c.h.b16 %v4295
        %v4636 = vunpack.c.l.b16 %v4296
        %v4637 = vunpack.c.h.b16 %v4296
        %v4638 = vunpack.c.l.b16 %v4297
        %v4639 = vpack.c.b16 %v4444, %v4439
        %v4640 = vpack.c.b16 %v4445, %v4440
        %v4641 = vpack.c.b16 %v4446, %v4441
        %v4642 = vpack.c.b16 %v4447, %v4442
        %v4643 = vpack.c.b16 %v4448, %v4443
        %v4644 = vpack.c.b16 %v4454, %v4449
        %v4645 = vpack.c.b16 %v4455, %v4450
        %v4646 = vpack.c.b16 %v4456, %v4451
        %v4647 = vpack.c.b16 %v4457, %v4452
        %v4648 = vpack.c.b16 %v4458, %v4453
        %v4649 = vpack.c.b16 %v4464, %v4459
        %v4650 = vpack.c.b16 %v4465, %v4460
        %v4651 = vpack.c.b16 %v4466, %v4461
        %v4652 = vpack.c.b16 %v4467, %v4462
        %v4653 = vpack.c.b16 %v4468, %v4463
        %v4654 = vpack.c.b16 %v4474, %v4469
        %v4655 = vpack.c.b16 %v4475, %v4470
        %v4656 = vpack.c.b16 %v4476, %v4471
        %v4657 = vpack.c.b16 %v4477, %v4472
        %v4658 = vpack.c.b16 %v4478, %v4473
        %v4659 = vpack.c.b16 %v4484, %v4479
        %v4660 = vpack.c.b16 %v4485, %v4480
        %v4661 = vpack.c.b16 %v4486, %v4481
        %v4662 = vpack.c.b16 %v4487, %v4482
        %v4663 = vpack.c.b16 %v4488, %v4483
        %v4664 = vpack.c.b16 %v4494, %v4489
        %v4665 = vpack.c.b16 %v4495, %v4490
        %v4666 = vpack.c.b16 %v4496, %v4491
        %v4667 = vpack.c.b16 %v4497, %v4492
        %v4668 = vpack.c.b16 %v4498, %v4493
        %v4669 = vpack.c.b16 %v4504, %v4499
        %v4670 = vpack.c.b16 %v4505, %v4500
        %v4671 = vpack.c.b16 %v4506, %v4501
        %v4672 = vpack.c.b16 %v4507, %v4502
        %v4673 = vpack.c.b16 %v4508, %v4503
        %v4674 = vpack.c.b16 %v4514, %v4509
        %v4675 = vpack.c.b16 %v4515, %v4510
        %v4676 = vpack.c.b16 %v4516, %v4511
        %v4677 = vpack.c.b16 %v4517, %v4512
        %v4678 = vpack.c.b16 %v4518, %v4513
        %v4679 = vpack.c.b16 %v4524, %v4519
        %v4680 = vpack.c.b16 %v4525, %v4520
        %v4681 = vpack.c.b16 %v4526, %v4521
        %v4682 = vpack.c.b16 %v4527, %v4522
        %v4683 = vpack.c.b16 %v4528, %v4523
        %v4684 = vpack.c.b16 %v4534, %v4529
        %v4685 = vpack.c.b16 %v4535, %v4530
        %v4686 = vpack.c.b16 %v4536, %v4531
        %v4687 = vpack.c.b16 %v4537, %v4532
        %v4688 = vpack.c.b16 %v4538, %v4533
        %v4689 = vpack.c.b16 %v4544, %v4539
        %v4690 = vpack.c.b16 %v4545, %v4540
        %v4691 = vpack.c.b16 %v4546, %v4541
        %v4692 = vpack.c.b16 %v4547, %v4542
        %v4693 = vpack.c.b16 %v4548, %v4543
        %v4694 = vpack.c.b16 %v4554, %v4549
        %v4695 = vpack.c.b16 %v4555, %v4550
        %v4696 = vpack.c.b16 %v4556, %v4551
        %v4697 = vpack.c.b16 %v4557, %v4552
        %v4698 = vpack.c.b16 %v4558, %v4553
        %v4699 = vpack.c.b16 %v4564, %v4559
        %v4700 = vpack.c.b16 %v4565, %v4560
        %v4701 = vpack.c.b16 %v4566, %v4561
        %v4702 = vpack.c.b16 %v4567, %v4562
        %v4703 = vpack.c.b16 %v4568, %v4563
        %v4704 = vpack.c.b16 %v4574, %v4569
        %v4705 = vpack.c.b16 %v4575, %v4570
        %v4706 = vpack.c.b16 %v4576, %v4571
        %v4707 = vpack.c.b16 %v4577, %v4572
        %v4708 = vpack.c.b16 %v4578, %v4573
        %v4709 = vpack.c.b16 %v4584, %v4579
        %v4710 = vpack.c.b16 %v4585, %v4580
        %v4711 = vpack.c.b16 %v4586, %v4581
        %v4712 = vpack.c.b16 %v4587, %v4582
        %v4713 = vpack.c.b16 %v4588, %v4583
        %v4714 = vpack.c.b16 %v4594, %v4589
        %v4715 = vpack.c.b16 %v4595, %v4590
        %v4716 = vpack.c.b16 %v4596, %v4591
        %v4717 = vpack.c.b16 %v4597, %v4592
        %v4718 = vpack.c.b16 %v4598, %v4593
        %v4719 = vpack.c.b16 %v4604, %v4599
        %v4720 = vpack.c.b16 %v4605, %v4600
        %v4721 = vpack.c.b16 %v4606, %v4601
        %v4722 = vpack.c.b16 %v4607, %v4602
        %v4723 = vpack.c.b16 %v4608, %v4603
        %v4724 = vpack.c.b16 %v4614, %v4609
        %v4725 = vpack.c.b16 %v4615, %v4610
        %v4726 = vpack.c.b16 %v4616, %v4611
        %v4727 = vpack.c.b16 %v4617, %v4612
        %v4728 = vpack.c.b16 %v4618, %v4613
        %v4729 = vpack.c.b16 %v4624, %v4619
        %v4730 = vpack.c.b16 %v4625, %v4620
        %v4731 = vpack.c.b16 %v4626, %v4621
        %v4732 = vpack.c.b16 %v4627, %v4622
        %v4733 = vpack.c.b16 %v4628, %v4623
        %v4734 = vpack.c.b16 %v4634, %v4629
        %v4735 = vpack.c.b16 %v4635, %v4630
        %v4736 = vpack.c.b16 %v4636, %v4631
        %v4737 = vpack.c.b16 %v4637, %v4632
        %v4738 = vpack.c.b16 %v4638, %v4633
        %v4840 = vsel %vm2235, %v4303, 0
        %v4843 = vsel %vm2235, %v4309, 0
        %4845 = vmatprep.subr.bf16.mxu0 %v4640
        %4846 = vmatpush1.bf16.msra.mxu0 %v4639
        %4847 = vmatprep.subr.bf16.mxu0 %v4645
        %4848 = vmatpush1.bf16.msra.mxu0 %v4644
        %4849 = vmatprep.subr.bf16.mxu0 %v4650
        %4850 = vmatpush1.bf16.msra.mxu0 %v4649
        %4851 = vmatprep.subr.bf16.mxu0 %v4655
        %4852 = vmatpush1.bf16.msra.mxu0 %v4654
        %4853 = vmatprep.subr.bf16.mxu0 %v4660
        %4854 = vmatpush1.bf16.msra.mxu0 %v4659
        %4855 = vmatprep.subr.bf16.mxu0 %v4665
        %4856 = vmatpush1.bf16.msra.mxu0 %v4664
        %4857 = vmatprep.subr.bf16.mxu0 %v4670
        %4858 = vmatpush1.bf16.msra.mxu0 %v4669
        %4859 = vmatprep.subr.bf16.mxu0 %v4675
        %4860 = vmatpush1.bf16.msra.mxu0 %v4674
        %4861 = vmatprep.subr.bf16.mxu0 %v4680
        %4862 = vmatpush1.bf16.msra.mxu0 %v4679
        %4863 = vmatprep.subr.bf16.mxu0 %v4685
        %4864 = vmatpush1.bf16.msra.mxu0 %v4684
        %4865 = vmatprep.subr.bf16.mxu0 %v4690
        %4866 = vmatpush1.bf16.msra.mxu0 %v4689
        %4867 = vmatprep.subr.bf16.mxu0 %v4695
        %4868 = vmatpush1.bf16.msra.mxu0 %v4694
        %4869 = vmatprep.subr.bf16.mxu0 %v4700
        %4870 = vmatpush1.bf16.msra.mxu0 %v4699
        %4871 = vmatprep.subr.bf16.mxu0 %v4705
        %4872 = vmatpush1.bf16.msra.mxu0 %v4704
        %4873 = vmatprep.subr.bf16.mxu0 %v4710
        %4874 = vmatpush1.bf16.msra.mxu0 %v4709
        %4875 = vmatprep.subr.bf16.mxu0 %v4715
        %4876 = vmatpush1.bf16.msra.mxu0 %v4714
        %4877 = vmatprep.mubr.bf16.mxu0 %v4312
        %4878 = vmatmul.mubr.bf16.gmra.mrb[0].mxu0 %v4311
        %v4879 = vpop.f32.mrb[0].mxu0
        %v4880 = vadd.f32 0.0, %v4879
        %v4881 = vpop.f32.mrb[0].mxu0
        %v4882 = vadd.f32 0.0, %v4881
        %v4883 = vpop.f32.mrb[0].mxu0
        %v4884 = vadd.f32 0.0, %v4883
        %v4885 = vpop.f32.mrb[0].mxu0
        %v4886 = vadd.f32 0.0, %v4885
        %4887 = vmatprep.mubr.bf16.mxu0 %v4314
        %4888 = vmatmul.mubr.bf16.gmra.mrb[0].mxu0 %v4313
        %v4889 = vpop.f32.mrb[0].mxu0
        %v4890 = vadd.f32 0.0, %v4889
        %v4891 = vpop.f32.mrb[0].mxu0
        %v4892 = vadd.f32 0.0, %v4891
        %v4893 = vpop.f32.mrb[0].mxu0
        %v4894 = vpop.f32.mrb[0].mxu0
        %4895 = vdwg.mxu0
        %4896 = vmatprep.subr.bf16.mxu0 %v4720
        %4897 = vmatpush1.bf16.msra.mxu0 %v4719
        %4898 = vmatprep.subr.bf16.mxu0 %v4725
        %4899 = vmatpush1.bf16.msra.mxu0 %v4724
        %4900 = vmatprep.subr.bf16.mxu0 %v4730
        %4901 = vmatpush1.bf16.msra.mxu0 %v4729
        %4902 = vmatprep.subr.bf16.mxu0 %v4735
        %4903 = vmatpush1.bf16.msra.mxu0 %v4734
        %4904 = vmatprep.subr.bf16.mxu0 0
        %4905 = vmatpush1.bf16.msra.mxu0 0
        %4906 = vmatprep.subr.bf16.mxu0 0
        %4907 = vmatpush1.bf16.msra.mxu0 0
        %4908 = vmatprep.subr.bf16.mxu0 0
        %4909 = vmatpush1.bf16.msra.mxu0 0
        %4910 = vmatprep.subr.bf16.mxu0 0
        %4911 = vmatpush1.bf16.msra.mxu0 0
        %4912 = vmatprep.subr.bf16.mxu0 0
        %4913 = vmatpush1.bf16.msra.mxu0 0
        %4914 = vmatprep.subr.bf16.mxu0 0
        %4915 = vmatpush1.bf16.msra.mxu0 0
        %4916 = vmatprep.subr.bf16.mxu0 0
        %4917 = vmatpush1.bf16.msra.mxu0 0
        %4918 = vmatprep.subr.bf16.mxu0 0
        %4919 = vmatpush1.bf16.msra.mxu0 0
        %4920 = vmatprep.subr.bf16.mxu0 0
        %4921 = vmatpush1.bf16.msra.mxu0 0
        %4922 = vmatprep.subr.bf16.mxu0 0
        %4923 = vmatpush1.bf16.msra.mxu0 0
        %4924 = vmatprep.subr.bf16.mxu0 0
        %4925 = vmatpush1.bf16.msra.mxu0 0
        %4926 = vmatprep.subr.bf16.mxu0 0
        %4927 = vmatpush1.bf16.msra.mxu0 0
        %4928 = vmatprep.mubr.bf16.mxu0 0
        %4929 = vmatmul.mubr.bf16.gmra.mrb[0].mxu0 %v4840
        %v4930 = vpop.f32.mrb[0].mxu0
        %v4931 = vadd.f32 %v4880, %v4930
        %v4932 = vpop.f32.mrb[0].mxu0
        %v4933 = vadd.f32 %v4882, %v4932
        %v4934 = vpop.f32.mrb[0].mxu0
        %v4935 = vadd.f32 %v4884, %v4934
        %v4936 = vpop.f32.mrb[0].mxu0
        %v4937 = vadd.f32 %v4886, %v4936
        %4938 = vmatprep.mubr.bf16.mxu0 0
        %4939 = vmatmul.mubr.bf16.gmra.mrb[0].mxu0 %v4843
        %v4940 = vpop.f32.mrb[0].mxu0
        %v4941 = vadd.f32 %v4890, %v4940
        %v4942 = vpop.f32.mrb[0].mxu0
        %v4943 = vadd.f32 %v4892, %v4942
        %v4944 = vpop.f32.mrb[0].mxu0
        %v4945 = vpop.f32.mrb[0].mxu0
        %4946 = vdwg.mxu0
        %4947 = vmatprep.subr.bf16.mxu0 %v4642
        %4948 = vmatpush1.bf16.msra.mxu0 %v4641
        %4949 = vmatprep.subr.bf16.mxu0 %v4647
        %4950 = vmatpush1.bf16.msra.mxu0 %v4646
        %4951 = vmatprep.subr.bf16.mxu0 %v4652
        %4952 = vmatpush1.bf16.msra.mxu0 %v4651
        %4953 = vmatprep.subr.bf16.mxu0 %v4657
        %4954 = vmatpush1.bf16.msra.mxu0 %v4656
        %4955 = vmatprep.subr.bf16.mxu0 %v4662
        %4956 = vmatpush1.bf16.msra.mxu0 %v4661
        %4957 = vmatprep.subr.bf16.mxu0 %v4667
        %4958 = vmatpush1.bf16.msra.mxu0 %v4666
        %4959 = vmatprep.subr.bf16.mxu0 %v4672
        %4960 = vmatpush1.bf16.msra.mxu0 %v4671
        %4961 = vmatprep.subr.bf16.mxu0 %v4677
        %4962 = vmatpush1.bf16.msra.mxu0 %v4676
        %4963 = vmatprep.subr.bf16.mxu0 %v4682
        %4964 = vmatpush1.bf16.msra.mxu0 %v4681
        %4965 = vmatprep.subr.bf16.mxu0 %v4687
        %4966 = vmatpush1.bf16.msra.mxu0 %v4686
        %4967 = vmatprep.subr.bf16.mxu0 %v4692
        %4968 = vmatpush1.bf16.msra.mxu0 %v4691
        %4969 = vmatprep.subr.bf16.mxu0 %v4697
        %4970 = vmatpush1.bf16.msra.mxu0 %v4696
        %4971 = vmatprep.subr.bf16.mxu0 %v4702
        %4972 = vmatpush1.bf16.msra.mxu0 %v4701
        %4973 = vmatprep.subr.bf16.mxu0 %v4707
        %4974 = vmatpush1.bf16.msra.mxu0 %v4706
        %4975 = vmatprep.subr.bf16.mxu0 %v4712
        %4976 = vmatpush1.bf16.msra.mxu0 %v4711
        %4977 = vmatprep.subr.bf16.mxu0 %v4717
        %4978 = vmatpush1.bf16.msra.mxu0 %v4716
        %4979 = vmatprep.mubr.bf16.mxu0 %v4312
        %4980 = vmatmul.mubr.bf16.gmra.mrb[0].mxu0 %v4311
        %v4981 = vpop.f32.mrb[0].mxu0
        %v4982 = vadd.f32 0.0, %v4981
        %v4983 = vpop.f32.mrb[0].mxu0
        %v4984 = vadd.f32 0.0, %v4983
        %v4985 = vpop.f32.mrb[0].mxu0
        %v4986 = vadd.f32 0.0, %v4985
        %v4987 = vpop.f32.mrb[0].mxu0
        %v4988 = vadd.f32 0.0, %v4987
        %4989 = vmatprep.mubr.bf16.mxu0 %v4314
        %4990 = vmatmul.mubr.bf16.gmra.mrb[0].mxu0 %v4313
        %v4991 = vpop.f32.mrb[0].mxu0
        %v4992 = vadd.f32 0.0, %v4991
        %v4993 = vpop.f32.mrb[0].mxu0
        %v4994 = vadd.f32 0.0, %v4993
        %v4995 = vpop.f32.mrb[0].mxu0
        %v4996 = vpop.f32.mrb[0].mxu0
        %4997 = vdwg.mxu0
        %4998 = vmatprep.subr.bf16.mxu0 %v4722
        %4999 = vmatpush1.bf16.msra.mxu0 %v4721
        %5000 = vmatprep.subr.bf16.mxu0 %v4727
        %5001 = vmatpush1.bf16.msra.mxu0 %v4726
        %5002 = vmatprep.subr.bf16.mxu0 %v4732
        %5003 = vmatpush1.bf16.msra.mxu0 %v4731
        %5004 = vmatprep.subr.bf16.mxu0 %v4737
        %5005 = vmatpush1.bf16.msra.mxu0 %v4736
        %5006 = vmatprep.subr.bf16.mxu0 0
        %5007 = vmatpush1.bf16.msra.mxu0 0
        %5008 = vmatprep.subr.bf16.mxu0 0
        %5009 = vmatpush1.bf16.msra.mxu0 0
        %5010 = vmatprep.subr.bf16.mxu0 0
        %5011 = vmatpush1.bf16.msra.mxu0 0
        %5012 = vmatprep.subr.bf16.mxu0 0
        %5013 = vmatpush1.bf16.msra.mxu0 0
        %5014 = vmatprep.subr.bf16.mxu0 0
        %5015 = vmatpush1.bf16.msra.mxu0 0
        %5016 = vmatprep.subr.bf16.mxu0 0
        %5017 = vmatpush1.bf16.msra.mxu0 0
        %5018 = vmatprep.subr.bf16.mxu0 0
        %5019 = vmatpush1.bf16.msra.mxu0 0
        %5020 = vmatprep.subr.bf16.mxu0 0
        %5021 = vmatpush1.bf16.msra.mxu0 0
        %5022 = vmatprep.subr.bf16.mxu0 0
        %5023 = vmatpush1.bf16.msra.mxu0 0
        %5024 = vmatprep.subr.bf16.mxu0 0
        %5025 = vmatpush1.bf16.msra.mxu0 0
        %5026 = vmatprep.subr.bf16.mxu0 0
        %5027 = vmatpush1.bf16.msra.mxu0 0
        %5028 = vmatprep.subr.bf16.mxu0 0
        %5029 = vmatpush1.bf16.msra.mxu0 0
        %5030 = vmatprep.mubr.bf16.mxu0 0
        %5031 = vmatmul.mubr.bf16.gmra.mrb[0].mxu0 %v4840
        %v5032 = vpop.f32.mrb[0].mxu0
        %v5033 = vadd.f32 %v4982, %v5032
        %v5034 = vpop.f32.mrb[0].mxu0
        %v5035 = vadd.f32 %v4984, %v5034
        %v5036 = vpop.f32.mrb[0].mxu0
        %v5037 = vadd.f32 %v4986, %v5036
        %v5038 = vpop.f32.mrb[0].mxu0
        %v5039 = vadd.f32 %v4988, %v5038
        %5040 = vmatprep.mubr.bf16.mxu0 0
        %5041 = vmatmul.mubr.bf16.gmra.mrb[0].mxu0 %v4843
        %v5042 = vpop.f32.mrb[0].mxu0
        %v5043 = vadd.f32 %v4992, %v5042
        %v5044 = vpop.f32.mrb[0].mxu0
        %v5045 = vadd.f32 %v4994, %v5044
        %v5046 = vpop.f32.mrb[0].mxu0
        %v5047 = vpop.f32.mrb[0].mxu0
        %5048 = vdwg.mxu0
        %5049 = vmatprep.subr.bf16.mxu0 0
        %5050 = vmatpush1.bf16.msra.mxu0 %v4643
        %5051 = vmatprep.subr.bf16.mxu0 0
        %5052 = vmatpush1.bf16.msra.mxu0 %v4648
        %5053 = vmatprep.subr.bf16.mxu0 0
        %5054 = vmatpush1.bf16.msra.mxu0 %v4653
        %5055 = vmatprep.subr.bf16.mxu0 0
        %5056 = vmatpush1.bf16.msra.mxu0 %v4658
        %5057 = vmatprep.subr.bf16.mxu0 0
        %5058 = vmatpush1.bf16.msra.mxu0 %v4663
        %5059 = vmatprep.subr.bf16.mxu0 0
        %5060 = vmatpush1.bf16.msra.mxu0 %v4668
        %5061 = vmatprep.subr.bf16.mxu0 0
        %5062 = vmatpush1.bf16.msra.mxu0 %v4673
        %5063 = vmatprep.subr.bf16.mxu0 0
        %5064 = vmatpush1.bf16.msra.mxu0 %v4678
        %5065 = vmatprep.subr.bf16.mxu0 0
        %5066 = vmatpush1.bf16.msra.mxu0 %v4683
        %5067 = vmatprep.subr.bf16.mxu0 0
        %5068 = vmatpush1.bf16.msra.mxu0 %v4688
        %5069 = vmatprep.subr.bf16.mxu0 0
        %5070 = vmatpush1.bf16.msra.mxu0 %v4693
        %5071 = vmatprep.subr.bf16.mxu0 0
        %5072 = vmatpush1.bf16.msra.mxu0 %v4698
        %5073 = vmatprep.subr.bf16.mxu0 0
        %5074 = vmatpush1.bf16.msra.mxu0 %v4703
        %5075 = vmatprep.subr.bf16.mxu0 0
        %5076 = vmatpush1.bf16.msra.mxu0 %v4708
        %5077 = vmatprep.subr.bf16.mxu0 0
        %5078 = vmatpush1.bf16.msra.mxu0 %v4713
        %5079 = vmatprep.subr.bf16.mxu0 0
        %5080 = vmatpush1.bf16.msra.mxu0 %v4718
        %5081 = vmatprep.mubr.bf16.mxu0 %v4312
        %5082 = vmatmul.mubr.bf16.gmra.mrb[0].mxu0 %v4311
        %v5083 = vpop.f32.mrb[0].mxu0
        %v5084 = vadd.f32 0.0, %v5083
        %v5085 = vpop.f32.mrb[0].mxu0
        %v5086 = vpop.f32.mrb[0].mxu0
        %v5087 = vadd.f32 0.0, %v5086
        %v5088 = vpop.f32.mrb[0].mxu0
        %5089 = vmatprep.mubr.bf16.mxu0 %v4314
        %5090 = vmatmul.mubr.bf16.gmra.mrb[0].mxu0 %v4313
        %v5091 = vpop.f32.mrb[0].mxu0
        %v5092 = vadd.f32 0.0, %v5091
        %v5093 = vpop.f32.mrb[0].mxu0
        %v5094 = vpop.f32.mrb[0].mxu0
        %v5095 = vpop.f32.mrb[0].mxu0
        %5096 = vdwg.mxu0
        %5097 = vmatprep.subr.bf16.mxu0 0
        %5098 = vmatpush1.bf16.msra.mxu0 %v4723
        %5099 = vmatprep.subr.bf16.mxu0 0
        %5100 = vmatpush1.bf16.msra.mxu0 %v4728
        %5101 = vmatprep.subr.bf16.mxu0 0
        %5102 = vmatpush1.bf16.msra.mxu0 %v4733
        %5103 = vmatprep.subr.bf16.mxu0 0
        %5104 = vmatpush1.bf16.msra.mxu0 %v4738
        %5105 = vmatprep.subr.bf16.mxu0 0
        %5106 = vmatpush1.bf16.msra.mxu0 0
        %5107 = vmatprep.subr.bf16.mxu0 0
        %5108 = vmatpush1.bf16.msra.mxu0 0
        %5109 = vmatprep.subr.bf16.mxu0 0
        %5110 = vmatpush1.bf16.msra.mxu0 0
        %5111 = vmatprep.subr.bf16.mxu0 0
        %5112 = vmatpush1.bf16.msra.mxu0 0
        %5113 = vmatprep.subr.bf16.mxu0 0
        %5114 = vmatpush1.bf16.msra.mxu0 0
        %5115 = vmatprep.subr.bf16.mxu0 0
        %5116 = vmatpush1.bf16.msra.mxu0 0
        %5117 = vmatprep.subr.bf16.mxu0 0
        %5118 = vmatpush1.bf16.msra.mxu0 0
        %5119 = vmatprep.subr.bf16.mxu0 0
        %5120 = vmatpush1.bf16.msra.mxu0 0
        %5121 = vmatprep.subr.bf16.mxu0 0
        %5122 = vmatpush1.bf16.msra.mxu0 0
        %5123 = vmatprep.subr.bf16.mxu0 0
        %5124 = vmatpush1.bf16.msra.mxu0 0
        %5125 = vmatprep.subr.bf16.mxu0 0
        %5126 = vmatpush1.bf16.msra.mxu0 0
        %5127 = vmatprep.subr.bf16.mxu0 0
        %5128 = vmatpush1.bf16.msra.mxu0 0
        %5129 = vmatprep.mubr.bf16.mxu0 0
        %5130 = vmatmul.mubr.bf16.gmra.mrb[0].mxu0 %v4840
        %v5131 = vpop.f32.mrb[0].mxu0
        %v5132 = vadd.f32 %v5084, %v5131
        %v5133 = vpop.f32.mrb[0].mxu0
        %v5134 = vpop.f32.mrb[0].mxu0
        %v5135 = vadd.f32 %v5087, %v5134
        %v5136 = vpop.f32.mrb[0].mxu0
        %5137 = vmatprep.mubr.bf16.mxu0 0
        %5138 = vmatmul.mubr.bf16.gmra.mrb[0].mxu0 %v4843
        %v5139 = vpop.f32.mrb[0].mxu0
        %v5140 = vadd.f32 %v5092, %v5139
        %v5141 = vpop.f32.mrb[0].mxu0
        %v5142 = vpop.f32.mrb[0].mxu0
        %v5143 = vpop.f32.mrb[0].mxu0
        %5144 = vdwg.mxu0
        %v5145 = vadd.f32 %v3963, %v4931
        %v5146 = vadd.f32 %v3965, %v4933
        %v5147 = vadd.f32 %v4065, %v5033
        %v5148 = vadd.f32 %v4067, %v5035
        %v5149 = vadd.f32 %v4164, %v5132
        %v5150 = vadd.f32 %v3967, %v4935
        %v5151 = vadd.f32 %v3969, %v4937
        %v5152 = vadd.f32 %v4069, %v5037
        %v5153 = vadd.f32 %v4071, %v5039
        %v5154 = vadd.f32 %v4167, %v5135
        %v5155 = vadd.f32 %v3973, %v4941
        %v5156 = vadd.f32 %v3975, %v4943
        %v5157 = vadd.f32 %v4075, %v5043
        %v5158 = vadd.f32 %v4077, %v5045
        %v5159 = vadd.f32 %v4172, %v5140
        %s5160 = scalar_lea.vmem [#allocation8], 2400
        %v5161 = vld [vmem:[%s5160] sm:$0xff]
        %v5162 = vld [vmem:[%s5160 + $0x8] sm:$0xff]
        %v5163 = vld [vmem:[%s5160 + $0x10] sm:$0xf]
        %v5164 = vld [vmem:[%s5160 + $0x14] sm:$0xff]
        %v5165 = vld [vmem:[%s5160 + $0x1c] sm:$0xff]
        %v5166 = vld [vmem:[%s5160 + $0x24] sm:$0xf]
        %v5167 = vld [vmem:[%s5160 + $0x28] sm:$0xff]
        %v5168 = vld [vmem:[%s5160 + $0x30] sm:$0xff]
        %v5169 = vld [vmem:[%s5160 + $0x38] sm:$0xf]
        %v5170 = vld [vmem:[%s5160 + $0x3c] sm:$0xff]
        %v5171 = vld [vmem:[%s5160 + $0x44] sm:$0xff]
        %v5172 = vld [vmem:[%s5160 + $0x4c] sm:$0xf]
        %v5173 = vld [vmem:[%s5160 + $0x50] sm:$0xff]
        %v5174 = vld [vmem:[%s5160 + $0x58] sm:$0xff]
        %v5175 = vld [vmem:[%s5160 + $0x60] sm:$0xf]
        %v5176 = vld [vmem:[%s5160 + $0x64] sm:$0xff]
        %v5177 = vld [vmem:[%s5160 + $0x6c] sm:$0xff]
        %v5178 = vld [vmem:[%s5160 + $0x74] sm:$0xf]
        %v5179 = vld [vmem:[%s5160 + $0x78] sm:$0xff]
        %v5180 = vld [vmem:[%s5160 + $0x80] sm:$0xff]
        %v5181 = vld [vmem:[%s5160 + $0x88] sm:$0xf]
        %v5182 = vld [vmem:[%s5160 + $0x8c] sm:$0xff]
        %v5183 = vld [vmem:[%s5160 + $0x94] sm:$0xff]
        %v5184 = vld [vmem:[%s5160 + $0x9c] sm:$0xf]
        %v5185 = vld [vmem:[%s5160 + $0xa0] sm:$0xff]
        %v5186 = vld [vmem:[%s5160 + $0xa8] sm:$0xff]
        %v5187 = vld [vmem:[%s5160 + $0xb0] sm:$0xf]
        %v5188 = vld [vmem:[%s5160 + $0xb4] sm:$0xff]
        %v5189 = vld [vmem:[%s5160 + $0xbc] sm:$0xff]
        %v5190 = vld [vmem:[%s5160 + $0xc4] sm:$0xf]
        %v5191 = vld [vmem:[%s5160 + $0xc8] sm:$0xff]
        %v5192 = vld [vmem:[%s5160 + $0xd0] sm:$0xff]
        %v5193 = vld [vmem:[%s5160 + $0xd8] sm:$0xf]
        %v5194 = vld [vmem:[%s5160 + $0xdc] sm:$0xff]
        %v5195 = vld [vmem:[%s5160 + $0xe4] sm:$0xff]
        %v5196 = vld [vmem:[%s5160 + $0xec] sm:$0xf]
        %v5197 = vld [vmem:[%s5160 + $0xf0] sm:$0xff]
        %v5198 = vld [vmem:[%s5160 + $0xf8] sm:$0xff]
        %v5199 = vld [vmem:[%s5160 + $0x100] sm:$0xf]
        %v5200 = vld [vmem:[%s5160 + $0x104] sm:$0xff]
        %v5201 = vld [vmem:[%s5160 + $0x10c] sm:$0xff]
        %v5202 = vld [vmem:[%s5160 + $0x114] sm:$0xf]
        %v5203 = vld [vmem:[%s5160 + $0x118] sm:$0xff]
        %v5204 = vld [vmem:[%s5160 + $0x120] sm:$0xff]
        %v5205 = vld [vmem:[%s5160 + $0x128] sm:$0xf]
        %v5206 = vld [vmem:[%s5160 + $0x12c] sm:$0xff]
        %v5207 = vld [vmem:[%s5160 + $0x134] sm:$0xff]
        %v5208 = vld [vmem:[%s5160 + $0x13c] sm:$0xf]
        %v5209 = vld [vmem:[%s5160 + $0x140] sm:$0xff]
        %v5210 = vld [vmem:[%s5160 + $0x148] sm:$0xff]
        %v5211 = vld [vmem:[%s5160 + $0x150] sm:$0xf]
        %v5212 = vld [vmem:[%s5160 + $0x154] sm:$0xff]
        %v5213 = vld [vmem:[%s5160 + $0x15c] sm:$0xff]
        %v5214 = vld [vmem:[%s5160 + $0x164] sm:$0xf]
        %v5215 = vld [vmem:[%s5160 + $0x168] sm:$0xff]
        %v5216 = vld [vmem:[%s5160 + $0x170] sm:$0xff]
        %v5217 = vld [vmem:[%s5160 + $0x178] sm:$0xf]
        %v5218 = vld [vmem:[%s5160 + $0x17c] sm:$0xff]
        %v5219 = vld [vmem:[%s5160 + $0x184] sm:$0xff]
        %v5220 = vld [vmem:[%s5160 + $0x18c] sm:$0xf]
        %v5221 = vld [vmem:[%s5160 + $0x190] sm:$0xff]
        %v5222 = vld [vmem:[%s5160 + $0x198] sm:$0xff]
        %v5223 = vld [vmem:[%s5160 + $0x1a0] sm:$0xf]
        %v5224 = vld [vmem:[%s5160 + $0x1a4] sm:$0xff]
        %v5225 = vld [vmem:[%s5160 + $0x1ac] sm:$0xff]
        %v5226 = vld [vmem:[%s5160 + $0x1b4] sm:$0xf]
        %v5227 = vld [vmem:[%s5160 + $0x1b8] sm:$0xff]
        %v5228 = vld [vmem:[%s5160 + $0x1c0] sm:$0xff]
        %v5229 = vld [vmem:[%s5160 + $0x1c8] sm:$0xf]
        %v5230 = vld [vmem:[%s5160 + $0x1cc] sm:$0xff]
        %v5231 = vld [vmem:[%s5160 + $0x1d4] sm:$0xff]
        %v5232 = vld [vmem:[%s5160 + $0x1dc] sm:$0xf]
        %v5233 = vld [vmem:[%s5160 + $0x1e0] sm:$0xff]
        %v5234 = vld [vmem:[%s5160 + $0x1e8] sm:$0xff]
        %v5235 = vld [vmem:[%s5160 + $0x1f0] sm:$0xf]
        %v5236 = vld [vmem:[%s5160 + $0x1f4] sm:$0xff]
        %v5237 = vld [vmem:[%s5160 + $0x1fc] sm:$0xff]
        %v5238 = vld [vmem:[%s5160 + $0x204] sm:$0xf]
        %v5239 = vld [vmem:[%s5160 + $0x208] sm:$0xff]
        %v5240 = vld [vmem:[%s5160 + $0x210] sm:$0xff]
        %v5241 = vld [vmem:[%s5160 + $0x218] sm:$0xf]
        %v5242 = vld [vmem:[%s5160 + $0x21c] sm:$0xff]
        %v5243 = vld [vmem:[%s5160 + $0x224] sm:$0xff]
        %v5244 = vld [vmem:[%s5160 + $0x22c] sm:$0xf]
        %v5245 = vld [vmem:[%s5160 + $0x230] sm:$0xff]
        %v5246 = vld [vmem:[%s5160 + $0x238] sm:$0xff]
        %v5247 = vld [vmem:[%s5160 + $0x240] sm:$0xf]
        %v5248 = vld [vmem:[%s5160 + $0x244] sm:$0xff]
        %v5249 = vld [vmem:[%s5160 + $0x24c] sm:$0xff]
        %v5250 = vld [vmem:[%s5160 + $0x254] sm:$0xf]
        %v5251 = vld [vmem:[%s5160 + $0x258] sm:$0xff]
        %v5252 = vld [vmem:[%s5160 + $0x260] sm:$0xff]
        %v5253 = vld [vmem:[%s5160 + $0x268] sm:$0xf]
        %v5254 = vld [vmem:[%s5160 + $0x26c] sm:$0xff]
        %v5255 = vld [vmem:[%s5160 + $0x274] sm:$0xff]
        %v5256 = vld [vmem:[%s5160 + $0x27c] sm:$0xf]
        %v5257 = vld [vmem:[%s5160 + $0x280] sm:$0xff]
        %v5258 = vld [vmem:[%s5160 + $0x288] sm:$0xff]
        %v5259 = vld [vmem:[%s5160 + $0x290] sm:$0xf]
        %v5260 = vld [vmem:[%s5160 + $0x294] sm:$0xff]
        %v5261 = vld [vmem:[%s5160 + $0x29c] sm:$0xff]
        %v5262 = vld [vmem:[%s5160 + $0x2a4] sm:$0xf]
        %v5263 = vld [vmem:[%s5160 + $0x2a8] sm:$0xff]
        %v5264 = vld [vmem:[%s5160 + $0x2b0] sm:$0xff]
        %v5265 = vld [vmem:[%s5160 + $0x2b8] sm:$0xf]
        %v5266 = vld [vmem:[%s5160 + $0x2bc] sm:$0xff]
        %v5267 = vld [vmem:[%s5160 + $0x2c4] sm:$0xff]
        %v5268 = vld [vmem:[%s5160 + $0x2cc] sm:$0xf]
        %v5269 = vld [vmem:[%s5160 + $0x2d0] sm:$0xff]
        %v5270 = vld [vmem:[%s5160 + $0x2d8] sm:$0xff]
        %v5271 = vld [vmem:[%s5160 + $0x2e0] sm:$0xf]
        %v5272 = vld [vmem:[%s5160 + $0x2e4] sm:$0xff]
        %v5273 = vld [vmem:[%s5160 + $0x2ec] sm:$0xff]
        %v5274 = vld [vmem:[%s5160 + $0x2f4] sm:$0xf]
        %v5275 = vld [vmem:[%s5160 + $0x2f8] sm:$0xff]
        %v5276 = vld [vmem:[%s5160 + $0x300] sm:$0xff]
        %v5277 = vld [vmem:[%s5160 + $0x308] sm:$0xf]
        %v5278 = vld [vmem:[%s5160 + $0x30c] sm:$0xff]
        %v5279 = vld [vmem:[%s5160 + $0x314] sm:$0xff]
        %v5280 = vld [vmem:[%s5160 + $0x31c] sm:$0xf]
        %v5282 = vshrl.u32 %v2251, 16
        %v5284 = vshll.u32 %v2251, 16
        %v5286 = vrot.slane %v5284, 1
        %v5287 = vor.u32 %v5282, %v5286
        %v5289 = vshll.u32 %v2254, 16
        %v5291 = vrot.slane %v5289, 1
        %v5292 = vsel %vm939, %v5287, %v5291
        %v5294 = vshrl.u32 %v2252, 16
        %v5296 = vshll.u32 %v2252, 16
        %v5298 = vrot.slane %v5296, 1
        %v5299 = vor.u32 %v5294, %v5298
        %v5301 = vshll.u32 %v2255, 16
        %v5303 = vrot.slane %v5301, 1
        %v5304 = vsel %vm939, %v5299, %v5303
        %v5305 = vshrl.u32 %v2253, 16
        %v5307 = vshll.u32 %v2253, 16
        %v5309 = vrot.slane %v5307, 1
        %v5310 = vor.u32 %v5305, %v5309
        %v5311 = vshll.u32 %v2256, 16
        %v5313 = vrot.slane %v5311, 1
        %v5314 = vsel %vm939, %v5310, %v5313
        %v5315 = vshrl.u32 %v2254, 16
        %v5317 = vor.u32 %v5315, %v5291
        %v5318 = vshrl.u32 %v2255, 16
        %v5320 = vor.u32 %v5318, %v5303
        %v5321 = vshrl.u32 %v2256, 16
        %v5323 = vor.u32 %v5321, %v5313
        %v5448 = vunpack.c.l.b16 %v5161
        %v5449 = vunpack.c.h.b16 %v5161
        %v5450 = vunpack.c.l.b16 %v5162
        %v5451 = vunpack.c.h.b16 %v5162
        %v5452 = vunpack.c.l.b16 %v5163
        %v5453 = vunpack.c.l.b16 %v5164
        %v5454 = vunpack.c.h.b16 %v5164
        %v5455 = vunpack.c.l.b16 %v5165
        %v5456 = vunpack.c.h.b16 %v5165
        %v5457 = vunpack.c.l.b16 %v5166
        %v5458 = vunpack.c.l.b16 %v5167
        %v5459 = vunpack.c.h.b16 %v5167
        %v5460 = vunpack.c.l.b16 %v5168
        %v5461 = vunpack.c.h.b16 %v5168
        %v5462 = vunpack.c.l.b16 %v5169
        %v5463 = vunpack.c.l.b16 %v5170
        %v5464 = vunpack.c.h.b16 %v5170
        %v5465 = vunpack.c.l.b16 %v5171
        %v5466 = vunpack.c.h.b16 %v5171
        %v5467 = vunpack.c.l.b16 %v5172
        %v5468 = vunpack.c.l.b16 %v5173
        %v5469 = vunpack.c.h.b16 %v5173
        %v5470 = vunpack.c.l.b16 %v5174
        %v5471 = vunpack.c.h.b16 %v5174
        %v5472 = vunpack.c.l.b16 %v5175
        %v5473 = vunpack.c.l.b16 %v5176
        %v5474 = vunpack.c.h.b16 %v5176
        %v5475 = vunpack.c.l.b16 %v5177
        %v5476 = vunpack.c.h.b16 %v5177
        %v5477 = vunpack.c.l.b16 %v5178
        %v5478 = vunpack.c.l.b16 %v5179
        %v5479 = vunpack.c.h.b16 %v5179
        %v5480 = vunpack.c.l.b16 %v5180
        %v5481 = vunpack.c.h.b16 %v5180
        %v5482 = vunpack.c.l.b16 %v5181
        %v5483 = vunpack.c.l.b16 %v5182
        %v5484 = vunpack.c.h.b16 %v5182
        %v5485 = vunpack.c.l.b16 %v5183
        %v5486 = vunpack.c.h.b16 %v5183
        %v5487 = vunpack.c.l.b16 %v5184
        %v5488 = vunpack.c.l.b16 %v5185
        %v5489 = vunpack.c.h.b16 %v5185
        %v5490 = vunpack.c.l.b16 %v5186
        %v5491 = vunpack.c.h.b16 %v5186
        %v5492 = vunpack.c.l.b16 %v5187
        %v5493 = vunpack.c.l.b16 %v5188
        %v5494 = vunpack.c.h.b16 %v5188
        %v5495 = vunpack.c.l.b16 %v5189
        %v5496 = vunpack.c.h.b16 %v5189
        %v5497 = vunpack.c.l.b16 %v5190
        %v5498 = vunpack.c.l.b16 %v5191
        %v5499 = vunpack.c.h.b16 %v5191
        %v5500 = vunpack.c.l.b16 %v5192
        %v5501 = vunpack.c.h.b16 %v5192
        %v5502 = vunpack.c.l.b16 %v5193
        %v5503 = vunpack.c.l.b16 %v5194
        %v5504 = vunpack.c.h.b16 %v5194
        %v5505 = vunpack.c.l.b16 %v5195
        %v5506 = vunpack.c.h.b16 %v5195
        %v5507 = vunpack.c.l.b16 %v5196
        %v5508 = vunpack.c.l.b16 %v5197
        %v5509 = vunpack.c.h.b16 %v5197
        %v5510 = vunpack.c.l.b16 %v5198
        %v5511 = vunpack.c.h.b16 %v5198
        %v5512 = vunpack.c.l.b16 %v5199
        %v5513 = vunpack.c.l.b16 %v5200
        %v5514 = vunpack.c.h.b16 %v5200
        %v5515 = vunpack.c.l.b16 %v5201
        %v5516 = vunpack.c.h.b16 %v5201
        %v5517 = vunpack.c.l.b16 %v5202
        %v5518 = vunpack.c.l.b16 %v5203
        %v5519 = vunpack.c.h.b16 %v5203
        %v5520 = vunpack.c.l.b16 %v5204
        %v5521 = vunpack.c.h.b16 %v5204
        %v5522 = vunpack.c.l.b16 %v5205
        %v5523 = vunpack.c.l.b16 %v5206
        %v5524 = vunpack.c.h.b16 %v5206
        %v5525 = vunpack.c.l.b16 %v5207
        %v5526 = vunpack.c.h.b16 %v5207
        %v5527 = vunpack.c.l.b16 %v5208
        %v5528 = vunpack.c.l.b16 %v5209
        %v5529 = vunpack.c.h.b16 %v5209
        %v5530 = vunpack.c.l.b16 %v5210
        %v5531 = vunpack.c.h.b16 %v5210
        %v5532 = vunpack.c.l.b16 %v5211
        %v5533 = vunpack.c.l.b16 %v5212
        %v5534 = vunpack.c.h.b16 %v5212
        %v5535 = vunpack.c.l.b16 %v5213
        %v5536 = vunpack.c.h.b16 %v5213
        %v5537 = vunpack.c.l.b16 %v5214
        %v5538 = vunpack.c.l.b16 %v5215
        %v5539 = vunpack.c.h.b16 %v5215
        %v5540 = vunpack.c.l.b16 %v5216
        %v5541 = vunpack.c.h.b16 %v5216
        %v5542 = vunpack.c.l.b16 %v5217
        %v5543 = vunpack.c.l.b16 %v5218
        %v5544 = vunpack.c.h.b16 %v5218
        %v5545 = vunpack.c.l.b16 %v5219
        %v5546 = vunpack.c.h.b16 %v5219
        %v5547 = vunpack.c.l.b16 %v5220
        %v5548 = vunpack.c.l.b16 %v5221
        %v5549 = vunpack.c.h.b16 %v5221
        %v5550 = vunpack.c.l.b16 %v5222
        %v5551 = vunpack.c.h.b16 %v5222
        %v5552 = vunpack.c.l.b16 %v5223
        %v5553 = vunpack.c.l.b16 %v5224
        %v5554 = vunpack.c.h.b16 %v5224
        %v5555 = vunpack.c.l.b16 %v5225
        %v5556 = vunpack.c.h.b16 %v5225
        %v5557 = vunpack.c.l.b16 %v5226
        %v5558 = vunpack.c.l.b16 %v5227
        %v5559 = vunpack.c.h.b16 %v5227
        %v5560 = vunpack.c.l.b16 %v5228
        %v5561 = vunpack.c.h.b16 %v5228
        %v5562 = vunpack.c.l.b16 %v5229
        %v5563 = vunpack.c.l.b16 %v5230
        %v5564 = vunpack.c.h.b16 %v5230
        %v5565 = vunpack.c.l.b16 %v5231
        %v5566 = vunpack.c.h.b16 %v5231
        %v5567 = vunpack.c.l.b16 %v5232
        %v5568 = vunpack.c.l.b16 %v5233
        %v5569 = vunpack.c.h.b16 %v5233
        %v5570 = vunpack.c.l.b16 %v5234
        %v5571 = vunpack.c.h.b16 %v5234
        %v5572 = vunpack.c.l.b16 %v5235
        %v5573 = vunpack.c.l.b16 %v5236
        %v5574 = vunpack.c.h.b16 %v5236
        %v5575 = vunpack.c.l.b16 %v5237
        %v5576 = vunpack.c.h.b16 %v5237
        %v5577 = vunpack.c.l.b16 %v5238
        %v5578 = vunpack.c.l.b16 %v5239
        %v5579 = vunpack.c.h.b16 %v5239
        %v5580 = vunpack.c.l.b16 %v5240
        %v5581 = vunpack.c.h.b16 %v5240
        %v5582 = vunpack.c.l.b16 %v5241
        %v5583 = vunpack.c.l.b16 %v5242
        %v5584 = vunpack.c.h.b16 %v5242
        %v5585 = vunpack.c.l.b16 %v5243
        %v5586 = vunpack.c.h.b16 %v5243
        %v5587 = vunpack.c.l.b16 %v5244
        %v5588 = vunpack.c.l.b16 %v5245
        %v5589 = vunpack.c.h.b16 %v5245
        %v5590 = vunpack.c.l.b16 %v5246
        %v5591 = vunpack.c.h.b16 %v5246
        %v5592 = vunpack.c.l.b16 %v5247
        %v5593 = vunpack.c.l.b16 %v5248
        %v5594 = vunpack.c.h.b16 %v5248
        %v5595 = vunpack.c.l.b16 %v5249
        %v5596 = vunpack.c.h.b16 %v5249
        %v5597 = vunpack.c.l.b16 %v5250
        %v5598 = vunpack.c.l.b16 %v5251
        %v5599 = vunpack.c.h.b16 %v5251
        %v5600 = vunpack.c.l.b16 %v5252
        %v5601 = vunpack.c.h.b16 %v5252
        %v5602 = vunpack.c.l.b16 %v5253
        %v5603 = vunpack.c.l.b16 %v5254
        %v5604 = vunpack.c.h.b16 %v5254
        %v5605 = vunpack.c.l.b16 %v5255
        %v5606 = vunpack.c.h.b16 %v5255
        %v5607 = vunpack.c.l.b16 %v5256
        %v5608 = vunpack.c.l.b16 %v5257
        %v5609 = vunpack.c.h.b16 %v5257
        %v5610 = vunpack.c.l.b16 %v5258
        %v5611 = vunpack.c.h.b16 %v5258
        %v5612 = vunpack.c.l.b16 %v5259
        %v5613 = vunpack.c.l.b16 %v5260
        %v5614 = vunpack.c.h.b16 %v5260
        %v5615 = vunpack.c.l.b16 %v5261
        %v5616 = vunpack.c.h.b16 %v5261
        %v5617 = vunpack.c.l.b16 %v5262
        %v5618 = vunpack.c.l.b16 %v5263
        %v5619 = vunpack.c.h.b16 %v5263
        %v5620 = vunpack.c.l.b16 %v5264
        %v5621 = vunpack.c.h.b16 %v5264
        %v5622 = vunpack.c.l.b16 %v5265
        %v5623 = vunpack.c.l.b16 %v5266
        %v5624 = vunpack.c.h.b16 %v5266
        %v5625 = vunpack.c.l.b16 %v5267
        %v5626 = vunpack.c.h.b16 %v5267
        %v5627 = vunpack.c.l.b16 %v5268
        %v5628 = vunpack.c.l.b16 %v5269
        %v5629 = vunpack.c.h.b16 %v5269
        %v5630 = vunpack.c.l.b16 %v5270
        %v5631 = vunpack.c.h.b16 %v5270
        %v5632 = vunpack.c.l.b16 %v5271
        %v5633 = vunpack.c.l.b16 %v5272
        %v5634 = vunpack.c.h.b16 %v5272
        %v5635 = vunpack.c.l.b16 %v5273
        %v5636 = vunpack.c.h.b16 %v5273
        %v5637 = vunpack.c.l.b16 %v5274
        %v5638 = vunpack.c.l.b16 %v5275
        %v5639 = vunpack.c.h.b16 %v5275
        %v5640 = vunpack.c.l.b16 %v5276
        %v5641 = vunpack.c.h.b16 %v5276
        %v5642 = vunpack.c.l.b16 %v5277
        %v5643 = vunpack.c.l.b16 %v5278
        %v5644 = vunpack.c.h.b16 %v5278
        %v5645 = vunpack.c.l.b16 %v5279
        %v5646 = vunpack.c.h.b16 %v5279
        %v5647 = vunpack.c.l.b16 %v5280
        %v5648 = vpack.c.b16 %v5453, %v5448
        %v5649 = vpack.c.b16 %v5454, %v5449
        %v5650 = vpack.c.b16 %v5455, %v5450
        %v5651 = vpack.c.b16 %v5456, %v5451
        %v5652 = vpack.c.b16 %v5457, %v5452
        %v5653 = vpack.c.b16 %v5463, %v5458
        %v5654 = vpack.c.b16 %v5464, %v5459
        %v5655 = vpack.c.b16 %v5465, %v5460
        %v5656 = vpack.c.b16 %v5466, %v5461
        %v5657 = vpack.c.b16 %v5467, %v5462
        %v5658 = vpack.c.b16 %v5473, %v5468
        %v5659 = vpack.c.b16 %v5474, %v5469
        %v5660 = vpack.c.b16 %v5475, %v5470
        %v5661 = vpack.c.b16 %v5476, %v5471
        %v5662 = vpack.c.b16 %v5477, %v5472
        %v5663 = vpack.c.b16 %v5483, %v5478
        %v5664 = vpack.c.b16 %v5484, %v5479
        %v5665 = vpack.c.b16 %v5485, %v5480
        %v5666 = vpack.c.b16 %v5486, %v5481
        %v5667 = vpack.c.b16 %v5487, %v5482
        %v5668 = vpack.c.b16 %v5493, %v5488
        %v5669 = vpack.c.b16 %v5494, %v5489
        %v5670 = vpack.c.b16 %v5495, %v5490
        %v5671 = vpack.c.b16 %v5496, %v5491
        %v5672 = vpack.c.b16 %v5497, %v5492
        %v5673 = vpack.c.b16 %v5503, %v5498
        %v5674 = vpack.c.b16 %v5504, %v5499
        %v5675 = vpack.c.b16 %v5505, %v5500
        %v5676 = vpack.c.b16 %v5506, %v5501
        %v5677 = vpack.c.b16 %v5507, %v5502
        %v5678 = vpack.c.b16 %v5513, %v5508
        %v5679 = vpack.c.b16 %v5514, %v5509
        %v5680 = vpack.c.b16 %v5515, %v5510
        %v5681 = vpack.c.b16 %v5516, %v5511
        %v5682 = vpack.c.b16 %v5517, %v5512
        %v5683 = vpack.c.b16 %v5523, %v5518
        %v5684 = vpack.c.b16 %v5524, %v5519
        %v5685 = vpack.c.b16 %v5525, %v5520
        %v5686 = vpack.c.b16 %v5526, %v5521
        %v5687 = vpack.c.b16 %v5527, %v5522
        %v5688 = vpack.c.b16 %v5533, %v5528
        %v5689 = vpack.c.b16 %v5534, %v5529
        %v5690 = vpack.c.b16 %v5535, %v5530
        %v5691 = vpack.c.b16 %v5536, %v5531
        %v5692 = vpack.c.b16 %v5537, %v5532
        %v5693 = vpack.c.b16 %v5543, %v5538
        %v5694 = vpack.c.b16 %v5544, %v5539
        %v5695 = vpack.c.b16 %v5545, %v5540
        %v5696 = vpack.c.b16 %v5546, %v5541
        %v5697 = vpack.c.b16 %v5547, %v5542
        %v5698 = vpack.c.b16 %v5553, %v5548
        %v5699 = vpack.c.b16 %v5554, %v5549
        %v5700 = vpack.c.b16 %v5555, %v5550
        %v5701 = vpack.c.b16 %v5556, %v5551
        %v5702 = vpack.c.b16 %v5557, %v5552
        %v5703 = vpack.c.b16 %v5563, %v5558
        %v5704 = vpack.c.b16 %v5564, %v5559
        %v5705 = vpack.c.b16 %v5565, %v5560
        %v5706 = vpack.c.b16 %v5566, %v5561
        %v5707 = vpack.c.b16 %v5567, %v5562
        %v5708 = vpack.c.b16 %v5573, %v5568
        %v5709 = vpack.c.b16 %v5574, %v5569
        %v5710 = vpack.c.b16 %v5575, %v5570
        %v5711 = vpack.c.b16 %v5576, %v5571
        %v5712 = vpack.c.b16 %v5577, %v5572
        %v5713 = vpack.c.b16 %v5583, %v5578
        %v5714 = vpack.c.b16 %v5584, %v5579
        %v5715 = vpack.c.b16 %v5585, %v5580
        %v5716 = vpack.c.b16 %v5586, %v5581
        %v5717 = vpack.c.b16 %v5587, %v5582
        %v5718 = vpack.c.b16 %v5593, %v5588
        %v5719 = vpack.c.b16 %v5594, %v5589
        %v5720 = vpack.c.b16 %v5595, %v5590
        %v5721 = vpack.c.b16 %v5596, %v5591
        %v5722 = vpack.c.b16 %v5597, %v5592
        %v5723 = vpack.c.b16 %v5603, %v5598
        %v5724 = vpack.c.b16 %v5604, %v5599
        %v5725 = vpack.c.b16 %v5605, %v5600
        %v5726 = vpack.c.b16 %v5606, %v5601
        %v5727 = vpack.c.b16 %v5607, %v5602
        %v5728 = vpack.c.b16 %v5613, %v5608
        %v5729 = vpack.c.b16 %v5614, %v5609
        %v5730 = vpack.c.b16 %v5615, %v5610
        %v5731 = vpack.c.b16 %v5616, %v5611
        %v5732 = vpack.c.b16 %v5617, %v5612
        %v5733 = vpack.c.b16 %v5623, %v5618
        %v5734 = vpack.c.b16 %v5624, %v5619
        %v5735 = vpack.c.b16 %v5625, %v5620
        %v5736 = vpack.c.b16 %v5626, %v5621
        %v5737 = vpack.c.b16 %v5627, %v5622
        %v5738 = vpack.c.b16 %v5633, %v5628
        %v5739 = vpack.c.b16 %v5634, %v5629
        %v5740 = vpack.c.b16 %v5635, %v5630
        %v5741 = vpack.c.b16 %v5636, %v5631
        %v5742 = vpack.c.b16 %v5637, %v5632
        %v5743 = vpack.c.b16 %v5643, %v5638
        %v5744 = vpack.c.b16 %v5644, %v5639
        %v5745 = vpack.c.b16 %v5645, %v5640
        %v5746 = vpack.c.b16 %v5646, %v5641
        %v5747 = vpack.c.b16 %v5647, %v5642
        %v5849 = vsel %vm2235, %v5314, 0
        %v5852 = vsel %vm2235, %v5323, 0
        %5854 = vmatprep.subr.bf16.mxu0 %v5649
        %5855 = vmatpush1.bf16.msra.mxu0 %v5648
        %5856 = vmatprep.subr.bf16.mxu0 %v5654
        %5857 = vmatpush1.bf16.msra.mxu0 %v5653
        %5858 = vmatprep.subr.bf16.mxu0 %v5659
        %5859 = vmatpush1.bf16.msra.mxu0 %v5658
        %5860 = vmatprep.subr.bf16.mxu0 %v5664
        %5861 = vmatpush1.bf16.msra.mxu0 %v5663
        %5862 = vmatprep.subr.bf16.mxu0 %v5669
        %5863 = vmatpush1.bf16.msra.mxu0 %v5668
        %5864 = vmatprep.subr.bf16.mxu0 %v5674
        %5865 = vmatpush1.bf16.msra.mxu0 %v5673
        %5866 = vmatprep.subr.bf16.mxu0 %v5679
        %5867 = vmatpush1.bf16.msra.mxu0 %v5678
        %5868 = vmatprep.subr.bf16.mxu0 %v5684
        %5869 = vmatpush1.bf16.msra.mxu0 %v5683
        %5870 = vmatprep.subr.bf16.mxu0 %v5689
        %5871 = vmatpush1.bf16.msra.mxu0 %v5688
        %5872 = vmatprep.subr.bf16.mxu0 %v5694
        %5873 = vmatpush1.bf16.msra.mxu0 %v5693
        %5874 = vmatprep.subr.bf16.mxu0 %v5699
        %5875 = vmatpush1.bf16.msra.mxu0 %v5698
        %5876 = vmatprep.subr.bf16.mxu0 %v5704
        %5877 = vmatpush1.bf16.msra.mxu0 %v5703
        %5878 = vmatprep.subr.bf16.mxu0 %v5709
        %5879 = vmatpush1.bf16.msra.mxu0 %v5708
        %5880 = vmatprep.subr.bf16.mxu0 %v5714
        %5881 = vmatpush1.bf16.msra.mxu0 %v5713
        %5882 = vmatprep.subr.bf16.mxu0 %v5719
        %5883 = vmatpush1.bf16.msra.mxu0 %v5718
        %5884 = vmatprep.subr.bf16.mxu0 %v5724
        %5885 = vmatpush1.bf16.msra.mxu0 %v5723
        %5886 = vmatprep.mubr.bf16.mxu0 %v5304
        %5887 = vmatmul.mubr.bf16.gmra.mrb[0].mxu0 %v5292
        %v5888 = vpop.f32.mrb[0].mxu0
        %v5889 = vadd.f32 0.0, %v5888
        %v5890 = vpop.f32.mrb[0].mxu0
        %v5891 = vadd.f32 0.0, %v5890
        %v5892 = vpop.f32.mrb[0].mxu0
        %v5893 = vadd.f32 0.0, %v5892
        %v5894 = vpop.f32.mrb[0].mxu0
        %v5895 = vadd.f32 0.0, %v5894
        %5896 = vmatprep.mubr.bf16.mxu0 %v5320
        %5897 = vmatmul.mubr.bf16.gmra.mrb[0].mxu0 %v5317
        %v5898 = vpop.f32.mrb[0].mxu0
        %v5899 = vadd.f32 0.0, %v5898
        %v5900 = vpop.f32.mrb[0].mxu0
        %v5901 = vadd.f32 0.0, %v5900
        %v5902 = vpop.f32.mrb[0].mxu0
        %v5903 = vpop.f32.mrb[0].mxu0
        %5904 = vdwg.mxu0
        %5905 = vmatprep.subr.bf16.mxu0 %v5729
        %5906 = vmatpush1.bf16.msra.mxu0 %v5728
        %5907 = vmatprep.subr.bf16.mxu0 %v5734
        %5908 = vmatpush1.bf16.msra.mxu0 %v5733
        %5909 = vmatprep.subr.bf16.mxu0 %v5739
        %5910 = vmatpush1.bf16.msra.mxu0 %v5738
        %5911 = vmatprep.subr.bf16.mxu0 %v5744
        %5912 = vmatpush1.bf16.msra.mxu0 %v5743
        %5913 = vmatprep.subr.bf16.mxu0 0
        %5914 = vmatpush1.bf16.msra.mxu0 0
        %5915 = vmatprep.subr.bf16.mxu0 0
        %5916 = vmatpush1.bf16.msra.mxu0 0
        %5917 = vmatprep.subr.bf16.mxu0 0
        %5918 = vmatpush1.bf16.msra.mxu0 0
        %5919 = vmatprep.subr.bf16.mxu0 0
        %5920 = vmatpush1.bf16.msra.mxu0 0
        %5921 = vmatprep.subr.bf16.mxu0 0
        %5922 = vmatpush1.bf16.msra.mxu0 0
        %5923 = vmatprep.subr.bf16.mxu0 0
        %5924 = vmatpush1.bf16.msra.mxu0 0
        %5925 = vmatprep.subr.bf16.mxu0 0
        %5926 = vmatpush1.bf16.msra.mxu0 0
        %5927 = vmatprep.subr.bf16.mxu0 0
        %5928 = vmatpush1.bf16.msra.mxu0 0
        %5929 = vmatprep.subr.bf16.mxu0 0
        %5930 = vmatpush1.bf16.msra.mxu0 0
        %5931 = vmatprep.subr.bf16.mxu0 0
        %5932 = vmatpush1.bf16.msra.mxu0 0
        %5933 = vmatprep.subr.bf16.mxu0 0
        %5934 = vmatpush1.bf16.msra.mxu0 0
        %5935 = vmatprep.subr.bf16.mxu0 0
        %5936 = vmatpush1.bf16.msra.mxu0 0
        %5937 = vmatprep.mubr.bf16.mxu0 0
        %5938 = vmatmul.mubr.bf16.gmra.mrb[0].mxu0 %v5849
        %v5939 = vpop.f32.mrb[0].mxu0
        %v5940 = vadd.f32 %v5889, %v5939
        %v5941 = vpop.f32.mrb[0].mxu0
        %v5942 = vadd.f32 %v5891, %v5941
        %v5943 = vpop.f32.mrb[0].mxu0
        %v5944 = vadd.f32 %v5893, %v5943
        %v5945 = vpop.f32.mrb[0].mxu0
        %v5946 = vadd.f32 %v5895, %v5945
        %5947 = vmatprep.mubr.bf16.mxu0 0
        %5948 = vmatmul.mubr.bf16.gmra.mrb[0].mxu0 %v5852
        %v5949 = vpop.f32.mrb[0].mxu0
        %v5950 = vadd.f32 %v5899, %v5949
        %v5951 = vpop.f32.mrb[0].mxu0
        %v5952 = vadd.f32 %v5901, %v5951
        %v5953 = vpop.f32.mrb[0].mxu0
        %v5954 = vpop.f32.mrb[0].mxu0
        %5955 = vdwg.mxu0
        %5956 = vmatprep.subr.bf16.mxu0 %v5651
        %5957 = vmatpush1.bf16.msra.mxu0 %v5650
        %5958 = vmatprep.subr.bf16.mxu0 %v5656
        %5959 = vmatpush1.bf16.msra.mxu0 %v5655
        %5960 = vmatprep.subr.bf16.mxu0 %v5661
        %5961 = vmatpush1.bf16.msra.mxu0 %v5660
        %5962 = vmatprep.subr.bf16.mxu0 %v5666
        %5963 = vmatpush1.bf16.msra.mxu0 %v5665
        %5964 = vmatprep.subr.bf16.mxu0 %v5671
        %5965 = vmatpush1.bf16.msra.mxu0 %v5670
        %5966 = vmatprep.subr.bf16.mxu0 %v5676
        %5967 = vmatpush1.bf16.msra.mxu0 %v5675
        %5968 = vmatprep.subr.bf16.mxu0 %v5681
        %5969 = vmatpush1.bf16.msra.mxu0 %v5680
        %5970 = vmatprep.subr.bf16.mxu0 %v5686
        %5971 = vmatpush1.bf16.msra.mxu0 %v5685
        %5972 = vmatprep.subr.bf16.mxu0 %v5691
        %5973 = vmatpush1.bf16.msra.mxu0 %v5690
        %5974 = vmatprep.subr.bf16.mxu0 %v5696
        %5975 = vmatpush1.bf16.msra.mxu0 %v5695
        %5976 = vmatprep.subr.bf16.mxu0 %v5701
        %5977 = vmatpush1.bf16.msra.mxu0 %v5700
        %5978 = vmatprep.subr.bf16.mxu0 %v5706
        %5979 = vmatpush1.bf16.msra.mxu0 %v5705
        %5980 = vmatprep.subr.bf16.mxu0 %v5711
        %5981 = vmatpush1.bf16.msra.mxu0 %v5710
        %5982 = vmatprep.subr.bf16.mxu0 %v5716
        %5983 = vmatpush1.bf16.msra.mxu0 %v5715
        %5984 = vmatprep.subr.bf16.mxu0 %v5721
        %5985 = vmatpush1.bf16.msra.mxu0 %v5720
        %5986 = vmatprep.subr.bf16.mxu0 %v5726
        %5987 = vmatpush1.bf16.msra.mxu0 %v5725
        %5988 = vmatprep.mubr.bf16.mxu0 %v5304
        %5989 = vmatmul.mubr.bf16.gmra.mrb[0].mxu0 %v5292
        %v5990 = vpop.f32.mrb[0].mxu0
        %v5991 = vadd.f32 0.0, %v5990
        %v5992 = vpop.f32.mrb[0].mxu0
        %v5993 = vadd.f32 0.0, %v5992
        %v5994 = vpop.f32.mrb[0].mxu0
        %v5995 = vadd.f32 0.0, %v5994
        %v5996 = vpop.f32.mrb[0].mxu0
        %v5997 = vadd.f32 0.0, %v5996
        %5998 = vmatprep.mubr.bf16.mxu0 %v5320
        %5999 = vmatmul.mubr.bf16.gmra.mrb[0].mxu0 %v5317
        %v6000 = vpop.f32.mrb[0].mxu0
        %v6001 = vadd.f32 0.0, %v6000
        %v6002 = vpop.f32.mrb[0].mxu0
        %v6003 = vadd.f32 0.0, %v6002
        %v6004 = vpop.f32.mrb[0].mxu0
        %v6005 = vpop.f32.mrb[0].mxu0
        %6006 = vdwg.mxu0
        %6007 = vmatprep.subr.bf16.mxu0 %v5731
        %6008 = vmatpush1.bf16.msra.mxu0 %v5730
        %6009 = vmatprep.subr.bf16.mxu0 %v5736
        %6010 = vmatpush1.bf16.msra.mxu0 %v5735
        %6011 = vmatprep.subr.bf16.mxu0 %v5741
        %6012 = vmatpush1.bf16.msra.mxu0 %v5740
        %6013 = vmatprep.subr.bf16.mxu0 %v5746
        %6014 = vmatpush1.bf16.msra.mxu0 %v5745
        %6015 = vmatprep.subr.bf16.mxu0 0
        %6016 = vmatpush1.bf16.msra.mxu0 0
        %6017 = vmatprep.subr.bf16.mxu0 0
        %6018 = vmatpush1.bf16.msra.mxu0 0
        %6019 = vmatprep.subr.bf16.mxu0 0
        %6020 = vmatpush1.bf16.msra.mxu0 0
        %6021 = vmatprep.subr.bf16.mxu0 0
        %6022 = vmatpush1.bf16.msra.mxu0 0
        %6023 = vmatprep.subr.bf16.mxu0 0
        %6024 = vmatpush1.bf16.msra.mxu0 0
        %6025 = vmatprep.subr.bf16.mxu0 0
        %6026 = vmatpush1.bf16.msra.mxu0 0
        %6027 = vmatprep.subr.bf16.mxu0 0
        %6028 = vmatpush1.bf16.msra.mxu0 0
        %6029 = vmatprep.subr.bf16.mxu0 0
        %6030 = vmatpush1.bf16.msra.mxu0 0
        %6031 = vmatprep.subr.bf16.mxu0 0
        %6032 = vmatpush1.bf16.msra.mxu0 0
        %6033 = vmatprep.subr.bf16.mxu0 0
        %6034 = vmatpush1.bf16.msra.mxu0 0
        %6035 = vmatprep.subr.bf16.mxu0 0
        %6036 = vmatpush1.bf16.msra.mxu0 0
        %6037 = vmatprep.subr.bf16.mxu0 0
        %6038 = vmatpush1.bf16.msra.mxu0 0
        %6039 = vmatprep.mubr.bf16.mxu0 0
        %6040 = vmatmul.mubr.bf16.gmra.mrb[0].mxu0 %v5849
        %v6041 = vpop.f32.mrb[0].mxu0
        %v6042 = vadd.f32 %v5991, %v6041
        %v6043 = vpop.f32.mrb[0].mxu0
        %v6044 = vadd.f32 %v5993, %v6043
        %v6045 = vpop.f32.mrb[0].mxu0
        %v6046 = vadd.f32 %v5995, %v6045
        %v6047 = vpop.f32.mrb[0].mxu0
        %v6048 = vadd.f32 %v5997, %v6047
        %6049 = vmatprep.mubr.bf16.mxu0 0
        %6050 = vmatmul.mubr.bf16.gmra.mrb[0].mxu0 %v5852
        %v6051 = vpop.f32.mrb[0].mxu0
        %v6052 = vadd.f32 %v6001, %v6051
        %v6053 = vpop.f32.mrb[0].mxu0
        %v6054 = vadd.f32 %v6003, %v6053
        %v6055 = vpop.f32.mrb[0].mxu0
        %v6056 = vpop.f32.mrb[0].mxu0
        %6057 = vdwg.mxu0
        %6058 = vmatprep.subr.bf16.mxu0 0
        %6059 = vmatpush1.bf16.msra.mxu0 %v5652
        %6060 = vmatprep.subr.bf16.mxu0 0
        %6061 = vmatpush1.bf16.msra.mxu0 %v5657
        %6062 = vmatprep.subr.bf16.mxu0 0
        %6063 = vmatpush1.bf16.msra.mxu0 %v5662
        %6064 = vmatprep.subr.bf16.mxu0 0
        %6065 = vmatpush1.bf16.msra.mxu0 %v5667
        %6066 = vmatprep.subr.bf16.mxu0 0
        %6067 = vmatpush1.bf16.msra.mxu0 %v5672
        %6068 = vmatprep.subr.bf16.mxu0 0
        %6069 = vmatpush1.bf16.msra.mxu0 %v5677
        %6070 = vmatprep.subr.bf16.mxu0 0
        %6071 = vmatpush1.bf16.msra.mxu0 %v5682
        %6072 = vmatprep.subr.bf16.mxu0 0
        %6073 = vmatpush1.bf16.msra.mxu0 %v5687
        %6074 = vmatprep.subr.bf16.mxu0 0
        %6075 = vmatpush1.bf16.msra.mxu0 %v5692
        %6076 = vmatprep.subr.bf16.mxu0 0
        %6077 = vmatpush1.bf16.msra.mxu0 %v5697
        %6078 = vmatprep.subr.bf16.mxu0 0
        %6079 = vmatpush1.bf16.msra.mxu0 %v5702
        %6080 = vmatprep.subr.bf16.mxu0 0
        %6081 = vmatpush1.bf16.msra.mxu0 %v5707
        %6082 = vmatprep.subr.bf16.mxu0 0
        %6083 = vmatpush1.bf16.msra.mxu0 %v5712
        %6084 = vmatprep.subr.bf16.mxu0 0
        %6085 = vmatpush1.bf16.msra.mxu0 %v5717
        %6086 = vmatprep.subr.bf16.mxu0 0
        %6087 = vmatpush1.bf16.msra.mxu0 %v5722
        %6088 = vmatprep.subr.bf16.mxu0 0
        %6089 = vmatpush1.bf16.msra.mxu0 %v5727
        %6090 = vmatprep.mubr.bf16.mxu0 %v5304
        %6091 = vmatmul.mubr.bf16.gmra.mrb[0].mxu0 %v5292
        %v6092 = vpop.f32.mrb[0].mxu0
        %v6093 = vadd.f32 0.0, %v6092
        %v6094 = vpop.f32.mrb[0].mxu0
        %v6095 = vpop.f32.mrb[0].mxu0
        %v6096 = vadd.f32 0.0, %v6095
        %v6097 = vpop.f32.mrb[0].mxu0
        %6098 = vmatprep.mubr.bf16.mxu0 %v5320
        %6099 = vmatmul.mubr.bf16.gmra.mrb[0].mxu0 %v5317
        %v6100 = vpop.f32.mrb[0].mxu0
        %v6101 = vadd.f32 0.0, %v6100
        %v6102 = vpop.f32.mrb[0].mxu0
        %v6103 = vpop.f32.mrb[0].mxu0
        %v6104 = vpop.f32.mrb[0].mxu0
        %6105 = vdwg.mxu0
        %6106 = vmatprep.subr.bf16.mxu0 0
        %6107 = vmatpush1.bf16.msra.mxu0 %v5732
        %6108 = vmatprep.subr.bf16.mxu0 0
        %6109 = vmatpush1.bf16.msra.mxu0 %v5737
        %6110 = vmatprep.subr.bf16.mxu0 0
        %6111 = vmatpush1.bf16.msra.mxu0 %v5742
        %6112 = vmatprep.subr.bf16.mxu0 0
        %6113 = vmatpush1.bf16.msra.mxu0 %v5747
        %6114 = vmatprep.subr.bf16.mxu0 0
        %6115 = vmatpush1.bf16.msra.mxu0 0
        %6116 = vmatprep.subr.bf16.mxu0 0
        %6117 = vmatpush1.bf16.msra.mxu0 0
        %6118 = vmatprep.subr.bf16.mxu0 0
        %6119 = vmatpush1.bf16.msra.mxu0 0
        %6120 = vmatprep.subr.bf16.mxu0 0
        %6121 = vmatpush1.bf16.msra.mxu0 0
        %6122 = vmatprep.subr.bf16.mxu0 0
        %6123 = vmatpush1.bf16.msra.mxu0 0
        %6124 = vmatprep.subr.bf16.mxu0 0
        %6125 = vmatpush1.bf16.msra.mxu0 0
        %6126 = vmatprep.subr.bf16.mxu0 0
        %6127 = vmatpush1.bf16.msra.mxu0 0
        %6128 = vmatprep.subr.bf16.mxu0 0
        %6129 = vmatpush1.bf16.msra.mxu0 0
        %6130 = vmatprep.subr.bf16.mxu0 0
        %6131 = vmatpush1.bf16.msra.mxu0 0
        %6132 = vmatprep.subr.bf16.mxu0 0
        %6133 = vmatpush1.bf16.msra.mxu0 0
        %6134 = vmatprep.subr.bf16.mxu0 0
        %6135 = vmatpush1.bf16.msra.mxu0 0
        %6136 = vmatprep.subr.bf16.mxu0 0
        %6137 = vmatpush1.bf16.msra.mxu0 0
        %6138 = vmatprep.mubr.bf16.mxu0 0
        %6139 = vmatmul.mubr.bf16.gmra.mrb[0].mxu0 %v5849
        %v6140 = vpop.f32.mrb[0].mxu0
        %v6141 = vadd.f32 %v6093, %v6140
        %v6142 = vpop.f32.mrb[0].mxu0
        %v6143 = vpop.f32.mrb[0].mxu0
        %v6144 = vadd.f32 %v6096, %v6143
        %v6145 = vpop.f32.mrb[0].mxu0
        %6146 = vmatprep.mubr.bf16.mxu0 0
        %6147 = vmatmul.mubr.bf16.gmra.mrb[0].mxu0 %v5852
        %v6148 = vpop.f32.mrb[0].mxu0
        %v6149 = vadd.f32 %v6101, %v6148
        %v6150 = vpop.f32.mrb[0].mxu0
        %v6151 = vpop.f32.mrb[0].mxu0
        %v6152 = vpop.f32.mrb[0].mxu0
        %6153 = vdwg.mxu0
        %v6154 = vadd.f32 %v5145, %v5940
        %v6155 = vadd.f32 %v5146, %v5942
        %v6156 = vadd.f32 %v5147, %v6042
        %v6157 = vadd.f32 %v5148, %v6044
        %v6158 = vadd.f32 %v5149, %v6141
        %v6159 = vadd.f32 %v5150, %v5944
        %v6160 = vadd.f32 %v5151, %v5946
        %v6161 = vadd.f32 %v5152, %v6046
        %v6162 = vadd.f32 %v5153, %v6048
        %v6163 = vadd.f32 %v5154, %v6144
        %v6164 = vadd.f32 %v5155, %v5950
        %v6165 = vadd.f32 %v5156, %v5952
        %v6166 = vadd.f32 %v5157, %v6052
        %v6167 = vadd.f32 %v5158, %v6054
        %v6168 = vadd.f32 %v5159, %v6149
        %s6169 = scalar_lea.vmem [#allocation8], 3200
        %v6170 = vld [vmem:[%s6169] sm:$0xff]
        %v6171 = vld [vmem:[%s6169 + $0x8] sm:$0xff]
        %v6172 = vld [vmem:[%s6169 + $0x10] sm:$0xf]
        %v6173 = vld [vmem:[%s6169 + $0x14] sm:$0xff]
        %v6174 = vld [vmem:[%s6169 + $0x1c] sm:$0xff]
        %v6175 = vld [vmem:[%s6169 + $0x24] sm:$0xf]
        %v6176 = vld [vmem:[%s6169 + $0x28] sm:$0xff]
        %v6177 = vld [vmem:[%s6169 + $0x30] sm:$0xff]
        %v6178 = vld [vmem:[%s6169 + $0x38] sm:$0xf]
        %v6179 = vld [vmem:[%s6169 + $0x3c] sm:$0xff]
        %v6180 = vld [vmem:[%s6169 + $0x44] sm:$0xff]
        %v6181 = vld [vmem:[%s6169 + $0x4c] sm:$0xf]
        %v6182 = vld [vmem:[%s6169 + $0x50] sm:$0xff]
        %v6183 = vld [vmem:[%s6169 + $0x58] sm:$0xff]
        %v6184 = vld [vmem:[%s6169 + $0x60] sm:$0xf]
        %v6185 = vld [vmem:[%s6169 + $0x64] sm:$0xff]
        %v6186 = vld [vmem:[%s6169 + $0x6c] sm:$0xff]
        %v6187 = vld [vmem:[%s6169 + $0x74] sm:$0xf]
        %v6188 = vld [vmem:[%s6169 + $0x78] sm:$0xff]
        %v6189 = vld [vmem:[%s6169 + $0x80] sm:$0xff]
        %v6190 = vld [vmem:[%s6169 + $0x88] sm:$0xf]
        %v6191 = vld [vmem:[%s6169 + $0x8c] sm:$0xff]
        %v6192 = vld [vmem:[%s6169 + $0x94] sm:$0xff]
        %v6193 = vld [vmem:[%s6169 + $0x9c] sm:$0xf]
        %v6194 = vld [vmem:[%s6169 + $0xa0] sm:$0xff]
        %v6195 = vld [vmem:[%s6169 + $0xa8] sm:$0xff]
        %v6196 = vld [vmem:[%s6169 + $0xb0] sm:$0xf]
        %v6197 = vld [vmem:[%s6169 + $0xb4] sm:$0xff]
        %v6198 = vld [vmem:[%s6169 + $0xbc] sm:$0xff]
        %v6199 = vld [vmem:[%s6169 + $0xc4] sm:$0xf]
        %v6200 = vld [vmem:[%s6169 + $0xc8] sm:$0xff]
        %v6201 = vld [vmem:[%s6169 + $0xd0] sm:$0xff]
        %v6202 = vld [vmem:[%s6169 + $0xd8] sm:$0xf]
        %v6203 = vld [vmem:[%s6169 + $0xdc] sm:$0xff]
        %v6204 = vld [vmem:[%s6169 + $0xe4] sm:$0xff]
        %v6205 = vld [vmem:[%s6169 + $0xec] sm:$0xf]
        %v6206 = vld [vmem:[%s6169 + $0xf0] sm:$0xff]
        %v6207 = vld [vmem:[%s6169 + $0xf8] sm:$0xff]
        %v6208 = vld [vmem:[%s6169 + $0x100] sm:$0xf]
        %v6209 = vld [vmem:[%s6169 + $0x104] sm:$0xff]
        %v6210 = vld [vmem:[%s6169 + $0x10c] sm:$0xff]
        %v6211 = vld [vmem:[%s6169 + $0x114] sm:$0xf]
        %v6212 = vld [vmem:[%s6169 + $0x118] sm:$0xff]
        %v6213 = vld [vmem:[%s6169 + $0x120] sm:$0xff]
        %v6214 = vld [vmem:[%s6169 + $0x128] sm:$0xf]
        %v6215 = vld [vmem:[%s6169 + $0x12c] sm:$0xff]
        %v6216 = vld [vmem:[%s6169 + $0x134] sm:$0xff]
        %v6217 = vld [vmem:[%s6169 + $0x13c] sm:$0xf]
        %v6218 = vld [vmem:[%s6169 + $0x140] sm:$0xff]
        %v6219 = vld [vmem:[%s6169 + $0x148] sm:$0xff]
        %v6220 = vld [vmem:[%s6169 + $0x150] sm:$0xf]
        %v6221 = vld [vmem:[%s6169 + $0x154] sm:$0xff]
        %v6222 = vld [vmem:[%s6169 + $0x15c] sm:$0xff]
        %v6223 = vld [vmem:[%s6169 + $0x164] sm:$0xf]
        %v6224 = vld [vmem:[%s6169 + $0x168] sm:$0xff]
        %v6225 = vld [vmem:[%s6169 + $0x170] sm:$0xff]
        %v6226 = vld [vmem:[%s6169 + $0x178] sm:$0xf]
        %v6227 = vld [vmem:[%s6169 + $0x17c] sm:$0xff]
        %v6228 = vld [vmem:[%s6169 + $0x184] sm:$0xff]
        %v6229 = vld [vmem:[%s6169 + $0x18c] sm:$0xf]
        %v6230 = vld [vmem:[%s6169 + $0x190] sm:$0xff]
        %v6231 = vld [vmem:[%s6169 + $0x198] sm:$0xff]
        %v6232 = vld [vmem:[%s6169 + $0x1a0] sm:$0xf]
        %v6233 = vld [vmem:[%s6169 + $0x1a4] sm:$0xff]
        %v6234 = vld [vmem:[%s6169 + $0x1ac] sm:$0xff]
        %v6235 = vld [vmem:[%s6169 + $0x1b4] sm:$0xf]
        %v6236 = vld [vmem:[%s6169 + $0x1b8] sm:$0xff]
        %v6237 = vld [vmem:[%s6169 + $0x1c0] sm:$0xff]
        %v6238 = vld [vmem:[%s6169 + $0x1c8] sm:$0xf]
        %v6239 = vld [vmem:[%s6169 + $0x1cc] sm:$0xff]
        %v6240 = vld [vmem:[%s6169 + $0x1d4] sm:$0xff]
        %v6241 = vld [vmem:[%s6169 + $0x1dc] sm:$0xf]
        %v6242 = vld [vmem:[%s6169 + $0x1e0] sm:$0xff]
        %v6243 = vld [vmem:[%s6169 + $0x1e8] sm:$0xff]
        %v6244 = vld [vmem:[%s6169 + $0x1f0] sm:$0xf]
        %v6245 = vld [vmem:[%s6169 + $0x1f4] sm:$0xff]
        %v6246 = vld [vmem:[%s6169 + $0x1fc] sm:$0xff]
        %v6247 = vld [vmem:[%s6169 + $0x204] sm:$0xf]
        %v6248 = vld [vmem:[%s6169 + $0x208] sm:$0xff]
        %v6249 = vld [vmem:[%s6169 + $0x210] sm:$0xff]
        %v6250 = vld [vmem:[%s6169 + $0x218] sm:$0xf]
        %v6251 = vld [vmem:[%s6169 + $0x21c] sm:$0xff]
        %v6252 = vld [vmem:[%s6169 + $0x224] sm:$0xff]
        %v6253 = vld [vmem:[%s6169 + $0x22c] sm:$0xf]
        %v6254 = vld [vmem:[%s6169 + $0x230] sm:$0xff]
        %v6255 = vld [vmem:[%s6169 + $0x238] sm:$0xff]
        %v6256 = vld [vmem:[%s6169 + $0x240] sm:$0xf]
        %v6257 = vld [vmem:[%s6169 + $0x244] sm:$0xff]
        %v6258 = vld [vmem:[%s6169 + $0x24c] sm:$0xff]
        %v6259 = vld [vmem:[%s6169 + $0x254] sm:$0xf]
        %v6260 = vld [vmem:[%s6169 + $0x258] sm:$0xff]
        %v6261 = vld [vmem:[%s6169 + $0x260] sm:$0xff]
        %v6262 = vld [vmem:[%s6169 + $0x268] sm:$0xf]
        %v6263 = vld [vmem:[%s6169 + $0x26c] sm:$0xff]
        %v6264 = vld [vmem:[%s6169 + $0x274] sm:$0xff]
        %v6265 = vld [vmem:[%s6169 + $0x27c] sm:$0xf]
        %v6266 = vld [vmem:[%s6169 + $0x280] sm:$0xff]
        %v6267 = vld [vmem:[%s6169 + $0x288] sm:$0xff]
        %v6268 = vld [vmem:[%s6169 + $0x290] sm:$0xf]
        %v6269 = vld [vmem:[%s6169 + $0x294] sm:$0xff]
        %v6270 = vld [vmem:[%s6169 + $0x29c] sm:$0xff]
        %v6271 = vld [vmem:[%s6169 + $0x2a4] sm:$0xf]
        %v6272 = vld [vmem:[%s6169 + $0x2a8] sm:$0xff]
        %v6273 = vld [vmem:[%s6169 + $0x2b0] sm:$0xff]
        %v6274 = vld [vmem:[%s6169 + $0x2b8] sm:$0xf]
        %v6275 = vld [vmem:[%s6169 + $0x2bc] sm:$0xff]
        %v6276 = vld [vmem:[%s6169 + $0x2c4] sm:$0xff]
        %v6277 = vld [vmem:[%s6169 + $0x2cc] sm:$0xf]
        %v6278 = vld [vmem:[%s6169 + $0x2d0] sm:$0xff]
        %v6279 = vld [vmem:[%s6169 + $0x2d8] sm:$0xff]
        %v6280 = vld [vmem:[%s6169 + $0x2e0] sm:$0xf]
        %v6281 = vld [vmem:[%s6169 + $0x2e4] sm:$0xff]
        %v6282 = vld [vmem:[%s6169 + $0x2ec] sm:$0xff]
        %v6283 = vld [vmem:[%s6169 + $0x2f4] sm:$0xf]
        %v6284 = vld [vmem:[%s6169 + $0x2f8] sm:$0xff]
        %v6285 = vld [vmem:[%s6169 + $0x300] sm:$0xff]
        %v6286 = vld [vmem:[%s6169 + $0x308] sm:$0xf]
        %v6287 = vld [vmem:[%s6169 + $0x30c] sm:$0xff]
        %v6288 = vld [vmem:[%s6169 + $0x314] sm:$0xff]
        %v6289 = vld [vmem:[%s6169 + $0x31c] sm:$0xf]
        %6290 = vrot.lane.b32.xlu0 %v5292, 112
        %v6291 = vpop.permute.xlu0 %6290
        %6292 = vrot.lane.b32.xlu0 %v5304, 112
        %v6293 = vpop.permute.xlu0 %6292
        %6294 = vrot.lane.b32.xlu0 %v5314, 112
        %v6295 = vpop.permute.xlu0 %6294
        %6296 = vrot.lane.b32.xlu0 %v5317, 112
        %v6297 = vpop.permute.xlu0 %6296
        %6298 = vrot.lane.b32.xlu0 %v5320, 112
        %v6299 = vpop.permute.xlu0 %6298
        %6300 = vrot.lane.b32.xlu0 %v5323, 112
        %v6301 = vpop.permute.xlu0 %6300
        %v6302 = vsel %vm2516, %v6291, %v6293
        %v6303 = vsel %vm2516, %v6293, %v6295
        %v6304 = vsel %vm2516, %v6297, %v6299
        %v6305 = vsel %vm2516, %v6299, %v6301
        %v6430 = vunpack.c.l.b16 %v6170
        %v6431 = vunpack.c.h.b16 %v6170
        %v6432 = vunpack.c.l.b16 %v6171
        %v6433 = vunpack.c.h.b16 %v6171
        %v6434 = vunpack.c.l.b16 %v6172
        %v6435 = vunpack.c.l.b16 %v6173
        %v6436 = vunpack.c.h.b16 %v6173
        %v6437 = vunpack.c.l.b16 %v6174
        %v6438 = vunpack.c.h.b16 %v6174
        %v6439 = vunpack.c.l.b16 %v6175
        %v6440 = vunpack.c.l.b16 %v6176
        %v6441 = vunpack.c.h.b16 %v6176
        %v6442 = vunpack.c.l.b16 %v6177
        %v6443 = vunpack.c.h.b16 %v6177
        %v6444 = vunpack.c.l.b16 %v6178
        %v6445 = vunpack.c.l.b16 %v6179
        %v6446 = vunpack.c.h.b16 %v6179
        %v6447 = vunpack.c.l.b16 %v6180
        %v6448 = vunpack.c.h.b16 %v6180
        %v6449 = vunpack.c.l.b16 %v6181
        %v6450 = vunpack.c.l.b16 %v6182
        %v6451 = vunpack.c.h.b16 %v6182
        %v6452 = vunpack.c.l.b16 %v6183
        %v6453 = vunpack.c.h.b16 %v6183
        %v6454 = vunpack.c.l.b16 %v6184
        %v6455 = vunpack.c.l.b16 %v6185
        %v6456 = vunpack.c.h.b16 %v6185
        %v6457 = vunpack.c.l.b16 %v6186
        %v6458 = vunpack.c.h.b16 %v6186
        %v6459 = vunpack.c.l.b16 %v6187
        %v6460 = vunpack.c.l.b16 %v6188
        %v6461 = vunpack.c.h.b16 %v6188
        %v6462 = vunpack.c.l.b16 %v6189
        %v6463 = vunpack.c.h.b16 %v6189
        %v6464 = vunpack.c.l.b16 %v6190
        %v6465 = vunpack.c.l.b16 %v6191
        %v6466 = vunpack.c.h.b16 %v6191
        %v6467 = vunpack.c.l.b16 %v6192
        %v6468 = vunpack.c.h.b16 %v6192
        %v6469 = vunpack.c.l.b16 %v6193
        %v6470 = vunpack.c.l.b16 %v6194
        %v6471 = vunpack.c.h.b16 %v6194
        %v6472 = vunpack.c.l.b16 %v6195
        %v6473 = vunpack.c.h.b16 %v6195
        %v6474 = vunpack.c.l.b16 %v6196
        %v6475 = vunpack.c.l.b16 %v6197
        %v6476 = vunpack.c.h.b16 %v6197
        %v6477 = vunpack.c.l.b16 %v6198
        %v6478 = vunpack.c.h.b16 %v6198
        %v6479 = vunpack.c.l.b16 %v6199
        %v6480 = vunpack.c.l.b16 %v6200
        %v6481 = vunpack.c.h.b16 %v6200
        %v6482 = vunpack.c.l.b16 %v6201
        %v6483 = vunpack.c.h.b16 %v6201
        %v6484 = vunpack.c.l.b16 %v6202
        %v6485 = vunpack.c.l.b16 %v6203
        %v6486 = vunpack.c.h.b16 %v6203
        %v6487 = vunpack.c.l.b16 %v6204
        %v6488 = vunpack.c.h.b16 %v6204
        %v6489 = vunpack.c.l.b16 %v6205
        %v6490 = vunpack.c.l.b16 %v6206
        %v6491 = vunpack.c.h.b16 %v6206
        %v6492 = vunpack.c.l.b16 %v6207
        %v6493 = vunpack.c.h.b16 %v6207
        %v6494 = vunpack.c.l.b16 %v6208
        %v6495 = vunpack.c.l.b16 %v6209
        %v6496 = vunpack.c.h.b16 %v6209
        %v6497 = vunpack.c.l.b16 %v6210
        %v6498 = vunpack.c.h.b16 %v6210
        %v6499 = vunpack.c.l.b16 %v6211
        %v6500 = vunpack.c.l.b16 %v6212
        %v6501 = vunpack.c.h.b16 %v6212
        %v6502 = vunpack.c.l.b16 %v6213
        %v6503 = vunpack.c.h.b16 %v6213
        %v6504 = vunpack.c.l.b16 %v6214
        %v6505 = vunpack.c.l.b16 %v6215
        %v6506 = vunpack.c.h.b16 %v6215
        %v6507 = vunpack.c.l.b16 %v6216
        %v6508 = vunpack.c.h.b16 %v6216
        %v6509 = vunpack.c.l.b16 %v6217
        %v6510 = vunpack.c.l.b16 %v6218
        %v6511 = vunpack.c.h.b16 %v6218
        %v6512 = vunpack.c.l.b16 %v6219
        %v6513 = vunpack.c.h.b16 %v6219
        %v6514 = vunpack.c.l.b16 %v6220
        %v6515 = vunpack.c.l.b16 %v6221
        %v6516 = vunpack.c.h.b16 %v6221
        %v6517 = vunpack.c.l.b16 %v6222
        %v6518 = vunpack.c.h.b16 %v6222
        %v6519 = vunpack.c.l.b16 %v6223
        %v6520 = vunpack.c.l.b16 %v6224
        %v6521 = vunpack.c.h.b16 %v6224
        %v6522 = vunpack.c.l.b16 %v6225
        %v6523 = vunpack.c.h.b16 %v6225
        %v6524 = vunpack.c.l.b16 %v6226
        %v6525 = vunpack.c.l.b16 %v6227
        %v6526 = vunpack.c.h.b16 %v6227
        %v6527 = vunpack.c.l.b16 %v6228
        %v6528 = vunpack.c.h.b16 %v6228
        %v6529 = vunpack.c.l.b16 %v6229
        %v6530 = vunpack.c.l.b16 %v6230
        %v6531 = vunpack.c.h.b16 %v6230
        %v6532 = vunpack.c.l.b16 %v6231
        %v6533 = vunpack.c.h.b16 %v6231
        %v6534 = vunpack.c.l.b16 %v6232
        %v6535 = vunpack.c.l.b16 %v6233
        %v6536 = vunpack.c.h.b16 %v6233
        %v6537 = vunpack.c.l.b16 %v6234
        %v6538 = vunpack.c.h.b16 %v6234
        %v6539 = vunpack.c.l.b16 %v6235
        %v6540 = vunpack.c.l.b16 %v6236
        %v6541 = vunpack.c.h.b16 %v6236
        %v6542 = vunpack.c.l.b16 %v6237
        %v6543 = vunpack.c.h.b16 %v6237
        %v6544 = vunpack.c.l.b16 %v6238
        %v6545 = vunpack.c.l.b16 %v6239
        %v6546 = vunpack.c.h.b16 %v6239
        %v6547 = vunpack.c.l.b16 %v6240
        %v6548 = vunpack.c.h.b16 %v6240
        %v6549 = vunpack.c.l.b16 %v6241
        %v6550 = vunpack.c.l.b16 %v6242
        %v6551 = vunpack.c.h.b16 %v6242
        %v6552 = vunpack.c.l.b16 %v6243
        %v6553 = vunpack.c.h.b16 %v6243
        %v6554 = vunpack.c.l.b16 %v6244
        %v6555 = vunpack.c.l.b16 %v6245
        %v6556 = vunpack.c.h.b16 %v6245
        %v6557 = vunpack.c.l.b16 %v6246
        %v6558 = vunpack.c.h.b16 %v6246
        %v6559 = vunpack.c.l.b16 %v6247
        %v6560 = vunpack.c.l.b16 %v6248
        %v6561 = vunpack.c.h.b16 %v6248
        %v6562 = vunpack.c.l.b16 %v6249
        %v6563 = vunpack.c.h.b16 %v6249
        %v6564 = vunpack.c.l.b16 %v6250
        %v6565 = vunpack.c.l.b16 %v6251
        %v6566 = vunpack.c.h.b16 %v6251
        %v6567 = vunpack.c.l.b16 %v6252
        %v6568 = vunpack.c.h.b16 %v6252
        %v6569 = vunpack.c.l.b16 %v6253
        %v6570 = vunpack.c.l.b16 %v6254
        %v6571 = vunpack.c.h.b16 %v6254
        %v6572 = vunpack.c.l.b16 %v6255
        %v6573 = vunpack.c.h.b16 %v6255
        %v6574 = vunpack.c.l.b16 %v6256
        %v6575 = vunpack.c.l.b16 %v6257
        %v6576 = vunpack.c.h.b16 %v6257
        %v6577 = vunpack.c.l.b16 %v6258
        %v6578 = vunpack.c.h.b16 %v6258
        %v6579 = vunpack.c.l.b16 %v6259
        %v6580 = vunpack.c.l.b16 %v6260
        %v6581 = vunpack.c.h.b16 %v6260
        %v6582 = vunpack.c.l.b16 %v6261
        %v6583 = vunpack.c.h.b16 %v6261
        %v6584 = vunpack.c.l.b16 %v6262
        %v6585 = vunpack.c.l.b16 %v6263
        %v6586 = vunpack.c.h.b16 %v6263
        %v6587 = vunpack.c.l.b16 %v6264
        %v6588 = vunpack.c.h.b16 %v6264
        %v6589 = vunpack.c.l.b16 %v6265
        %v6590 = vunpack.c.l.b16 %v6266
        %v6591 = vunpack.c.h.b16 %v6266
        %v6592 = vunpack.c.l.b16 %v6267
        %v6593 = vunpack.c.h.b16 %v6267
        %v6594 = vunpack.c.l.b16 %v6268
        %v6595 = vunpack.c.l.b16 %v6269
        %v6596 = vunpack.c.h.b16 %v6269
        %v6597 = vunpack.c.l.b16 %v6270
        %v6598 = vunpack.c.h.b16 %v6270
        %v6599 = vunpack.c.l.b16 %v6271
        %v6600 = vunpack.c.l.b16 %v6272
        %v6601 = vunpack.c.h.b16 %v6272
        %v6602 = vunpack.c.l.b16 %v6273
        %v6603 = vunpack.c.h.b16 %v6273
        %v6604 = vunpack.c.l.b16 %v6274
        %v6605 = vunpack.c.l.b16 %v6275
        %v6606 = vunpack.c.h.b16 %v6275
        %v6607 = vunpack.c.l.b16 %v6276
        %v6608 = vunpack.c.h.b16 %v6276
        %v6609 = vunpack.c.l.b16 %v6277
        %v6610 = vunpack.c.l.b16 %v6278
        %v6611 = vunpack.c.h.b16 %v6278
        %v6612 = vunpack.c.l.b16 %v6279
        %v6613 = vunpack.c.h.b16 %v6279
        %v6614 = vunpack.c.l.b16 %v6280
        %v6615 = vunpack.c.l.b16 %v6281
        %v6616 = vunpack.c.h.b16 %v6281
        %v6617 = vunpack.c.l.b16 %v6282
        %v6618 = vunpack.c.h.b16 %v6282
        %v6619 = vunpack.c.l.b16 %v6283
        %v6620 = vunpack.c.l.b16 %v6284
        %v6621 = vunpack.c.h.b16 %v6284
        %v6622 = vunpack.c.l.b16 %v6285
        %v6623 = vunpack.c.h.b16 %v6285
        %v6624 = vunpack.c.l.b16 %v6286
        %v6625 = vunpack.c.l.b16 %v6287
        %v6626 = vunpack.c.h.b16 %v6287
        %v6627 = vunpack.c.l.b16 %v6288
        %v6628 = vunpack.c.h.b16 %v6288
        %v6629 = vunpack.c.l.b16 %v6289
        %v6630 = vpack.c.b16 %v6435, %v6430
        %v6631 = vpack.c.b16 %v6436, %v6431
        %v6632 = vpack.c.b16 %v6437, %v6432
        %v6633 = vpack.c.b16 %v6438, %v6433
        %v6634 = vpack.c.b16 %v6439, %v6434
        %v6635 = vpack.c.b16 %v6445, %v6440
        %v6636 = vpack.c.b16 %v6446, %v6441
        %v6637 = vpack.c.b16 %v6447, %v6442
        %v6638 = vpack.c.b16 %v6448, %v6443
        %v6639 = vpack.c.b16 %v6449, %v6444
        %v6640 = vpack.c.b16 %v6455, %v6450
        %v6641 = vpack.c.b16 %v6456, %v6451
        %v6642 = vpack.c.b16 %v6457, %v6452
        %v6643 = vpack.c.b16 %v6458, %v6453
        %v6644 = vpack.c.b16 %v6459, %v6454
        %v6645 = vpack.c.b16 %v6465, %v6460
        %v6646 = vpack.c.b16 %v6466, %v6461
        %v6647 = vpack.c.b16 %v6467, %v6462
        %v6648 = vpack.c.b16 %v6468, %v6463
        %v6649 = vpack.c.b16 %v6469, %v6464
        %v6650 = vpack.c.b16 %v6475, %v6470
        %v6651 = vpack.c.b16 %v6476, %v6471
        %v6652 = vpack.c.b16 %v6477, %v6472
        %v6653 = vpack.c.b16 %v6478, %v6473
        %v6654 = vpack.c.b16 %v6479, %v6474
        %v6655 = vpack.c.b16 %v6485, %v6480
        %v6656 = vpack.c.b16 %v6486, %v6481
        %v6657 = vpack.c.b16 %v6487, %v6482
        %v6658 = vpack.c.b16 %v6488, %v6483
        %v6659 = vpack.c.b16 %v6489, %v6484
        %v6660 = vpack.c.b16 %v6495, %v6490
        %v6661 = vpack.c.b16 %v6496, %v6491
        %v6662 = vpack.c.b16 %v6497, %v6492
        %v6663 = vpack.c.b16 %v6498, %v6493
        %v6664 = vpack.c.b16 %v6499, %v6494
        %v6665 = vpack.c.b16 %v6505, %v6500
        %v6666 = vpack.c.b16 %v6506, %v6501
        %v6667 = vpack.c.b16 %v6507, %v6502
        %v6668 = vpack.c.b16 %v6508, %v6503
        %v6669 = vpack.c.b16 %v6509, %v6504
        %v6670 = vpack.c.b16 %v6515, %v6510
        %v6671 = vpack.c.b16 %v6516, %v6511
        %v6672 = vpack.c.b16 %v6517, %v6512
        %v6673 = vpack.c.b16 %v6518, %v6513
        %v6674 = vpack.c.b16 %v6519, %v6514
        %v6675 = vpack.c.b16 %v6525, %v6520
        %v6676 = vpack.c.b16 %v6526, %v6521
        %v6677 = vpack.c.b16 %v6527, %v6522
        %v6678 = vpack.c.b16 %v6528, %v6523
        %v6679 = vpack.c.b16 %v6529, %v6524
        %v6680 = vpack.c.b16 %v6535, %v6530
        %v6681 = vpack.c.b16 %v6536, %v6531
        %v6682 = vpack.c.b16 %v6537, %v6532
        %v6683 = vpack.c.b16 %v6538, %v6533
        %v6684 = vpack.c.b16 %v6539, %v6534
        %v6685 = vpack.c.b16 %v6545, %v6540
        %v6686 = vpack.c.b16 %v6546, %v6541
        %v6687 = vpack.c.b16 %v6547, %v6542
        %v6688 = vpack.c.b16 %v6548, %v6543
        %v6689 = vpack.c.b16 %v6549, %v6544
        %v6690 = vpack.c.b16 %v6555, %v6550
        %v6691 = vpack.c.b16 %v6556, %v6551
        %v6692 = vpack.c.b16 %v6557, %v6552
        %v6693 = vpack.c.b16 %v6558, %v6553
        %v6694 = vpack.c.b16 %v6559, %v6554
        %v6695 = vpack.c.b16 %v6565, %v6560
        %v6696 = vpack.c.b16 %v6566, %v6561
        %v6697 = vpack.c.b16 %v6567, %v6562
        %v6698 = vpack.c.b16 %v6568, %v6563
        %v6699 = vpack.c.b16 %v6569, %v6564
        %v6700 = vpack.c.b16 %v6575, %v6570
        %v6701 = vpack.c.b16 %v6576, %v6571
        %v6702 = vpack.c.b16 %v6577, %v6572
        %v6703 = vpack.c.b16 %v6578, %v6573
        %v6704 = vpack.c.b16 %v6579, %v6574
        %v6705 = vpack.c.b16 %v6585, %v6580
        %v6706 = vpack.c.b16 %v6586, %v6581
        %v6707 = vpack.c.b16 %v6587, %v6582
        %v6708 = vpack.c.b16 %v6588, %v6583
        %v6709 = vpack.c.b16 %v6589, %v6584
        %v6710 = vpack.c.b16 %v6595, %v6590
        %v6711 = vpack.c.b16 %v6596, %v6591
        %v6712 = vpack.c.b16 %v6597, %v6592
        %v6713 = vpack.c.b16 %v6598, %v6593
        %v6714 = vpack.c.b16 %v6599, %v6594
        %v6715 = vpack.c.b16 %v6605, %v6600
        %v6716 = vpack.c.b16 %v6606, %v6601
        %v6717 = vpack.c.b16 %v6607, %v6602
        %v6718 = vpack.c.b16 %v6608, %v6603
        %v6719 = vpack.c.b16 %v6609, %v6604
        %v6720 = vpack.c.b16 %v6615, %v6610
        %v6721 = vpack.c.b16 %v6616, %v6611
        %v6722 = vpack.c.b16 %v6617, %v6612
        %v6723 = vpack.c.b16 %v6618, %v6613
        %v6724 = vpack.c.b16 %v6619, %v6614
        %v6725 = vpack.c.b16 %v6625, %v6620
        %v6726 = vpack.c.b16 %v6626, %v6621
        %v6727 = vpack.c.b16 %v6627, %v6622
        %v6728 = vpack.c.b16 %v6628, %v6623
        %v6729 = vpack.c.b16 %v6629, %v6624
        %v6831 = vsel %vm2235, %v6295, 0
        %v6834 = vsel %vm2235, %v6301, 0
        %6836 = vmatprep.subr.bf16.mxu0 %v6631
        %6837 = vmatpush1.bf16.msra.mxu0 %v6630
        %6838 = vmatprep.subr.bf16.mxu0 %v6636
        %6839 = vmatpush1.bf16.msra.mxu0 %v6635
        %6840 = vmatprep.subr.bf16.mxu0 %v6641
        %6841 = vmatpush1.bf16.msra.mxu0 %v6640
        %6842 = vmatprep.subr.bf16.mxu0 %v6646
        %6843 = vmatpush1.bf16.msra.mxu0 %v6645
        %6844 = vmatprep.subr.bf16.mxu0 %v6651
        %6845 = vmatpush1.bf16.msra.mxu0 %v6650
        %6846 = vmatprep.subr.bf16.mxu0 %v6656
        %6847 = vmatpush1.bf16.msra.mxu0 %v6655
        %6848 = vmatprep.subr.bf16.mxu0 %v6661
        %6849 = vmatpush1.bf16.msra.mxu0 %v6660
        %6850 = vmatprep.subr.bf16.mxu0 %v6666
        %6851 = vmatpush1.bf16.msra.mxu0 %v6665
        %6852 = vmatprep.subr.bf16.mxu0 %v6671
        %6853 = vmatpush1.bf16.msra.mxu0 %v6670
        %6854 = vmatprep.subr.bf16.mxu0 %v6676
        %6855 = vmatpush1.bf16.msra.mxu0 %v6675
        %6856 = vmatprep.subr.bf16.mxu0 %v6681
        %6857 = vmatpush1.bf16.msra.mxu0 %v6680
        %6858 = vmatprep.subr.bf16.mxu0 %v6686
        %6859 = vmatpush1.bf16.msra.mxu0 %v6685
        %6860 = vmatprep.subr.bf16.mxu0 %v6691
        %6861 = vmatpush1.bf16.msra.mxu0 %v6690
        %6862 = vmatprep.subr.bf16.mxu0 %v6696
        %6863 = vmatpush1.bf16.msra.mxu0 %v6695
        %6864 = vmatprep.subr.bf16.mxu0 %v6701
        %6865 = vmatpush1.bf16.msra.mxu0 %v6700
        %6866 = vmatprep.subr.bf16.mxu0 %v6706
        %6867 = vmatpush1.bf16.msra.mxu0 %v6705
        %6868 = vmatprep.mubr.bf16.mxu0 %v6303
        %6869 = vmatmul.mubr.bf16.gmra.mrb[0].mxu0 %v6302
        %v6870 = vpop.f32.mrb[0].mxu0
        %v6871 = vadd.f32 0.0, %v6870
        %v6872 = vpop.f32.mrb[0].mxu0
        %v6873 = vadd.f32 0.0, %v6872
        %v6874 = vpop.f32.mrb[0].mxu0
        %v6875 = vadd.f32 0.0, %v6874
        %v6876 = vpop.f32.mrb[0].mxu0
        %v6877 = vadd.f32 0.0, %v6876
        %6878 = vmatprep.mubr.bf16.mxu0 %v6305
        %6879 = vmatmul.mubr.bf16.gmra.mrb[0].mxu0 %v6304
        %v6880 = vpop.f32.mrb[0].mxu0
        %v6881 = vadd.f32 0.0, %v6880
        %v6882 = vpop.f32.mrb[0].mxu0
        %v6883 = vadd.f32 0.0, %v6882
        %v6884 = vpop.f32.mrb[0].mxu0
        %v6885 = vpop.f32.mrb[0].mxu0
        %6886 = vdwg.mxu0
        %6887 = vmatprep.subr.bf16.mxu0 %v6711
        %6888 = vmatpush1.bf16.msra.mxu0 %v6710
        %6889 = vmatprep.subr.bf16.mxu0 %v6716
        %6890 = vmatpush1.bf16.msra.mxu0 %v6715
        %6891 = vmatprep.subr.bf16.mxu0 %v6721
        %6892 = vmatpush1.bf16.msra.mxu0 %v6720
        %6893 = vmatprep.subr.bf16.mxu0 %v6726
        %6894 = vmatpush1.bf16.msra.mxu0 %v6725
        %6895 = vmatprep.subr.bf16.mxu0 0
        %6896 = vmatpush1.bf16.msra.mxu0 0
        %6897 = vmatprep.subr.bf16.mxu0 0
        %6898 = vmatpush1.bf16.msra.mxu0 0
        %6899 = vmatprep.subr.bf16.mxu0 0
        %6900 = vmatpush1.bf16.msra.mxu0 0
        %6901 = vmatprep.subr.bf16.mxu0 0
        %6902 = vmatpush1.bf16.msra.mxu0 0
        %6903 = vmatprep.subr.bf16.mxu0 0
        %6904 = vmatpush1.bf16.msra.mxu0 0
        %6905 = vmatprep.subr.bf16.mxu0 0
        %6906 = vmatpush1.bf16.msra.mxu0 0
        %6907 = vmatprep.subr.bf16.mxu0 0
        %6908 = vmatpush1.bf16.msra.mxu0 0
        %6909 = vmatprep.subr.bf16.mxu0 0
        %6910 = vmatpush1.bf16.msra.mxu0 0
        %6911 = vmatprep.subr.bf16.mxu0 0
        %6912 = vmatpush1.bf16.msra.mxu0 0
        %6913 = vmatprep.subr.bf16.mxu0 0
        %6914 = vmatpush1.bf16.msra.mxu0 0
        %6915 = vmatprep.subr.bf16.mxu0 0
        %6916 = vmatpush1.bf16.msra.mxu0 0
        %6917 = vmatprep.subr.bf16.mxu0 0
        %6918 = vmatpush1.bf16.msra.mxu0 0
        %6919 = vmatprep.mubr.bf16.mxu0 0
        %6920 = vmatmul.mubr.bf16.gmra.mrb[0].mxu0 %v6831
        %v6921 = vpop.f32.mrb[0].mxu0
        %v6922 = vadd.f32 %v6871, %v6921
        %v6923 = vpop.f32.mrb[0].mxu0
        %v6924 = vadd.f32 %v6873, %v6923
        %v6925 = vpop.f32.mrb[0].mxu0
        %v6926 = vadd.f32 %v6875, %v6925
        %v6927 = vpop.f32.mrb[0].mxu0
        %v6928 = vadd.f32 %v6877, %v6927
        %6929 = vmatprep.mubr.bf16.mxu0 0
        %6930 = vmatmul.mubr.bf16.gmra.mrb[0].mxu0 %v6834
        %v6931 = vpop.f32.mrb[0].mxu0
        %v6932 = vadd.f32 %v6881, %v6931
        %v6933 = vpop.f32.mrb[0].mxu0
        %v6934 = vadd.f32 %v6883, %v6933
        %v6935 = vpop.f32.mrb[0].mxu0
        %v6936 = vpop.f32.mrb[0].mxu0
        %6937 = vdwg.mxu0
        %6938 = vmatprep.subr.bf16.mxu0 %v6633
        %6939 = vmatpush1.bf16.msra.mxu0 %v6632
        %6940 = vmatprep.subr.bf16.mxu0 %v6638
        %6941 = vmatpush1.bf16.msra.mxu0 %v6637
        %6942 = vmatprep.subr.bf16.mxu0 %v6643
        %6943 = vmatpush1.bf16.msra.mxu0 %v6642
        %6944 = vmatprep.subr.bf16.mxu0 %v6648
        %6945 = vmatpush1.bf16.msra.mxu0 %v6647
        %6946 = vmatprep.subr.bf16.mxu0 %v6653
        %6947 = vmatpush1.bf16.msra.mxu0 %v6652
        %6948 = vmatprep.subr.bf16.mxu0 %v6658
        %6949 = vmatpush1.bf16.msra.mxu0 %v6657
        %6950 = vmatprep.subr.bf16.mxu0 %v6663
        %6951 = vmatpush1.bf16.msra.mxu0 %v6662
        %6952 = vmatprep.subr.bf16.mxu0 %v6668
        %6953 = vmatpush1.bf16.msra.mxu0 %v6667
        %6954 = vmatprep.subr.bf16.mxu0 %v6673
        %6955 = vmatpush1.bf16.msra.mxu0 %v6672
        %6956 = vmatprep.subr.bf16.mxu0 %v6678
        %6957 = vmatpush1.bf16.msra.mxu0 %v6677
        %6958 = vmatprep.subr.bf16.mxu0 %v6683
        %6959 = vmatpush1.bf16.msra.mxu0 %v6682
        %6960 = vmatprep.subr.bf16.mxu0 %v6688
        %6961 = vmatpush1.bf16.msra.mxu0 %v6687
        %6962 = vmatprep.subr.bf16.mxu0 %v6693
        %6963 = vmatpush1.bf16.msra.mxu0 %v6692
        %6964 = vmatprep.subr.bf16.mxu0 %v6698
        %6965 = vmatpush1.bf16.msra.mxu0 %v6697
        %6966 = vmatprep.subr.bf16.mxu0 %v6703
        %6967 = vmatpush1.bf16.msra.mxu0 %v6702
        %6968 = vmatprep.subr.bf16.mxu0 %v6708
        %6969 = vmatpush1.bf16.msra.mxu0 %v6707
        %6970 = vmatprep.mubr.bf16.mxu0 %v6303
        %6971 = vmatmul.mubr.bf16.gmra.mrb[0].mxu0 %v6302
        %v6972 = vpop.f32.mrb[0].mxu0
        %v6973 = vadd.f32 0.0, %v6972
        %v6974 = vpop.f32.mrb[0].mxu0
        %v6975 = vadd.f32 0.0, %v6974
        %v6976 = vpop.f32.mrb[0].mxu0
        %v6977 = vadd.f32 0.0, %v6976
        %v6978 = vpop.f32.mrb[0].mxu0
        %v6979 = vadd.f32 0.0, %v6978
        %6980 = vmatprep.mubr.bf16.mxu0 %v6305
        %6981 = vmatmul.mubr.bf16.gmra.mrb[0].mxu0 %v6304
        %v6982 = vpop.f32.mrb[0].mxu0
        %v6983 = vadd.f32 0.0, %v6982
        %v6984 = vpop.f32.mrb[0].mxu0
        %v6985 = vadd.f32 0.0, %v6984
        %v6986 = vpop.f32.mrb[0].mxu0
        %v6987 = vpop.f32.mrb[0].mxu0
        %6988 = vdwg.mxu0
        %6989 = vmatprep.subr.bf16.mxu0 %v6713
        %6990 = vmatpush1.bf16.msra.mxu0 %v6712
        %6991 = vmatprep.subr.bf16.mxu0 %v6718
        %6992 = vmatpush1.bf16.msra.mxu0 %v6717
        %6993 = vmatprep.subr.bf16.mxu0 %v6723
        %6994 = vmatpush1.bf16.msra.mxu0 %v6722
        %6995 = vmatprep.subr.bf16.mxu0 %v6728
        %6996 = vmatpush1.bf16.msra.mxu0 %v6727
        %6997 = vmatprep.subr.bf16.mxu0 0
        %6998 = vmatpush1.bf16.msra.mxu0 0
        %6999 = vmatprep.subr.bf16.mxu0 0
        %7000 = vmatpush1.bf16.msra.mxu0 0
        %7001 = vmatprep.subr.bf16.mxu0 0
        %7002 = vmatpush1.bf16.msra.mxu0 0
        %7003 = vmatprep.subr.bf16.mxu0 0
        %7004 = vmatpush1.bf16.msra.mxu0 0
        %7005 = vmatprep.subr.bf16.mxu0 0
        %7006 = vmatpush1.bf16.msra.mxu0 0
        %7007 = vmatprep.subr.bf16.mxu0 0
        %7008 = vmatpush1.bf16.msra.mxu0 0
        %7009 = vmatprep.subr.bf16.mxu0 0
        %7010 = vmatpush1.bf16.msra.mxu0 0
        %7011 = vmatprep.subr.bf16.mxu0 0
        %7012 = vmatpush1.bf16.msra.mxu0 0
        %7013 = vmatprep.subr.bf16.mxu0 0
        %7014 = vmatpush1.bf16.msra.mxu0 0
        %7015 = vmatprep.subr.bf16.mxu0 0
        %7016 = vmatpush1.bf16.msra.mxu0 0
        %7017 = vmatprep.subr.bf16.mxu0 0
        %7018 = vmatpush1.bf16.msra.mxu0 0
        %7019 = vmatprep.subr.bf16.mxu0 0
        %7020 = vmatpush1.bf16.msra.mxu0 0
        %7021 = vmatprep.mubr.bf16.mxu0 0
        %7022 = vmatmul.mubr.bf16.gmra.mrb[0].mxu0 %v6831
        %v7023 = vpop.f32.mrb[0].mxu0
        %v7024 = vadd.f32 %v6973, %v7023
        %v7025 = vpop.f32.mrb[0].mxu0
        %v7026 = vadd.f32 %v6975, %v7025
        %v7027 = vpop.f32.mrb[0].mxu0
        %v7028 = vadd.f32 %v6977, %v7027
        %v7029 = vpop.f32.mrb[0].mxu0
        %v7030 = vadd.f32 %v6979, %v7029
        %7031 = vmatprep.mubr.bf16.mxu0 0
        %7032 = vmatmul.mubr.bf16.gmra.mrb[0].mxu0 %v6834
        %v7033 = vpop.f32.mrb[0].mxu0
        %v7034 = vadd.f32 %v6983, %v7033
        %v7035 = vpop.f32.mrb[0].mxu0
        %v7036 = vadd.f32 %v6985, %v7035
        %v7037 = vpop.f32.mrb[0].mxu0
        %v7038 = vpop.f32.mrb[0].mxu0
        %7039 = vdwg.mxu0
        %7040 = vmatprep.subr.bf16.mxu0 0
        %7041 = vmatpush1.bf16.msra.mxu0 %v6634
        %7042 = vmatprep.subr.bf16.mxu0 0
        %7043 = vmatpush1.bf16.msra.mxu0 %v6639
        %7044 = vmatprep.subr.bf16.mxu0 0
        %7045 = vmatpush1.bf16.msra.mxu0 %v6644
        %7046 = vmatprep.subr.bf16.mxu0 0
        %7047 = vmatpush1.bf16.msra.mxu0 %v6649
        %7048 = vmatprep.subr.bf16.mxu0 0
        %7049 = vmatpush1.bf16.msra.mxu0 %v6654
        %7050 = vmatprep.subr.bf16.mxu0 0
        %7051 = vmatpush1.bf16.msra.mxu0 %v6659
        %7052 = vmatprep.subr.bf16.mxu0 0
        %7053 = vmatpush1.bf16.msra.mxu0 %v6664
        %7054 = vmatprep.subr.bf16.mxu0 0
        %7055 = vmatpush1.bf16.msra.mxu0 %v6669
        %7056 = vmatprep.subr.bf16.mxu0 0
        %7057 = vmatpush1.bf16.msra.mxu0 %v6674
        %7058 = vmatprep.subr.bf16.mxu0 0
        %7059 = vmatpush1.bf16.msra.mxu0 %v6679
        %7060 = vmatprep.subr.bf16.mxu0 0
        %7061 = vmatpush1.bf16.msra.mxu0 %v6684
        %7062 = vmatprep.subr.bf16.mxu0 0
        %7063 = vmatpush1.bf16.msra.mxu0 %v6689
        %7064 = vmatprep.subr.bf16.mxu0 0
        %7065 = vmatpush1.bf16.msra.mxu0 %v6694
        %7066 = vmatprep.subr.bf16.mxu0 0
        %7067 = vmatpush1.bf16.msra.mxu0 %v6699
        %7068 = vmatprep.subr.bf16.mxu0 0
        %7069 = vmatpush1.bf16.msra.mxu0 %v6704
        %7070 = vmatprep.subr.bf16.mxu0 0
        %7071 = vmatpush1.bf16.msra.mxu0 %v6709
        %7072 = vmatprep.mubr.bf16.mxu0 %v6303
        %7073 = vmatmul.mubr.bf16.gmra.mrb[0].mxu0 %v6302
        %v7074 = vpop.f32.mrb[0].mxu0
        %v7075 = vadd.f32 0.0, %v7074
        %v7076 = vpop.f32.mrb[0].mxu0
        %v7077 = vpop.f32.mrb[0].mxu0
        %v7078 = vadd.f32 0.0, %v7077
        %v7079 = vpop.f32.mrb[0].mxu0
        %7080 = vmatprep.mubr.bf16.mxu0 %v6305
        %7081 = vmatmul.mubr.bf16.gmra.mrb[0].mxu0 %v6304
        %v7082 = vpop.f32.mrb[0].mxu0
        %v7083 = vadd.f32 0.0, %v7082
        %v7084 = vpop.f32.mrb[0].mxu0
        %v7085 = vpop.f32.mrb[0].mxu0
        %v7086 = vpop.f32.mrb[0].mxu0
        %7087 = vdwg.mxu0
        %7088 = vmatprep.subr.bf16.mxu0 0
        %7089 = vmatpush1.bf16.msra.mxu0 %v6714
        %7090 = vmatprep.subr.bf16.mxu0 0
        %7091 = vmatpush1.bf16.msra.mxu0 %v6719
        %7092 = vmatprep.subr.bf16.mxu0 0
        %7093 = vmatpush1.bf16.msra.mxu0 %v6724
        %7094 = vmatprep.subr.bf16.mxu0 0
        %7095 = vmatpush1.bf16.msra.mxu0 %v6729
        %7096 = vmatprep.subr.bf16.mxu0 0
        %7097 = vmatpush1.bf16.msra.mxu0 0
        %7098 = vmatprep.subr.bf16.mxu0 0
        %7099 = vmatpush1.bf16.msra.mxu0 0
        %7100 = vmatprep.subr.bf16.mxu0 0
        %7101 = vmatpush1.bf16.msra.mxu0 0
        %7102 = vmatprep.subr.bf16.mxu0 0
        %7103 = vmatpush1.bf16.msra.mxu0 0
        %7104 = vmatprep.subr.bf16.mxu0 0
        %7105 = vmatpush1.bf16.msra.mxu0 0
        %7106 = vmatprep.subr.bf16.mxu0 0
        %7107 = vmatpush1.bf16.msra.mxu0 0
        %7108 = vmatprep.subr.bf16.mxu0 0
        %7109 = vmatpush1.bf16.msra.mxu0 0
        %7110 = vmatprep.subr.bf16.mxu0 0
        %7111 = vmatpush1.bf16.msra.mxu0 0
        %7112 = vmatprep.subr.bf16.mxu0 0
        %7113 = vmatpush1.bf16.msra.mxu0 0
        %7114 = vmatprep.subr.bf16.mxu0 0
        %7115 = vmatpush1.bf16.msra.mxu0 0
        %7116 = vmatprep.subr.bf16.mxu0 0
        %7117 = vmatpush1.bf16.msra.mxu0 0
        %7118 = vmatprep.subr.bf16.mxu0 0
        %7119 = vmatpush1.bf16.msra.mxu0 0
        %7120 = vmatprep.mubr.bf16.mxu0 0
        %7121 = vmatmul.mubr.bf16.gmra.mrb[0].mxu0 %v6831
        %v7122 = vpop.f32.mrb[0].mxu0
        %v7123 = vadd.f32 %v7075, %v7122
        %v7124 = vpop.f32.mrb[0].mxu0
        %v7125 = vpop.f32.mrb[0].mxu0
        %v7126 = vadd.f32 %v7078, %v7125
        %v7127 = vpop.f32.mrb[0].mxu0
        %7128 = vmatprep.mubr.bf16.mxu0 0
        %7129 = vmatmul.mubr.bf16.gmra.mrb[0].mxu0 %v6834
        %v7130 = vpop.f32.mrb[0].mxu0
        %v7131 = vadd.f32 %v7083, %v7130
        %v7132 = vpop.f32.mrb[0].mxu0
        %v7133 = vpop.f32.mrb[0].mxu0
        %v7134 = vpop.f32.mrb[0].mxu0
        %7135 = vdwg.mxu0
        %v7136 = vadd.f32 %v6154, %v6922
        %v7137 = vadd.f32 %v6155, %v6924
        %v7138 = vadd.f32 %v6156, %v7024
        %v7139 = vadd.f32 %v6157, %v7026
        %v7140 = vadd.f32 %v6158, %v7123
        %v7141 = vadd.f32 %v6159, %v6926
        %v7142 = vadd.f32 %v6160, %v6928
        %v7143 = vadd.f32 %v6161, %v7028
        %v7144 = vadd.f32 %v6162, %v7030
        %v7145 = vadd.f32 %v6163, %v7126
        %v7146 = vadd.f32 %v6164, %v6932
        %v7147 = vadd.f32 %v6165, %v6934
        %v7148 = vadd.f32 %v6166, %v7034
        %v7149 = vadd.f32 %v6167, %v7036
        %v7150 = vadd.f32 %v6168, %v7131
        %s7151 = scalar_lea.vmem [#allocation8], 4000
        %v7152 = vld [vmem:[%s7151] sm:$0xff]
        %v7153 = vld [vmem:[%s7151 + $0x8] sm:$0xff]
        %v7154 = vld [vmem:[%s7151 + $0x10] sm:$0xf]
        %v7155 = vld [vmem:[%s7151 + $0x14] sm:$0xff]
        %v7156 = vld [vmem:[%s7151 + $0x1c] sm:$0xff]
        %v7157 = vld [vmem:[%s7151 + $0x24] sm:$0xf]
        %v7158 = vld [vmem:[%s7151 + $0x28] sm:$0xff]
        %v7159 = vld [vmem:[%s7151 + $0x30] sm:$0xff]
        %v7160 = vld [vmem:[%s7151 + $0x38] sm:$0xf]
        %v7161 = vld [vmem:[%s7151 + $0x3c] sm:$0xff]
        %v7162 = vld [vmem:[%s7151 + $0x44] sm:$0xff]
        %v7163 = vld [vmem:[%s7151 + $0x4c] sm:$0xf]
        %v7164 = vld [vmem:[%s7151 + $0x50] sm:$0xff]
        %v7165 = vld [vmem:[%s7151 + $0x58] sm:$0xff]
        %v7166 = vld [vmem:[%s7151 + $0x60] sm:$0xf]
        %v7167 = vld [vmem:[%s7151 + $0x64] sm:$0xff]
        %v7168 = vld [vmem:[%s7151 + $0x6c] sm:$0xff]
        %v7169 = vld [vmem:[%s7151 + $0x74] sm:$0xf]
        %v7170 = vld [vmem:[%s7151 + $0x78] sm:$0xff]
        %v7171 = vld [vmem:[%s7151 + $0x80] sm:$0xff]
        %v7172 = vld [vmem:[%s7151 + $0x88] sm:$0xf]
        %v7173 = vld [vmem:[%s7151 + $0x8c] sm:$0xff]
        %v7174 = vld [vmem:[%s7151 + $0x94] sm:$0xff]
        %v7175 = vld [vmem:[%s7151 + $0x9c] sm:$0xf]
        %v7176 = vld [vmem:[%s7151 + $0xa0] sm:$0xff]
        %v7177 = vld [vmem:[%s7151 + $0xa8] sm:$0xff]
        %v7178 = vld [vmem:[%s7151 + $0xb0] sm:$0xf]
        %v7179 = vld [vmem:[%s7151 + $0xb4] sm:$0xff]
        %v7180 = vld [vmem:[%s7151 + $0xbc] sm:$0xff]
        %v7181 = vld [vmem:[%s7151 + $0xc4] sm:$0xf]
        %v7182 = vld [vmem:[%s7151 + $0xc8] sm:$0xff]
        %v7183 = vld [vmem:[%s7151 + $0xd0] sm:$0xff]
        %v7184 = vld [vmem:[%s7151 + $0xd8] sm:$0xf]
        %v7185 = vld [vmem:[%s7151 + $0xdc] sm:$0xff]
        %v7186 = vld [vmem:[%s7151 + $0xe4] sm:$0xff]
        %v7187 = vld [vmem:[%s7151 + $0xec] sm:$0xf]
        %v7188 = vld [vmem:[%s7151 + $0xf0] sm:$0xff]
        %v7189 = vld [vmem:[%s7151 + $0xf8] sm:$0xff]
        %v7190 = vld [vmem:[%s7151 + $0x100] sm:$0xf]
        %v7191 = vld [vmem:[%s7151 + $0x104] sm:$0xff]
        %v7192 = vld [vmem:[%s7151 + $0x10c] sm:$0xff]
        %v7193 = vld [vmem:[%s7151 + $0x114] sm:$0xf]
        %v7194 = vld [vmem:[%s7151 + $0x118] sm:$0xff]
        %v7195 = vld [vmem:[%s7151 + $0x120] sm:$0xff]
        %v7196 = vld [vmem:[%s7151 + $0x128] sm:$0xf]
        %v7197 = vld [vmem:[%s7151 + $0x12c] sm:$0xff]
        %v7198 = vld [vmem:[%s7151 + $0x134] sm:$0xff]
        %v7199 = vld [vmem:[%s7151 + $0x13c] sm:$0xf]
        %v7200 = vld [vmem:[%s7151 + $0x140] sm:$0xff]
        %v7201 = vld [vmem:[%s7151 + $0x148] sm:$0xff]
        %v7202 = vld [vmem:[%s7151 + $0x150] sm:$0xf]
        %v7203 = vld [vmem:[%s7151 + $0x154] sm:$0xff]
        %v7204 = vld [vmem:[%s7151 + $0x15c] sm:$0xff]
        %v7205 = vld [vmem:[%s7151 + $0x164] sm:$0xf]
        %v7206 = vld [vmem:[%s7151 + $0x168] sm:$0xff]
        %v7207 = vld [vmem:[%s7151 + $0x170] sm:$0xff]
        %v7208 = vld [vmem:[%s7151 + $0x178] sm:$0xf]
        %v7209 = vld [vmem:[%s7151 + $0x17c] sm:$0xff]
        %v7210 = vld [vmem:[%s7151 + $0x184] sm:$0xff]
        %v7211 = vld [vmem:[%s7151 + $0x18c] sm:$0xf]
        %v7212 = vld [vmem:[%s7151 + $0x190] sm:$0xff]
        %v7213 = vld [vmem:[%s7151 + $0x198] sm:$0xff]
        %v7214 = vld [vmem:[%s7151 + $0x1a0] sm:$0xf]
        %v7215 = vld [vmem:[%s7151 + $0x1a4] sm:$0xff]
        %v7216 = vld [vmem:[%s7151 + $0x1ac] sm:$0xff]
        %v7217 = vld [vmem:[%s7151 + $0x1b4] sm:$0xf]
        %v7218 = vld [vmem:[%s7151 + $0x1b8] sm:$0xff]
        %v7219 = vld [vmem:[%s7151 + $0x1c0] sm:$0xff]
        %v7220 = vld [vmem:[%s7151 + $0x1c8] sm:$0xf]
        %v7221 = vld [vmem:[%s7151 + $0x1cc] sm:$0xff]
        %v7222 = vld [vmem:[%s7151 + $0x1d4] sm:$0xff]
        %v7223 = vld [vmem:[%s7151 + $0x1dc] sm:$0xf]
        %v7224 = vld [vmem:[%s7151 + $0x1e0] sm:$0xff]
        %v7225 = vld [vmem:[%s7151 + $0x1e8] sm:$0xff]
        %v7226 = vld [vmem:[%s7151 + $0x1f0] sm:$0xf]
        %v7227 = vld [vmem:[%s7151 + $0x1f4] sm:$0xff]
        %v7228 = vld [vmem:[%s7151 + $0x1fc] sm:$0xff]
        %v7229 = vld [vmem:[%s7151 + $0x204] sm:$0xf]
        %v7230 = vld [vmem:[%s7151 + $0x208] sm:$0xff]
        %v7231 = vld [vmem:[%s7151 + $0x210] sm:$0xff]
        %v7232 = vld [vmem:[%s7151 + $0x218] sm:$0xf]
        %v7233 = vld [vmem:[%s7151 + $0x21c] sm:$0xff]
        %v7234 = vld [vmem:[%s7151 + $0x224] sm:$0xff]
        %v7235 = vld [vmem:[%s7151 + $0x22c] sm:$0xf]
        %v7236 = vld [vmem:[%s7151 + $0x230] sm:$0xff]
        %v7237 = vld [vmem:[%s7151 + $0x238] sm:$0xff]
        %v7238 = vld [vmem:[%s7151 + $0x240] sm:$0xf]
        %v7239 = vld [vmem:[%s7151 + $0x244] sm:$0xff]
        %v7240 = vld [vmem:[%s7151 + $0x24c] sm:$0xff]
        %v7241 = vld [vmem:[%s7151 + $0x254] sm:$0xf]
        %v7242 = vld [vmem:[%s7151 + $0x258] sm:$0xff]
        %v7243 = vld [vmem:[%s7151 + $0x260] sm:$0xff]
        %v7244 = vld [vmem:[%s7151 + $0x268] sm:$0xf]
        %v7245 = vld [vmem:[%s7151 + $0x26c] sm:$0xff]
        %v7246 = vld [vmem:[%s7151 + $0x274] sm:$0xff]
        %v7247 = vld [vmem:[%s7151 + $0x27c] sm:$0xf]
        %v7248 = vld [vmem:[%s7151 + $0x280] sm:$0xff]
        %v7249 = vld [vmem:[%s7151 + $0x288] sm:$0xff]
        %v7250 = vld [vmem:[%s7151 + $0x290] sm:$0xf]
        %v7251 = vld [vmem:[%s7151 + $0x294] sm:$0xff]
        %v7252 = vld [vmem:[%s7151 + $0x29c] sm:$0xff]
        %v7253 = vld [vmem:[%s7151 + $0x2a4] sm:$0xf]
        %v7254 = vld [vmem:[%s7151 + $0x2a8] sm:$0xff]
        %v7255 = vld [vmem:[%s7151 + $0x2b0] sm:$0xff]
        %v7256 = vld [vmem:[%s7151 + $0x2b8] sm:$0xf]
        %v7257 = vld [vmem:[%s7151 + $0x2bc] sm:$0xff]
        %v7258 = vld [vmem:[%s7151 + $0x2c4] sm:$0xff]
        %v7259 = vld [vmem:[%s7151 + $0x2cc] sm:$0xf]
        %v7260 = vld [vmem:[%s7151 + $0x2d0] sm:$0xff]
        %v7261 = vld [vmem:[%s7151 + $0x2d8] sm:$0xff]
        %v7262 = vld [vmem:[%s7151 + $0x2e0] sm:$0xf]
        %v7263 = vld [vmem:[%s7151 + $0x2e4] sm:$0xff]
        %v7264 = vld [vmem:[%s7151 + $0x2ec] sm:$0xff]
        %v7265 = vld [vmem:[%s7151 + $0x2f4] sm:$0xf]
        %v7266 = vld [vmem:[%s7151 + $0x2f8] sm:$0xff]
        %v7267 = vld [vmem:[%s7151 + $0x300] sm:$0xff]
        %v7268 = vld [vmem:[%s7151 + $0x308] sm:$0xf]
        %v7269 = vld [vmem:[%s7151 + $0x30c] sm:$0xff]
        %v7270 = vld [vmem:[%s7151 + $0x314] sm:$0xff]
        %v7271 = vld [vmem:[%s7151 + $0x31c] sm:$0xf]
        %7272 = vrot.lane.b32.xlu0 %v5292, 96
        %v7273 = vpop.permute.xlu0 %7272
        %7274 = vrot.lane.b32.xlu0 %v5304, 96
        %v7275 = vpop.permute.xlu0 %7274
        %7276 = vrot.lane.b32.xlu0 %v5314, 96
        %v7277 = vpop.permute.xlu0 %7276
        %7278 = vrot.lane.b32.xlu0 %v5317, 96
        %v7279 = vpop.permute.xlu0 %7278
        %7280 = vrot.lane.b32.xlu0 %v5320, 96
        %v7281 = vpop.permute.xlu0 %7280
        %7282 = vrot.lane.b32.xlu0 %v5323, 96
        %v7283 = vpop.permute.xlu0 %7282
        %v7284 = vsel %vm4310, %v7273, %v7275
        %v7285 = vsel %vm4310, %v7275, %v7277
        %v7286 = vsel %vm4310, %v7279, %v7281
        %v7287 = vsel %vm4310, %v7281, %v7283
        %v7412 = vunpack.c.l.b16 %v7152
        %v7413 = vunpack.c.h.b16 %v7152
        %v7414 = vunpack.c.l.b16 %v7153
        %v7415 = vunpack.c.h.b16 %v7153
        %v7416 = vunpack.c.l.b16 %v7154
        %v7417 = vunpack.c.l.b16 %v7155
        %v7418 = vunpack.c.h.b16 %v7155
        %v7419 = vunpack.c.l.b16 %v7156
        %v7420 = vunpack.c.h.b16 %v7156
        %v7421 = vunpack.c.l.b16 %v7157
        %v7422 = vunpack.c.l.b16 %v7158
        %v7423 = vunpack.c.h.b16 %v7158
        %v7424 = vunpack.c.l.b16 %v7159
        %v7425 = vunpack.c.h.b16 %v7159
        %v7426 = vunpack.c.l.b16 %v7160
        %v7427 = vunpack.c.l.b16 %v7161
        %v7428 = vunpack.c.h.b16 %v7161
        %v7429 = vunpack.c.l.b16 %v7162
        %v7430 = vunpack.c.h.b16 %v7162
        %v7431 = vunpack.c.l.b16 %v7163
        %v7432 = vunpack.c.l.b16 %v7164
        %v7433 = vunpack.c.h.b16 %v7164
        %v7434 = vunpack.c.l.b16 %v7165
        %v7435 = vunpack.c.h.b16 %v7165
        %v7436 = vunpack.c.l.b16 %v7166
        %v7437 = vunpack.c.l.b16 %v7167
        %v7438 = vunpack.c.h.b16 %v7167
        %v7439 = vunpack.c.l.b16 %v7168
        %v7440 = vunpack.c.h.b16 %v7168
        %v7441 = vunpack.c.l.b16 %v7169
        %v7442 = vunpack.c.l.b16 %v7170
        %v7443 = vunpack.c.h.b16 %v7170
        %v7444 = vunpack.c.l.b16 %v7171
        %v7445 = vunpack.c.h.b16 %v7171
        %v7446 = vunpack.c.l.b16 %v7172
        %v7447 = vunpack.c.l.b16 %v7173
        %v7448 = vunpack.c.h.b16 %v7173
        %v7449 = vunpack.c.l.b16 %v7174
        %v7450 = vunpack.c.h.b16 %v7174
        %v7451 = vunpack.c.l.b16 %v7175
        %v7452 = vunpack.c.l.b16 %v7176
        %v7453 = vunpack.c.h.b16 %v7176
        %v7454 = vunpack.c.l.b16 %v7177
        %v7455 = vunpack.c.h.b16 %v7177
        %v7456 = vunpack.c.l.b16 %v7178
        %v7457 = vunpack.c.l.b16 %v7179
        %v7458 = vunpack.c.h.b16 %v7179
        %v7459 = vunpack.c.l.b16 %v7180
        %v7460 = vunpack.c.h.b16 %v7180
        %v7461 = vunpack.c.l.b16 %v7181
        %v7462 = vunpack.c.l.b16 %v7182
        %v7463 = vunpack.c.h.b16 %v7182
        %v7464 = vunpack.c.l.b16 %v7183
        %v7465 = vunpack.c.h.b16 %v7183
        %v7466 = vunpack.c.l.b16 %v7184
        %v7467 = vunpack.c.l.b16 %v7185
        %v7468 = vunpack.c.h.b16 %v7185
        %v7469 = vunpack.c.l.b16 %v7186
        %v7470 = vunpack.c.h.b16 %v7186
        %v7471 = vunpack.c.l.b16 %v7187
        %v7472 = vunpack.c.l.b16 %v7188
        %v7473 = vunpack.c.h.b16 %v7188
        %v7474 = vunpack.c.l.b16 %v7189
        %v7475 = vunpack.c.h.b16 %v7189
        %v7476 = vunpack.c.l.b16 %v7190
        %v7477 = vunpack.c.l.b16 %v7191
        %v7478 = vunpack.c.h.b16 %v7191
        %v7479 = vunpack.c.l.b16 %v7192
        %v7480 = vunpack.c.h.b16 %v7192
        %v7481 = vunpack.c.l.b16 %v7193
        %v7482 = vunpack.c.l.b16 %v7194
        %v7483 = vunpack.c.h.b16 %v7194
        %v7484 = vunpack.c.l.b16 %v7195
        %v7485 = vunpack.c.h.b16 %v7195
        %v7486 = vunpack.c.l.b16 %v7196
        %v7487 = vunpack.c.l.b16 %v7197
        %v7488 = vunpack.c.h.b16 %v7197
        %v7489 = vunpack.c.l.b16 %v7198
        %v7490 = vunpack.c.h.b16 %v7198
        %v7491 = vunpack.c.l.b16 %v7199
        %v7492 = vunpack.c.l.b16 %v7200
        %v7493 = vunpack.c.h.b16 %v7200
        %v7494 = vunpack.c.l.b16 %v7201
        %v7495 = vunpack.c.h.b16 %v7201
        %v7496 = vunpack.c.l.b16 %v7202
        %v7497 = vunpack.c.l.b16 %v7203
        %v7498 = vunpack.c.h.b16 %v7203
        %v7499 = vunpack.c.l.b16 %v7204
        %v7500 = vunpack.c.h.b16 %v7204
        %v7501 = vunpack.c.l.b16 %v7205
        %v7502 = vunpack.c.l.b16 %v7206
        %v7503 = vunpack.c.h.b16 %v7206
        %v7504 = vunpack.c.l.b16 %v7207
        %v7505 = vunpack.c.h.b16 %v7207
        %v7506 = vunpack.c.l.b16 %v7208
        %v7507 = vunpack.c.l.b16 %v7209
        %v7508 = vunpack.c.h.b16 %v7209
        %v7509 = vunpack.c.l.b16 %v7210
        %v7510 = vunpack.c.h.b16 %v7210
        %v7511 = vunpack.c.l.b16 %v7211
        %v7512 = vunpack.c.l.b16 %v7212
        %v7513 = vunpack.c.h.b16 %v7212
        %v7514 = vunpack.c.l.b16 %v7213
        %v7515 = vunpack.c.h.b16 %v7213
        %v7516 = vunpack.c.l.b16 %v7214
        %v7517 = vunpack.c.l.b16 %v7215
        %v7518 = vunpack.c.h.b16 %v7215
        %v7519 = vunpack.c.l.b16 %v7216
        %v7520 = vunpack.c.h.b16 %v7216
        %v7521 = vunpack.c.l.b16 %v7217
        %v7522 = vunpack.c.l.b16 %v7218
        %v7523 = vunpack.c.h.b16 %v7218
        %v7524 = vunpack.c.l.b16 %v7219
        %v7525 = vunpack.c.h.b16 %v7219
        %v7526 = vunpack.c.l.b16 %v7220
        %v7527 = vunpack.c.l.b16 %v7221
        %v7528 = vunpack.c.h.b16 %v7221
        %v7529 = vunpack.c.l.b16 %v7222
        %v7530 = vunpack.c.h.b16 %v7222
        %v7531 = vunpack.c.l.b16 %v7223
        %v7532 = vunpack.c.l.b16 %v7224
        %v7533 = vunpack.c.h.b16 %v7224
        %v7534 = vunpack.c.l.b16 %v7225
        %v7535 = vunpack.c.h.b16 %v7225
        %v7536 = vunpack.c.l.b16 %v7226
        %v7537 = vunpack.c.l.b16 %v7227
        %v7538 = vunpack.c.h.b16 %v7227
        %v7539 = vunpack.c.l.b16 %v7228
        %v7540 = vunpack.c.h.b16 %v7228
        %v7541 = vunpack.c.l.b16 %v7229
        %v7542 = vunpack.c.l.b16 %v7230
        %v7543 = vunpack.c.h.b16 %v7230
        %v7544 = vunpack.c.l.b16 %v7231
        %v7545 = vunpack.c.h.b16 %v7231
        %v7546 = vunpack.c.l.b16 %v7232
        %v7547 = vunpack.c.l.b16 %v7233
        %v7548 = vunpack.c.h.b16 %v7233
        %v7549 = vunpack.c.l.b16 %v7234
        %v7550 = vunpack.c.h.b16 %v7234
        %v7551 = vunpack.c.l.b16 %v7235
        %v7552 = vunpack.c.l.b16 %v7236
        %v7553 = vunpack.c.h.b16 %v7236
        %v7554 = vunpack.c.l.b16 %v7237
        %v7555 = vunpack.c.h.b16 %v7237
        %v7556 = vunpack.c.l.b16 %v7238
        %v7557 = vunpack.c.l.b16 %v7239
        %v7558 = vunpack.c.h.b16 %v7239
        %v7559 = vunpack.c.l.b16 %v7240
        %v7560 = vunpack.c.h.b16 %v7240
        %v7561 = vunpack.c.l.b16 %v7241
        %v7562 = vunpack.c.l.b16 %v7242
        %v7563 = vunpack.c.h.b16 %v7242
        %v7564 = vunpack.c.l.b16 %v7243
        %v7565 = vunpack.c.h.b16 %v7243
        %v7566 = vunpack.c.l.b16 %v7244
        %v7567 = vunpack.c.l.b16 %v7245
        %v7568 = vunpack.c.h.b16 %v7245
        %v7569 = vunpack.c.l.b16 %v7246
        %v7570 = vunpack.c.h.b16 %v7246
        %v7571 = vunpack.c.l.b16 %v7247
        %v7572 = vunpack.c.l.b16 %v7248
        %v7573 = vunpack.c.h.b16 %v7248
        %v7574 = vunpack.c.l.b16 %v7249
        %v7575 = vunpack.c.h.b16 %v7249
        %v7576 = vunpack.c.l.b16 %v7250
        %v7577 = vunpack.c.l.b16 %v7251
        %v7578 = vunpack.c.h.b16 %v7251
        %v7579 = vunpack.c.l.b16 %v7252
        %v7580 = vunpack.c.h.b16 %v7252
        %v7581 = vunpack.c.l.b16 %v7253
        %v7582 = vunpack.c.l.b16 %v7254
        %v7583 = vunpack.c.h.b16 %v7254
        %v7584 = vunpack.c.l.b16 %v7255
        %v7585 = vunpack.c.h.b16 %v7255
        %v7586 = vunpack.c.l.b16 %v7256
        %v7587 = vunpack.c.l.b16 %v7257
        %v7588 = vunpack.c.h.b16 %v7257
        %v7589 = vunpack.c.l.b16 %v7258
        %v7590 = vunpack.c.h.b16 %v7258
        %v7591 = vunpack.c.l.b16 %v7259
        %v7592 = vunpack.c.l.b16 %v7260
        %v7593 = vunpack.c.h.b16 %v7260
        %v7594 = vunpack.c.l.b16 %v7261
        %v7595 = vunpack.c.h.b16 %v7261
        %v7596 = vunpack.c.l.b16 %v7262
        %v7597 = vunpack.c.l.b16 %v7263
        %v7598 = vunpack.c.h.b16 %v7263
        %v7599 = vunpack.c.l.b16 %v7264
        %v7600 = vunpack.c.h.b16 %v7264
        %v7601 = vunpack.c.l.b16 %v7265
        %v7602 = vunpack.c.l.b16 %v7266
        %v7603 = vunpack.c.h.b16 %v7266
        %v7604 = vunpack.c.l.b16 %v7267
        %v7605 = vunpack.c.h.b16 %v7267
        %v7606 = vunpack.c.l.b16 %v7268
        %v7607 = vunpack.c.l.b16 %v7269
        %v7608 = vunpack.c.h.b16 %v7269
        %v7609 = vunpack.c.l.b16 %v7270
        %v7610 = vunpack.c.h.b16 %v7270
        %v7611 = vunpack.c.l.b16 %v7271
        %v7612 = vpack.c.b16 %v7417, %v7412
        %v7613 = vpack.c.b16 %v7418, %v7413
        %v7614 = vpack.c.b16 %v7419, %v7414
        %v7615 = vpack.c.b16 %v7420, %v7415
        %v7616 = vpack.c.b16 %v7421, %v7416
        %v7617 = vpack.c.b16 %v7427, %v7422
        %v7618 = vpack.c.b16 %v7428, %v7423
        %v7619 = vpack.c.b16 %v7429, %v7424
        %v7620 = vpack.c.b16 %v7430, %v7425
        %v7621 = vpack.c.b16 %v7431, %v7426
        %v7622 = vpack.c.b16 %v7437, %v7432
        %v7623 = vpack.c.b16 %v7438, %v7433
        %v7624 = vpack.c.b16 %v7439, %v7434
        %v7625 = vpack.c.b16 %v7440, %v7435
        %v7626 = vpack.c.b16 %v7441, %v7436
        %v7627 = vpack.c.b16 %v7447, %v7442
        %v7628 = vpack.c.b16 %v7448, %v7443
        %v7629 = vpack.c.b16 %v7449, %v7444
        %v7630 = vpack.c.b16 %v7450, %v7445
        %v7631 = vpack.c.b16 %v7451, %v7446
        %v7632 = vpack.c.b16 %v7457, %v7452
        %v7633 = vpack.c.b16 %v7458, %v7453
        %v7634 = vpack.c.b16 %v7459, %v7454
        %v7635 = vpack.c.b16 %v7460, %v7455
        %v7636 = vpack.c.b16 %v7461, %v7456
        %v7637 = vpack.c.b16 %v7467, %v7462
        %v7638 = vpack.c.b16 %v7468, %v7463
        %v7639 = vpack.c.b16 %v7469, %v7464
        %v7640 = vpack.c.b16 %v7470, %v7465
        %v7641 = vpack.c.b16 %v7471, %v7466
        %v7642 = vpack.c.b16 %v7477, %v7472
        %v7643 = vpack.c.b16 %v7478, %v7473
        %v7644 = vpack.c.b16 %v7479, %v7474
        %v7645 = vpack.c.b16 %v7480, %v7475
        %v7646 = vpack.c.b16 %v7481, %v7476
        %v7647 = vpack.c.b16 %v7487, %v7482
        %v7648 = vpack.c.b16 %v7488, %v7483
        %v7649 = vpack.c.b16 %v7489, %v7484
        %v7650 = vpack.c.b16 %v7490, %v7485
        %v7651 = vpack.c.b16 %v7491, %v7486
        %v7652 = vpack.c.b16 %v7497, %v7492
        %v7653 = vpack.c.b16 %v7498, %v7493
        %v7654 = vpack.c.b16 %v7499, %v7494
        %v7655 = vpack.c.b16 %v7500, %v7495
        %v7656 = vpack.c.b16 %v7501, %v7496
        %v7657 = vpack.c.b16 %v7507, %v7502
        %v7658 = vpack.c.b16 %v7508, %v7503
        %v7659 = vpack.c.b16 %v7509, %v7504
        %v7660 = vpack.c.b16 %v7510, %v7505
        %v7661 = vpack.c.b16 %v7511, %v7506
        %v7662 = vpack.c.b16 %v7517, %v7512
        %v7663 = vpack.c.b16 %v7518, %v7513
        %v7664 = vpack.c.b16 %v7519, %v7514
        %v7665 = vpack.c.b16 %v7520, %v7515
        %v7666 = vpack.c.b16 %v7521, %v7516
        %v7667 = vpack.c.b16 %v7527, %v7522
        %v7668 = vpack.c.b16 %v7528, %v7523
        %v7669 = vpack.c.b16 %v7529, %v7524
        %v7670 = vpack.c.b16 %v7530, %v7525
        %v7671 = vpack.c.b16 %v7531, %v7526
        %v7672 = vpack.c.b16 %v7537, %v7532
        %v7673 = vpack.c.b16 %v7538, %v7533
        %v7674 = vpack.c.b16 %v7539, %v7534
        %v7675 = vpack.c.b16 %v7540, %v7535
        %v7676 = vpack.c.b16 %v7541, %v7536
        %v7677 = vpack.c.b16 %v7547, %v7542
        %v7678 = vpack.c.b16 %v7548, %v7543
        %v7679 = vpack.c.b16 %v7549, %v7544
        %v7680 = vpack.c.b16 %v7550, %v7545
        %v7681 = vpack.c.b16 %v7551, %v7546
        %v7682 = vpack.c.b16 %v7557, %v7552
        %v7683 = vpack.c.b16 %v7558, %v7553
        %v7684 = vpack.c.b16 %v7559, %v7554
        %v7685 = vpack.c.b16 %v7560, %v7555
        %v7686 = vpack.c.b16 %v7561, %v7556
        %v7687 = vpack.c.b16 %v7567, %v7562
        %v7688 = vpack.c.b16 %v7568, %v7563
        %v7689 = vpack.c.b16 %v7569, %v7564
        %v7690 = vpack.c.b16 %v7570, %v7565
        %v7691 = vpack.c.b16 %v7571, %v7566
        %v7692 = vpack.c.b16 %v7577, %v7572
        %v7693 = vpack.c.b16 %v7578, %v7573
        %v7694 = vpack.c.b16 %v7579, %v7574
        %v7695 = vpack.c.b16 %v7580, %v7575
        %v7696 = vpack.c.b16 %v7581, %v7576
        %v7697 = vpack.c.b16 %v7587, %v7582
        %v7698 = vpack.c.b16 %v7588, %v7583
        %v7699 = vpack.c.b16 %v7589, %v7584
        %v7700 = vpack.c.b16 %v7590, %v7585
        %v7701 = vpack.c.b16 %v7591, %v7586
        %v7702 = vpack.c.b16 %v7597, %v7592
        %v7703 = vpack.c.b16 %v7598, %v7593
        %v7704 = vpack.c.b16 %v7599, %v7594
        %v7705 = vpack.c.b16 %v7600, %v7595
        %v7706 = vpack.c.b16 %v7601, %v7596
        %v7707 = vpack.c.b16 %v7607, %v7602
        %v7708 = vpack.c.b16 %v7608, %v7603
        %v7709 = vpack.c.b16 %v7609, %v7604
        %v7710 = vpack.c.b16 %v7610, %v7605
        %v7711 = vpack.c.b16 %v7611, %v7606
        %v7813 = vsel %vm2235, %v7277, 0
        %v7816 = vsel %vm2235, %v7283, 0
        %7818 = vmatprep.subr.bf16.mxu0 %v7613
        %7819 = vmatpush1.bf16.msra.mxu0 %v7612
        %7820 = vmatprep.subr.bf16.mxu0 %v7618
        %7821 = vmatpush1.bf16.msra.mxu0 %v7617
        %7822 = vmatprep.subr.bf16.mxu0 %v7623
        %7823 = vmatpush1.bf16.msra.mxu0 %v7622
        %7824 = vmatprep.subr.bf16.mxu0 %v7628
        %7825 = vmatpush1.bf16.msra.mxu0 %v7627
        %7826 = vmatprep.subr.bf16.mxu0 %v7633
        %7827 = vmatpush1.bf16.msra.mxu0 %v7632
        %7828 = vmatprep.subr.bf16.mxu0 %v7638
        %7829 = vmatpush1.bf16.msra.mxu0 %v7637
        %7830 = vmatprep.subr.bf16.mxu0 %v7643
        %7831 = vmatpush1.bf16.msra.mxu0 %v7642
        %7832 = vmatprep.subr.bf16.mxu0 %v7648
        %7833 = vmatpush1.bf16.msra.mxu0 %v7647
        %7834 = vmatprep.subr.bf16.mxu0 %v7653
        %7835 = vmatpush1.bf16.msra.mxu0 %v7652
        %7836 = vmatprep.subr.bf16.mxu0 %v7658
        %7837 = vmatpush1.bf16.msra.mxu0 %v7657
        %7838 = vmatprep.subr.bf16.mxu0 %v7663
        %7839 = vmatpush1.bf16.msra.mxu0 %v7662
        %7840 = vmatprep.subr.bf16.mxu0 %v7668
        %7841 = vmatpush1.bf16.msra.mxu0 %v7667
        %7842 = vmatprep.subr.bf16.mxu0 %v7673
        %7843 = vmatpush1.bf16.msra.mxu0 %v7672
        %7844 = vmatprep.subr.bf16.mxu0 %v7678
        %7845 = vmatpush1.bf16.msra.mxu0 %v7677
        %7846 = vmatprep.subr.bf16.mxu0 %v7683
        %7847 = vmatpush1.bf16.msra.mxu0 %v7682
        %7848 = vmatprep.subr.bf16.mxu0 %v7688
        %7849 = vmatpush1.bf16.msra.mxu0 %v7687
        %7850 = vmatprep.mubr.bf16.mxu0 %v7285
        %7851 = vmatmul.mubr.bf16.gmra.mrb[0].mxu0 %v7284
        %v7852 = vpop.f32.mrb[0].mxu0
        %v7853 = vadd.f32 0.0, %v7852
        %v7854 = vpop.f32.mrb[0].mxu0
        %v7855 = vadd.f32 0.0, %v7854
        %v7856 = vpop.f32.mrb[0].mxu0
        %v7857 = vadd.f32 0.0, %v7856
        %v7858 = vpop.f32.mrb[0].mxu0
        %v7859 = vadd.f32 0.0, %v7858
        %7860 = vmatprep.mubr.bf16.mxu0 %v7287
        %7861 = vmatmul.mubr.bf16.gmra.mrb[0].mxu0 %v7286
        %v7862 = vpop.f32.mrb[0].mxu0
        %v7863 = vadd.f32 0.0, %v7862
        %v7864 = vpop.f32.mrb[0].mxu0
        %v7865 = vadd.f32 0.0, %v7864
        %v7866 = vpop.f32.mrb[0].mxu0
        %v7867 = vpop.f32.mrb[0].mxu0
        %7868 = vdwg.mxu0
        %7869 = vmatprep.subr.bf16.mxu0 %v7693
        %7870 = vmatpush1.bf16.msra.mxu0 %v7692
        %7871 = vmatprep.subr.bf16.mxu0 %v7698
        %7872 = vmatpush1.bf16.msra.mxu0 %v7697
        %7873 = vmatprep.subr.bf16.mxu0 %v7703
        %7874 = vmatpush1.bf16.msra.mxu0 %v7702
        %7875 = vmatprep.subr.bf16.mxu0 %v7708
        %7876 = vmatpush1.bf16.msra.mxu0 %v7707
        %7877 = vmatprep.subr.bf16.mxu0 0
        %7878 = vmatpush1.bf16.msra.mxu0 0
        %7879 = vmatprep.subr.bf16.mxu0 0
        %7880 = vmatpush1.bf16.msra.mxu0 0
        %7881 = vmatprep.subr.bf16.mxu0 0
        %7882 = vmatpush1.bf16.msra.mxu0 0
        %7883 = vmatprep.subr.bf16.mxu0 0
        %7884 = vmatpush1.bf16.msra.mxu0 0
        %7885 = vmatprep.subr.bf16.mxu0 0
        %7886 = vmatpush1.bf16.msra.mxu0 0
        %7887 = vmatprep.subr.bf16.mxu0 0
        %7888 = vmatpush1.bf16.msra.mxu0 0
        %7889 = vmatprep.subr.bf16.mxu0 0
        %7890 = vmatpush1.bf16.msra.mxu0 0
        %7891 = vmatprep.subr.bf16.mxu0 0
        %7892 = vmatpush1.bf16.msra.mxu0 0
        %7893 = vmatprep.subr.bf16.mxu0 0
        %7894 = vmatpush1.bf16.msra.mxu0 0
        %7895 = vmatprep.subr.bf16.mxu0 0
        %7896 = vmatpush1.bf16.msra.mxu0 0
        %7897 = vmatprep.subr.bf16.mxu0 0
        %7898 = vmatpush1.bf16.msra.mxu0 0
        %7899 = vmatprep.subr.bf16.mxu0 0
        %7900 = vmatpush1.bf16.msra.mxu0 0
        %7901 = vmatprep.mubr.bf16.mxu0 0
        %7902 = vmatmul.mubr.bf16.gmra.mrb[0].mxu0 %v7813
        %v7903 = vpop.f32.mrb[0].mxu0
        %v7904 = vadd.f32 %v7853, %v7903
        %v7905 = vpop.f32.mrb[0].mxu0
        %v7906 = vadd.f32 %v7855, %v7905
        %v7907 = vpop.f32.mrb[0].mxu0
        %v7908 = vadd.f32 %v7857, %v7907
        %v7909 = vpop.f32.mrb[0].mxu0
        %v7910 = vadd.f32 %v7859, %v7909
        %7911 = vmatprep.mubr.bf16.mxu0 0
        %7912 = vmatmul.mubr.bf16.gmra.mrb[0].mxu0 %v7816
        %v7913 = vpop.f32.mrb[0].mxu0
        %v7914 = vadd.f32 %v7863, %v7913
        %v7915 = vpop.f32.mrb[0].mxu0
        %v7916 = vadd.f32 %v7865, %v7915
        %v7917 = vpop.f32.mrb[0].mxu0
        %v7918 = vpop.f32.mrb[0].mxu0
        %7919 = vdwg.mxu0
        %7920 = vmatprep.subr.bf16.mxu0 %v7615
        %7921 = vmatpush1.bf16.msra.mxu0 %v7614
        %7922 = vmatprep.subr.bf16.mxu0 %v7620
        %7923 = vmatpush1.bf16.msra.mxu0 %v7619
        %7924 = vmatprep.subr.bf16.mxu0 %v7625
        %7925 = vmatpush1.bf16.msra.mxu0 %v7624
        %7926 = vmatprep.subr.bf16.mxu0 %v7630
        %7927 = vmatpush1.bf16.msra.mxu0 %v7629
        %7928 = vmatprep.subr.bf16.mxu0 %v7635
        %7929 = vmatpush1.bf16.msra.mxu0 %v7634
        %7930 = vmatprep.subr.bf16.mxu0 %v7640
        %7931 = vmatpush1.bf16.msra.mxu0 %v7639
        %7932 = vmatprep.subr.bf16.mxu0 %v7645
        %7933 = vmatpush1.bf16.msra.mxu0 %v7644
        %7934 = vmatprep.subr.bf16.mxu0 %v7650
        %7935 = vmatpush1.bf16.msra.mxu0 %v7649
        %7936 = vmatprep.subr.bf16.mxu0 %v7655
        %7937 = vmatpush1.bf16.msra.mxu0 %v7654
        %7938 = vmatprep.subr.bf16.mxu0 %v7660
        %7939 = vmatpush1.bf16.msra.mxu0 %v7659
        %7940 = vmatprep.subr.bf16.mxu0 %v7665
        %7941 = vmatpush1.bf16.msra.mxu0 %v7664
        %7942 = vmatprep.subr.bf16.mxu0 %v7670
        %7943 = vmatpush1.bf16.msra.mxu0 %v7669
        %7944 = vmatprep.subr.bf16.mxu0 %v7675
        %7945 = vmatpush1.bf16.msra.mxu0 %v7674
        %7946 = vmatprep.subr.bf16.mxu0 %v7680
        %7947 = vmatpush1.bf16.msra.mxu0 %v7679
        %7948 = vmatprep.subr.bf16.mxu0 %v7685
        %7949 = vmatpush1.bf16.msra.mxu0 %v7684
        %7950 = vmatprep.subr.bf16.mxu0 %v7690
        %7951 = vmatpush1.bf16.msra.mxu0 %v7689
        %7952 = vmatprep.mubr.bf16.mxu0 %v7285
        %7953 = vmatmul.mubr.bf16.gmra.mrb[0].mxu0 %v7284
        %v7954 = vpop.f32.mrb[0].mxu0
        %v7955 = vadd.f32 0.0, %v7954
        %v7956 = vpop.f32.mrb[0].mxu0
        %v7957 = vadd.f32 0.0, %v7956
        %v7958 = vpop.f32.mrb[0].mxu0
        %v7959 = vadd.f32 0.0, %v7958
        %v7960 = vpop.f32.mrb[0].mxu0
        %v7961 = vadd.f32 0.0, %v7960
        %7962 = vmatprep.mubr.bf16.mxu0 %v7287
        %7963 = vmatmul.mubr.bf16.gmra.mrb[0].mxu0 %v7286
        %v7964 = vpop.f32.mrb[0].mxu0
        %v7965 = vadd.f32 0.0, %v7964
        %v7966 = vpop.f32.mrb[0].mxu0
        %v7967 = vadd.f32 0.0, %v7966
        %v7968 = vpop.f32.mrb[0].mxu0
        %v7969 = vpop.f32.mrb[0].mxu0
        %7970 = vdwg.mxu0
        %7971 = vmatprep.subr.bf16.mxu0 %v7695
        %7972 = vmatpush1.bf16.msra.mxu0 %v7694
        %7973 = vmatprep.subr.bf16.mxu0 %v7700
        %7974 = vmatpush1.bf16.msra.mxu0 %v7699
        %7975 = vmatprep.subr.bf16.mxu0 %v7705
        %7976 = vmatpush1.bf16.msra.mxu0 %v7704
        %7977 = vmatprep.subr.bf16.mxu0 %v7710
        %7978 = vmatpush1.bf16.msra.mxu0 %v7709
        %7979 = vmatprep.subr.bf16.mxu0 0
        %7980 = vmatpush1.bf16.msra.mxu0 0
        %7981 = vmatprep.subr.bf16.mxu0 0
        %7982 = vmatpush1.bf16.msra.mxu0 0
        %7983 = vmatprep.subr.bf16.mxu0 0
        %7984 = vmatpush1.bf16.msra.mxu0 0
        %7985 = vmatprep.subr.bf16.mxu0 0
        %7986 = vmatpush1.bf16.msra.mxu0 0
        %7987 = vmatprep.subr.bf16.mxu0 0
        %7988 = vmatpush1.bf16.msra.mxu0 0
        %7989 = vmatprep.subr.bf16.mxu0 0
        %7990 = vmatpush1.bf16.msra.mxu0 0
        %7991 = vmatprep.subr.bf16.mxu0 0
        %7992 = vmatpush1.bf16.msra.mxu0 0
        %7993 = vmatprep.subr.bf16.mxu0 0
        %7994 = vmatpush1.bf16.msra.mxu0 0
        %7995 = vmatprep.subr.bf16.mxu0 0
        %7996 = vmatpush1.bf16.msra.mxu0 0
        %7997 = vmatprep.subr.bf16.mxu0 0
        %7998 = vmatpush1.bf16.msra.mxu0 0
        %7999 = vmatprep.subr.bf16.mxu0 0
        %8000 = vmatpush1.bf16.msra.mxu0 0
        %8001 = vmatprep.subr.bf16.mxu0 0
        %8002 = vmatpush1.bf16.msra.mxu0 0
        %8003 = vmatprep.mubr.bf16.mxu0 0
        %8004 = vmatmul.mubr.bf16.gmra.mrb[0].mxu0 %v7813
        %v8005 = vpop.f32.mrb[0].mxu0
        %v8006 = vadd.f32 %v7955, %v8005
        %v8007 = vpop.f32.mrb[0].mxu0
        %v8008 = vadd.f32 %v7957, %v8007
        %v8009 = vpop.f32.mrb[0].mxu0
        %v8010 = vadd.f32 %v7959, %v8009
        %v8011 = vpop.f32.mrb[0].mxu0
        %v8012 = vadd.f32 %v7961, %v8011
        %8013 = vmatprep.mubr.bf16.mxu0 0
        %8014 = vmatmul.mubr.bf16.gmra.mrb[0].mxu0 %v7816
        %v8015 = vpop.f32.mrb[0].mxu0
        %v8016 = vadd.f32 %v7965, %v8015
        %v8017 = vpop.f32.mrb[0].mxu0
        %v8018 = vadd.f32 %v7967, %v8017
        %v8019 = vpop.f32.mrb[0].mxu0
        %v8020 = vpop.f32.mrb[0].mxu0
        %8021 = vdwg.mxu0
        %8022 = vmatprep.subr.bf16.mxu0 0
        %8023 = vmatpush1.bf16.msra.mxu0 %v7616
        %8024 = vmatprep.subr.bf16.mxu0 0
        %8025 = vmatpush1.bf16.msra.mxu0 %v7621
        %8026 = vmatprep.subr.bf16.mxu0 0
        %8027 = vmatpush1.bf16.msra.mxu0 %v7626
        %8028 = vmatprep.subr.bf16.mxu0 0
        %8029 = vmatpush1.bf16.msra.mxu0 %v7631
        %8030 = vmatprep.subr.bf16.mxu0 0
        %8031 = vmatpush1.bf16.msra.mxu0 %v7636
        %8032 = vmatprep.subr.bf16.mxu0 0
        %8033 = vmatpush1.bf16.msra.mxu0 %v7641
        %8034 = vmatprep.subr.bf16.mxu0 0
        %8035 = vmatpush1.bf16.msra.mxu0 %v7646
        %8036 = vmatprep.subr.bf16.mxu0 0
        %8037 = vmatpush1.bf16.msra.mxu0 %v7651
        %8038 = vmatprep.subr.bf16.mxu0 0
        %8039 = vmatpush1.bf16.msra.mxu0 %v7656
        %8040 = vmatprep.subr.bf16.mxu0 0
        %8041 = vmatpush1.bf16.msra.mxu0 %v7661
        %8042 = vmatprep.subr.bf16.mxu0 0
        %8043 = vmatpush1.bf16.msra.mxu0 %v7666
        %8044 = vmatprep.subr.bf16.mxu0 0
        %8045 = vmatpush1.bf16.msra.mxu0 %v7671
        %8046 = vmatprep.subr.bf16.mxu0 0
        %8047 = vmatpush1.bf16.msra.mxu0 %v7676
        %8048 = vmatprep.subr.bf16.mxu0 0
        %8049 = vmatpush1.bf16.msra.mxu0 %v7681
        %8050 = vmatprep.subr.bf16.mxu0 0
        %8051 = vmatpush1.bf16.msra.mxu0 %v7686
        %8052 = vmatprep.subr.bf16.mxu0 0
        %8053 = vmatpush1.bf16.msra.mxu0 %v7691
        %8054 = vmatprep.mubr.bf16.mxu0 %v7285
        %8055 = vmatmul.mubr.bf16.gmra.mrb[0].mxu0 %v7284
        %v8056 = vpop.f32.mrb[0].mxu0
        %v8057 = vadd.f32 0.0, %v8056
        %v8058 = vpop.f32.mrb[0].mxu0
        %v8059 = vpop.f32.mrb[0].mxu0
        %v8060 = vadd.f32 0.0, %v8059
        %v8061 = vpop.f32.mrb[0].mxu0
        %8062 = vmatprep.mubr.bf16.mxu0 %v7287
        %8063 = vmatmul.mubr.bf16.gmra.mrb[0].mxu0 %v7286
        %v8064 = vpop.f32.mrb[0].mxu0
        %v8065 = vadd.f32 0.0, %v8064
        %v8066 = vpop.f32.mrb[0].mxu0
        %v8067 = vpop.f32.mrb[0].mxu0
        %v8068 = vpop.f32.mrb[0].mxu0
        %8069 = vdwg.mxu0
        %8070 = vmatprep.subr.bf16.mxu0 0
        %8071 = vmatpush1.bf16.msra.mxu0 %v7696
        %8072 = vmatprep.subr.bf16.mxu0 0
        %8073 = vmatpush1.bf16.msra.mxu0 %v7701
        %8074 = vmatprep.subr.bf16.mxu0 0
        %8075 = vmatpush1.bf16.msra.mxu0 %v7706
        %8076 = vmatprep.subr.bf16.mxu0 0
        %8077 = vmatpush1.bf16.msra.mxu0 %v7711
        %8078 = vmatprep.subr.bf16.mxu0 0
        %8079 = vmatpush1.bf16.msra.mxu0 0
        %8080 = vmatprep.subr.bf16.mxu0 0
        %8081 = vmatpush1.bf16.msra.mxu0 0
        %8082 = vmatprep.subr.bf16.mxu0 0
        %8083 = vmatpush1.bf16.msra.mxu0 0
        %8084 = vmatprep.subr.bf16.mxu0 0
        %8085 = vmatpush1.bf16.msra.mxu0 0
        %8086 = vmatprep.subr.bf16.mxu0 0
        %8087 = vmatpush1.bf16.msra.mxu0 0
        %8088 = vmatprep.subr.bf16.mxu0 0
        %8089 = vmatpush1.bf16.msra.mxu0 0
        %8090 = vmatprep.subr.bf16.mxu0 0
        %8091 = vmatpush1.bf16.msra.mxu0 0
        %8092 = vmatprep.subr.bf16.mxu0 0
        %8093 = vmatpush1.bf16.msra.mxu0 0
        %8094 = vmatprep.subr.bf16.mxu0 0
        %8095 = vmatpush1.bf16.msra.mxu0 0
        %8096 = vmatprep.subr.bf16.mxu0 0
        %8097 = vmatpush1.bf16.msra.mxu0 0
        %8098 = vmatprep.subr.bf16.mxu0 0
        %8099 = vmatpush1.bf16.msra.mxu0 0
        %8100 = vmatprep.subr.bf16.mxu0 0
        %8101 = vmatpush1.bf16.msra.mxu0 0
        %8102 = vmatprep.mubr.bf16.mxu0 0
        %8103 = vmatmul.mubr.bf16.gmra.mrb[0].mxu0 %v7813
        %v8104 = vpop.f32.mrb[0].mxu0
        %v8105 = vadd.f32 %v8057, %v8104
        %v8106 = vpop.f32.mrb[0].mxu0
        %v8107 = vpop.f32.mrb[0].mxu0
        %v8108 = vadd.f32 %v8060, %v8107
        %v8109 = vpop.f32.mrb[0].mxu0
        %8110 = vmatprep.mubr.bf16.mxu0 0
        %8111 = vmatmul.mubr.bf16.gmra.mrb[0].mxu0 %v7816
        %v8112 = vpop.f32.mrb[0].mxu0
        %v8113 = vadd.f32 %v8065, %v8112
        %v8114 = vpop.f32.mrb[0].mxu0
        %v8115 = vpop.f32.mrb[0].mxu0
        %v8116 = vpop.f32.mrb[0].mxu0
        %8117 = vdwg.mxu0
        %v8118 = vadd.f32 %v7136, %v7904
        %v8119 = vadd.f32 %v7137, %v7906
        %v8120 = vadd.f32 %v7138, %v8006
        %v8121 = vadd.f32 %v7139, %v8008
        %v8122 = vadd.f32 %v7140, %v8105
        %v8123 = vadd.f32 %v7141, %v7908
        %v8124 = vadd.f32 %v7142, %v7910
        %v8125 = vadd.f32 %v7143, %v8010
        %v8126 = vadd.f32 %v7144, %v8012
        %v8127 = vadd.f32 %v7145, %v8108
        %v8128 = vadd.f32 %v7146, %v7914
        %v8129 = vadd.f32 %v7147, %v7916
        %v8130 = vadd.f32 %v7148, %v8016
        %v8131 = vadd.f32 %v7149, %v8018
        %v8132 = vadd.f32 %v7150, %v8113
        %s8133 = scalar_lea.vmem [#allocation8], 4800
        %v8134 = vld [vmem:[%s8133] sm:$0xff]
        %v8135 = vld [vmem:[%s8133 + $0x8] sm:$0xff]
        %v8136 = vld [vmem:[%s8133 + $0x10] sm:$0xf]
        %v8137 = vld [vmem:[%s8133 + $0x14] sm:$0xff]
        %v8138 = vld [vmem:[%s8133 + $0x1c] sm:$0xff]
        %v8139 = vld [vmem:[%s8133 + $0x24] sm:$0xf]
        %v8140 = vld [vmem:[%s8133 + $0x28] sm:$0xff]
        %v8141 = vld [vmem:[%s8133 + $0x30] sm:$0xff]
        %v8142 = vld [vmem:[%s8133 + $0x38] sm:$0xf]
        %v8143 = vld [vmem:[%s8133 + $0x3c] sm:$0xff]
        %v8144 = vld [vmem:[%s8133 + $0x44] sm:$0xff]
        %v8145 = vld [vmem:[%s8133 + $0x4c] sm:$0xf]
        %v8146 = vld [vmem:[%s8133 + $0x50] sm:$0xff]
        %v8147 = vld [vmem:[%s8133 + $0x58] sm:$0xff]
        %v8148 = vld [vmem:[%s8133 + $0x60] sm:$0xf]
        %v8149 = vld [vmem:[%s8133 + $0x64] sm:$0xff]
        %v8150 = vld [vmem:[%s8133 + $0x6c] sm:$0xff]
        %v8151 = vld [vmem:[%s8133 + $0x74] sm:$0xf]
        %v8152 = vld [vmem:[%s8133 + $0x78] sm:$0xff]
        %v8153 = vld [vmem:[%s8133 + $0x80] sm:$0xff]
        %v8154 = vld [vmem:[%s8133 + $0x88] sm:$0xf]
        %v8155 = vld [vmem:[%s8133 + $0x8c] sm:$0xff]
        %v8156 = vld [vmem:[%s8133 + $0x94] sm:$0xff]
        %v8157 = vld [vmem:[%s8133 + $0x9c] sm:$0xf]
        %v8158 = vld [vmem:[%s8133 + $0xa0] sm:$0xff]
        %v8159 = vld [vmem:[%s8133 + $0xa8] sm:$0xff]
        %v8160 = vld [vmem:[%s8133 + $0xb0] sm:$0xf]
        %v8161 = vld [vmem:[%s8133 + $0xb4] sm:$0xff]
        %v8162 = vld [vmem:[%s8133 + $0xbc] sm:$0xff]
        %v8163 = vld [vmem:[%s8133 + $0xc4] sm:$0xf]
        %v8164 = vld [vmem:[%s8133 + $0xc8] sm:$0xff]
        %v8165 = vld [vmem:[%s8133 + $0xd0] sm:$0xff]
        %v8166 = vld [vmem:[%s8133 + $0xd8] sm:$0xf]
        %v8167 = vld [vmem:[%s8133 + $0xdc] sm:$0xff]
        %v8168 = vld [vmem:[%s8133 + $0xe4] sm:$0xff]
        %v8169 = vld [vmem:[%s8133 + $0xec] sm:$0xf]
        %v8170 = vld [vmem:[%s8133 + $0xf0] sm:$0xff]
        %v8171 = vld [vmem:[%s8133 + $0xf8] sm:$0xff]
        %v8172 = vld [vmem:[%s8133 + $0x100] sm:$0xf]
        %v8173 = vld [vmem:[%s8133 + $0x104] sm:$0xff]
        %v8174 = vld [vmem:[%s8133 + $0x10c] sm:$0xff]
        %v8175 = vld [vmem:[%s8133 + $0x114] sm:$0xf]
        %v8176 = vld [vmem:[%s8133 + $0x118] sm:$0xff]
        %v8177 = vld [vmem:[%s8133 + $0x120] sm:$0xff]
        %v8178 = vld [vmem:[%s8133 + $0x128] sm:$0xf]
        %v8179 = vld [vmem:[%s8133 + $0x12c] sm:$0xff]
        %v8180 = vld [vmem:[%s8133 + $0x134] sm:$0xff]
        %v8181 = vld [vmem:[%s8133 + $0x13c] sm:$0xf]
        %v8182 = vld [vmem:[%s8133 + $0x140] sm:$0xff]
        %v8183 = vld [vmem:[%s8133 + $0x148] sm:$0xff]
        %v8184 = vld [vmem:[%s8133 + $0x150] sm:$0xf]
        %v8185 = vld [vmem:[%s8133 + $0x154] sm:$0xff]
        %v8186 = vld [vmem:[%s8133 + $0x15c] sm:$0xff]
        %v8187 = vld [vmem:[%s8133 + $0x164] sm:$0xf]
        %v8188 = vld [vmem:[%s8133 + $0x168] sm:$0xff]
        %v8189 = vld [vmem:[%s8133 + $0x170] sm:$0xff]
        %v8190 = vld [vmem:[%s8133 + $0x178] sm:$0xf]
        %v8191 = vld [vmem:[%s8133 + $0x17c] sm:$0xff]
        %v8192 = vld [vmem:[%s8133 + $0x184] sm:$0xff]
        %v8193 = vld [vmem:[%s8133 + $0x18c] sm:$0xf]
        %v8194 = vld [vmem:[%s8133 + $0x190] sm:$0xff]
        %v8195 = vld [vmem:[%s8133 + $0x198] sm:$0xff]
        %v8196 = vld [vmem:[%s8133 + $0x1a0] sm:$0xf]
        %v8197 = vld [vmem:[%s8133 + $0x1a4] sm:$0xff]
        %v8198 = vld [vmem:[%s8133 + $0x1ac] sm:$0xff]
        %v8199 = vld [vmem:[%s8133 + $0x1b4] sm:$0xf]
        %v8200 = vld [vmem:[%s8133 + $0x1b8] sm:$0xff]
        %v8201 = vld [vmem:[%s8133 + $0x1c0] sm:$0xff]
        %v8202 = vld [vmem:[%s8133 + $0x1c8] sm:$0xf]
        %v8203 = vld [vmem:[%s8133 + $0x1cc] sm:$0xff]
        %v8204 = vld [vmem:[%s8133 + $0x1d4] sm:$0xff]
        %v8205 = vld [vmem:[%s8133 + $0x1dc] sm:$0xf]
        %v8206 = vld [vmem:[%s8133 + $0x1e0] sm:$0xff]
        %v8207 = vld [vmem:[%s8133 + $0x1e8] sm:$0xff]
        %v8208 = vld [vmem:[%s8133 + $0x1f0] sm:$0xf]
        %v8209 = vld [vmem:[%s8133 + $0x1f4] sm:$0xff]
        %v8210 = vld [vmem:[%s8133 + $0x1fc] sm:$0xff]
        %v8211 = vld [vmem:[%s8133 + $0x204] sm:$0xf]
        %v8212 = vld [vmem:[%s8133 + $0x208] sm:$0xff]
        %v8213 = vld [vmem:[%s8133 + $0x210] sm:$0xff]
        %v8214 = vld [vmem:[%s8133 + $0x218] sm:$0xf]
        %v8215 = vld [vmem:[%s8133 + $0x21c] sm:$0xff]
        %v8216 = vld [vmem:[%s8133 + $0x224] sm:$0xff]
        %v8217 = vld [vmem:[%s8133 + $0x22c] sm:$0xf]
        %v8218 = vld [vmem:[%s8133 + $0x230] sm:$0xff]
        %v8219 = vld [vmem:[%s8133 + $0x238] sm:$0xff]
        %v8220 = vld [vmem:[%s8133 + $0x240] sm:$0xf]
        %v8221 = vld [vmem:[%s8133 + $0x244] sm:$0xff]
        %v8222 = vld [vmem:[%s8133 + $0x24c] sm:$0xff]
        %v8223 = vld [vmem:[%s8133 + $0x254] sm:$0xf]
        %v8224 = vld [vmem:[%s8133 + $0x258] sm:$0xff]
        %v8225 = vld [vmem:[%s8133 + $0x260] sm:$0xff]
        %v8226 = vld [vmem:[%s8133 + $0x268] sm:$0xf]
        %v8227 = vld [vmem:[%s8133 + $0x26c] sm:$0xff]
        %v8228 = vld [vmem:[%s8133 + $0x274] sm:$0xff]
        %v8229 = vld [vmem:[%s8133 + $0x27c] sm:$0xf]
        %v8230 = vld [vmem:[%s8133 + $0x280] sm:$0xff]
        %v8231 = vld [vmem:[%s8133 + $0x288] sm:$0xff]
        %v8232 = vld [vmem:[%s8133 + $0x290] sm:$0xf]
        %v8233 = vld [vmem:[%s8133 + $0x294] sm:$0xff]
        %v8234 = vld [vmem:[%s8133 + $0x29c] sm:$0xff]
        %v8235 = vld [vmem:[%s8133 + $0x2a4] sm:$0xf]
        %v8236 = vld [vmem:[%s8133 + $0x2a8] sm:$0xff]
        %v8237 = vld [vmem:[%s8133 + $0x2b0] sm:$0xff]
        %v8238 = vld [vmem:[%s8133 + $0x2b8] sm:$0xf]
        %v8239 = vld [vmem:[%s8133 + $0x2bc] sm:$0xff]
        %v8240 = vld [vmem:[%s8133 + $0x2c4] sm:$0xff]
        %v8241 = vld [vmem:[%s8133 + $0x2cc] sm:$0xf]
        %v8242 = vld [vmem:[%s8133 + $0x2d0] sm:$0xff]
        %v8243 = vld [vmem:[%s8133 + $0x2d8] sm:$0xff]
        %v8244 = vld [vmem:[%s8133 + $0x2e0] sm:$0xf]
        %v8245 = vld [vmem:[%s8133 + $0x2e4] sm:$0xff]
        %v8246 = vld [vmem:[%s8133 + $0x2ec] sm:$0xff]
        %v8247 = vld [vmem:[%s8133 + $0x2f4] sm:$0xf]
        %v8248 = vld [vmem:[%s8133 + $0x2f8] sm:$0xff]
        %v8249 = vld [vmem:[%s8133 + $0x300] sm:$0xff]
        %v8250 = vld [vmem:[%s8133 + $0x308] sm:$0xf]
        %v8251 = vld [vmem:[%s8133 + $0x30c] sm:$0xff]
        %v8252 = vld [vmem:[%s8133 + $0x314] sm:$0xff]
        %v8253 = vld [vmem:[%s8133 + $0x31c] sm:$0xf]
        %v8254 = vrot.slane %v2251, 1
        %v8255 = vrot.slane %v2254, 1
        %v8256 = vsel %vm1543, %v8254, %v8255
        %v8257 = vrot.slane %v2252, 1
        %v8258 = vrot.slane %v2255, 1
        %v8259 = vsel %vm1543, %v8257, %v8258
        %v8260 = vrot.slane %v2253, 1
        %v8261 = vrot.slane %v2256, 1
        %v8262 = vsel %vm1543, %v8260, %v8261
        %v8387 = vunpack.c.l.b16 %v8134
        %v8388 = vunpack.c.h.b16 %v8134
        %v8389 = vunpack.c.l.b16 %v8135
        %v8390 = vunpack.c.h.b16 %v8135
        %v8391 = vunpack.c.l.b16 %v8136
        %v8392 = vunpack.c.l.b16 %v8137
        %v8393 = vunpack.c.h.b16 %v8137
        %v8394 = vunpack.c.l.b16 %v8138
        %v8395 = vunpack.c.h.b16 %v8138
        %v8396 = vunpack.c.l.b16 %v8139
        %v8397 = vunpack.c.l.b16 %v8140
        %v8398 = vunpack.c.h.b16 %v8140
        %v8399 = vunpack.c.l.b16 %v8141
        %v8400 = vunpack.c.h.b16 %v8141
        %v8401 = vunpack.c.l.b16 %v8142
        %v8402 = vunpack.c.l.b16 %v8143
        %v8403 = vunpack.c.h.b16 %v8143
        %v8404 = vunpack.c.l.b16 %v8144
        %v8405 = vunpack.c.h.b16 %v8144
        %v8406 = vunpack.c.l.b16 %v8145
        %v8407 = vunpack.c.l.b16 %v8146
        %v8408 = vunpack.c.h.b16 %v8146
        %v8409 = vunpack.c.l.b16 %v8147
        %v8410 = vunpack.c.h.b16 %v8147
        %v8411 = vunpack.c.l.b16 %v8148
        %v8412 = vunpack.c.l.b16 %v8149
        %v8413 = vunpack.c.h.b16 %v8149
        %v8414 = vunpack.c.l.b16 %v8150
        %v8415 = vunpack.c.h.b16 %v8150
        %v8416 = vunpack.c.l.b16 %v8151
        %v8417 = vunpack.c.l.b16 %v8152
        %v8418 = vunpack.c.h.b16 %v8152
        %v8419 = vunpack.c.l.b16 %v8153
        %v8420 = vunpack.c.h.b16 %v8153
        %v8421 = vunpack.c.l.b16 %v8154
        %v8422 = vunpack.c.l.b16 %v8155
        %v8423 = vunpack.c.h.b16 %v8155
        %v8424 = vunpack.c.l.b16 %v8156
        %v8425 = vunpack.c.h.b16 %v8156
        %v8426 = vunpack.c.l.b16 %v8157
        %v8427 = vunpack.c.l.b16 %v8158
        %v8428 = vunpack.c.h.b16 %v8158
        %v8429 = vunpack.c.l.b16 %v8159
        %v8430 = vunpack.c.h.b16 %v8159
        %v8431 = vunpack.c.l.b16 %v8160
        %v8432 = vunpack.c.l.b16 %v8161
        %v8433 = vunpack.c.h.b16 %v8161
        %v8434 = vunpack.c.l.b16 %v8162
        %v8435 = vunpack.c.h.b16 %v8162
        %v8436 = vunpack.c.l.b16 %v8163
        %v8437 = vunpack.c.l.b16 %v8164
        %v8438 = vunpack.c.h.b16 %v8164
        %v8439 = vunpack.c.l.b16 %v8165
        %v8440 = vunpack.c.h.b16 %v8165
        %v8441 = vunpack.c.l.b16 %v8166
        %v8442 = vunpack.c.l.b16 %v8167
        %v8443 = vunpack.c.h.b16 %v8167
        %v8444 = vunpack.c.l.b16 %v8168
        %v8445 = vunpack.c.h.b16 %v8168
        %v8446 = vunpack.c.l.b16 %v8169
        %v8447 = vunpack.c.l.b16 %v8170
        %v8448 = vunpack.c.h.b16 %v8170
        %v8449 = vunpack.c.l.b16 %v8171
        %v8450 = vunpack.c.h.b16 %v8171
        %v8451 = vunpack.c.l.b16 %v8172
        %v8452 = vunpack.c.l.b16 %v8173
        %v8453 = vunpack.c.h.b16 %v8173
        %v8454 = vunpack.c.l.b16 %v8174
        %v8455 = vunpack.c.h.b16 %v8174
        %v8456 = vunpack.c.l.b16 %v8175
        %v8457 = vunpack.c.l.b16 %v8176
        %v8458 = vunpack.c.h.b16 %v8176
        %v8459 = vunpack.c.l.b16 %v8177
        %v8460 = vunpack.c.h.b16 %v8177
        %v8461 = vunpack.c.l.b16 %v8178
        %v8462 = vunpack.c.l.b16 %v8179
        %v8463 = vunpack.c.h.b16 %v8179
        %v8464 = vunpack.c.l.b16 %v8180
        %v8465 = vunpack.c.h.b16 %v8180
        %v8466 = vunpack.c.l.b16 %v8181
        %v8467 = vunpack.c.l.b16 %v8182
        %v8468 = vunpack.c.h.b16 %v8182
        %v8469 = vunpack.c.l.b16 %v8183
        %v8470 = vunpack.c.h.b16 %v8183
        %v8471 = vunpack.c.l.b16 %v8184
        %v8472 = vunpack.c.l.b16 %v8185
        %v8473 = vunpack.c.h.b16 %v8185
        %v8474 = vunpack.c.l.b16 %v8186
        %v8475 = vunpack.c.h.b16 %v8186
        %v8476 = vunpack.c.l.b16 %v8187
        %v8477 = vunpack.c.l.b16 %v8188
        %v8478 = vunpack.c.h.b16 %v8188
        %v8479 = vunpack.c.l.b16 %v8189
        %v8480 = vunpack.c.h.b16 %v8189
        %v8481 = vunpack.c.l.b16 %v8190
        %v8482 = vunpack.c.l.b16 %v8191
        %v8483 = vunpack.c.h.b16 %v8191
        %v8484 = vunpack.c.l.b16 %v8192
        %v8485 = vunpack.c.h.b16 %v8192
        %v8486 = vunpack.c.l.b16 %v8193
        %v8487 = vunpack.c.l.b16 %v8194
        %v8488 = vunpack.c.h.b16 %v8194
        %v8489 = vunpack.c.l.b16 %v8195
        %v8490 = vunpack.c.h.b16 %v8195
        %v8491 = vunpack.c.l.b16 %v8196
        %v8492 = vunpack.c.l.b16 %v8197
        %v8493 = vunpack.c.h.b16 %v8197
        %v8494 = vunpack.c.l.b16 %v8198
        %v8495 = vunpack.c.h.b16 %v8198
        %v8496 = vunpack.c.l.b16 %v8199
        %v8497 = vunpack.c.l.b16 %v8200
        %v8498 = vunpack.c.h.b16 %v8200
        %v8499 = vunpack.c.l.b16 %v8201
        %v8500 = vunpack.c.h.b16 %v8201
        %v8501 = vunpack.c.l.b16 %v8202
        %v8502 = vunpack.c.l.b16 %v8203
        %v8503 = vunpack.c.h.b16 %v8203
        %v8504 = vunpack.c.l.b16 %v8204
        %v8505 = vunpack.c.h.b16 %v8204
        %v8506 = vunpack.c.l.b16 %v8205
        %v8507 = vunpack.c.l.b16 %v8206
        %v8508 = vunpack.c.h.b16 %v8206
        %v8509 = vunpack.c.l.b16 %v8207
        %v8510 = vunpack.c.h.b16 %v8207
        %v8511 = vunpack.c.l.b16 %v8208
        %v8512 = vunpack.c.l.b16 %v8209
        %v8513 = vunpack.c.h.b16 %v8209
        %v8514 = vunpack.c.l.b16 %v8210
        %v8515 = vunpack.c.h.b16 %v8210
        %v8516 = vunpack.c.l.b16 %v8211
        %v8517 = vunpack.c.l.b16 %v8212
        %v8518 = vunpack.c.h.b16 %v8212
        %v8519 = vunpack.c.l.b16 %v8213
        %v8520 = vunpack.c.h.b16 %v8213
        %v8521 = vunpack.c.l.b16 %v8214
        %v8522 = vunpack.c.l.b16 %v8215
        %v8523 = vunpack.c.h.b16 %v8215
        %v8524 = vunpack.c.l.b16 %v8216
        %v8525 = vunpack.c.h.b16 %v8216
        %v8526 = vunpack.c.l.b16 %v8217
        %v8527 = vunpack.c.l.b16 %v8218
        %v8528 = vunpack.c.h.b16 %v8218
        %v8529 = vunpack.c.l.b16 %v8219
        %v8530 = vunpack.c.h.b16 %v8219
        %v8531 = vunpack.c.l.b16 %v8220
        %v8532 = vunpack.c.l.b16 %v8221
        %v8533 = vunpack.c.h.b16 %v8221
        %v8534 = vunpack.c.l.b16 %v8222
        %v8535 = vunpack.c.h.b16 %v8222
        %v8536 = vunpack.c.l.b16 %v8223
        %v8537 = vunpack.c.l.b16 %v8224
        %v8538 = vunpack.c.h.b16 %v8224
        %v8539 = vunpack.c.l.b16 %v8225
        %v8540 = vunpack.c.h.b16 %v8225
        %v8541 = vunpack.c.l.b16 %v8226
        %v8542 = vunpack.c.l.b16 %v8227
        %v8543 = vunpack.c.h.b16 %v8227
        %v8544 = vunpack.c.l.b16 %v8228
        %v8545 = vunpack.c.h.b16 %v8228
        %v8546 = vunpack.c.l.b16 %v8229
        %v8547 = vunpack.c.l.b16 %v8230
        %v8548 = vunpack.c.h.b16 %v8230
        %v8549 = vunpack.c.l.b16 %v8231
        %v8550 = vunpack.c.h.b16 %v8231
        %v8551 = vunpack.c.l.b16 %v8232
        %v8552 = vunpack.c.l.b16 %v8233
        %v8553 = vunpack.c.h.b16 %v8233
        %v8554 = vunpack.c.l.b16 %v8234
        %v8555 = vunpack.c.h.b16 %v8234
        %v8556 = vunpack.c.l.b16 %v8235
        %v8557 = vunpack.c.l.b16 %v8236
        %v8558 = vunpack.c.h.b16 %v8236
        %v8559 = vunpack.c.l.b16 %v8237
        %v8560 = vunpack.c.h.b16 %v8237
        %v8561 = vunpack.c.l.b16 %v8238
        %v8562 = vunpack.c.l.b16 %v8239
        %v8563 = vunpack.c.h.b16 %v8239
        %v8564 = vunpack.c.l.b16 %v8240
        %v8565 = vunpack.c.h.b16 %v8240
        %v8566 = vunpack.c.l.b16 %v8241
        %v8567 = vunpack.c.l.b16 %v8242
        %v8568 = vunpack.c.h.b16 %v8242
        %v8569 = vunpack.c.l.b16 %v8243
        %v8570 = vunpack.c.h.b16 %v8243
        %v8571 = vunpack.c.l.b16 %v8244
        %v8572 = vunpack.c.l.b16 %v8245
        %v8573 = vunpack.c.h.b16 %v8245
        %v8574 = vunpack.c.l.b16 %v8246
        %v8575 = vunpack.c.h.b16 %v8246
        %v8576 = vunpack.c.l.b16 %v8247
        %v8577 = vunpack.c.l.b16 %v8248
        %v8578 = vunpack.c.h.b16 %v8248
        %v8579 = vunpack.c.l.b16 %v8249
        %v8580 = vunpack.c.h.b16 %v8249
        %v8581 = vunpack.c.l.b16 %v8250
        %v8582 = vunpack.c.l.b16 %v8251
        %v8583 = vunpack.c.h.b16 %v8251
        %v8584 = vunpack.c.l.b16 %v8252
        %v8585 = vunpack.c.h.b16 %v8252
        %v8586 = vunpack.c.l.b16 %v8253
        %v8587 = vpack.c.b16 %v8392, %v8387
        %v8588 = vpack.c.b16 %v8393, %v8388
        %v8589 = vpack.c.b16 %v8394, %v8389
        %v8590 = vpack.c.b16 %v8395, %v8390
        %v8591 = vpack.c.b16 %v8396, %v8391
        %v8592 = vpack.c.b16 %v8402, %v8397
        %v8593 = vpack.c.b16 %v8403, %v8398
        %v8594 = vpack.c.b16 %v8404, %v8399
        %v8595 = vpack.c.b16 %v8405, %v8400
        %v8596 = vpack.c.b16 %v8406, %v8401
        %v8597 = vpack.c.b16 %v8412, %v8407
        %v8598 = vpack.c.b16 %v8413, %v8408
        %v8599 = vpack.c.b16 %v8414, %v8409
        %v8600 = vpack.c.b16 %v8415, %v8410
        %v8601 = vpack.c.b16 %v8416, %v8411
        %v8602 = vpack.c.b16 %v8422, %v8417
        %v8603 = vpack.c.b16 %v8423, %v8418
        %v8604 = vpack.c.b16 %v8424, %v8419
        %v8605 = vpack.c.b16 %v8425, %v8420
        %v8606 = vpack.c.b16 %v8426, %v8421
        %v8607 = vpack.c.b16 %v8432, %v8427
        %v8608 = vpack.c.b16 %v8433, %v8428
        %v8609 = vpack.c.b16 %v8434, %v8429
        %v8610 = vpack.c.b16 %v8435, %v8430
        %v8611 = vpack.c.b16 %v8436, %v8431
        %v8612 = vpack.c.b16 %v8442, %v8437
        %v8613 = vpack.c.b16 %v8443, %v8438
        %v8614 = vpack.c.b16 %v8444, %v8439
        %v8615 = vpack.c.b16 %v8445, %v8440
        %v8616 = vpack.c.b16 %v8446, %v8441
        %v8617 = vpack.c.b16 %v8452, %v8447
        %v8618 = vpack.c.b16 %v8453, %v8448
        %v8619 = vpack.c.b16 %v8454, %v8449
        %v8620 = vpack.c.b16 %v8455, %v8450
        %v8621 = vpack.c.b16 %v8456, %v8451
        %v8622 = vpack.c.b16 %v8462, %v8457
        %v8623 = vpack.c.b16 %v8463, %v8458
        %v8624 = vpack.c.b16 %v8464, %v8459
        %v8625 = vpack.c.b16 %v8465, %v8460
        %v8626 = vpack.c.b16 %v8466, %v8461
        %v8627 = vpack.c.b16 %v8472, %v8467
        %v8628 = vpack.c.b16 %v8473, %v8468
        %v8629 = vpack.c.b16 %v8474, %v8469
        %v8630 = vpack.c.b16 %v8475, %v8470
        %v8631 = vpack.c.b16 %v8476, %v8471
        %v8632 = vpack.c.b16 %v8482, %v8477
        %v8633 = vpack.c.b16 %v8483, %v8478
        %v8634 = vpack.c.b16 %v8484, %v8479
        %v8635 = vpack.c.b16 %v8485, %v8480
        %v8636 = vpack.c.b16 %v8486, %v8481
        %v8637 = vpack.c.b16 %v8492, %v8487
        %v8638 = vpack.c.b16 %v8493, %v8488
        %v8639 = vpack.c.b16 %v8494, %v8489
        %v8640 = vpack.c.b16 %v8495, %v8490
        %v8641 = vpack.c.b16 %v8496, %v8491
        %v8642 = vpack.c.b16 %v8502, %v8497
        %v8643 = vpack.c.b16 %v8503, %v8498
        %v8644 = vpack.c.b16 %v8504, %v8499
        %v8645 = vpack.c.b16 %v8505, %v8500
        %v8646 = vpack.c.b16 %v8506, %v8501
        %v8647 = vpack.c.b16 %v8512, %v8507
        %v8648 = vpack.c.b16 %v8513, %v8508
        %v8649 = vpack.c.b16 %v8514, %v8509
        %v8650 = vpack.c.b16 %v8515, %v8510
        %v8651 = vpack.c.b16 %v8516, %v8511
        %v8652 = vpack.c.b16 %v8522, %v8517
        %v8653 = vpack.c.b16 %v8523, %v8518
        %v8654 = vpack.c.b16 %v8524, %v8519
        %v8655 = vpack.c.b16 %v8525, %v8520
        %v8656 = vpack.c.b16 %v8526, %v8521
        %v8657 = vpack.c.b16 %v8532, %v8527
        %v8658 = vpack.c.b16 %v8533, %v8528
        %v8659 = vpack.c.b16 %v8534, %v8529
        %v8660 = vpack.c.b16 %v8535, %v8530
        %v8661 = vpack.c.b16 %v8536, %v8531
        %v8662 = vpack.c.b16 %v8542, %v8537
        %v8663 = vpack.c.b16 %v8543, %v8538
        %v8664 = vpack.c.b16 %v8544, %v8539
        %v8665 = vpack.c.b16 %v8545, %v8540
        %v8666 = vpack.c.b16 %v8546, %v8541
        %v8667 = vpack.c.b16 %v8552, %v8547
        %v8668 = vpack.c.b16 %v8553, %v8548
        %v8669 = vpack.c.b16 %v8554, %v8549
        %v8670 = vpack.c.b16 %v8555, %v8550
        %v8671 = vpack.c.b16 %v8556, %v8551
        %v8672 = vpack.c.b16 %v8562, %v8557
        %v8673 = vpack.c.b16 %v8563, %v8558
        %v8674 = vpack.c.b16 %v8564, %v8559
        %v8675 = vpack.c.b16 %v8565, %v8560
        %v8676 = vpack.c.b16 %v8566, %v8561
        %v8677 = vpack.c.b16 %v8572, %v8567
        %v8678 = vpack.c.b16 %v8573, %v8568
        %v8679 = vpack.c.b16 %v8574, %v8569
        %v8680 = vpack.c.b16 %v8575, %v8570
        %v8681 = vpack.c.b16 %v8576, %v8571
        %v8682 = vpack.c.b16 %v8582, %v8577
        %v8683 = vpack.c.b16 %v8583, %v8578
        %v8684 = vpack.c.b16 %v8584, %v8579
        %v8685 = vpack.c.b16 %v8585, %v8580
        %v8686 = vpack.c.b16 %v8586, %v8581
        %v8788 = vsel %vm2235, %v8262, 0
        %v8791 = vsel %vm2235, %v8261, 0
        %8793 = vmatprep.subr.bf16.mxu0 %v8588
        %8794 = vmatpush1.bf16.msra.mxu0 %v8587
        %8795 = vmatprep.subr.bf16.mxu0 %v8593
        %8796 = vmatpush1.bf16.msra.mxu0 %v8592
        %8797 = vmatprep.subr.bf16.mxu0 %v8598
        %8798 = vmatpush1.bf16.msra.mxu0 %v8597
        %8799 = vmatprep.subr.bf16.mxu0 %v8603
        %8800 = vmatpush1.bf16.msra.mxu0 %v8602
        %8801 = vmatprep.subr.bf16.mxu0 %v8608
        %8802 = vmatpush1.bf16.msra.mxu0 %v8607
        %8803 = vmatprep.subr.bf16.mxu0 %v8613
        %8804 = vmatpush1.bf16.msra.mxu0 %v8612
        %8805 = vmatprep.subr.bf16.mxu0 %v8618
        %8806 = vmatpush1.bf16.msra.mxu0 %v8617
        %8807 = vmatprep.subr.bf16.mxu0 %v8623
        %8808 = vmatpush1.bf16.msra.mxu0 %v8622
        %8809 = vmatprep.subr.bf16.mxu0 %v8628
        %8810 = vmatpush1.bf16.msra.mxu0 %v8627
        %8811 = vmatprep.subr.bf16.mxu0 %v8633
        %8812 = vmatpush1.bf16.msra.mxu0 %v8632
        %8813 = vmatprep.subr.bf16.mxu0 %v8638
        %8814 = vmatpush1.bf16.msra.mxu0 %v8637
        %8815 = vmatprep.subr.bf16.mxu0 %v8643
        %8816 = vmatpush1.bf16.msra.mxu0 %v8642
        %8817 = vmatprep.subr.bf16.mxu0 %v8648
        %8818 = vmatpush1.bf16.msra.mxu0 %v8647
        %8819 = vmatprep.subr.bf16.mxu0 %v8653
        %8820 = vmatpush1.bf16.msra.mxu0 %v8652
        %8821 = vmatprep.subr.bf16.mxu0 %v8658
        %8822 = vmatpush1.bf16.msra.mxu0 %v8657
        %8823 = vmatprep.subr.bf16.mxu0 %v8663
        %8824 = vmatpush1.bf16.msra.mxu0 %v8662
        %8825 = vmatprep.mubr.bf16.mxu0 %v8259
        %8826 = vmatmul.mubr.bf16.gmra.mrb[0].mxu0 %v8256
        %v8827 = vpop.f32.mrb[0].mxu0
        %v8828 = vadd.f32 0.0, %v8827
        %v8829 = vpop.f32.mrb[0].mxu0
        %v8830 = vadd.f32 0.0, %v8829
        %v8831 = vpop.f32.mrb[0].mxu0
        %v8832 = vadd.f32 0.0, %v8831
        %v8833 = vpop.f32.mrb[0].mxu0
        %v8834 = vadd.f32 0.0, %v8833
        %8835 = vmatprep.mubr.bf16.mxu0 %v8258
        %8836 = vmatmul.mubr.bf16.gmra.mrb[0].mxu0 %v8255
        %v8837 = vpop.f32.mrb[0].mxu0
        %v8838 = vadd.f32 0.0, %v8837
        %v8839 = vpop.f32.mrb[0].mxu0
        %v8840 = vadd.f32 0.0, %v8839
        %v8841 = vpop.f32.mrb[0].mxu0
        %v8842 = vpop.f32.mrb[0].mxu0
        %8843 = vdwg.mxu0
        %8844 = vmatprep.subr.bf16.mxu0 %v8668
        %8845 = vmatpush1.bf16.msra.mxu0 %v8667
        %8846 = vmatprep.subr.bf16.mxu0 %v8673
        %8847 = vmatpush1.bf16.msra.mxu0 %v8672
        %8848 = vmatprep.subr.bf16.mxu0 %v8678
        %8849 = vmatpush1.bf16.msra.mxu0 %v8677
        %8850 = vmatprep.subr.bf16.mxu0 %v8683
        %8851 = vmatpush1.bf16.msra.mxu0 %v8682
        %8852 = vmatprep.subr.bf16.mxu0 0
        %8853 = vmatpush1.bf16.msra.mxu0 0
        %8854 = vmatprep.subr.bf16.mxu0 0
        %8855 = vmatpush1.bf16.msra.mxu0 0
        %8856 = vmatprep.subr.bf16.mxu0 0
        %8857 = vmatpush1.bf16.msra.mxu0 0
        %8858 = vmatprep.subr.bf16.mxu0 0
        %8859 = vmatpush1.bf16.msra.mxu0 0
        %8860 = vmatprep.subr.bf16.mxu0 0
        %8861 = vmatpush1.bf16.msra.mxu0 0
        %8862 = vmatprep.subr.bf16.mxu0 0
        %8863 = vmatpush1.bf16.msra.mxu0 0
        %8864 = vmatprep.subr.bf16.mxu0 0
        %8865 = vmatpush1.bf16.msra.mxu0 0
        %8866 = vmatprep.subr.bf16.mxu0 0
        %8867 = vmatpush1.bf16.msra.mxu0 0
        %8868 = vmatprep.subr.bf16.mxu0 0
        %8869 = vmatpush1.bf16.msra.mxu0 0
        %8870 = vmatprep.subr.bf16.mxu0 0
        %8871 = vmatpush1.bf16.msra.mxu0 0
        %8872 = vmatprep.subr.bf16.mxu0 0
        %8873 = vmatpush1.bf16.msra.mxu0 0
        %8874 = vmatprep.subr.bf16.mxu0 0
        %8875 = vmatpush1.bf16.msra.mxu0 0
        %8876 = vmatprep.mubr.bf16.mxu0 0
        %8877 = vmatmul.mubr.bf16.gmra.mrb[0].mxu0 %v8788
        %v8878 = vpop.f32.mrb[0].mxu0
        %v8879 = vadd.f32 %v8828, %v8878
        %v8880 = vpop.f32.mrb[0].mxu0
        %v8881 = vadd.f32 %v8830, %v8880
        %v8882 = vpop.f32.mrb[0].mxu0
        %v8883 = vadd.f32 %v8832, %v8882
        %v8884 = vpop.f32.mrb[0].mxu0
        %v8885 = vadd.f32 %v8834, %v8884
        %8886 = vmatprep.mubr.bf16.mxu0 0
        %8887 = vmatmul.mubr.bf16.gmra.mrb[0].mxu0 %v8791
        %v8888 = vpop.f32.mrb[0].mxu0
        %v8889 = vadd.f32 %v8838, %v8888
        %v8890 = vpop.f32.mrb[0].mxu0
        %v8891 = vadd.f32 %v8840, %v8890
        %v8892 = vpop.f32.mrb[0].mxu0
        %v8893 = vpop.f32.mrb[0].mxu0
        %8894 = vdwg.mxu0
        %8895 = vmatprep.subr.bf16.mxu0 %v8590
        %8896 = vmatpush1.bf16.msra.mxu0 %v8589
        %8897 = vmatprep.subr.bf16.mxu0 %v8595
        %8898 = vmatpush1.bf16.msra.mxu0 %v8594
        %8899 = vmatprep.subr.bf16.mxu0 %v8600
        %8900 = vmatpush1.bf16.msra.mxu0 %v8599
        %8901 = vmatprep.subr.bf16.mxu0 %v8605
        %8902 = vmatpush1.bf16.msra.mxu0 %v8604
        %8903 = vmatprep.subr.bf16.mxu0 %v8610
        %8904 = vmatpush1.bf16.msra.mxu0 %v8609
        %8905 = vmatprep.subr.bf16.mxu0 %v8615
        %8906 = vmatpush1.bf16.msra.mxu0 %v8614
        %8907 = vmatprep.subr.bf16.mxu0 %v8620
        %8908 = vmatpush1.bf16.msra.mxu0 %v8619
        %8909 = vmatprep.subr.bf16.mxu0 %v8625
        %8910 = vmatpush1.bf16.msra.mxu0 %v8624
        %8911 = vmatprep.subr.bf16.mxu0 %v8630
        %8912 = vmatpush1.bf16.msra.mxu0 %v8629
        %8913 = vmatprep.subr.bf16.mxu0 %v8635
        %8914 = vmatpush1.bf16.msra.mxu0 %v8634
        %8915 = vmatprep.subr.bf16.mxu0 %v8640
        %8916 = vmatpush1.bf16.msra.mxu0 %v8639
        %8917 = vmatprep.subr.bf16.mxu0 %v8645
        %8918 = vmatpush1.bf16.msra.mxu0 %v8644
        %8919 = vmatprep.subr.bf16.mxu0 %v8650
        %8920 = vmatpush1.bf16.msra.mxu0 %v8649
        %8921 = vmatprep.subr.bf16.mxu0 %v8655
        %8922 = vmatpush1.bf16.msra.mxu0 %v8654
        %8923 = vmatprep.subr.bf16.mxu0 %v8660
        %8924 = vmatpush1.bf16.msra.mxu0 %v8659
        %8925 = vmatprep.subr.bf16.mxu0 %v8665
        %8926 = vmatpush1.bf16.msra.mxu0 %v8664
        %8927 = vmatprep.mubr.bf16.mxu0 %v8259
        %8928 = vmatmul.mubr.bf16.gmra.mrb[0].mxu0 %v8256
        %v8929 = vpop.f32.mrb[0].mxu0
        %v8930 = vadd.f32 0.0, %v8929
        %v8931 = vpop.f32.mrb[0].mxu0
        %v8932 = vadd.f32 0.0, %v8931
        %v8933 = vpop.f32.mrb[0].mxu0
        %v8934 = vadd.f32 0.0, %v8933
        %v8935 = vpop.f32.mrb[0].mxu0
        %v8936 = vadd.f32 0.0, %v8935
        %8937 = vmatprep.mubr.bf16.mxu0 %v8258
        %8938 = vmatmul.mubr.bf16.gmra.mrb[0].mxu0 %v8255
        %v8939 = vpop.f32.mrb[0].mxu0
        %v8940 = vadd.f32 0.0, %v8939
        %v8941 = vpop.f32.mrb[0].mxu0
        %v8942 = vadd.f32 0.0, %v8941
        %v8943 = vpop.f32.mrb[0].mxu0
        %v8944 = vpop.f32.mrb[0].mxu0
        %8945 = vdwg.mxu0
        %8946 = vmatprep.subr.bf16.mxu0 %v8670
        %8947 = vmatpush1.bf16.msra.mxu0 %v8669
        %8948 = vmatprep.subr.bf16.mxu0 %v8675
        %8949 = vmatpush1.bf16.msra.mxu0 %v8674
        %8950 = vmatprep.subr.bf16.mxu0 %v8680
        %8951 = vmatpush1.bf16.msra.mxu0 %v8679
        %8952 = vmatprep.subr.bf16.mxu0 %v8685
        %8953 = vmatpush1.bf16.msra.mxu0 %v8684
        %8954 = vmatprep.subr.bf16.mxu0 0
        %8955 = vmatpush1.bf16.msra.mxu0 0
        %8956 = vmatprep.subr.bf16.mxu0 0
        %8957 = vmatpush1.bf16.msra.mxu0 0
        %8958 = vmatprep.subr.bf16.mxu0 0
        %8959 = vmatpush1.bf16.msra.mxu0 0
        %8960 = vmatprep.subr.bf16.mxu0 0
        %8961 = vmatpush1.bf16.msra.mxu0 0
        %8962 = vmatprep.subr.bf16.mxu0 0
        %8963 = vmatpush1.bf16.msra.mxu0 0
        %8964 = vmatprep.subr.bf16.mxu0 0
        %8965 = vmatpush1.bf16.msra.mxu0 0
        %8966 = vmatprep.subr.bf16.mxu0 0
        %8967 = vmatpush1.bf16.msra.mxu0 0
        %8968 = vmatprep.subr.bf16.mxu0 0
        %8969 = vmatpush1.bf16.msra.mxu0 0
        %8970 = vmatprep.subr.bf16.mxu0 0
        %8971 = vmatpush1.bf16.msra.mxu0 0
        %8972 = vmatprep.subr.bf16.mxu0 0
        %8973 = vmatpush1.bf16.msra.mxu0 0
        %8974 = vmatprep.subr.bf16.mxu0 0
        %8975 = vmatpush1.bf16.msra.mxu0 0
        %8976 = vmatprep.subr.bf16.mxu0 0
        %8977 = vmatpush1.bf16.msra.mxu0 0
        %8978 = vmatprep.mubr.bf16.mxu0 0
        %8979 = vmatmul.mubr.bf16.gmra.mrb[0].mxu0 %v8788
        %v8980 = vpop.f32.mrb[0].mxu0
        %v8981 = vadd.f32 %v8930, %v8980
        %v8982 = vpop.f32.mrb[0].mxu0
        %v8983 = vadd.f32 %v8932, %v8982
        %v8984 = vpop.f32.mrb[0].mxu0
        %v8985 = vadd.f32 %v8934, %v8984
        %v8986 = vpop.f32.mrb[0].mxu0
        %v8987 = vadd.f32 %v8936, %v8986
        %8988 = vmatprep.mubr.bf16.mxu0 0
        %8989 = vmatmul.mubr.bf16.gmra.mrb[0].mxu0 %v8791
        %v8990 = vpop.f32.mrb[0].mxu0
        %v8991 = vadd.f32 %v8940, %v8990
        %v8992 = vpop.f32.mrb[0].mxu0
        %v8993 = vadd.f32 %v8942, %v8992
        %v8994 = vpop.f32.mrb[0].mxu0
        %v8995 = vpop.f32.mrb[0].mxu0
        %8996 = vdwg.mxu0
        %8997 = vmatprep.subr.bf16.mxu0 0
        %8998 = vmatpush1.bf16.msra.mxu0 %v8591
        %8999 = vmatprep.subr.bf16.mxu0 0
        %9000 = vmatpush1.bf16.msra.mxu0 %v8596
        %9001 = vmatprep.subr.bf16.mxu0 0
        %9002 = vmatpush1.bf16.msra.mxu0 %v8601
        %9003 = vmatprep.subr.bf16.mxu0 0
        %9004 = vmatpush1.bf16.msra.mxu0 %v8606
        %9005 = vmatprep.subr.bf16.mxu0 0
        %9006 = vmatpush1.bf16.msra.mxu0 %v8611
        %9007 = vmatprep.subr.bf16.mxu0 0
        %9008 = vmatpush1.bf16.msra.mxu0 %v8616
        %9009 = vmatprep.subr.bf16.mxu0 0
        %9010 = vmatpush1.bf16.msra.mxu0 %v8621
        %9011 = vmatprep.subr.bf16.mxu0 0
        %9012 = vmatpush1.bf16.msra.mxu0 %v8626
        %9013 = vmatprep.subr.bf16.mxu0 0
        %9014 = vmatpush1.bf16.msra.mxu0 %v8631
        %9015 = vmatprep.subr.bf16.mxu0 0
        %9016 = vmatpush1.bf16.msra.mxu0 %v8636
        %9017 = vmatprep.subr.bf16.mxu0 0
        %9018 = vmatpush1.bf16.msra.mxu0 %v8641
        %9019 = vmatprep.subr.bf16.mxu0 0
        %9020 = vmatpush1.bf16.msra.mxu0 %v8646
        %9021 = vmatprep.subr.bf16.mxu0 0
        %9022 = vmatpush1.bf16.msra.mxu0 %v8651
        %9023 = vmatprep.subr.bf16.mxu0 0
        %9024 = vmatpush1.bf16.msra.mxu0 %v8656
        %9025 = vmatprep.subr.bf16.mxu0 0
        %9026 = vmatpush1.bf16.msra.mxu0 %v8661
        %9027 = vmatprep.subr.bf16.mxu0 0
        %9028 = vmatpush1.bf16.msra.mxu0 %v8666
        %9029 = vmatprep.mubr.bf16.mxu0 %v8259
        %9030 = vmatmul.mubr.bf16.gmra.mrb[0].mxu0 %v8256
        %v9031 = vpop.f32.mrb[0].mxu0
        %v9032 = vadd.f32 0.0, %v9031
        %v9033 = vpop.f32.mrb[0].mxu0
        %v9034 = vpop.f32.mrb[0].mxu0
        %v9035 = vadd.f32 0.0, %v9034
        %v9036 = vpop.f32.mrb[0].mxu0
        %9037 = vmatprep.mubr.bf16.mxu0 %v8258
        %9038 = vmatmul.mubr.bf16.gmra.mrb[0].mxu0 %v8255
        %v9039 = vpop.f32.mrb[0].mxu0
        %v9040 = vadd.f32 0.0, %v9039
        %v9041 = vpop.f32.mrb[0].mxu0
        %v9042 = vpop.f32.mrb[0].mxu0
        %v9043 = vpop.f32.mrb[0].mxu0
        %9044 = vdwg.mxu0
        %9045 = vmatprep.subr.bf16.mxu0 0
        %9046 = vmatpush1.bf16.msra.mxu0 %v8671
        %9047 = vmatprep.subr.bf16.mxu0 0
        %9048 = vmatpush1.bf16.msra.mxu0 %v8676
        %9049 = vmatprep.subr.bf16.mxu0 0
        %9050 = vmatpush1.bf16.msra.mxu0 %v8681
        %9051 = vmatprep.subr.bf16.mxu0 0
        %9052 = vmatpush1.bf16.msra.mxu0 %v8686
        %9053 = vmatprep.subr.bf16.mxu0 0
        %9054 = vmatpush1.bf16.msra.mxu0 0
        %9055 = vmatprep.subr.bf16.mxu0 0
        %9056 = vmatpush1.bf16.msra.mxu0 0
        %9057 = vmatprep.subr.bf16.mxu0 0
        %9058 = vmatpush1.bf16.msra.mxu0 0
        %9059 = vmatprep.subr.bf16.mxu0 0
        %9060 = vmatpush1.bf16.msra.mxu0 0
        %9061 = vmatprep.subr.bf16.mxu0 0
        %9062 = vmatpush1.bf16.msra.mxu0 0
        %9063 = vmatprep.subr.bf16.mxu0 0
        %9064 = vmatpush1.bf16.msra.mxu0 0
        %9065 = vmatprep.subr.bf16.mxu0 0
        %9066 = vmatpush1.bf16.msra.mxu0 0
        %9067 = vmatprep.subr.bf16.mxu0 0
        %9068 = vmatpush1.bf16.msra.mxu0 0
        %9069 = vmatprep.subr.bf16.mxu0 0
        %9070 = vmatpush1.bf16.msra.mxu0 0
        %9071 = vmatprep.subr.bf16.mxu0 0
        %9072 = vmatpush1.bf16.msra.mxu0 0
        %9073 = vmatprep.subr.bf16.mxu0 0
        %9074 = vmatpush1.bf16.msra.mxu0 0
        %9075 = vmatprep.subr.bf16.mxu0 0
        %9076 = vmatpush1.bf16.msra.mxu0 0
        %9077 = vmatprep.mubr.bf16.mxu0 0
        %9078 = vmatmul.mubr.bf16.gmra.mrb[0].mxu0 %v8788
        %v9079 = vpop.f32.mrb[0].mxu0
        %v9080 = vadd.f32 %v9032, %v9079
        %v9081 = vpop.f32.mrb[0].mxu0
        %v9082 = vpop.f32.mrb[0].mxu0
        %v9083 = vadd.f32 %v9035, %v9082
        %v9084 = vpop.f32.mrb[0].mxu0
        %9085 = vmatprep.mubr.bf16.mxu0 0
        %9086 = vmatmul.mubr.bf16.gmra.mrb[0].mxu0 %v8791
        %v9087 = vpop.f32.mrb[0].mxu0
        %v9088 = vadd.f32 %v9040, %v9087
        %v9089 = vpop.f32.mrb[0].mxu0
        %v9090 = vpop.f32.mrb[0].mxu0
        %v9091 = vpop.f32.mrb[0].mxu0
        %9092 = vdwg.mxu0
        %v9093 = vadd.f32 %v8118, %v8879
        %v9094 = vadd.f32 %v8119, %v8881
        %v9095 = vadd.f32 %v8120, %v8981
        %v9096 = vadd.f32 %v8121, %v8983
        %v9097 = vadd.f32 %v8122, %v9080
        %v9098 = vadd.f32 %v8123, %v8883
        %v9099 = vadd.f32 %v8124, %v8885
        %v9100 = vadd.f32 %v8125, %v8985
        %v9101 = vadd.f32 %v8126, %v8987
        %v9102 = vadd.f32 %v8127, %v9083
        %v9103 = vadd.f32 %v8128, %v8889
        %v9104 = vadd.f32 %v8129, %v8891
        %v9105 = vadd.f32 %v8130, %v8991
        %v9106 = vadd.f32 %v8131, %v8993
        %v9107 = vadd.f32 %v8132, %v9088
        %s9108 = scalar_lea.vmem [#allocation8], 5600
        %v9109 = vld [vmem:[%s9108] sm:$0xff]
        %v9110 = vld [vmem:[%s9108 + $0x8] sm:$0xff]
        %v9111 = vld [vmem:[%s9108 + $0x10] sm:$0xf]
        %v9112 = vld [vmem:[%s9108 + $0x14] sm:$0xff]
        %v9113 = vld [vmem:[%s9108 + $0x1c] sm:$0xff]
        %v9114 = vld [vmem:[%s9108 + $0x24] sm:$0xf]
        %v9115 = vld [vmem:[%s9108 + $0x28] sm:$0xff]
        %v9116 = vld [vmem:[%s9108 + $0x30] sm:$0xff]
        %v9117 = vld [vmem:[%s9108 + $0x38] sm:$0xf]
        %v9118 = vld [vmem:[%s9108 + $0x3c] sm:$0xff]
        %v9119 = vld [vmem:[%s9108 + $0x44] sm:$0xff]
        %v9120 = vld [vmem:[%s9108 + $0x4c] sm:$0xf]
        %v9121 = vld [vmem:[%s9108 + $0x50] sm:$0xff]
        %v9122 = vld [vmem:[%s9108 + $0x58] sm:$0xff]
        %v9123 = vld [vmem:[%s9108 + $0x60] sm:$0xf]
        %v9124 = vld [vmem:[%s9108 + $0x64] sm:$0xff]
        %v9125 = vld [vmem:[%s9108 + $0x6c] sm:$0xff]
        %v9126 = vld [vmem:[%s9108 + $0x74] sm:$0xf]
        %v9127 = vld [vmem:[%s9108 + $0x78] sm:$0xff]
        %v9128 = vld [vmem:[%s9108 + $0x80] sm:$0xff]
        %v9129 = vld [vmem:[%s9108 + $0x88] sm:$0xf]
        %v9130 = vld [vmem:[%s9108 + $0x8c] sm:$0xff]
        %v9131 = vld [vmem:[%s9108 + $0x94] sm:$0xff]
        %v9132 = vld [vmem:[%s9108 + $0x9c] sm:$0xf]
        %v9133 = vld [vmem:[%s9108 + $0xa0] sm:$0xff]
        %v9134 = vld [vmem:[%s9108 + $0xa8] sm:$0xff]
        %v9135 = vld [vmem:[%s9108 + $0xb0] sm:$0xf]
        %v9136 = vld [vmem:[%s9108 + $0xb4] sm:$0xff]
        %v9137 = vld [vmem:[%s9108 + $0xbc] sm:$0xff]
        %v9138 = vld [vmem:[%s9108 + $0xc4] sm:$0xf]
        %v9139 = vld [vmem:[%s9108 + $0xc8] sm:$0xff]
        %v9140 = vld [vmem:[%s9108 + $0xd0] sm:$0xff]
        %v9141 = vld [vmem:[%s9108 + $0xd8] sm:$0xf]
        %v9142 = vld [vmem:[%s9108 + $0xdc] sm:$0xff]
        %v9143 = vld [vmem:[%s9108 + $0xe4] sm:$0xff]
        %v9144 = vld [vmem:[%s9108 + $0xec] sm:$0xf]
        %v9145 = vld [vmem:[%s9108 + $0xf0] sm:$0xff]
        %v9146 = vld [vmem:[%s9108 + $0xf8] sm:$0xff]
        %v9147 = vld [vmem:[%s9108 + $0x100] sm:$0xf]
        %v9148 = vld [vmem:[%s9108 + $0x104] sm:$0xff]
        %v9149 = vld [vmem:[%s9108 + $0x10c] sm:$0xff]
        %v9150 = vld [vmem:[%s9108 + $0x114] sm:$0xf]
        %v9151 = vld [vmem:[%s9108 + $0x118] sm:$0xff]
        %v9152 = vld [vmem:[%s9108 + $0x120] sm:$0xff]
        %v9153 = vld [vmem:[%s9108 + $0x128] sm:$0xf]
        %v9154 = vld [vmem:[%s9108 + $0x12c] sm:$0xff]
        %v9155 = vld [vmem:[%s9108 + $0x134] sm:$0xff]
        %v9156 = vld [vmem:[%s9108 + $0x13c] sm:$0xf]
        %v9157 = vld [vmem:[%s9108 + $0x140] sm:$0xff]
        %v9158 = vld [vmem:[%s9108 + $0x148] sm:$0xff]
        %v9159 = vld [vmem:[%s9108 + $0x150] sm:$0xf]
        %v9160 = vld [vmem:[%s9108 + $0x154] sm:$0xff]
        %v9161 = vld [vmem:[%s9108 + $0x15c] sm:$0xff]
        %v9162 = vld [vmem:[%s9108 + $0x164] sm:$0xf]
        %v9163 = vld [vmem:[%s9108 + $0x168] sm:$0xff]
        %v9164 = vld [vmem:[%s9108 + $0x170] sm:$0xff]
        %v9165 = vld [vmem:[%s9108 + $0x178] sm:$0xf]
        %v9166 = vld [vmem:[%s9108 + $0x17c] sm:$0xff]
        %v9167 = vld [vmem:[%s9108 + $0x184] sm:$0xff]
        %v9168 = vld [vmem:[%s9108 + $0x18c] sm:$0xf]
        %v9169 = vld [vmem:[%s9108 + $0x190] sm:$0xff]
        %v9170 = vld [vmem:[%s9108 + $0x198] sm:$0xff]
        %v9171 = vld [vmem:[%s9108 + $0x1a0] sm:$0xf]
        %v9172 = vld [vmem:[%s9108 + $0x1a4] sm:$0xff]
        %v9173 = vld [vmem:[%s9108 + $0x1ac] sm:$0xff]
        %v9174 = vld [vmem:[%s9108 + $0x1b4] sm:$0xf]
        %v9175 = vld [vmem:[%s9108 + $0x1b8] sm:$0xff]
        %v9176 = vld [vmem:[%s9108 + $0x1c0] sm:$0xff]
        %v9177 = vld [vmem:[%s9108 + $0x1c8] sm:$0xf]
        %v9178 = vld [vmem:[%s9108 + $0x1cc] sm:$0xff]
        %v9179 = vld [vmem:[%s9108 + $0x1d4] sm:$0xff]
        %v9180 = vld [vmem:[%s9108 + $0x1dc] sm:$0xf]
        %v9181 = vld [vmem:[%s9108 + $0x1e0] sm:$0xff]
        %v9182 = vld [vmem:[%s9108 + $0x1e8] sm:$0xff]
        %v9183 = vld [vmem:[%s9108 + $0x1f0] sm:$0xf]
        %v9184 = vld [vmem:[%s9108 + $0x1f4] sm:$0xff]
        %v9185 = vld [vmem:[%s9108 + $0x1fc] sm:$0xff]
        %v9186 = vld [vmem:[%s9108 + $0x204] sm:$0xf]
        %v9187 = vld [vmem:[%s9108 + $0x208] sm:$0xff]
        %v9188 = vld [vmem:[%s9108 + $0x210] sm:$0xff]
        %v9189 = vld [vmem:[%s9108 + $0x218] sm:$0xf]
        %v9190 = vld [vmem:[%s9108 + $0x21c] sm:$0xff]
        %v9191 = vld [vmem:[%s9108 + $0x224] sm:$0xff]
        %v9192 = vld [vmem:[%s9108 + $0x22c] sm:$0xf]
        %v9193 = vld [vmem:[%s9108 + $0x230] sm:$0xff]
        %v9194 = vld [vmem:[%s9108 + $0x238] sm:$0xff]
        %v9195 = vld [vmem:[%s9108 + $0x240] sm:$0xf]
        %v9196 = vld [vmem:[%s9108 + $0x244] sm:$0xff]
        %v9197 = vld [vmem:[%s9108 + $0x24c] sm:$0xff]
        %v9198 = vld [vmem:[%s9108 + $0x254] sm:$0xf]
        %v9199 = vld [vmem:[%s9108 + $0x258] sm:$0xff]
        %v9200 = vld [vmem:[%s9108 + $0x260] sm:$0xff]
        %v9201 = vld [vmem:[%s9108 + $0x268] sm:$0xf]
        %v9202 = vld [vmem:[%s9108 + $0x26c] sm:$0xff]
        %v9203 = vld [vmem:[%s9108 + $0x274] sm:$0xff]
        %v9204 = vld [vmem:[%s9108 + $0x27c] sm:$0xf]
        %v9205 = vld [vmem:[%s9108 + $0x280] sm:$0xff]
        %v9206 = vld [vmem:[%s9108 + $0x288] sm:$0xff]
        %v9207 = vld [vmem:[%s9108 + $0x290] sm:$0xf]
        %v9208 = vld [vmem:[%s9108 + $0x294] sm:$0xff]
        %v9209 = vld [vmem:[%s9108 + $0x29c] sm:$0xff]
        %v9210 = vld [vmem:[%s9108 + $0x2a4] sm:$0xf]
        %v9211 = vld [vmem:[%s9108 + $0x2a8] sm:$0xff]
        %v9212 = vld [vmem:[%s9108 + $0x2b0] sm:$0xff]
        %v9213 = vld [vmem:[%s9108 + $0x2b8] sm:$0xf]
        %v9214 = vld [vmem:[%s9108 + $0x2bc] sm:$0xff]
        %v9215 = vld [vmem:[%s9108 + $0x2c4] sm:$0xff]
        %v9216 = vld [vmem:[%s9108 + $0x2cc] sm:$0xf]
        %v9217 = vld [vmem:[%s9108 + $0x2d0] sm:$0xff]
        %v9218 = vld [vmem:[%s9108 + $0x2d8] sm:$0xff]
        %v9219 = vld [vmem:[%s9108 + $0x2e0] sm:$0xf]
        %v9220 = vld [vmem:[%s9108 + $0x2e4] sm:$0xff]
        %v9221 = vld [vmem:[%s9108 + $0x2ec] sm:$0xff]
        %v9222 = vld [vmem:[%s9108 + $0x2f4] sm:$0xf]
        %v9223 = vld [vmem:[%s9108 + $0x2f8] sm:$0xff]
        %v9224 = vld [vmem:[%s9108 + $0x300] sm:$0xff]
        %v9225 = vld [vmem:[%s9108 + $0x308] sm:$0xf]
        %v9226 = vld [vmem:[%s9108 + $0x30c] sm:$0xff]
        %v9227 = vld [vmem:[%s9108 + $0x314] sm:$0xff]
        %v9228 = vld [vmem:[%s9108 + $0x31c] sm:$0xf]
        %9229 = vrot.lane.b32.xlu0 %v8256, 112
        %v9230 = vpop.permute.xlu0 %9229
        %9231 = vrot.lane.b32.xlu0 %v8259, 112
        %v9232 = vpop.permute.xlu0 %9231
        %9233 = vrot.lane.b32.xlu0 %v8262, 112
        %v9234 = vpop.permute.xlu0 %9233
        %9235 = vrot.lane.b32.xlu0 %v8255, 112
        %v9236 = vpop.permute.xlu0 %9235
        %9237 = vrot.lane.b32.xlu0 %v8258, 112
        %v9238 = vpop.permute.xlu0 %9237
        %9239 = vrot.lane.b32.xlu0 %v8261, 112
        %v9240 = vpop.permute.xlu0 %9239
        %v9241 = vsel %vm2516, %v9230, %v9232
        %v9242 = vsel %vm2516, %v9232, %v9234
        %v9243 = vsel %vm2516, %v9236, %v9238
        %v9244 = vsel %vm2516, %v9238, %v9240
        %v9369 = vunpack.c.l.b16 %v9109
        %v9370 = vunpack.c.h.b16 %v9109
        %v9371 = vunpack.c.l.b16 %v9110
        %v9372 = vunpack.c.h.b16 %v9110
        %v9373 = vunpack.c.l.b16 %v9111
        %v9374 = vunpack.c.l.b16 %v9112
        %v9375 = vunpack.c.h.b16 %v9112
        %v9376 = vunpack.c.l.b16 %v9113
        %v9377 = vunpack.c.h.b16 %v9113
        %v9378 = vunpack.c.l.b16 %v9114
        %v9379 = vunpack.c.l.b16 %v9115
        %v9380 = vunpack.c.h.b16 %v9115
        %v9381 = vunpack.c.l.b16 %v9116
        %v9382 = vunpack.c.h.b16 %v9116
        %v9383 = vunpack.c.l.b16 %v9117
        %v9384 = vunpack.c.l.b16 %v9118
        %v9385 = vunpack.c.h.b16 %v9118
        %v9386 = vunpack.c.l.b16 %v9119
        %v9387 = vunpack.c.h.b16 %v9119
        %v9388 = vunpack.c.l.b16 %v9120
        %v9389 = vunpack.c.l.b16 %v9121
        %v9390 = vunpack.c.h.b16 %v9121
        %v9391 = vunpack.c.l.b16 %v9122
        %v9392 = vunpack.c.h.b16 %v9122
        %v9393 = vunpack.c.l.b16 %v9123
        %v9394 = vunpack.c.l.b16 %v9124
        %v9395 = vunpack.c.h.b16 %v9124
        %v9396 = vunpack.c.l.b16 %v9125
        %v9397 = vunpack.c.h.b16 %v9125
        %v9398 = vunpack.c.l.b16 %v9126
        %v9399 = vunpack.c.l.b16 %v9127
        %v9400 = vunpack.c.h.b16 %v9127
        %v9401 = vunpack.c.l.b16 %v9128
        %v9402 = vunpack.c.h.b16 %v9128
        %v9403 = vunpack.c.l.b16 %v9129
        %v9404 = vunpack.c.l.b16 %v9130
        %v9405 = vunpack.c.h.b16 %v9130
        %v9406 = vunpack.c.l.b16 %v9131
        %v9407 = vunpack.c.h.b16 %v9131
        %v9408 = vunpack.c.l.b16 %v9132
        %v9409 = vunpack.c.l.b16 %v9133
        %v9410 = vunpack.c.h.b16 %v9133
        %v9411 = vunpack.c.l.b16 %v9134
        %v9412 = vunpack.c.h.b16 %v9134
        %v9413 = vunpack.c.l.b16 %v9135
        %v9414 = vunpack.c.l.b16 %v9136
        %v9415 = vunpack.c.h.b16 %v9136
        %v9416 = vunpack.c.l.b16 %v9137
        %v9417 = vunpack.c.h.b16 %v9137
        %v9418 = vunpack.c.l.b16 %v9138
        %v9419 = vunpack.c.l.b16 %v9139
        %v9420 = vunpack.c.h.b16 %v9139
        %v9421 = vunpack.c.l.b16 %v9140
        %v9422 = vunpack.c.h.b16 %v9140
        %v9423 = vunpack.c.l.b16 %v9141
        %v9424 = vunpack.c.l.b16 %v9142
        %v9425 = vunpack.c.h.b16 %v9142
        %v9426 = vunpack.c.l.b16 %v9143
        %v9427 = vunpack.c.h.b16 %v9143
        %v9428 = vunpack.c.l.b16 %v9144
        %v9429 = vunpack.c.l.b16 %v9145
        %v9430 = vunpack.c.h.b16 %v9145
        %v9431 = vunpack.c.l.b16 %v9146
        %v9432 = vunpack.c.h.b16 %v9146
        %v9433 = vunpack.c.l.b16 %v9147
        %v9434 = vunpack.c.l.b16 %v9148
        %v9435 = vunpack.c.h.b16 %v9148
        %v9436 = vunpack.c.l.b16 %v9149
        %v9437 = vunpack.c.h.b16 %v9149
        %v9438 = vunpack.c.l.b16 %v9150
        %v9439 = vunpack.c.l.b16 %v9151
        %v9440 = vunpack.c.h.b16 %v9151
        %v9441 = vunpack.c.l.b16 %v9152
        %v9442 = vunpack.c.h.b16 %v9152
        %v9443 = vunpack.c.l.b16 %v9153
        %v9444 = vunpack.c.l.b16 %v9154
        %v9445 = vunpack.c.h.b16 %v9154
        %v9446 = vunpack.c.l.b16 %v9155
        %v9447 = vunpack.c.h.b16 %v9155
        %v9448 = vunpack.c.l.b16 %v9156
        %v9449 = vunpack.c.l.b16 %v9157
        %v9450 = vunpack.c.h.b16 %v9157
        %v9451 = vunpack.c.l.b16 %v9158
        %v9452 = vunpack.c.h.b16 %v9158
        %v9453 = vunpack.c.l.b16 %v9159
        %v9454 = vunpack.c.l.b16 %v9160
        %v9455 = vunpack.c.h.b16 %v9160
        %v9456 = vunpack.c.l.b16 %v9161
        %v9457 = vunpack.c.h.b16 %v9161
        %v9458 = vunpack.c.l.b16 %v9162
        %v9459 = vunpack.c.l.b16 %v9163
        %v9460 = vunpack.c.h.b16 %v9163
        %v9461 = vunpack.c.l.b16 %v9164
        %v9462 = vunpack.c.h.b16 %v9164
        %v9463 = vunpack.c.l.b16 %v9165
        %v9464 = vunpack.c.l.b16 %v9166
        %v9465 = vunpack.c.h.b16 %v9166
        %v9466 = vunpack.c.l.b16 %v9167
        %v9467 = vunpack.c.h.b16 %v9167
        %v9468 = vunpack.c.l.b16 %v9168
        %v9469 = vunpack.c.l.b16 %v9169
        %v9470 = vunpack.c.h.b16 %v9169
        %v9471 = vunpack.c.l.b16 %v9170
        %v9472 = vunpack.c.h.b16 %v9170
        %v9473 = vunpack.c.l.b16 %v9171
        %v9474 = vunpack.c.l.b16 %v9172
        %v9475 = vunpack.c.h.b16 %v9172
        %v9476 = vunpack.c.l.b16 %v9173
        %v9477 = vunpack.c.h.b16 %v9173
        %v9478 = vunpack.c.l.b16 %v9174
        %v9479 = vunpack.c.l.b16 %v9175
        %v9480 = vunpack.c.h.b16 %v9175
        %v9481 = vunpack.c.l.b16 %v9176
        %v9482 = vunpack.c.h.b16 %v9176
        %v9483 = vunpack.c.l.b16 %v9177
        %v9484 = vunpack.c.l.b16 %v9178
        %v9485 = vunpack.c.h.b16 %v9178
        %v9486 = vunpack.c.l.b16 %v9179
        %v9487 = vunpack.c.h.b16 %v9179
        %v9488 = vunpack.c.l.b16 %v9180
        %v9489 = vunpack.c.l.b16 %v9181
        %v9490 = vunpack.c.h.b16 %v9181
        %v9491 = vunpack.c.l.b16 %v9182
        %v9492 = vunpack.c.h.b16 %v9182
        %v9493 = vunpack.c.l.b16 %v9183
        %v9494 = vunpack.c.l.b16 %v9184
        %v9495 = vunpack.c.h.b16 %v9184
        %v9496 = vunpack.c.l.b16 %v9185
        %v9497 = vunpack.c.h.b16 %v9185
        %v9498 = vunpack.c.l.b16 %v9186
        %v9499 = vunpack.c.l.b16 %v9187
        %v9500 = vunpack.c.h.b16 %v9187
        %v9501 = vunpack.c.l.b16 %v9188
        %v9502 = vunpack.c.h.b16 %v9188
        %v9503 = vunpack.c.l.b16 %v9189
        %v9504 = vunpack.c.l.b16 %v9190
        %v9505 = vunpack.c.h.b16 %v9190
        %v9506 = vunpack.c.l.b16 %v9191
        %v9507 = vunpack.c.h.b16 %v9191
        %v9508 = vunpack.c.l.b16 %v9192
        %v9509 = vunpack.c.l.b16 %v9193
        %v9510 = vunpack.c.h.b16 %v9193
        %v9511 = vunpack.c.l.b16 %v9194
        %v9512 = vunpack.c.h.b16 %v9194
        %v9513 = vunpack.c.l.b16 %v9195
        %v9514 = vunpack.c.l.b16 %v9196
        %v9515 = vunpack.c.h.b16 %v9196
        %v9516 = vunpack.c.l.b16 %v9197
        %v9517 = vunpack.c.h.b16 %v9197
        %v9518 = vunpack.c.l.b16 %v9198
        %v9519 = vunpack.c.l.b16 %v9199
        %v9520 = vunpack.c.h.b16 %v9199
        %v9521 = vunpack.c.l.b16 %v9200
        %v9522 = vunpack.c.h.b16 %v9200
        %v9523 = vunpack.c.l.b16 %v9201
        %v9524 = vunpack.c.l.b16 %v9202
        %v9525 = vunpack.c.h.b16 %v9202
        %v9526 = vunpack.c.l.b16 %v9203
        %v9527 = vunpack.c.h.b16 %v9203
        %v9528 = vunpack.c.l.b16 %v9204
        %v9529 = vunpack.c.l.b16 %v9205
        %v9530 = vunpack.c.h.b16 %v9205
        %v9531 = vunpack.c.l.b16 %v9206
        %v9532 = vunpack.c.h.b16 %v9206
        %v9533 = vunpack.c.l.b16 %v9207
        %v9534 = vunpack.c.l.b16 %v9208
        %v9535 = vunpack.c.h.b16 %v9208
        %v9536 = vunpack.c.l.b16 %v9209
        %v9537 = vunpack.c.h.b16 %v9209
        %v9538 = vunpack.c.l.b16 %v9210
        %v9539 = vunpack.c.l.b16 %v9211
        %v9540 = vunpack.c.h.b16 %v9211
        %v9541 = vunpack.c.l.b16 %v9212
        %v9542 = vunpack.c.h.b16 %v9212
        %v9543 = vunpack.c.l.b16 %v9213
        %v9544 = vunpack.c.l.b16 %v9214
        %v9545 = vunpack.c.h.b16 %v9214
        %v9546 = vunpack.c.l.b16 %v9215
        %v9547 = vunpack.c.h.b16 %v9215
        %v9548 = vunpack.c.l.b16 %v9216
        %v9549 = vunpack.c.l.b16 %v9217
        %v9550 = vunpack.c.h.b16 %v9217
        %v9551 = vunpack.c.l.b16 %v9218
        %v9552 = vunpack.c.h.b16 %v9218
        %v9553 = vunpack.c.l.b16 %v9219
        %v9554 = vunpack.c.l.b16 %v9220
        %v9555 = vunpack.c.h.b16 %v9220
        %v9556 = vunpack.c.l.b16 %v9221
        %v9557 = vunpack.c.h.b16 %v9221
        %v9558 = vunpack.c.l.b16 %v9222
        %v9559 = vunpack.c.l.b16 %v9223
        %v9560 = vunpack.c.h.b16 %v9223
        %v9561 = vunpack.c.l.b16 %v9224
        %v9562 = vunpack.c.h.b16 %v9224
        %v9563 = vunpack.c.l.b16 %v9225
        %v9564 = vunpack.c.l.b16 %v9226
        %v9565 = vunpack.c.h.b16 %v9226
        %v9566 = vunpack.c.l.b16 %v9227
        %v9567 = vunpack.c.h.b16 %v9227
        %v9568 = vunpack.c.l.b16 %v9228
        %v9569 = vpack.c.b16 %v9374, %v9369
        %v9570 = vpack.c.b16 %v9375, %v9370
        %v9571 = vpack.c.b16 %v9376, %v9371
        %v9572 = vpack.c.b16 %v9377, %v9372
        %v9573 = vpack.c.b16 %v9378, %v9373
        %v9574 = vpack.c.b16 %v9384, %v9379
        %v9575 = vpack.c.b16 %v9385, %v9380
        %v9576 = vpack.c.b16 %v9386, %v9381
        %v9577 = vpack.c.b16 %v9387, %v9382
        %v9578 = vpack.c.b16 %v9388, %v9383
        %v9579 = vpack.c.b16 %v9394, %v9389
        %v9580 = vpack.c.b16 %v9395, %v9390
        %v9581 = vpack.c.b16 %v9396, %v9391
        %v9582 = vpack.c.b16 %v9397, %v9392
        %v9583 = vpack.c.b16 %v9398, %v9393
        %v9584 = vpack.c.b16 %v9404, %v9399
        %v9585 = vpack.c.b16 %v9405, %v9400
        %v9586 = vpack.c.b16 %v9406, %v9401
        %v9587 = vpack.c.b16 %v9407, %v9402
        %v9588 = vpack.c.b16 %v9408, %v9403
        %v9589 = vpack.c.b16 %v9414, %v9409
        %v9590 = vpack.c.b16 %v9415, %v9410
        %v9591 = vpack.c.b16 %v9416, %v9411
        %v9592 = vpack.c.b16 %v9417, %v9412
        %v9593 = vpack.c.b16 %v9418, %v9413
        %v9594 = vpack.c.b16 %v9424, %v9419
        %v9595 = vpack.c.b16 %v9425, %v9420
        %v9596 = vpack.c.b16 %v9426, %v9421
        %v9597 = vpack.c.b16 %v9427, %v9422
        %v9598 = vpack.c.b16 %v9428, %v9423
        %v9599 = vpack.c.b16 %v9434, %v9429
        %v9600 = vpack.c.b16 %v9435, %v9430
        %v9601 = vpack.c.b16 %v9436, %v9431
        %v9602 = vpack.c.b16 %v9437, %v9432
        %v9603 = vpack.c.b16 %v9438, %v9433
        %v9604 = vpack.c.b16 %v9444, %v9439
        %v9605 = vpack.c.b16 %v9445, %v9440
        %v9606 = vpack.c.b16 %v9446, %v9441
        %v9607 = vpack.c.b16 %v9447, %v9442
        %v9608 = vpack.c.b16 %v9448, %v9443
        %v9609 = vpack.c.b16 %v9454, %v9449
        %v9610 = vpack.c.b16 %v9455, %v9450
        %v9611 = vpack.c.b16 %v9456, %v9451
        %v9612 = vpack.c.b16 %v9457, %v9452
        %v9613 = vpack.c.b16 %v9458, %v9453
        %v9614 = vpack.c.b16 %v9464, %v9459
        %v9615 = vpack.c.b16 %v9465, %v9460
        %v9616 = vpack.c.b16 %v9466, %v9461
        %v9617 = vpack.c.b16 %v9467, %v9462
        %v9618 = vpack.c.b16 %v9468, %v9463
        %v9619 = vpack.c.b16 %v9474, %v9469
        %v9620 = vpack.c.b16 %v9475, %v9470
        %v9621 = vpack.c.b16 %v9476, %v9471
        %v9622 = vpack.c.b16 %v9477, %v9472
        %v9623 = vpack.c.b16 %v9478, %v9473
        %v9624 = vpack.c.b16 %v9484, %v9479
        %v9625 = vpack.c.b16 %v9485, %v9480
        %v9626 = vpack.c.b16 %v9486, %v9481
        %v9627 = vpack.c.b16 %v9487, %v9482
        %v9628 = vpack.c.b16 %v9488, %v9483
        %v9629 = vpack.c.b16 %v9494, %v9489
        %v9630 = vpack.c.b16 %v9495, %v9490
        %v9631 = vpack.c.b16 %v9496, %v9491
        %v9632 = vpack.c.b16 %v9497, %v9492
        %v9633 = vpack.c.b16 %v9498, %v9493
        %v9634 = vpack.c.b16 %v9504, %v9499
        %v9635 = vpack.c.b16 %v9505, %v9500
        %v9636 = vpack.c.b16 %v9506, %v9501
        %v9637 = vpack.c.b16 %v9507, %v9502
        %v9638 = vpack.c.b16 %v9508, %v9503
        %v9639 = vpack.c.b16 %v9514, %v9509
        %v9640 = vpack.c.b16 %v9515, %v9510
        %v9641 = vpack.c.b16 %v9516, %v9511
        %v9642 = vpack.c.b16 %v9517, %v9512
        %v9643 = vpack.c.b16 %v9518, %v9513
        %v9644 = vpack.c.b16 %v9524, %v9519
        %v9645 = vpack.c.b16 %v9525, %v9520
        %v9646 = vpack.c.b16 %v9526, %v9521
        %v9647 = vpack.c.b16 %v9527, %v9522
        %v9648 = vpack.c.b16 %v9528, %v9523
        %v9649 = vpack.c.b16 %v9534, %v9529
        %v9650 = vpack.c.b16 %v9535, %v9530
        %v9651 = vpack.c.b16 %v9536, %v9531
        %v9652 = vpack.c.b16 %v9537, %v9532
        %v9653 = vpack.c.b16 %v9538, %v9533
        %v9654 = vpack.c.b16 %v9544, %v9539
        %v9655 = vpack.c.b16 %v9545, %v9540
        %v9656 = vpack.c.b16 %v9546, %v9541
        %v9657 = vpack.c.b16 %v9547, %v9542
        %v9658 = vpack.c.b16 %v9548, %v9543
        %v9659 = vpack.c.b16 %v9554, %v9549
        %v9660 = vpack.c.b16 %v9555, %v9550
        %v9661 = vpack.c.b16 %v9556, %v9551
        %v9662 = vpack.c.b16 %v9557, %v9552
        %v9663 = vpack.c.b16 %v9558, %v9553
        %v9664 = vpack.c.b16 %v9564, %v9559
        %v9665 = vpack.c.b16 %v9565, %v9560
        %v9666 = vpack.c.b16 %v9566, %v9561
        %v9667 = vpack.c.b16 %v9567, %v9562
        %v9668 = vpack.c.b16 %v9568, %v9563
        %v9770 = vsel %vm2235, %v9234, 0
        %v9773 = vsel %vm2235, %v9240, 0
        %9775 = vmatprep.subr.bf16.mxu0 %v9570
        %9776 = vmatpush1.bf16.msra.mxu0 %v9569
        %9777 = vmatprep.subr.bf16.mxu0 %v9575
        %9778 = vmatpush1.bf16.msra.mxu0 %v9574
        %9779 = vmatprep.subr.bf16.mxu0 %v9580
        %9780 = vmatpush1.bf16.msra.mxu0 %v9579
        %9781 = vmatprep.subr.bf16.mxu0 %v9585
        %9782 = vmatpush1.bf16.msra.mxu0 %v9584
        %9783 = vmatprep.subr.bf16.mxu0 %v9590
        %9784 = vmatpush1.bf16.msra.mxu0 %v9589
        %9785 = vmatprep.subr.bf16.mxu0 %v9595
        %9786 = vmatpush1.bf16.msra.mxu0 %v9594
        %9787 = vmatprep.subr.bf16.mxu0 %v9600
        %9788 = vmatpush1.bf16.msra.mxu0 %v9599
        %9789 = vmatprep.subr.bf16.mxu0 %v9605
        %9790 = vmatpush1.bf16.msra.mxu0 %v9604
        %9791 = vmatprep.subr.bf16.mxu0 %v9610
        %9792 = vmatpush1.bf16.msra.mxu0 %v9609
        %9793 = vmatprep.subr.bf16.mxu0 %v9615
        %9794 = vmatpush1.bf16.msra.mxu0 %v9614
        %9795 = vmatprep.subr.bf16.mxu0 %v9620
        %9796 = vmatpush1.bf16.msra.mxu0 %v9619
        %9797 = vmatprep.subr.bf16.mxu0 %v9625
        %9798 = vmatpush1.bf16.msra.mxu0 %v9624
        %9799 = vmatprep.subr.bf16.mxu0 %v9630
        %9800 = vmatpush1.bf16.msra.mxu0 %v9629
        %9801 = vmatprep.subr.bf16.mxu0 %v9635
        %9802 = vmatpush1.bf16.msra.mxu0 %v9634
        %9803 = vmatprep.subr.bf16.mxu0 %v9640
        %9804 = vmatpush1.bf16.msra.mxu0 %v9639
        %9805 = vmatprep.subr.bf16.mxu0 %v9645
        %9806 = vmatpush1.bf16.msra.mxu0 %v9644
        %9807 = vmatprep.mubr.bf16.mxu0 %v9242
        %9808 = vmatmul.mubr.bf16.gmra.mrb[0].mxu0 %v9241
        %v9809 = vpop.f32.mrb[0].mxu0
        %v9810 = vadd.f32 0.0, %v9809
        %v9811 = vpop.f32.mrb[0].mxu0
        %v9812 = vadd.f32 0.0, %v9811
        %v9813 = vpop.f32.mrb[0].mxu0
        %v9814 = vadd.f32 0.0, %v9813
        %v9815 = vpop.f32.mrb[0].mxu0
        %v9816 = vadd.f32 0.0, %v9815
        %9817 = vmatprep.mubr.bf16.mxu0 %v9244
        %9818 = vmatmul.mubr.bf16.gmra.mrb[0].mxu0 %v9243
        %v9819 = vpop.f32.mrb[0].mxu0
        %v9820 = vadd.f32 0.0, %v9819
        %v9821 = vpop.f32.mrb[0].mxu0
        %v9822 = vadd.f32 0.0, %v9821
        %v9823 = vpop.f32.mrb[0].mxu0
        %v9824 = vpop.f32.mrb[0].mxu0
        %9825 = vdwg.mxu0
        %9826 = vmatprep.subr.bf16.mxu0 %v9650
        %9827 = vmatpush1.bf16.msra.mxu0 %v9649
        %9828 = vmatprep.subr.bf16.mxu0 %v9655
        %9829 = vmatpush1.bf16.msra.mxu0 %v9654
        %9830 = vmatprep.subr.bf16.mxu0 %v9660
        %9831 = vmatpush1.bf16.msra.mxu0 %v9659
        %9832 = vmatprep.subr.bf16.mxu0 %v9665
        %9833 = vmatpush1.bf16.msra.mxu0 %v9664
        %9834 = vmatprep.subr.bf16.mxu0 0
        %9835 = vmatpush1.bf16.msra.mxu0 0
        %9836 = vmatprep.subr.bf16.mxu0 0
        %9837 = vmatpush1.bf16.msra.mxu0 0
        %9838 = vmatprep.subr.bf16.mxu0 0
        %9839 = vmatpush1.bf16.msra.mxu0 0
        %9840 = vmatprep.subr.bf16.mxu0 0
        %9841 = vmatpush1.bf16.msra.mxu0 0
        %9842 = vmatprep.subr.bf16.mxu0 0
        %9843 = vmatpush1.bf16.msra.mxu0 0
        %9844 = vmatprep.subr.bf16.mxu0 0
        %9845 = vmatpush1.bf16.msra.mxu0 0
        %9846 = vmatprep.subr.bf16.mxu0 0
        %9847 = vmatpush1.bf16.msra.mxu0 0
        %9848 = vmatprep.subr.bf16.mxu0 0
        %9849 = vmatpush1.bf16.msra.mxu0 0
        %9850 = vmatprep.subr.bf16.mxu0 0
        %9851 = vmatpush1.bf16.msra.mxu0 0
        %9852 = vmatprep.subr.bf16.mxu0 0
        %9853 = vmatpush1.bf16.msra.mxu0 0
        %9854 = vmatprep.subr.bf16.mxu0 0
        %9855 = vmatpush1.bf16.msra.mxu0 0
        %9856 = vmatprep.subr.bf16.mxu0 0
        %9857 = vmatpush1.bf16.msra.mxu0 0
        %9858 = vmatprep.mubr.bf16.mxu0 0
        %9859 = vmatmul.mubr.bf16.gmra.mrb[0].mxu0 %v9770
        %v9860 = vpop.f32.mrb[0].mxu0
        %v9861 = vadd.f32 %v9810, %v9860
        %v9862 = vpop.f32.mrb[0].mxu0
        %v9863 = vadd.f32 %v9812, %v9862
        %v9864 = vpop.f32.mrb[0].mxu0
        %v9865 = vadd.f32 %v9814, %v9864
        %v9866 = vpop.f32.mrb[0].mxu0
        %v9867 = vadd.f32 %v9816, %v9866
        %9868 = vmatprep.mubr.bf16.mxu0 0
        %9869 = vmatmul.mubr.bf16.gmra.mrb[0].mxu0 %v9773
        %v9870 = vpop.f32.mrb[0].mxu0
        %v9871 = vadd.f32 %v9820, %v9870
        %v9872 = vpop.f32.mrb[0].mxu0
        %v9873 = vadd.f32 %v9822, %v9872
        %v9874 = vpop.f32.mrb[0].mxu0
        %v9875 = vpop.f32.mrb[0].mxu0
        %9876 = vdwg.mxu0
        %9877 = vmatprep.subr.bf16.mxu0 %v9572
        %9878 = vmatpush1.bf16.msra.mxu0 %v9571
        %9879 = vmatprep.subr.bf16.mxu0 %v9577
        %9880 = vmatpush1.bf16.msra.mxu0 %v9576
        %9881 = vmatprep.subr.bf16.mxu0 %v9582
        %9882 = vmatpush1.bf16.msra.mxu0 %v9581
        %9883 = vmatprep.subr.bf16.mxu0 %v9587
        %9884 = vmatpush1.bf16.msra.mxu0 %v9586
        %9885 = vmatprep.subr.bf16.mxu0 %v9592
        %9886 = vmatpush1.bf16.msra.mxu0 %v9591
        %9887 = vmatprep.subr.bf16.mxu0 %v9597
        %9888 = vmatpush1.bf16.msra.mxu0 %v9596
        %9889 = vmatprep.subr.bf16.mxu0 %v9602
        %9890 = vmatpush1.bf16.msra.mxu0 %v9601
        %9891 = vmatprep.subr.bf16.mxu0 %v9607
        %9892 = vmatpush1.bf16.msra.mxu0 %v9606
        %9893 = vmatprep.subr.bf16.mxu0 %v9612
        %9894 = vmatpush1.bf16.msra.mxu0 %v9611
        %9895 = vmatprep.subr.bf16.mxu0 %v9617
        %9896 = vmatpush1.bf16.msra.mxu0 %v9616
        %9897 = vmatprep.subr.bf16.mxu0 %v9622
        %9898 = vmatpush1.bf16.msra.mxu0 %v9621
        %9899 = vmatprep.subr.bf16.mxu0 %v9627
        %9900 = vmatpush1.bf16.msra.mxu0 %v9626
        %9901 = vmatprep.subr.bf16.mxu0 %v9632
        %9902 = vmatpush1.bf16.msra.mxu0 %v9631
        %9903 = vmatprep.subr.bf16.mxu0 %v9637
        %9904 = vmatpush1.bf16.msra.mxu0 %v9636
        %9905 = vmatprep.subr.bf16.mxu0 %v9642
        %9906 = vmatpush1.bf16.msra.mxu0 %v9641
        %9907 = vmatprep.subr.bf16.mxu0 %v9647
        %9908 = vmatpush1.bf16.msra.mxu0 %v9646
        %9909 = vmatprep.mubr.bf16.mxu0 %v9242
        %9910 = vmatmul.mubr.bf16.gmra.mrb[0].mxu0 %v9241
        %v9911 = vpop.f32.mrb[0].mxu0
        %v9912 = vadd.f32 0.0, %v9911
        %v9913 = vpop.f32.mrb[0].mxu0
        %v9914 = vadd.f32 0.0, %v9913
        %v9915 = vpop.f32.mrb[0].mxu0
        %v9916 = vadd.f32 0.0, %v9915
        %v9917 = vpop.f32.mrb[0].mxu0
        %v9918 = vadd.f32 0.0, %v9917
        %9919 = vmatprep.mubr.bf16.mxu0 %v9244
        %9920 = vmatmul.mubr.bf16.gmra.mrb[0].mxu0 %v9243
        %v9921 = vpop.f32.mrb[0].mxu0
        %v9922 = vadd.f32 0.0, %v9921
        %v9923 = vpop.f32.mrb[0].mxu0
        %v9924 = vadd.f32 0.0, %v9923
        %v9925 = vpop.f32.mrb[0].mxu0
        %v9926 = vpop.f32.mrb[0].mxu0
        %9927 = vdwg.mxu0
        %9928 = vmatprep.subr.bf16.mxu0 %v9652
        %9929 = vmatpush1.bf16.msra.mxu0 %v9651
        %9930 = vmatprep.subr.bf16.mxu0 %v9657
        %9931 = vmatpush1.bf16.msra.mxu0 %v9656
        %9932 = vmatprep.subr.bf16.mxu0 %v9662
        %9933 = vmatpush1.bf16.msra.mxu0 %v9661
        %9934 = vmatprep.subr.bf16.mxu0 %v9667
        %9935 = vmatpush1.bf16.msra.mxu0 %v9666
        %9936 = vmatprep.subr.bf16.mxu0 0
        %9937 = vmatpush1.bf16.msra.mxu0 0
        %9938 = vmatprep.subr.bf16.mxu0 0
        %9939 = vmatpush1.bf16.msra.mxu0 0
        %9940 = vmatprep.subr.bf16.mxu0 0
        %9941 = vmatpush1.bf16.msra.mxu0 0
        %9942 = vmatprep.subr.bf16.mxu0 0
        %9943 = vmatpush1.bf16.msra.mxu0 0
        %9944 = vmatprep.subr.bf16.mxu0 0
        %9945 = vmatpush1.bf16.msra.mxu0 0
        %9946 = vmatprep.subr.bf16.mxu0 0
        %9947 = vmatpush1.bf16.msra.mxu0 0
        %9948 = vmatprep.subr.bf16.mxu0 0
        %9949 = vmatpush1.bf16.msra.mxu0 0
        %9950 = vmatprep.subr.bf16.mxu0 0
        %9951 = vmatpush1.bf16.msra.mxu0 0
        %9952 = vmatprep.subr.bf16.mxu0 0
        %9953 = vmatpush1.bf16.msra.mxu0 0
        %9954 = vmatprep.subr.bf16.mxu0 0
        %9955 = vmatpush1.bf16.msra.mxu0 0
        %9956 = vmatprep.subr.bf16.mxu0 0
        %9957 = vmatpush1.bf16.msra.mxu0 0
        %9958 = vmatprep.subr.bf16.mxu0 0
        %9959 = vmatpush1.bf16.msra.mxu0 0
        %9960 = vmatprep.mubr.bf16.mxu0 0
        %9961 = vmatmul.mubr.bf16.gmra.mrb[0].mxu0 %v9770
        %v9962 = vpop.f32.mrb[0].mxu0
        %v9963 = vadd.f32 %v9912, %v9962
        %v9964 = vpop.f32.mrb[0].mxu0
        %v9965 = vadd.f32 %v9914, %v9964
        %v9966 = vpop.f32.mrb[0].mxu0
        %v9967 = vadd.f32 %v9916, %v9966
        %v9968 = vpop.f32.mrb[0].mxu0
        %v9969 = vadd.f32 %v9918, %v9968
        %9970 = vmatprep.mubr.bf16.mxu0 0
        %9971 = vmatmul.mubr.bf16.gmra.mrb[0].mxu0 %v9773
        %v9972 = vpop.f32.mrb[0].mxu0
        %v9973 = vadd.f32 %v9922, %v9972
        %v9974 = vpop.f32.mrb[0].mxu0
        %v9975 = vadd.f32 %v9924, %v9974
        %v9976 = vpop.f32.mrb[0].mxu0
        %v9977 = vpop.f32.mrb[0].mxu0
        %9978 = vdwg.mxu0
        %9979 = vmatprep.subr.bf16.mxu0 0
        %9980 = vmatpush1.bf16.msra.mxu0 %v9573
        %9981 = vmatprep.subr.bf16.mxu0 0
        %9982 = vmatpush1.bf16.msra.mxu0 %v9578
        %9983 = vmatprep.subr.bf16.mxu0 0
        %9984 = vmatpush1.bf16.msra.mxu0 %v9583
        %9985 = vmatprep.subr.bf16.mxu0 0
        %9986 = vmatpush1.bf16.msra.mxu0 %v9588
        %9987 = vmatprep.subr.bf16.mxu0 0
        %9988 = vmatpush1.bf16.msra.mxu0 %v9593
        %9989 = vmatprep.subr.bf16.mxu0 0
        %9990 = vmatpush1.bf16.msra.mxu0 %v9598
        %9991 = vmatprep.subr.bf16.mxu0 0
        %9992 = vmatpush1.bf16.msra.mxu0 %v9603
        %9993 = vmatprep.subr.bf16.mxu0 0
        %9994 = vmatpush1.bf16.msra.mxu0 %v9608
        %9995 = vmatprep.subr.bf16.mxu0 0
        %9996 = vmatpush1.bf16.msra.mxu0 %v9613
        %9997 = vmatprep.subr.bf16.mxu0 0
        %9998 = vmatpush1.bf16.msra.mxu0 %v9618
        %9999 = vmatprep.subr.bf16.mxu0 0
        %10000 = vmatpush1.bf16.msra.mxu0 %v9623
        %10001 = vmatprep.subr.bf16.mxu0 0
        %10002 = vmatpush1.bf16.msra.mxu0 %v9628
        %10003 = vmatprep.subr.bf16.mxu0 0
        %10004 = vmatpush1.bf16.msra.mxu0 %v9633
        %10005 = vmatprep.subr.bf16.mxu0 0
        %10006 = vmatpush1.bf16.msra.mxu0 %v9638
        %10007 = vmatprep.subr.bf16.mxu0 0
        %10008 = vmatpush1.bf16.msra.mxu0 %v9643
        %10009 = vmatprep.subr.bf16.mxu0 0
        %10010 = vmatpush1.bf16.msra.mxu0 %v9648
        %10011 = vmatprep.mubr.bf16.mxu0 %v9242
        %10012 = vmatmul.mubr.bf16.gmra.mrb[0].mxu0 %v9241
        %v10013 = vpop.f32.mrb[0].mxu0
        %v10014 = vadd.f32 0.0, %v10013
        %v10015 = vpop.f32.mrb[0].mxu0
        %v10016 = vpop.f32.mrb[0].mxu0
        %v10017 = vadd.f32 0.0, %v10016
        %v10018 = vpop.f32.mrb[0].mxu0
        %10019 = vmatprep.mubr.bf16.mxu0 %v9244
        %10020 = vmatmul.mubr.bf16.gmra.mrb[0].mxu0 %v9243
        %v10021 = vpop.f32.mrb[0].mxu0
        %v10022 = vadd.f32 0.0, %v10021
        %v10023 = vpop.f32.mrb[0].mxu0
        %v10024 = vpop.f32.mrb[0].mxu0
        %v10025 = vpop.f32.mrb[0].mxu0
        %10026 = vdwg.mxu0
        %10027 = vmatprep.subr.bf16.mxu0 0
        %10028 = vmatpush1.bf16.msra.mxu0 %v9653
        %10029 = vmatprep.subr.bf16.mxu0 0
        %10030 = vmatpush1.bf16.msra.mxu0 %v9658
        %10031 = vmatprep.subr.bf16.mxu0 0
        %10032 = vmatpush1.bf16.msra.mxu0 %v9663
        %10033 = vmatprep.subr.bf16.mxu0 0
        %10034 = vmatpush1.bf16.msra.mxu0 %v9668
        %10035 = vmatprep.subr.bf16.mxu0 0
        %10036 = vmatpush1.bf16.msra.mxu0 0
        %10037 = vmatprep.subr.bf16.mxu0 0
        %10038 = vmatpush1.bf16.msra.mxu0 0
        %10039 = vmatprep.subr.bf16.mxu0 0
        %10040 = vmatpush1.bf16.msra.mxu0 0
        %10041 = vmatprep.subr.bf16.mxu0 0
        %10042 = vmatpush1.bf16.msra.mxu0 0
        %10043 = vmatprep.subr.bf16.mxu0 0
        %10044 = vmatpush1.bf16.msra.mxu0 0
        %10045 = vmatprep.subr.bf16.mxu0 0
        %10046 = vmatpush1.bf16.msra.mxu0 0
        %10047 = vmatprep.subr.bf16.mxu0 0
        %10048 = vmatpush1.bf16.msra.mxu0 0
        %10049 = vmatprep.subr.bf16.mxu0 0
        %10050 = vmatpush1.bf16.msra.mxu0 0
        %10051 = vmatprep.subr.bf16.mxu0 0
        %10052 = vmatpush1.bf16.msra.mxu0 0
        %10053 = vmatprep.subr.bf16.mxu0 0
        %10054 = vmatpush1.bf16.msra.mxu0 0
        %10055 = vmatprep.subr.bf16.mxu0 0
        %10056 = vmatpush1.bf16.msra.mxu0 0
        %10057 = vmatprep.subr.bf16.mxu0 0
        %10058 = vmatpush1.bf16.msra.mxu0 0
        %10059 = vmatprep.mubr.bf16.mxu0 0
        %10060 = vmatmul.mubr.bf16.gmra.mrb[0].mxu0 %v9770
        %v10061 = vpop.f32.mrb[0].mxu0
        %v10062 = vadd.f32 %v10014, %v10061
        %v10063 = vpop.f32.mrb[0].mxu0
        %v10064 = vpop.f32.mrb[0].mxu0
        %v10065 = vadd.f32 %v10017, %v10064
        %v10066 = vpop.f32.mrb[0].mxu0
        %10067 = vmatprep.mubr.bf16.mxu0 0
        %10068 = vmatmul.mubr.bf16.gmra.mrb[0].mxu0 %v9773
        %v10069 = vpop.f32.mrb[0].mxu0
        %v10070 = vadd.f32 %v10022, %v10069
        %v10071 = vpop.f32.mrb[0].mxu0
        %v10072 = vpop.f32.mrb[0].mxu0
        %v10073 = vpop.f32.mrb[0].mxu0
        %10074 = vdwg.mxu0
        %v10075 = vadd.f32 %v9093, %v9861
        %v10076 = vadd.f32 %v9094, %v9863
        %v10077 = vadd.f32 %v9095, %v9963
        %v10078 = vadd.f32 %v9096, %v9965
        %v10079 = vadd.f32 %v9097, %v10062
        %v10080 = vadd.f32 %v9098, %v9865
        %v10081 = vadd.f32 %v9099, %v9867
        %v10082 = vadd.f32 %v9100, %v9967
        %v10083 = vadd.f32 %v9101, %v9969
        %v10084 = vadd.f32 %v9102, %v10065
        %v10085 = vadd.f32 %v9103, %v9871
        %v10086 = vadd.f32 %v9104, %v9873
        %v10087 = vadd.f32 %v9105, %v9973
        %v10088 = vadd.f32 %v9106, %v9975
        %v10089 = vadd.f32 %v9107, %v10070
        %s10090 = scalar_lea.vmem [#allocation8], 6400
        %v10091 = vld [vmem:[%s10090] sm:$0xff]
        %v10092 = vld [vmem:[%s10090 + $0x8] sm:$0xff]
        %v10093 = vld [vmem:[%s10090 + $0x10] sm:$0xf]
        %v10094 = vld [vmem:[%s10090 + $0x14] sm:$0xff]
        %v10095 = vld [vmem:[%s10090 + $0x1c] sm:$0xff]
        %v10096 = vld [vmem:[%s10090 + $0x24] sm:$0xf]
        %v10097 = vld [vmem:[%s10090 + $0x28] sm:$0xff]
        %v10098 = vld [vmem:[%s10090 + $0x30] sm:$0xff]
        %v10099 = vld [vmem:[%s10090 + $0x38] sm:$0xf]
        %v10100 = vld [vmem:[%s10090 + $0x3c] sm:$0xff]
        %v10101 = vld [vmem:[%s10090 + $0x44] sm:$0xff]
        %v10102 = vld [vmem:[%s10090 + $0x4c] sm:$0xf]
        %v10103 = vld [vmem:[%s10090 + $0x50] sm:$0xff]
        %v10104 = vld [vmem:[%s10090 + $0x58] sm:$0xff]
        %v10105 = vld [vmem:[%s10090 + $0x60] sm:$0xf]
        %v10106 = vld [vmem:[%s10090 + $0x64] sm:$0xff]
        %v10107 = vld [vmem:[%s10090 + $0x6c] sm:$0xff]
        %v10108 = vld [vmem:[%s10090 + $0x74] sm:$0xf]
        %v10109 = vld [vmem:[%s10090 + $0x78] sm:$0xff]
        %v10110 = vld [vmem:[%s10090 + $0x80] sm:$0xff]
        %v10111 = vld [vmem:[%s10090 + $0x88] sm:$0xf]
        %v10112 = vld [vmem:[%s10090 + $0x8c] sm:$0xff]
        %v10113 = vld [vmem:[%s10090 + $0x94] sm:$0xff]
        %v10114 = vld [vmem:[%s10090 + $0x9c] sm:$0xf]
        %v10115 = vld [vmem:[%s10090 + $0xa0] sm:$0xff]
        %v10116 = vld [vmem:[%s10090 + $0xa8] sm:$0xff]
        %v10117 = vld [vmem:[%s10090 + $0xb0] sm:$0xf]
        %v10118 = vld [vmem:[%s10090 + $0xb4] sm:$0xff]
        %v10119 = vld [vmem:[%s10090 + $0xbc] sm:$0xff]
        %v10120 = vld [vmem:[%s10090 + $0xc4] sm:$0xf]
        %v10121 = vld [vmem:[%s10090 + $0xc8] sm:$0xff]
        %v10122 = vld [vmem:[%s10090 + $0xd0] sm:$0xff]
        %v10123 = vld [vmem:[%s10090 + $0xd8] sm:$0xf]
        %v10124 = vld [vmem:[%s10090 + $0xdc] sm:$0xff]
        %v10125 = vld [vmem:[%s10090 + $0xe4] sm:$0xff]
        %v10126 = vld [vmem:[%s10090 + $0xec] sm:$0xf]
        %v10127 = vld [vmem:[%s10090 + $0xf0] sm:$0xff]
        %v10128 = vld [vmem:[%s10090 + $0xf8] sm:$0xff]
        %v10129 = vld [vmem:[%s10090 + $0x100] sm:$0xf]
        %v10130 = vld [vmem:[%s10090 + $0x104] sm:$0xff]
        %v10131 = vld [vmem:[%s10090 + $0x10c] sm:$0xff]
        %v10132 = vld [vmem:[%s10090 + $0x114] sm:$0xf]
        %v10133 = vld [vmem:[%s10090 + $0x118] sm:$0xff]
        %v10134 = vld [vmem:[%s10090 + $0x120] sm:$0xff]
        %v10135 = vld [vmem:[%s10090 + $0x128] sm:$0xf]
        %v10136 = vld [vmem:[%s10090 + $0x12c] sm:$0xff]
        %v10137 = vld [vmem:[%s10090 + $0x134] sm:$0xff]
        %v10138 = vld [vmem:[%s10090 + $0x13c] sm:$0xf]
        %v10139 = vld [vmem:[%s10090 + $0x140] sm:$0xff]
        %v10140 = vld [vmem:[%s10090 + $0x148] sm:$0xff]
        %v10141 = vld [vmem:[%s10090 + $0x150] sm:$0xf]
        %v10142 = vld [vmem:[%s10090 + $0x154] sm:$0xff]
        %v10143 = vld [vmem:[%s10090 + $0x15c] sm:$0xff]
        %v10144 = vld [vmem:[%s10090 + $0x164] sm:$0xf]
        %v10145 = vld [vmem:[%s10090 + $0x168] sm:$0xff]
        %v10146 = vld [vmem:[%s10090 + $0x170] sm:$0xff]
        %v10147 = vld [vmem:[%s10090 + $0x178] sm:$0xf]
        %v10148 = vld [vmem:[%s10090 + $0x17c] sm:$0xff]
        %v10149 = vld [vmem:[%s10090 + $0x184] sm:$0xff]
        %v10150 = vld [vmem:[%s10090 + $0x18c] sm:$0xf]
        %v10151 = vld [vmem:[%s10090 + $0x190] sm:$0xff]
        %v10152 = vld [vmem:[%s10090 + $0x198] sm:$0xff]
        %v10153 = vld [vmem:[%s10090 + $0x1a0] sm:$0xf]
        %v10154 = vld [vmem:[%s10090 + $0x1a4] sm:$0xff]
        %v10155 = vld [vmem:[%s10090 + $0x1ac] sm:$0xff]
        %v10156 = vld [vmem:[%s10090 + $0x1b4] sm:$0xf]
        %v10157 = vld [vmem:[%s10090 + $0x1b8] sm:$0xff]
        %v10158 = vld [vmem:[%s10090 + $0x1c0] sm:$0xff]
        %v10159 = vld [vmem:[%s10090 + $0x1c8] sm:$0xf]
        %v10160 = vld [vmem:[%s10090 + $0x1cc] sm:$0xff]
        %v10161 = vld [vmem:[%s10090 + $0x1d4] sm:$0xff]
        %v10162 = vld [vmem:[%s10090 + $0x1dc] sm:$0xf]
        %v10163 = vld [vmem:[%s10090 + $0x1e0] sm:$0xff]
        %v10164 = vld [vmem:[%s10090 + $0x1e8] sm:$0xff]
        %v10165 = vld [vmem:[%s10090 + $0x1f0] sm:$0xf]
        %v10166 = vld [vmem:[%s10090 + $0x1f4] sm:$0xff]
        %v10167 = vld [vmem:[%s10090 + $0x1fc] sm:$0xff]
        %v10168 = vld [vmem:[%s10090 + $0x204] sm:$0xf]
        %v10169 = vld [vmem:[%s10090 + $0x208] sm:$0xff]
        %v10170 = vld [vmem:[%s10090 + $0x210] sm:$0xff]
        %v10171 = vld [vmem:[%s10090 + $0x218] sm:$0xf]
        %v10172 = vld [vmem:[%s10090 + $0x21c] sm:$0xff]
        %v10173 = vld [vmem:[%s10090 + $0x224] sm:$0xff]
        %v10174 = vld [vmem:[%s10090 + $0x22c] sm:$0xf]
        %v10175 = vld [vmem:[%s10090 + $0x230] sm:$0xff]
        %v10176 = vld [vmem:[%s10090 + $0x238] sm:$0xff]
        %v10177 = vld [vmem:[%s10090 + $0x240] sm:$0xf]
        %v10178 = vld [vmem:[%s10090 + $0x244] sm:$0xff]
        %v10179 = vld [vmem:[%s10090 + $0x24c] sm:$0xff]
        %v10180 = vld [vmem:[%s10090 + $0x254] sm:$0xf]
        %v10181 = vld [vmem:[%s10090 + $0x258] sm:$0xff]
        %v10182 = vld [vmem:[%s10090 + $0x260] sm:$0xff]
        %v10183 = vld [vmem:[%s10090 + $0x268] sm:$0xf]
        %v10184 = vld [vmem:[%s10090 + $0x26c] sm:$0xff]
        %v10185 = vld [vmem:[%s10090 + $0x274] sm:$0xff]
        %v10186 = vld [vmem:[%s10090 + $0x27c] sm:$0xf]
        %v10187 = vld [vmem:[%s10090 + $0x280] sm:$0xff]
        %v10188 = vld [vmem:[%s10090 + $0x288] sm:$0xff]
        %v10189 = vld [vmem:[%s10090 + $0x290] sm:$0xf]
        %v10190 = vld [vmem:[%s10090 + $0x294] sm:$0xff]
        %v10191 = vld [vmem:[%s10090 + $0x29c] sm:$0xff]
        %v10192 = vld [vmem:[%s10090 + $0x2a4] sm:$0xf]
        %v10193 = vld [vmem:[%s10090 + $0x2a8] sm:$0xff]
        %v10194 = vld [vmem:[%s10090 + $0x2b0] sm:$0xff]
        %v10195 = vld [vmem:[%s10090 + $0x2b8] sm:$0xf]
        %v10196 = vld [vmem:[%s10090 + $0x2bc] sm:$0xff]
        %v10197 = vld [vmem:[%s10090 + $0x2c4] sm:$0xff]
        %v10198 = vld [vmem:[%s10090 + $0x2cc] sm:$0xf]
        %v10199 = vld [vmem:[%s10090 + $0x2d0] sm:$0xff]
        %v10200 = vld [vmem:[%s10090 + $0x2d8] sm:$0xff]
        %v10201 = vld [vmem:[%s10090 + $0x2e0] sm:$0xf]
        %v10202 = vld [vmem:[%s10090 + $0x2e4] sm:$0xff]
        %v10203 = vld [vmem:[%s10090 + $0x2ec] sm:$0xff]
        %v10204 = vld [vmem:[%s10090 + $0x2f4] sm:$0xf]
        %v10205 = vld [vmem:[%s10090 + $0x2f8] sm:$0xff]
        %v10206 = vld [vmem:[%s10090 + $0x300] sm:$0xff]
        %v10207 = vld [vmem:[%s10090 + $0x308] sm:$0xf]
        %v10208 = vld [vmem:[%s10090 + $0x30c] sm:$0xff]
        %v10209 = vld [vmem:[%s10090 + $0x314] sm:$0xff]
        %v10210 = vld [vmem:[%s10090 + $0x31c] sm:$0xf]
        %10211 = vrot.lane.b32.xlu0 %v8256, 96
        %v10212 = vpop.permute.xlu0 %10211
        %10213 = vrot.lane.b32.xlu0 %v8259, 96
        %v10214 = vpop.permute.xlu0 %10213
        %10215 = vrot.lane.b32.xlu0 %v8262, 96
        %v10216 = vpop.permute.xlu0 %10215
        %10217 = vrot.lane.b32.xlu0 %v8255, 96
        %v10218 = vpop.permute.xlu0 %10217
        %10219 = vrot.lane.b32.xlu0 %v8258, 96
        %v10220 = vpop.permute.xlu0 %10219
        %10221 = vrot.lane.b32.xlu0 %v8261, 96
        %v10222 = vpop.permute.xlu0 %10221
        %v10223 = vsel %vm4310, %v10212, %v10214
        %v10224 = vsel %vm4310, %v10214, %v10216
        %v10225 = vsel %vm4310, %v10218, %v10220
        %v10226 = vsel %vm4310, %v10220, %v10222
        %v10351 = vunpack.c.l.b16 %v10091
        %v10352 = vunpack.c.h.b16 %v10091
        %v10353 = vunpack.c.l.b16 %v10092
        %v10354 = vunpack.c.h.b16 %v10092
        %v10355 = vunpack.c.l.b16 %v10093
        %v10356 = vunpack.c.l.b16 %v10094
        %v10357 = vunpack.c.h.b16 %v10094
        %v10358 = vunpack.c.l.b16 %v10095
        %v10359 = vunpack.c.h.b16 %v10095
        %v10360 = vunpack.c.l.b16 %v10096
        %v10361 = vunpack.c.l.b16 %v10097
        %v10362 = vunpack.c.h.b16 %v10097
        %v10363 = vunpack.c.l.b16 %v10098
        %v10364 = vunpack.c.h.b16 %v10098
        %v10365 = vunpack.c.l.b16 %v10099
        %v10366 = vunpack.c.l.b16 %v10100
        %v10367 = vunpack.c.h.b16 %v10100
        %v10368 = vunpack.c.l.b16 %v10101
        %v10369 = vunpack.c.h.b16 %v10101
        %v10370 = vunpack.c.l.b16 %v10102
        %v10371 = vunpack.c.l.b16 %v10103
        %v10372 = vunpack.c.h.b16 %v10103
        %v10373 = vunpack.c.l.b16 %v10104
        %v10374 = vunpack.c.h.b16 %v10104
        %v10375 = vunpack.c.l.b16 %v10105
        %v10376 = vunpack.c.l.b16 %v10106
        %v10377 = vunpack.c.h.b16 %v10106
        %v10378 = vunpack.c.l.b16 %v10107
        %v10379 = vunpack.c.h.b16 %v10107
        %v10380 = vunpack.c.l.b16 %v10108
        %v10381 = vunpack.c.l.b16 %v10109
        %v10382 = vunpack.c.h.b16 %v10109
        %v10383 = vunpack.c.l.b16 %v10110
        %v10384 = vunpack.c.h.b16 %v10110
        %v10385 = vunpack.c.l.b16 %v10111
        %v10386 = vunpack.c.l.b16 %v10112
        %v10387 = vunpack.c.h.b16 %v10112
        %v10388 = vunpack.c.l.b16 %v10113
        %v10389 = vunpack.c.h.b16 %v10113
        %v10390 = vunpack.c.l.b16 %v10114
        %v10391 = vunpack.c.l.b16 %v10115
        %v10392 = vunpack.c.h.b16 %v10115
        %v10393 = vunpack.c.l.b16 %v10116
        %v10394 = vunpack.c.h.b16 %v10116
        %v10395 = vunpack.c.l.b16 %v10117
        %v10396 = vunpack.c.l.b16 %v10118
        %v10397 = vunpack.c.h.b16 %v10118
        %v10398 = vunpack.c.l.b16 %v10119
        %v10399 = vunpack.c.h.b16 %v10119
        %v10400 = vunpack.c.l.b16 %v10120
        %v10401 = vunpack.c.l.b16 %v10121
        %v10402 = vunpack.c.h.b16 %v10121
        %v10403 = vunpack.c.l.b16 %v10122
        %v10404 = vunpack.c.h.b16 %v10122
        %v10405 = vunpack.c.l.b16 %v10123
        %v10406 = vunpack.c.l.b16 %v10124
        %v10407 = vunpack.c.h.b16 %v10124
        %v10408 = vunpack.c.l.b16 %v10125
        %v10409 = vunpack.c.h.b16 %v10125
        %v10410 = vunpack.c.l.b16 %v10126
        %v10411 = vunpack.c.l.b16 %v10127
        %v10412 = vunpack.c.h.b16 %v10127
        %v10413 = vunpack.c.l.b16 %v10128
        %v10414 = vunpack.c.h.b16 %v10128
        %v10415 = vunpack.c.l.b16 %v10129
        %v10416 = vunpack.c.l.b16 %v10130
        %v10417 = vunpack.c.h.b16 %v10130
        %v10418 = vunpack.c.l.b16 %v10131
        %v10419 = vunpack.c.h.b16 %v10131
        %v10420 = vunpack.c.l.b16 %v10132
        %v10421 = vunpack.c.l.b16 %v10133
        %v10422 = vunpack.c.h.b16 %v10133
        %v10423 = vunpack.c.l.b16 %v10134
        %v10424 = vunpack.c.h.b16 %v10134
        %v10425 = vunpack.c.l.b16 %v10135
        %v10426 = vunpack.c.l.b16 %v10136
        %v10427 = vunpack.c.h.b16 %v10136
        %v10428 = vunpack.c.l.b16 %v10137
        %v10429 = vunpack.c.h.b16 %v10137
        %v10430 = vunpack.c.l.b16 %v10138
        %v10431 = vunpack.c.l.b16 %v10139
        %v10432 = vunpack.c.h.b16 %v10139
        %v10433 = vunpack.c.l.b16 %v10140
        %v10434 = vunpack.c.h.b16 %v10140
        %v10435 = vunpack.c.l.b16 %v10141
        %v10436 = vunpack.c.l.b16 %v10142
        %v10437 = vunpack.c.h.b16 %v10142
        %v10438 = vunpack.c.l.b16 %v10143
        %v10439 = vunpack.c.h.b16 %v10143
        %v10440 = vunpack.c.l.b16 %v10144
        %v10441 = vunpack.c.l.b16 %v10145
        %v10442 = vunpack.c.h.b16 %v10145
        %v10443 = vunpack.c.l.b16 %v10146
        %v10444 = vunpack.c.h.b16 %v10146
        %v10445 = vunpack.c.l.b16 %v10147
        %v10446 = vunpack.c.l.b16 %v10148
        %v10447 = vunpack.c.h.b16 %v10148
        %v10448 = vunpack.c.l.b16 %v10149
        %v10449 = vunpack.c.h.b16 %v10149
        %v10450 = vunpack.c.l.b16 %v10150
        %v10451 = vunpack.c.l.b16 %v10151
        %v10452 = vunpack.c.h.b16 %v10151
        %v10453 = vunpack.c.l.b16 %v10152
        %v10454 = vunpack.c.h.b16 %v10152
        %v10455 = vunpack.c.l.b16 %v10153
        %v10456 = vunpack.c.l.b16 %v10154
        %v10457 = vunpack.c.h.b16 %v10154
        %v10458 = vunpack.c.l.b16 %v10155
        %v10459 = vunpack.c.h.b16 %v10155
        %v10460 = vunpack.c.l.b16 %v10156
        %v10461 = vunpack.c.l.b16 %v10157
        %v10462 = vunpack.c.h.b16 %v10157
        %v10463 = vunpack.c.l.b16 %v10158
        %v10464 = vunpack.c.h.b16 %v10158
        %v10465 = vunpack.c.l.b16 %v10159
        %v10466 = vunpack.c.l.b16 %v10160
        %v10467 = vunpack.c.h.b16 %v10160
        %v10468 = vunpack.c.l.b16 %v10161
        %v10469 = vunpack.c.h.b16 %v10161
        %v10470 = vunpack.c.l.b16 %v10162
        %v10471 = vunpack.c.l.b16 %v10163
        %v10472 = vunpack.c.h.b16 %v10163
        %v10473 = vunpack.c.l.b16 %v10164
        %v10474 = vunpack.c.h.b16 %v10164
        %v10475 = vunpack.c.l.b16 %v10165
        %v10476 = vunpack.c.l.b16 %v10166
        %v10477 = vunpack.c.h.b16 %v10166
        %v10478 = vunpack.c.l.b16 %v10167
        %v10479 = vunpack.c.h.b16 %v10167
        %v10480 = vunpack.c.l.b16 %v10168
        %v10481 = vunpack.c.l.b16 %v10169
        %v10482 = vunpack.c.h.b16 %v10169
        %v10483 = vunpack.c.l.b16 %v10170
        %v10484 = vunpack.c.h.b16 %v10170
        %v10485 = vunpack.c.l.b16 %v10171
        %v10486 = vunpack.c.l.b16 %v10172
        %v10487 = vunpack.c.h.b16 %v10172
        %v10488 = vunpack.c.l.b16 %v10173
        %v10489 = vunpack.c.h.b16 %v10173
        %v10490 = vunpack.c.l.b16 %v10174
        %v10491 = vunpack.c.l.b16 %v10175
        %v10492 = vunpack.c.h.b16 %v10175
        %v10493 = vunpack.c.l.b16 %v10176
        %v10494 = vunpack.c.h.b16 %v10176
        %v10495 = vunpack.c.l.b16 %v10177
        %v10496 = vunpack.c.l.b16 %v10178
        %v10497 = vunpack.c.h.b16 %v10178
        %v10498 = vunpack.c.l.b16 %v10179
        %v10499 = vunpack.c.h.b16 %v10179
        %v10500 = vunpack.c.l.b16 %v10180
        %v10501 = vunpack.c.l.b16 %v10181
        %v10502 = vunpack.c.h.b16 %v10181
        %v10503 = vunpack.c.l.b16 %v10182
        %v10504 = vunpack.c.h.b16 %v10182
        %v10505 = vunpack.c.l.b16 %v10183
        %v10506 = vunpack.c.l.b16 %v10184
        %v10507 = vunpack.c.h.b16 %v10184
        %v10508 = vunpack.c.l.b16 %v10185
        %v10509 = vunpack.c.h.b16 %v10185
        %v10510 = vunpack.c.l.b16 %v10186
        %v10511 = vunpack.c.l.b16 %v10187
        %v10512 = vunpack.c.h.b16 %v10187
        %v10513 = vunpack.c.l.b16 %v10188
        %v10514 = vunpack.c.h.b16 %v10188
        %v10515 = vunpack.c.l.b16 %v10189
        %v10516 = vunpack.c.l.b16 %v10190
        %v10517 = vunpack.c.h.b16 %v10190
        %v10518 = vunpack.c.l.b16 %v10191
        %v10519 = vunpack.c.h.b16 %v10191
        %v10520 = vunpack.c.l.b16 %v10192
        %v10521 = vunpack.c.l.b16 %v10193
        %v10522 = vunpack.c.h.b16 %v10193
        %v10523 = vunpack.c.l.b16 %v10194
        %v10524 = vunpack.c.h.b16 %v10194
        %v10525 = vunpack.c.l.b16 %v10195
        %v10526 = vunpack.c.l.b16 %v10196
        %v10527 = vunpack.c.h.b16 %v10196
        %v10528 = vunpack.c.l.b16 %v10197
        %v10529 = vunpack.c.h.b16 %v10197
        %v10530 = vunpack.c.l.b16 %v10198
        %v10531 = vunpack.c.l.b16 %v10199
        %v10532 = vunpack.c.h.b16 %v10199
        %v10533 = vunpack.c.l.b16 %v10200
        %v10534 = vunpack.c.h.b16 %v10200
        %v10535 = vunpack.c.l.b16 %v10201
        %v10536 = vunpack.c.l.b16 %v10202
        %v10537 = vunpack.c.h.b16 %v10202
        %v10538 = vunpack.c.l.b16 %v10203
        %v10539 = vunpack.c.h.b16 %v10203
        %v10540 = vunpack.c.l.b16 %v10204
        %v10541 = vunpack.c.l.b16 %v10205
        %v10542 = vunpack.c.h.b16 %v10205
        %v10543 = vunpack.c.l.b16 %v10206
        %v10544 = vunpack.c.h.b16 %v10206
        %v10545 = vunpack.c.l.b16 %v10207
        %v10546 = vunpack.c.l.b16 %v10208
        %v10547 = vunpack.c.h.b16 %v10208
        %v10548 = vunpack.c.l.b16 %v10209
        %v10549 = vunpack.c.h.b16 %v10209
        %v10550 = vunpack.c.l.b16 %v10210
        %v10551 = vpack.c.b16 %v10356, %v10351
        %v10552 = vpack.c.b16 %v10357, %v10352
        %v10553 = vpack.c.b16 %v10358, %v10353
        %v10554 = vpack.c.b16 %v10359, %v10354
        %v10555 = vpack.c.b16 %v10360, %v10355
        %v10556 = vpack.c.b16 %v10366, %v10361
        %v10557 = vpack.c.b16 %v10367, %v10362
        %v10558 = vpack.c.b16 %v10368, %v10363
        %v10559 = vpack.c.b16 %v10369, %v10364
        %v10560 = vpack.c.b16 %v10370, %v10365
        %v10561 = vpack.c.b16 %v10376, %v10371
        %v10562 = vpack.c.b16 %v10377, %v10372
        %v10563 = vpack.c.b16 %v10378, %v10373
        %v10564 = vpack.c.b16 %v10379, %v10374
        %v10565 = vpack.c.b16 %v10380, %v10375
        %v10566 = vpack.c.b16 %v10386, %v10381
        %v10567 = vpack.c.b16 %v10387, %v10382
        %v10568 = vpack.c.b16 %v10388, %v10383
        %v10569 = vpack.c.b16 %v10389, %v10384
        %v10570 = vpack.c.b16 %v10390, %v10385
        %v10571 = vpack.c.b16 %v10396, %v10391
        %v10572 = vpack.c.b16 %v10397, %v10392
        %v10573 = vpack.c.b16 %v10398, %v10393
        %v10574 = vpack.c.b16 %v10399, %v10394
        %v10575 = vpack.c.b16 %v10400, %v10395
        %v10576 = vpack.c.b16 %v10406, %v10401
        %v10577 = vpack.c.b16 %v10407, %v10402
        %v10578 = vpack.c.b16 %v10408, %v10403
        %v10579 = vpack.c.b16 %v10409, %v10404
        %v10580 = vpack.c.b16 %v10410, %v10405
        %v10581 = vpack.c.b16 %v10416, %v10411
        %v10582 = vpack.c.b16 %v10417, %v10412
        %v10583 = vpack.c.b16 %v10418, %v10413
        %v10584 = vpack.c.b16 %v10419, %v10414
        %v10585 = vpack.c.b16 %v10420, %v10415
        %v10586 = vpack.c.b16 %v10426, %v10421
        %v10587 = vpack.c.b16 %v10427, %v10422
        %v10588 = vpack.c.b16 %v10428, %v10423
        %v10589 = vpack.c.b16 %v10429, %v10424
        %v10590 = vpack.c.b16 %v10430, %v10425
        %v10591 = vpack.c.b16 %v10436, %v10431
        %v10592 = vpack.c.b16 %v10437, %v10432
        %v10593 = vpack.c.b16 %v10438, %v10433
        %v10594 = vpack.c.b16 %v10439, %v10434
        %v10595 = vpack.c.b16 %v10440, %v10435
        %v10596 = vpack.c.b16 %v10446, %v10441
        %v10597 = vpack.c.b16 %v10447, %v10442
        %v10598 = vpack.c.b16 %v10448, %v10443
        %v10599 = vpack.c.b16 %v10449, %v10444
        %v10600 = vpack.c.b16 %v10450, %v10445
        %v10601 = vpack.c.b16 %v10456, %v10451
        %v10602 = vpack.c.b16 %v10457, %v10452
        %v10603 = vpack.c.b16 %v10458, %v10453
        %v10604 = vpack.c.b16 %v10459, %v10454
        %v10605 = vpack.c.b16 %v10460, %v10455
        %v10606 = vpack.c.b16 %v10466, %v10461
        %v10607 = vpack.c.b16 %v10467, %v10462
        %v10608 = vpack.c.b16 %v10468, %v10463
        %v10609 = vpack.c.b16 %v10469, %v10464
        %v10610 = vpack.c.b16 %v10470, %v10465
        %v10611 = vpack.c.b16 %v10476, %v10471
        %v10612 = vpack.c.b16 %v10477, %v10472
        %v10613 = vpack.c.b16 %v10478, %v10473
        %v10614 = vpack.c.b16 %v10479, %v10474
        %v10615 = vpack.c.b16 %v10480, %v10475
        %v10616 = vpack.c.b16 %v10486, %v10481
        %v10617 = vpack.c.b16 %v10487, %v10482
        %v10618 = vpack.c.b16 %v10488, %v10483
        %v10619 = vpack.c.b16 %v10489, %v10484
        %v10620 = vpack.c.b16 %v10490, %v10485
        %v10621 = vpack.c.b16 %v10496, %v10491
        %v10622 = vpack.c.b16 %v10497, %v10492
        %v10623 = vpack.c.b16 %v10498, %v10493
        %v10624 = vpack.c.b16 %v10499, %v10494
        %v10625 = vpack.c.b16 %v10500, %v10495
        %v10626 = vpack.c.b16 %v10506, %v10501
        %v10627 = vpack.c.b16 %v10507, %v10502
        %v10628 = vpack.c.b16 %v10508, %v10503
        %v10629 = vpack.c.b16 %v10509, %v10504
        %v10630 = vpack.c.b16 %v10510, %v10505
        %v10631 = vpack.c.b16 %v10516, %v10511
        %v10632 = vpack.c.b16 %v10517, %v10512
        %v10633 = vpack.c.b16 %v10518, %v10513
        %v10634 = vpack.c.b16 %v10519, %v10514
        %v10635 = vpack.c.b16 %v10520, %v10515
        %v10636 = vpack.c.b16 %v10526, %v10521
        %v10637 = vpack.c.b16 %v10527, %v10522
        %v10638 = vpack.c.b16 %v10528, %v10523
        %v10639 = vpack.c.b16 %v10529, %v10524
        %v10640 = vpack.c.b16 %v10530, %v10525
        %v10641 = vpack.c.b16 %v10536, %v10531
        %v10642 = vpack.c.b16 %v10537, %v10532
        %v10643 = vpack.c.b16 %v10538, %v10533
        %v10644 = vpack.c.b16 %v10539, %v10534
        %v10645 = vpack.c.b16 %v10540, %v10535
        %v10646 = vpack.c.b16 %v10546, %v10541
        %v10647 = vpack.c.b16 %v10547, %v10542
        %v10648 = vpack.c.b16 %v10548, %v10543
        %v10649 = vpack.c.b16 %v10549, %v10544
        %v10650 = vpack.c.b16 %v10550, %v10545
        %v10752 = vsel %vm2235, %v10216, 0
        %v10755 = vsel %vm2235, %v10222, 0
        %10757 = vmatprep.subr.bf16.mxu0 %v10552
        %10758 = vmatpush1.bf16.msra.mxu0 %v10551
        %10759 = vmatprep.subr.bf16.mxu0 %v10557
        %10760 = vmatpush1.bf16.msra.mxu0 %v10556
        %10761 = vmatprep.subr.bf16.mxu0 %v10562
        %10762 = vmatpush1.bf16.msra.mxu0 %v10561
        %10763 = vmatprep.subr.bf16.mxu0 %v10567
        %10764 = vmatpush1.bf16.msra.mxu0 %v10566
        %10765 = vmatprep.subr.bf16.mxu0 %v10572
        %10766 = vmatpush1.bf16.msra.mxu0 %v10571
        %10767 = vmatprep.subr.bf16.mxu0 %v10577
        %10768 = vmatpush1.bf16.msra.mxu0 %v10576
        %10769 = vmatprep.subr.bf16.mxu0 %v10582
        %10770 = vmatpush1.bf16.msra.mxu0 %v10581
        %10771 = vmatprep.subr.bf16.mxu0 %v10587
        %10772 = vmatpush1.bf16.msra.mxu0 %v10586
        %10773 = vmatprep.subr.bf16.mxu0 %v10592
        %10774 = vmatpush1.bf16.msra.mxu0 %v10591
        %10775 = vmatprep.subr.bf16.mxu0 %v10597
        %10776 = vmatpush1.bf16.msra.mxu0 %v10596
        %10777 = vmatprep.subr.bf16.mxu0 %v10602
        %10778 = vmatpush1.bf16.msra.mxu0 %v10601
        %10779 = vmatprep.subr.bf16.mxu0 %v10607
        %10780 = vmatpush1.bf16.msra.mxu0 %v10606
        %10781 = vmatprep.subr.bf16.mxu0 %v10612
        %10782 = vmatpush1.bf16.msra.mxu0 %v10611
        %10783 = vmatprep.subr.bf16.mxu0 %v10617
        %10784 = vmatpush1.bf16.msra.mxu0 %v10616
        %10785 = vmatprep.subr.bf16.mxu0 %v10622
        %10786 = vmatpush1.bf16.msra.mxu0 %v10621
        %10787 = vmatprep.subr.bf16.mxu0 %v10627
        %10788 = vmatpush1.bf16.msra.mxu0 %v10626
        %10789 = vmatprep.mubr.bf16.mxu0 %v10224
        %10790 = vmatmul.mubr.bf16.gmra.mrb[0].mxu0 %v10223
        %v10791 = vpop.f32.mrb[0].mxu0
        %v10792 = vadd.f32 0.0, %v10791
        %v10793 = vpop.f32.mrb[0].mxu0
        %v10794 = vadd.f32 0.0, %v10793
        %v10795 = vpop.f32.mrb[0].mxu0
        %v10796 = vadd.f32 0.0, %v10795
        %v10797 = vpop.f32.mrb[0].mxu0
        %v10798 = vadd.f32 0.0, %v10797
        %10799 = vmatprep.mubr.bf16.mxu0 %v10226
        %10800 = vmatmul.mubr.bf16.gmra.mrb[0].mxu0 %v10225
        %v10801 = vpop.f32.mrb[0].mxu0
        %v10802 = vadd.f32 0.0, %v10801
        %v10803 = vpop.f32.mrb[0].mxu0
        %v10804 = vadd.f32 0.0, %v10803
        %v10805 = vpop.f32.mrb[0].mxu0
        %v10806 = vpop.f32.mrb[0].mxu0
        %10807 = vdwg.mxu0
        %10808 = vmatprep.subr.bf16.mxu0 %v10632
        %10809 = vmatpush1.bf16.msra.mxu0 %v10631
        %10810 = vmatprep.subr.bf16.mxu0 %v10637
        %10811 = vmatpush1.bf16.msra.mxu0 %v10636
        %10812 = vmatprep.subr.bf16.mxu0 %v10642
        %10813 = vmatpush1.bf16.msra.mxu0 %v10641
        %10814 = vmatprep.subr.bf16.mxu0 %v10647
        %10815 = vmatpush1.bf16.msra.mxu0 %v10646
        %10816 = vmatprep.subr.bf16.mxu0 0
        %10817 = vmatpush1.bf16.msra.mxu0 0
        %10818 = vmatprep.subr.bf16.mxu0 0
        %10819 = vmatpush1.bf16.msra.mxu0 0
        %10820 = vmatprep.subr.bf16.mxu0 0
        %10821 = vmatpush1.bf16.msra.mxu0 0
        %10822 = vmatprep.subr.bf16.mxu0 0
        %10823 = vmatpush1.bf16.msra.mxu0 0
        %10824 = vmatprep.subr.bf16.mxu0 0
        %10825 = vmatpush1.bf16.msra.mxu0 0
        %10826 = vmatprep.subr.bf16.mxu0 0
        %10827 = vmatpush1.bf16.msra.mxu0 0
        %10828 = vmatprep.subr.bf16.mxu0 0
        %10829 = vmatpush1.bf16.msra.mxu0 0
        %10830 = vmatprep.subr.bf16.mxu0 0
        %10831 = vmatpush1.bf16.msra.mxu0 0
        %10832 = vmatprep.subr.bf16.mxu0 0
        %10833 = vmatpush1.bf16.msra.mxu0 0
        %10834 = vmatprep.subr.bf16.mxu0 0
        %10835 = vmatpush1.bf16.msra.mxu0 0
        %10836 = vmatprep.subr.bf16.mxu0 0
        %10837 = vmatpush1.bf16.msra.mxu0 0
        %10838 = vmatprep.subr.bf16.mxu0 0
        %10839 = vmatpush1.bf16.msra.mxu0 0
        %10840 = vmatprep.mubr.bf16.mxu0 0
        %10841 = vmatmul.mubr.bf16.gmra.mrb[0].mxu0 %v10752
        %v10842 = vpop.f32.mrb[0].mxu0
        %v10843 = vadd.f32 %v10792, %v10842
        %v10844 = vpop.f32.mrb[0].mxu0
        %v10845 = vadd.f32 %v10794, %v10844
        %v10846 = vpop.f32.mrb[0].mxu0
        %v10847 = vadd.f32 %v10796, %v10846
        %v10848 = vpop.f32.mrb[0].mxu0
        %v10849 = vadd.f32 %v10798, %v10848
        %10850 = vmatprep.mubr.bf16.mxu0 0
        %10851 = vmatmul.mubr.bf16.gmra.mrb[0].mxu0 %v10755
        %v10852 = vpop.f32.mrb[0].mxu0
        %v10853 = vadd.f32 %v10802, %v10852
        %v10854 = vpop.f32.mrb[0].mxu0
        %v10855 = vadd.f32 %v10804, %v10854
        %v10856 = vpop.f32.mrb[0].mxu0
        %v10857 = vpop.f32.mrb[0].mxu0
        %10858 = vdwg.mxu0
        %10859 = vmatprep.subr.bf16.mxu0 %v10554
        %10860 = vmatpush1.bf16.msra.mxu0 %v10553
        %10861 = vmatprep.subr.bf16.mxu0 %v10559
        %10862 = vmatpush1.bf16.msra.mxu0 %v10558
        %10863 = vmatprep.subr.bf16.mxu0 %v10564
        %10864 = vmatpush1.bf16.msra.mxu0 %v10563
        %10865 = vmatprep.subr.bf16.mxu0 %v10569
        %10866 = vmatpush1.bf16.msra.mxu0 %v10568
        %10867 = vmatprep.subr.bf16.mxu0 %v10574
        %10868 = vmatpush1.bf16.msra.mxu0 %v10573
        %10869 = vmatprep.subr.bf16.mxu0 %v10579
        %10870 = vmatpush1.bf16.msra.mxu0 %v10578
        %10871 = vmatprep.subr.bf16.mxu0 %v10584
        %10872 = vmatpush1.bf16.msra.mxu0 %v10583
        %10873 = vmatprep.subr.bf16.mxu0 %v10589
        %10874 = vmatpush1.bf16.msra.mxu0 %v10588
        %10875 = vmatprep.subr.bf16.mxu0 %v10594
        %10876 = vmatpush1.bf16.msra.mxu0 %v10593
        %10877 = vmatprep.subr.bf16.mxu0 %v10599
        %10878 = vmatpush1.bf16.msra.mxu0 %v10598
        %10879 = vmatprep.subr.bf16.mxu0 %v10604
        %10880 = vmatpush1.bf16.msra.mxu0 %v10603
        %10881 = vmatprep.subr.bf16.mxu0 %v10609
        %10882 = vmatpush1.bf16.msra.mxu0 %v10608
        %10883 = vmatprep.subr.bf16.mxu0 %v10614
        %10884 = vmatpush1.bf16.msra.mxu0 %v10613
        %10885 = vmatprep.subr.bf16.mxu0 %v10619
        %10886 = vmatpush1.bf16.msra.mxu0 %v10618
        %10887 = vmatprep.subr.bf16.mxu0 %v10624
        %10888 = vmatpush1.bf16.msra.mxu0 %v10623
        %10889 = vmatprep.subr.bf16.mxu0 %v10629
        %10890 = vmatpush1.bf16.msra.mxu0 %v10628
        %10891 = vmatprep.mubr.bf16.mxu0 %v10224
        %10892 = vmatmul.mubr.bf16.gmra.mrb[0].mxu0 %v10223
        %v10893 = vpop.f32.mrb[0].mxu0
        %v10894 = vadd.f32 0.0, %v10893
        %v10895 = vpop.f32.mrb[0].mxu0
        %v10896 = vadd.f32 0.0, %v10895
        %v10897 = vpop.f32.mrb[0].mxu0
        %v10898 = vadd.f32 0.0, %v10897
        %v10899 = vpop.f32.mrb[0].mxu0
        %v10900 = vadd.f32 0.0, %v10899
        %10901 = vmatprep.mubr.bf16.mxu0 %v10226
        %10902 = vmatmul.mubr.bf16.gmra.mrb[0].mxu0 %v10225
        %v10903 = vpop.f32.mrb[0].mxu0
        %v10904 = vadd.f32 0.0, %v10903
        %v10905 = vpop.f32.mrb[0].mxu0
        %v10906 = vadd.f32 0.0, %v10905
        %v10907 = vpop.f32.mrb[0].mxu0
        %v10908 = vpop.f32.mrb[0].mxu0
        %10909 = vdwg.mxu0
        %10910 = vmatprep.subr.bf16.mxu0 %v10634
        %10911 = vmatpush1.bf16.msra.mxu0 %v10633
        %10912 = vmatprep.subr.bf16.mxu0 %v10639
        %10913 = vmatpush1.bf16.msra.mxu0 %v10638
        %10914 = vmatprep.subr.bf16.mxu0 %v10644
        %10915 = vmatpush1.bf16.msra.mxu0 %v10643
        %10916 = vmatprep.subr.bf16.mxu0 %v10649
        %10917 = vmatpush1.bf16.msra.mxu0 %v10648
        %10918 = vmatprep.subr.bf16.mxu0 0
        %10919 = vmatpush1.bf16.msra.mxu0 0
        %10920 = vmatprep.subr.bf16.mxu0 0
        %10921 = vmatpush1.bf16.msra.mxu0 0
        %10922 = vmatprep.subr.bf16.mxu0 0
        %10923 = vmatpush1.bf16.msra.mxu0 0
        %10924 = vmatprep.subr.bf16.mxu0 0
        %10925 = vmatpush1.bf16.msra.mxu0 0
        %10926 = vmatprep.subr.bf16.mxu0 0
        %10927 = vmatpush1.bf16.msra.mxu0 0
        %10928 = vmatprep.subr.bf16.mxu0 0
        %10929 = vmatpush1.bf16.msra.mxu0 0
        %10930 = vmatprep.subr.bf16.mxu0 0
        %10931 = vmatpush1.bf16.msra.mxu0 0
        %10932 = vmatprep.subr.bf16.mxu0 0
        %10933 = vmatpush1.bf16.msra.mxu0 0
        %10934 = vmatprep.subr.bf16.mxu0 0
        %10935 = vmatpush1.bf16.msra.mxu0 0
        %10936 = vmatprep.subr.bf16.mxu0 0
        %10937 = vmatpush1.bf16.msra.mxu0 0
        %10938 = vmatprep.subr.bf16.mxu0 0
        %10939 = vmatpush1.bf16.msra.mxu0 0
        %10940 = vmatprep.subr.bf16.mxu0 0
        %10941 = vmatpush1.bf16.msra.mxu0 0
        %10942 = vmatprep.mubr.bf16.mxu0 0
        %10943 = vmatmul.mubr.bf16.gmra.mrb[0].mxu0 %v10752
        %v10944 = vpop.f32.mrb[0].mxu0
        %v10945 = vadd.f32 %v10894, %v10944
        %v10946 = vpop.f32.mrb[0].mxu0
        %v10947 = vadd.f32 %v10896, %v10946
        %v10948 = vpop.f32.mrb[0].mxu0
        %v10949 = vadd.f32 %v10898, %v10948
        %v10950 = vpop.f32.mrb[0].mxu0
        %v10951 = vadd.f32 %v10900, %v10950
        %10952 = vmatprep.mubr.bf16.mxu0 0
        %10953 = vmatmul.mubr.bf16.gmra.mrb[0].mxu0 %v10755
        %v10954 = vpop.f32.mrb[0].mxu0
        %v10955 = vadd.f32 %v10904, %v10954
        %v10956 = vpop.f32.mrb[0].mxu0
        %v10957 = vadd.f32 %v10906, %v10956
        %v10958 = vpop.f32.mrb[0].mxu0
        %v10959 = vpop.f32.mrb[0].mxu0
        %10960 = vdwg.mxu0
        %10961 = vmatprep.subr.bf16.mxu0 0
        %10962 = vmatpush1.bf16.msra.mxu0 %v10555
        %10963 = vmatprep.subr.bf16.mxu0 0
        %10964 = vmatpush1.bf16.msra.mxu0 %v10560
        %10965 = vmatprep.subr.bf16.mxu0 0
        %10966 = vmatpush1.bf16.msra.mxu0 %v10565
        %10967 = vmatprep.subr.bf16.mxu0 0
        %10968 = vmatpush1.bf16.msra.mxu0 %v10570
        %10969 = vmatprep.subr.bf16.mxu0 0
        %10970 = vmatpush1.bf16.msra.mxu0 %v10575
        %10971 = vmatprep.subr.bf16.mxu0 0
        %10972 = vmatpush1.bf16.msra.mxu0 %v10580
        %10973 = vmatprep.subr.bf16.mxu0 0
        %10974 = vmatpush1.bf16.msra.mxu0 %v10585
        %10975 = vmatprep.subr.bf16.mxu0 0
        %10976 = vmatpush1.bf16.msra.mxu0 %v10590
        %10977 = vmatprep.subr.bf16.mxu0 0
        %10978 = vmatpush1.bf16.msra.mxu0 %v10595
        %10979 = vmatprep.subr.bf16.mxu0 0
        %10980 = vmatpush1.bf16.msra.mxu0 %v10600
        %10981 = vmatprep.subr.bf16.mxu0 0
        %10982 = vmatpush1.bf16.msra.mxu0 %v10605
        %10983 = vmatprep.subr.bf16.mxu0 0
        %10984 = vmatpush1.bf16.msra.mxu0 %v10610
        %10985 = vmatprep.subr.bf16.mxu0 0
        %10986 = vmatpush1.bf16.msra.mxu0 %v10615
        %10987 = vmatprep.subr.bf16.mxu0 0
        %10988 = vmatpush1.bf16.msra.mxu0 %v10620
        %10989 = vmatprep.subr.bf16.mxu0 0
        %10990 = vmatpush1.bf16.msra.mxu0 %v10625
        %10991 = vmatprep.subr.bf16.mxu0 0
        %10992 = vmatpush1.bf16.msra.mxu0 %v10630
        %10993 = vmatprep.mubr.bf16.mxu0 %v10224
        %10994 = vmatmul.mubr.bf16.gmra.mrb[0].mxu0 %v10223
        %v10995 = vpop.f32.mrb[0].mxu0
        %v10996 = vadd.f32 0.0, %v10995
        %v10997 = vpop.f32.mrb[0].mxu0
        %v10998 = vpop.f32.mrb[0].mxu0
        %v10999 = vadd.f32 0.0, %v10998
        %v11000 = vpop.f32.mrb[0].mxu0
        %11001 = vmatprep.mubr.bf16.mxu0 %v10226
        %11002 = vmatmul.mubr.bf16.gmra.mrb[0].mxu0 %v10225
        %v11003 = vpop.f32.mrb[0].mxu0
        %v11004 = vadd.f32 0.0, %v11003
        %v11005 = vpop.f32.mrb[0].mxu0
        %v11006 = vpop.f32.mrb[0].mxu0
        %v11007 = vpop.f32.mrb[0].mxu0
        %11008 = vdwg.mxu0
        %11009 = vmatprep.subr.bf16.mxu0 0
        %11010 = vmatpush1.bf16.msra.mxu0 %v10635
        %11011 = vmatprep.subr.bf16.mxu0 0
        %11012 = vmatpush1.bf16.msra.mxu0 %v10640
        %11013 = vmatprep.subr.bf16.mxu0 0
        %11014 = vmatpush1.bf16.msra.mxu0 %v10645
        %11015 = vmatprep.subr.bf16.mxu0 0
        %11016 = vmatpush1.bf16.msra.mxu0 %v10650
        %11017 = vmatprep.subr.bf16.mxu0 0
        %11018 = vmatpush1.bf16.msra.mxu0 0
        %11019 = vmatprep.subr.bf16.mxu0 0
        %11020 = vmatpush1.bf16.msra.mxu0 0
        %11021 = vmatprep.subr.bf16.mxu0 0
        %11022 = vmatpush1.bf16.msra.mxu0 0
        %11023 = vmatprep.subr.bf16.mxu0 0
        %11024 = vmatpush1.bf16.msra.mxu0 0
        %11025 = vmatprep.subr.bf16.mxu0 0
        %11026 = vmatpush1.bf16.msra.mxu0 0
        %11027 = vmatprep.subr.bf16.mxu0 0
        %11028 = vmatpush1.bf16.msra.mxu0 0
        %11029 = vmatprep.subr.bf16.mxu0 0
        %11030 = vmatpush1.bf16.msra.mxu0 0
        %11031 = vmatprep.subr.bf16.mxu0 0
        %11032 = vmatpush1.bf16.msra.mxu0 0
        %11033 = vmatprep.subr.bf16.mxu0 0
        %11034 = vmatpush1.bf16.msra.mxu0 0
        %11035 = vmatprep.subr.bf16.mxu0 0
        %11036 = vmatpush1.bf16.msra.mxu0 0
        %11037 = vmatprep.subr.bf16.mxu0 0
        %11038 = vmatpush1.bf16.msra.mxu0 0
        %11039 = vmatprep.subr.bf16.mxu0 0
        %11040 = vmatpush1.bf16.msra.mxu0 0
        %11041 = vmatprep.mubr.bf16.mxu0 0
        %11042 = vmatmul.mubr.bf16.gmra.mrb[0].mxu0 %v10752
        %v11043 = vpop.f32.mrb[0].mxu0
        %v11044 = vadd.f32 %v10996, %v11043
        %v11045 = vpop.f32.mrb[0].mxu0
        %v11046 = vpop.f32.mrb[0].mxu0
        %v11047 = vadd.f32 %v10999, %v11046
        %v11048 = vpop.f32.mrb[0].mxu0
        %11049 = vmatprep.mubr.bf16.mxu0 0
        %11050 = vmatmul.mubr.bf16.gmra.mrb[0].mxu0 %v10755
        %v11051 = vpop.f32.mrb[0].mxu0
        %v11052 = vadd.f32 %v11004, %v11051
        %v11053 = vpop.f32.mrb[0].mxu0
        %v11054 = vpop.f32.mrb[0].mxu0
        %v11055 = vpop.f32.mrb[0].mxu0
        %11056 = vdwg.mxu0
        %v11057 = vadd.f32 %v10075, %v10843
        %v11058 = vadd.f32 %v10076, %v10845
        %v11059 = vadd.f32 %v10077, %v10945
        %v11060 = vadd.f32 %v10078, %v10947
        %v11061 = vadd.f32 %v10079, %v11044
        %v11062 = vadd.f32 %v10080, %v10847
        %v11063 = vadd.f32 %v10081, %v10849
        %v11064 = vadd.f32 %v10082, %v10949
        %v11065 = vadd.f32 %v10083, %v10951
        %v11066 = vadd.f32 %v10084, %v11047
        %v11067 = vadd.f32 %v10085, %v10853
        %v11068 = vadd.f32 %v10086, %v10855
        %v11069 = vadd.f32 %v10087, %v10955
        %v11070 = vadd.f32 %v10088, %v10957
        %v11071 = vadd.f32 %v10089, %v11052
        %v11072 = vld [vmem:[#allocation9] sm:$0x1f]
        %v11074 = vlaneseq
        %v11075 = vshrl.u32 %v11074, 7
        %v11076 = vsub.s32 0, %v11075
        %v11077 = vrot.slane %v11072, %v11076
        %v11078 = vlaneseq
        %v11079 = vshrl.u32 %v11078, 7
        %v11080 = vsub.s32 1, %v11079
        %v11081 = vrot.slane %v11072, %v11080
        %v11082 = vlaneseq
        %v11083 = vshrl.u32 %v11082, 7
        %v11084 = vsub.s32 2, %v11083
        %v11085 = vrot.slane %v11072, %v11084
        %v11086 = vlaneseq
        %v11087 = vshrl.u32 %v11086, 7
        %v11088 = vsub.s32 3, %v11087
        %v11089 = vrot.slane %v11072, %v11088
        %v11090 = vlaneseq
        %v11091 = vshrl.u32 %v11090, 7
        %v11092 = vsub.s32 4, %v11091
        %v11093 = vrot.slane %v11072, %v11092
        %v11099 = vadd.f32 %v11057, %v11077
        %v11100 = vadd.f32 %v11058, %v11081
        %v11101 = vadd.f32 %v11059, %v11085
        %v11102 = vadd.f32 %v11060, %v11089
        %v11103 = vadd.f32 %v11061, %v11093
        %v11104 = vadd.f32 %v11062, %v11077
        %v11105 = vadd.f32 %v11063, %v11081
        %v11106 = vadd.f32 %v11064, %v11085
        %v11107 = vadd.f32 %v11065, %v11089
        %v11108 = vadd.f32 %v11066, %v11093
        %v11109 = vadd.f32 %v11067, %v11077
        %v11110 = vadd.f32 %v11068, %v11081
        %v11111 = vadd.f32 %v11069, %v11085
        %v11112 = vadd.f32 %v11070, %v11089
        %v11113 = vadd.f32 %v11071, %v11093
        %v11114 = vmax.f32 %v11099, 0.0
        %v11115 = vmax.f32 %v11100, 0.0
        %v11116 = vmax.f32 %v11101, 0.0
        %v11117 = vmax.f32 %v11102, 0.0
        %v11118 = vmax.f32 %v11103, 0.0
        %v11119 = vmax.f32 %v11104, 0.0
        %v11120 = vmax.f32 %v11105, 0.0
        %v11121 = vmax.f32 %v11106, 0.0
        %v11122 = vmax.f32 %v11107, 0.0
        %v11123 = vmax.f32 %v11108, 0.0
        %v11124 = vmax.f32 %v11109, 0.0
        %v11125 = vmax.f32 %v11110, 0.0
        %v11126 = vmax.f32 %v11111, 0.0
        %v11127 = vmax.f32 %v11112, 0.0
        %v11128 = vmax.f32 %v11113, 0.0
        %v11129 = vlaneseq
        %v11130 = vand.u32 %v11129, 127
        %v11131 = vld [vmem:[#allocation11] sm:$0x1]
        %v11132 = vld [vmem:[%s5] sm:$0xff]
        %v11133 = vld [vmem:[%s5 + $0x8] sm:$0xff]
        %v11134 = vld [vmem:[%s5 + $0x10] sm:$0xff]
        %v11135 = vld [vmem:[%s5 + $0x18] sm:$0xff]
        %v11136 = vld [vmem:[%s5 + $0x20] sm:$0xff]
        %v11137 = vld [vmem:[%s5 + $0x28] sm:$0xff]
        %v11138 = vld [vmem:[%s5 + $0x30] sm:$0xff]
        %v11139 = vld [vmem:[%s5 + $0x38] sm:$0xff]
        %v11140 = vld [vmem:[%s5 + $0x40] sm:$0xff]
        %v11141 = vld [vmem:[%s5 + $0x48] sm:$0xff]
        %v11142 = vld [vmem:[%s5 + $0x50] sm:$0xf]
        %v11143 = vld [vmem:[%s5 + $0x58] sm:$0xf]
        %v11144 = vld [vmem:[%s5 + $0x60] sm:$0xf]
        %v11145 = vld [vmem:[%s5 + $0x68] sm:$0xf]
        %v11146 = vld [vmem:[%s5 + $0x70] sm:$0xf]
        %v11147 = vmul.f32 %v11114, %v11132
        %v11148 = vmul.f32 %v11115, %v11133
        %v11149 = vmul.f32 %v11116, %v11134
        %v11150 = vmul.f32 %v11117, %v11135
        %v11151 = vmul.f32 %v11118, %v11136
        %v11152 = vmul.f32 %v11119, %v11137
        %v11153 = vmul.f32 %v11120, %v11138
        %v11154 = vmul.f32 %v11121, %v11139
        %v11155 = vmul.f32 %v11122, %v11140
        %v11156 = vmul.f32 %v11123, %v11141
        %v11157 = vmul.f32 %v11124, %v11142
        %v11158 = vmul.f32 %v11125, %v11143
        %v11159 = vmul.f32 %v11126, %v11144
        %v11160 = vmul.f32 %v11127, %v11145
        %v11161 = vmul.f32 %v11128, %v11146
        %v11162 = vadd.f32 %v11147, %v11148
        %v11163 = vadd.f32 %v11162, %v11149
        %v11164 = vadd.f32 %v11163, %v11150
        %v11165 = vadd.f32 %v11164, %v11151
        %11166 = vadd.xlane.f32.xlu0 %v11165
        %v11167 = vpop.xlane.xlu0 %11166
        %v11168 = vadd.f32 %v11152, %v11153
        %v11169 = vadd.f32 %v11168, %v11154
        %v11170 = vadd.f32 %v11169, %v11155
        %v11171 = vadd.f32 %v11170, %v11156
        %11172 = vadd.xlane.f32.xlu0 %v11171
        %v11173 = vpop.xlane.xlu0 %11172
        %vm11174 = vcmask 1043456
        %v11175 = vsel %vm11174, %v11157, 0.0
        %v11176 = vsel %vm11174, %v11158, 0.0
        %v11177 = vadd.f32 %v11175, %v11176
        %v11178 = vsel %vm11174, %v11159, 0.0
        %v11179 = vadd.f32 %v11177, %v11178
        %v11180 = vsel %vm11174, %v11160, 0.0
        %v11181 = vadd.f32 %v11179, %v11180
        %v11182 = vsel %vm11174, %v11161, 0.0
        %v11183 = vadd.f32 %v11181, %v11182
        %11184 = vadd.xlane.f32.xlu0 %v11183
        %v11185 = vpop.xlane.xlu0 %11184
        %v11186 = vadd.f32 %v11167, %v11173
        %v11187 = vsel %vm11174, %v11185, 0.0
        %v11188 = vadd.f32 %v11186, %v11187
        %v11189 = vrot.slane %v11188, 4
        %v11190 = vadd.f32 %v11188, %v11189
        %v11191 = vrot.slane %v11190, 2
        %v11192 = vadd.f32 %v11190, %v11191
        %v11193 = vrot.slane %v11192, 1
        %v11194 = vadd.f32 %v11192, %v11193
        %vm11195 = vcmp.eq.s32.totalorder %v11130, 0
        %v11196 = vsel %vm11195, 1, 0
        %v11197 = vcvt.s32.f32 %v11196
        %v11198 = vmul.f32 %v11194, %v11197
        %v11199 = vadd.f32 %v11131, %v11198
        %s11200 = scalar_lea.vmem %s5, 120
        %v11201 = vld [vmem:[%s11200] sm:$0xff]
        %v11202 = vld [vmem:[%s11200 + $0x8] sm:$0xff]
        %v11203 = vld [vmem:[%s11200 + $0x10] sm:$0xff]
        %v11204 = vld [vmem:[%s11200 + $0x18] sm:$0xff]
        %v11205 = vld [vmem:[%s11200 + $0x20] sm:$0xff]
        %v11206 = vld [vmem:[%s11200 + $0x28] sm:$0xff]
        %v11207 = vld [vmem:[%s11200 + $0x30] sm:$0xff]
        %v11208 = vld [vmem:[%s11200 + $0x38] sm:$0xff]
        %v11209 = vld [vmem:[%s11200 + $0x40] sm:$0xff]
        %v11210 = vld [vmem:[%s11200 + $0x48] sm:$0xff]
        %v11211 = vld [vmem:[%s11200 + $0x50] sm:$0xf]
        %v11212 = vld [vmem:[%s11200 + $0x58] sm:$0xf]
        %v11213 = vld [vmem:[%s11200 + $0x60] sm:$0xf]
        %v11214 = vld [vmem:[%s11200 + $0x68] sm:$0xf]
        %v11215 = vld [vmem:[%s11200 + $0x70] sm:$0xf]
        %v11216 = vmul.f32 %v11114, %v11201
        %v11217 = vmul.f32 %v11115, %v11202
        %v11218 = vmul.f32 %v11116, %v11203
        %v11219 = vmul.f32 %v11117, %v11204
        %v11220 = vmul.f32 %v11118, %v11205
        %v11221 = vmul.f32 %v11119, %v11206
        %v11222 = vmul.f32 %v11120, %v11207
        %v11223 = vmul.f32 %v11121, %v11208
        %v11224 = vmul.f32 %v11122, %v11209
        %v11225 = vmul.f32 %v11123, %v11210
        %v11226 = vmul.f32 %v11124, %v11211
        %v11227 = vmul.f32 %v11125, %v11212
        %v11228 = vmul.f32 %v11126, %v11213
        %v11229 = vmul.f32 %v11127, %v11214
        %v11230 = vmul.f32 %v11128, %v11215
        %v11231 = vadd.f32 %v11216, %v11217
        %v11232 = vadd.f32 %v11231, %v11218
        %v11233 = vadd.f32 %v11232, %v11219
        %v11234 = vadd.f32 %v11233, %v11220
        %11235 = vadd.xlane.f32.xlu0 %v11234
        %v11236 = vpop.xlane.xlu0 %11235
        %v11237 = vadd.f32 %v11221, %v11222
        %v11238 = vadd.f32 %v11237, %v11223
        %v11239 = vadd.f32 %v11238, %v11224
        %v11240 = vadd.f32 %v11239, %v11225
        %11241 = vadd.xlane.f32.xlu0 %v11240
        %v11242 = vpop.xlane.xlu0 %11241
        %v11243 = vsel %vm11174, %v11226, 0.0
        %v11244 = vsel %vm11174, %v11227, 0.0
        %v11245 = vadd.f32 %v11243, %v11244
        %v11246 = vsel %vm11174, %v11228, 0.0
        %v11247 = vadd.f32 %v11245, %v11246
        %v11248 = vsel %vm11174, %v11229, 0.0
        %v11249 = vadd.f32 %v11247, %v11248
        %v11250 = vsel %vm11174, %v11230, 0.0
        %v11251 = vadd.f32 %v11249, %v11250
        %11252 = vadd.xlane.f32.xlu0 %v11251
        %v11253 = vpop.xlane.xlu0 %11252
        %v11254 = vadd.f32 %v11236, %v11242
        %v11255 = vsel %vm11174, %v11253, 0.0
        %v11256 = vadd.f32 %v11254, %v11255
        %v11257 = vrot.slane %v11256, 4
        %v11258 = vadd.f32 %v11256, %v11257
        %v11259 = vrot.slane %v11258, 2
        %v11260 = vadd.f32 %v11258, %v11259
        %v11261 = vrot.slane %v11260, 1
        %v11262 = vadd.f32 %v11260, %v11261
        %vm11263 = vcmp.eq.s32.totalorder %v11130, 1
        %v11264 = vsel %vm11263, 1, 0
        %v11265 = vcvt.s32.f32 %v11264
        %v11266 = vmul.f32 %v11262, %v11265
        %v11267 = vadd.f32 %v11199, %v11266
        %s11268 = scalar_lea.vmem %s5, 240
        %v11269 = vld [vmem:[%s11268] sm:$0xff]
        %v11270 = vld [vmem:[%s11268 + $0x8] sm:$0xff]
        %v11271 = vld [vmem:[%s11268 + $0x10] sm:$0xff]
        %v11272 = vld [vmem:[%s11268 + $0x18] sm:$0xff]
        %v11273 = vld [vmem:[%s11268 + $0x20] sm:$0xff]
        %v11274 = vld [vmem:[%s11268 + $0x28] sm:$0xff]
        %v11275 = vld [vmem:[%s11268 + $0x30] sm:$0xff]
        %v11276 = vld [vmem:[%s11268 + $0x38] sm:$0xff]
        %v11277 = vld [vmem:[%s11268 + $0x40] sm:$0xff]
        %v11278 = vld [vmem:[%s11268 + $0x48] sm:$0xff]
        %v11279 = vld [vmem:[%s11268 + $0x50] sm:$0xf]
        %v11280 = vld [vmem:[%s11268 + $0x58] sm:$0xf]
        %v11281 = vld [vmem:[%s11268 + $0x60] sm:$0xf]
        %v11282 = vld [vmem:[%s11268 + $0x68] sm:$0xf]
        %v11283 = vld [vmem:[%s11268 + $0x70] sm:$0xf]
        %v11284 = vmul.f32 %v11114, %v11269
        %v11285 = vmul.f32 %v11115, %v11270
        %v11286 = vmul.f32 %v11116, %v11271
        %v11287 = vmul.f32 %v11117, %v11272
        %v11288 = vmul.f32 %v11118, %v11273
        %v11289 = vmul.f32 %v11119, %v11274
        %v11290 = vmul.f32 %v11120, %v11275
        %v11291 = vmul.f32 %v11121, %v11276
        %v11292 = vmul.f32 %v11122, %v11277
        %v11293 = vmul.f32 %v11123, %v11278
        %v11294 = vmul.f32 %v11124, %v11279
        %v11295 = vmul.f32 %v11125, %v11280
        %v11296 = vmul.f32 %v11126, %v11281
        %v11297 = vmul.f32 %v11127, %v11282
        %v11298 = vmul.f32 %v11128, %v11283
        %v11299 = vadd.f32 %v11284, %v11285
        %v11300 = vadd.f32 %v11299, %v11286
        %v11301 = vadd.f32 %v11300, %v11287
        %v11302 = vadd.f32 %v11301, %v11288
        %11303 = vadd.xlane.f32.xlu0 %v11302
        %v11304 = vpop.xlane.xlu0 %11303
        %v11305 = vadd.f32 %v11289, %v11290
        %v11306 = vadd.f32 %v11305, %v11291
        %v11307 = vadd.f32 %v11306, %v11292
        %v11308 = vadd.f32 %v11307, %v11293
        %11309 = vadd.xlane.f32.xlu0 %v11308
        %v11310 = vpop.xlane.xlu0 %11309
        %v11311 = vsel %vm11174, %v11294, 0.0
        %v11312 = vsel %vm11174, %v11295, 0.0
        %v11313 = vadd.f32 %v11311, %v11312
        %v11314 = vsel %vm11174, %v11296, 0.0
        %v11315 = vadd.f32 %v11313, %v11314
        %v11316 = vsel %vm11174, %v11297, 0.0
        %v11317 = vadd.f32 %v11315, %v11316
        %v11318 = vsel %vm11174, %v11298, 0.0
        %v11319 = vadd.f32 %v11317, %v11318
        %11320 = vadd.xlane.f32.xlu0 %v11319
        %v11321 = vpop.xlane.xlu0 %11320
        %v11322 = vadd.f32 %v11304, %v11310
        %v11323 = vsel %vm11174, %v11321, 0.0
        %v11324 = vadd.f32 %v11322, %v11323
        %v11325 = vrot.slane %v11324, 4
        %v11326 = vadd.f32 %v11324, %v11325
        %v11327 = vrot.slane %v11326, 2
        %v11328 = vadd.f32 %v11326, %v11327
        %v11329 = vrot.slane %v11328, 1
        %v11330 = vadd.f32 %v11328, %v11329
        %vm11331 = vcmp.eq.s32.totalorder %v11130, 2
        %v11332 = vsel %vm11331, 1, 0
        %v11333 = vcvt.s32.f32 %v11332
        %v11334 = vmul.f32 %v11330, %v11333
        %v11335 = vadd.f32 %v11267, %v11334
        %s11336 = scalar_lea.vmem %s5, 360
        %v11337 = vld [vmem:[%s11336] sm:$0xff]
        %v11338 = vld [vmem:[%s11336 + $0x8] sm:$0xff]
        %v11339 = vld [vmem:[%s11336 + $0x10] sm:$0xff]
        %v11340 = vld [vmem:[%s11336 + $0x18] sm:$0xff]
        %v11341 = vld [vmem:[%s11336 + $0x20] sm:$0xff]
        %v11342 = vld [vmem:[%s11336 + $0x28] sm:$0xff]
        %v11343 = vld [vmem:[%s11336 + $0x30] sm:$0xff]
        %v11344 = vld [vmem:[%s11336 + $0x38] sm:$0xff]
        %v11345 = vld [vmem:[%s11336 + $0x40] sm:$0xff]
        %v11346 = vld [vmem:[%s11336 + $0x48] sm:$0xff]
        %v11347 = vld [vmem:[%s11336 + $0x50] sm:$0xf]
        %v11348 = vld [vmem:[%s11336 + $0x58] sm:$0xf]
        %v11349 = vld [vmem:[%s11336 + $0x60] sm:$0xf]
        %v11350 = vld [vmem:[%s11336 + $0x68] sm:$0xf]
        %v11351 = vld [vmem:[%s11336 + $0x70] sm:$0xf]
        %v11352 = vmul.f32 %v11114, %v11337
        %v11353 = vmul.f32 %v11115, %v11338
        %v11354 = vmul.f32 %v11116, %v11339
        %v11355 = vmul.f32 %v11117, %v11340
        %v11356 = vmul.f32 %v11118, %v11341
        %v11357 = vmul.f32 %v11119, %v11342
        %v11358 = vmul.f32 %v11120, %v11343
        %v11359 = vmul.f32 %v11121, %v11344
        %v11360 = vmul.f32 %v11122, %v11345
        %v11361 = vmul.f32 %v11123, %v11346
        %v11362 = vmul.f32 %v11124, %v11347
        %v11363 = vmul.f32 %v11125, %v11348
        %v11364 = vmul.f32 %v11126, %v11349
        %v11365 = vmul.f32 %v11127, %v11350
        %v11366 = vmul.f32 %v11128, %v11351
        %v11367 = vadd.f32 %v11352, %v11353
        %v11368 = vadd.f32 %v11367, %v11354
        %v11369 = vadd.f32 %v11368, %v11355
        %v11370 = vadd.f32 %v11369, %v11356
        %11371 = vadd.xlane.f32.xlu0 %v11370
        %v11372 = vpop.xlane.xlu0 %11371
        %v11373 = vadd.f32 %v11357, %v11358
        %v11374 = vadd.f32 %v11373, %v11359
        %v11375 = vadd.f32 %v11374, %v11360
        %v11376 = vadd.f32 %v11375, %v11361
        %11377 = vadd.xlane.f32.xlu0 %v11376
        %v11378 = vpop.xlane.xlu0 %11377
        %v11379 = vsel %vm11174, %v11362, 0.0
        %v11380 = vsel %vm11174, %v11363, 0.0
        %v11381 = vadd.f32 %v11379, %v11380
        %v11382 = vsel %vm11174, %v11364, 0.0
        %v11383 = vadd.f32 %v11381, %v11382
        %v11384 = vsel %vm11174, %v11365, 0.0
        %v11385 = vadd.f32 %v11383, %v11384
        %v11386 = vsel %vm11174, %v11366, 0.0
        %v11387 = vadd.f32 %v11385, %v11386
        %11388 = vadd.xlane.f32.xlu0 %v11387
        %v11389 = vpop.xlane.xlu0 %11388
        %v11390 = vadd.f32 %v11372, %v11378
        %v11391 = vsel %vm11174, %v11389, 0.0
        %v11392 = vadd.f32 %v11390, %v11391
        %v11393 = vrot.slane %v11392, 4
        %v11394 = vadd.f32 %v11392, %v11393
        %v11395 = vrot.slane %v11394, 2
        %v11396 = vadd.f32 %v11394, %v11395
        %v11397 = vrot.slane %v11396, 1
        %v11398 = vadd.f32 %v11396, %v11397
        %vm11399 = vcmp.eq.s32.totalorder %v11130, 3
        %v11400 = vsel %vm11399, 1, 0
        %v11401 = vcvt.s32.f32 %v11400
        %v11402 = vmul.f32 %v11398, %v11401
        %v11403 = vadd.f32 %v11335, %v11402
        %vm11404 = vcmask 24576
        %v11405 = vsel %vm11404, %v11403, -inf
        %11406 = vmax.xlane.f32.xlu0 %v11405
        %v11407 = vpop.xlane.xlu0 %11406
        %v11408 = vsub.f32 %v11403, %v11407
        %v11409 = vmul.f32 %v11408, 1.442695
        %v11410 = vpow.pop %v11409
        %v11411 = vsel %vm11404, %v11410, 0.0
        %11412 = vadd.xlane.f32.xlu0 %v11411
        %v11413 = vpop.xlane.xlu0 %11412
        %v11414 = vrcp.pop %v11413
        %v11415 = vmul.f32 %v11410, %v11414
        %11416 = vst.msk [vmem:[%s337] sm:$0x1] %vm11404, %v11415
        %s11417 = sand.u32 %s184, 1
        %s11418 = scalar_lea.sflag [#allocation5], %s11417
        %s11419 = sand.u32 %s184, 1
        %s11420 = scalar_lea.vmem [#allocation12], %s11419
        // Predicated region
        $region69: #{policy_gradient_forward.1} parent=47 // pred_check
          %p11421 = pneg %p194
        $region70: #{policy_gradient_forward.1} parent=47 // pred_check_branch
          %11423 = sbr.rel (%p11421) target = $region72
        $region71: #{policy_gradient_forward.1} parent=47 // pred_region
          %s11425 = ssub.s32 16, 16
          %11426 = vsyncadd %s11418, %s11425
          %s11427 = smul.addr %s24, 16
          %s11428 = scalar_lea.hbm %s7, %s11427
          %s11430 = sshll.u32 %s11420, 4
          %s11431 = int_to_ptr.vmem [resolvable:$true] %s11430
          %11433 = dma.vmem_to_hbm [thread:$0]  %s11431, 16, %s11428, %s11418
        $region72: #{policy_gradient_forward.1} parent=47 // pred_fallthru
          _
      $region48: #{policy_gradient_forward.1} parent=5 // pred_fallthru
        _
      %p11434 = scmp.le.s32.totalorder 2, %s19
      // Predicated region
      $region73: #{policy_gradient_forward.1} parent=5 // pred_check
        %p11435 = pneg %p11434
      $region74: #{policy_gradient_forward.1} parent=5 // pred_check_branch
        %11437 = sbr.rel (%p11435) target = $region76
      $region75: #{policy_gradient_forward.1} parent=5 // pred_region
        %s11438 = ssub.s32 %s19, 2
        // Predicated region
        $region77: #{policy_gradient_forward.1} parent=75 // pred_check
          %p11439 = pneg %p200
        $region78: #{policy_gradient_forward.1} parent=75 // pred_check_branch
          %11441 = sbr.rel (%p11439) target = $region80
        $region79: #{policy_gradient_forward.1} parent=75 // pred_region
          %s11442 = sand.u32 %s185, 1
          %s11443 = scalar_lea.sflag [#allocation5], %s11442
          %s11444 = sand.u32 %s185, 1
          %s11445 = scalar_lea.vmem [#allocation12], %s11444
          %11446 = dma.done %s11443, 16
        $region80: #{policy_gradient_forward.1} parent=75 // pred_fallthru
          _
      $region76: #{policy_gradient_forward.1} parent=5 // pred_fallthru
        _
    $region6: #{policy_gradient_forward.1} parent=1 // loop_footer
      %s23 = sadd.s32 1, %s19
    $region7: #{policy_gradient_forward.1} parent=1 // loop_footer_branch
      %18 = sbr.rel target = $region3
    $region8: #{policy_gradient_forward.1} parent=1 // loop_exit
      _
    %11447 = vsyncpa [#allocation4], 1
    %s11448 = scalar_lea.sflag [#allocation4], 1
    %11449 = vsyncpa %s11448, 1
    %11450 = vsyncpa [#allocation7], 1
    %11451 = vsyncpa [#allocation10], 1
    %11452 = vsyncpa [#allocation5], 1
    %s11453 = scalar_lea.sflag [#allocation5], 1
    %11454 = vsyncpa %s11453, 1

</llo_original>
